<compile_context>
chip_gen: v7x
topology: tpu7x:2x2x1
jax: 0.10.0
libtpu: 0.0.40
codegen_flags: <defaults>
</compile_context>

<pallas_src>
import functools

import jax
import jax.numpy as jnp
from jax import lax
from jax.experimental import pallas as pl
from jax.experimental.pallas import tpu as pltpu

ENTMAX_ALPHA = 1.5   # entmax_bisect default (forward() passes alpha=None, which
                     # crashes the entmax package; we use the documented default).
ENTMAX_ITERS = 30    # dm halves every iteration; after ~30 halvings the tau
                     # update is below f32 resolution, so the package default of
                     # 50 iterations is numerically identical dead work.
LN_EPS = 1e-5


# ---------------------------------------------------------------------------
# Fused kernel: qkv proj -> windowed entmax attention -> LayerNorm -> o proj
# ---------------------------------------------------------------------------
def _fused_flash_kernel(x_ref, wqkv_ref, bqkv_ref, g_ref, bln_ref,
                        wo_ref, bo_ref, o_ref, acc_ref,
                        *, num_heads, head_dim, window):
    f32 = jnp.float32
    E = num_heads * head_dim
    R = x_ref.shape[0]
    Wb = R // window                       # windows per grid step (>= 1)

    # ---- QKV projection: MXU operands in native dtype, f32 accumulation.
    x = x_ref[...]
    qkv = jnp.dot(x, wqkv_ref[...], preferred_element_type=f32)
    qkv = qkv + bqkv_ref[...].astype(f32)
    qkv_lp = qkv.astype(x.dtype)           # low-precision view for tiny attn matmuls
                                           # (no-op when the model is f32)

    # scores * Dh^-0.5 * (alpha-1), folded into one post-matmul scale.
    score_scale = (head_dim ** -0.5) * (ENTMAX_ALPHA - 1.0)
    inv_n = (1.0 / window) ** (ENTMAX_ALPHA - 1.0)

    # ---- windowed entmax-1.5 attention, one head at a time.
    # Per-head q/k/v are static LANE slices of the qkv slab (free), windows are
    # batched along the dot_general batch dim -> no transposes/swapaxes.
    # TODO(synk): the per-head (W x Dh)x(Dh x W) matmuls are tiny; at these
    # window sizes the kernel is memory-bound so MXU under-utilization is not
    # the limiter.
    for h in range(num_heads):
        c = h * head_dim
        q = qkv_lp[:, 0 * E + c:0 * E + c + head_dim].reshape(Wb, window, head_dim)
        k = qkv_lp[:, 1 * E + c:1 * E + c + head_dim].reshape(Wb, window, head_dim)
        v = qkv_lp[:, 2 * E + c:2 * E + c + head_dim].reshape(Wb, window, head_dim)

        s = jnp.einsum('wqd,wkd->wqk', q, k, preferred_element_type=f32)
        X = s * score_scale                                 # (Wb, W, W), f32

        # entmax_bisect (alpha=1.5): p(t) = relu(X - t)^2, bisect tau so sum(p)=1.
        max_val = jnp.max(X, axis=-1, keepdims=True)
        tau_lo = max_val - 1.0
        tau_hi = max_val - inv_n
        f_lo = jnp.sum(jnp.square(jnp.maximum(X - tau_lo, 0.0)),
                       axis=-1, keepdims=True) - 1.0
        dm0 = tau_hi - tau_lo

        def body(_, carry, X=X, f_lo=f_lo):
            dm, tau_lo, _p = carry
            dm = dm * 0.5
            tau_m = tau_lo + dm
            p_m = jnp.square(jnp.maximum(X - tau_m, 0.0))
            f_m = jnp.sum(p_m, axis=-1, keepdims=True) - 1.0
            tau_lo = jnp.where(f_m * f_lo >= 0.0, tau_m, tau_lo)
            return dm, tau_lo, p_m

        # p_m is carried through the loop and reused directly (no recompute).
        _, _, p = lax.fori_loop(0, ENTMAX_ITERS, body,
                                (dm0, tau_lo, jnp.zeros_like(X)), unroll=True)
        p = p * pl.reciprocal(jnp.sum(p, axis=-1, keepdims=True), approx=True)

        o = jnp.einsum('wqk,wkd->wqd', p.astype(qkv_lp.dtype), v,
                       preferred_element_type=f32)
        # Head-major lane slice of the scratch: output already in (rows, E) layout.
        acc_ref[:, c:c + head_dim] = o.reshape(R, head_dim)

    # ---- LayerNorm (f32 statistics) fused with the output projection.
    a = acc_ref[...]
    mean = jnp.mean(a, axis=-1, keepdims=True)
    cen = a - mean
    var = jnp.mean(jnp.square(cen), axis=-1, keepdims=True)
    y = cen * lax.rsqrt(var + LN_EPS)
    y = y * g_ref[...].astype(f32) + bln_ref[...].astype(f32)
    out = jnp.dot(y.astype(wo_ref.dtype), wo_ref[...], preferred_element_type=f32)
    o_ref[...] = (out + bo_ref[...].astype(f32)).astype(o_ref.dtype)


# ---------------------------------------------------------------------------
# Wrapper
# ---------------------------------------------------------------------------
def _rows_per_step(S, W, E):
    """Largest multiple of W dividing S, capped so per-step slabs stay modest."""
    cap_rows = max(W, (4 * 1024 * 1024) // (16 * E))   # ~4 MiB for the f32 qkv slab
    target = min(S, 512, cap_rows)
    best = W
    r = W
    while r <= S:
        if S % r == 0 and r <= target:
            best = r
        r += W
    return best


def _vmem_limit_bytes(R, E, itemsize):
    """Derive the scoped-VMEM request from actual resident block sizes."""
    weights = (3 * E * E + E * E + 8 * E) * itemsize      # w_qkv + w_o + biases/LN
    acts = 2 * 2 * R * E * itemsize                       # double-buffered in/out
    scratch = R * E * 4                                   # attn accumulator
    temps = 2 * R * 3 * E * 4                             # qkv slab + headroom
    est = 2 * weights + acts + scratch + temps            # weights double-buffered
    cap = 128 * 1024 * 1024
    try:
        cap = pltpu.get_tpu_info().vmem_capacity_bytes     # 64 MiB on v7x
    except Exception:
        pass
    return int(min(max(2 * est, 32 * 1024 * 1024), cap))


@functools.partial(jax.jit, static_argnames=("num_heads", "attention_window"))
def flash_attention_forward(x, params, *, num_heads, attention_window):
    B, S, E = x.shape
    Dh = E // num_heads
    W = attention_window
    assert E % num_heads == 0
    assert S % W == 0, "example keeps seq divisible by attention_window"
    assert W % 8 == 0, "attention_window must be a multiple of 8"
    # TODO(synk): ragged last window (S % W != 0), span masking and per-head
    # tensor alpha variants of the PyTorch module are not implemented here.

    itemsize = jnp.dtype(x.dtype).itemsize
    row_align = 16 if itemsize == 2 else 8
    R = _rows_per_step(S, W, E)
    assert R % row_align == 0, "row chunk must match the sublane packing (bf16: 16)"

    BS = B * S
    x2d = x.reshape(BS, E)

    # One-time (tiny) weight-column permutation: PyTorch order (head,{q,k,v},Dh)
    # -> ([q|k|v], head, Dh), so q/k/v are contiguous head-major lane slabs.
    w_qkv = params["w_qkv"].reshape(E, num_heads, 3, Dh)
    w_qkv = jnp.transpose(w_qkv, (0, 2, 1, 3)).reshape(E, 3 * E)
    b_qkv = params["b_qkv"].reshape(num_heads, 3, Dh)
    b_qkv = jnp.transpose(b_qkv, (1, 0, 2)).reshape(1, 3 * E)

    out = pl.pallas_call(
        functools.partial(_fused_flash_kernel, num_heads=num_heads,
                          head_dim=Dh, window=W),
        out_shape=jax.ShapeDtypeStruct((BS, E), x.dtype),
        grid=(BS // R,),
        in_specs=[
            pl.BlockSpec((R, E), lambda i: (i, 0)),          # x rows
            pl.BlockSpec((E, 3 * E), lambda i: (0, 0)),      # w_qkv (resident)
            pl.BlockSpec((1, 3 * E), lambda i: (0, 0)),      # b_qkv
            pl.BlockSpec((1, E), lambda i: (0, 0)),          # ln gamma
            pl.BlockSpec((1, E), lambda i: (0, 0)),          # ln beta
            pl.BlockSpec((E, E), lambda i: (0, 0)),          # w_o (resident)
            pl.BlockSpec((1, E), lambda i: (0, 0)),          # b_o
        ],
        out_specs=pl.BlockSpec((R, E), lambda i: (i, 0)),
        scratch_shapes=[pltpu.VMEM((R, E), jnp.float32)],    # attn accumulator
        compiler_params=pltpu.CompilerParams(
            dimension_semantics=("parallel",),
            vmem_limit_bytes=_vmem_limit_bytes(R, E, itemsize)),
    )(x2d, w_qkv, b_qkv,
      params["ln_gamma"].reshape(1, E), params["ln_beta"].reshape(1, E),
      params["w_o"], params["b_o"].reshape(1, E))

    return out.reshape(B, S, E)


# ---------------------------------------------------------------------------
# Pure-JAX reference (original PyTorch layout, 50-iteration entmax, exact div)
# to validate the fused kernel.
# ---------------------------------------------------------------------------
def _entmax15_ref(s):
    am1 = ENTMAX_ALPHA - 1.0
    nk = s.shape[-1]
    X = s * am1
    max_val = jnp.max(X, axis=-1, keepdims=True)
    tau_lo = max_val - 1.0
    tau_hi = max_val - (1.0 / nk) ** am1
    f_lo = jnp.sum(jnp.maximum(X - tau_lo, 0.0) ** 2, -1, keepdims=True) - 1.0
    dm = tau_hi - tau_lo
    p_m = jnp.zeros_like(X)
    for _ in range(50):
        dm = dm * 0.5
        tau_m = tau_lo + dm
        p_m = jnp.maximum(X - tau_m, 0.0) ** 2
        f_m = jnp.sum(p_m, -1, keepdims=True) - 1.0
        tau_lo = jnp.where((f_m * f_lo) >= 0.0, tau_m, tau_lo)
    return p_m / jnp.sum(p_m, -1, keepdims=True)


def reference_forward(x, params, *, num_heads, attention_window):
    B, S, E = x.shape
    Dh = E // num_heads
    W = attention_window
    qkv = x.reshape(B * S, E) @ params["w_qkv"] + params["b_qkv"]
    qkv = qkv.reshape(B, S, num_heads, 3 * Dh).transpose(0, 2, 1, 3)
    q, k, v = jnp.split(qkv, 3, axis=-1)
    out = jnp.zeros_like(q)
    for i in range(0, S, W):
        qc, kc, vc = q[:, :, i:i + W], k[:, :, i:i + W], v[:, :, i:i + W]
        s = jnp.einsum("bhqd,bhkd->bhqk", qc, kc) / (Dh ** 0.5)
        p = _entmax15_ref(s)
        out = out.at[:, :, i:i + W].set(jnp.einsum("bhqk,bhkd->bhqd", p, vc))
    out = out.transpose(0, 2, 1, 3).reshape(B, S, E)
    mean = out.mean(-1, keepdims=True)
    var = ((out - mean) ** 2).mean(-1, keepdims=True)
    y = (out - mean) / jnp.sqrt(var + LN_EPS)
    y = y * params["ln_gamma"] + params["ln_beta"]
    return (y.reshape(B * S, E) @ params["w_o"] + params["b_o"]).reshape(B, S, E)


# ---------------------------------------------------------------------------
if __name__ == "__main__":
    B, S, E = 2, 16, 128
    NUM_HEADS = 4
    ATTN_WINDOW = 8

    key = jax.random.PRNGKey(0)
    kx, k1, k2, k3, k4 = jax.random.split(key, 5)

    params = {
        "w_qkv": jax.random.normal(k1, (E, 3 * E), jnp.float32) / jnp.sqrt(E),
        "b_qkv": jax.random.normal(k2, (3 * E,), jnp.float32) * 0.02,
        "w_o":   jax.random.normal(k3, (E, E), jnp.float32) / jnp.sqrt(E),
        "b_o":   jax.random.normal(k4, (E,), jnp.float32) * 0.02,
        "ln_gamma": jnp.ones((E,), jnp.float32),
        "ln_beta":  jnp.zeros((E,), jnp.float32),
    }

    x = jax.random.normal(kx, (B, S, E), jnp.float32)

    out = flash_attention_forward(
        x, params, num_heads=NUM_HEADS, attention_window=ATTN_WINDOW)
    out = jax.block_until_ready(out)

    ref = reference_forward(
        x, params, num_heads=NUM_HEADS, attention_window=ATTN_WINDOW)
    assert out.shape == (B, S, E)
    # 2e-3 tolerance: the kernel normalizes entmax with the EUP approximate
    # reciprocal (rel err ~2^-12); all other math matches the reference.
    assert jnp.allclose(out, ref, atol=2e-3, rtol=2e-3), (
        "Pallas output mismatch vs JAX reference")

    print("KERNEL_OK")
</pallas_src>

<mosaic_0001>
module attributes {stable_mosaic.version = 11 : i64} {
  func.func @_fused_flash_kernel(%arg0: i32, %arg1: memref<16x128xf32, #tpu.memory_space<vmem>>, %arg2: memref<128x384xf32, #tpu.memory_space<vmem>>, %arg3: memref<1x384xf32, #tpu.memory_space<vmem>>, %arg4: memref<1x128xf32, #tpu.memory_space<vmem>>, %arg5: memref<1x128xf32, #tpu.memory_space<vmem>>, %arg6: memref<128x128xf32, #tpu.memory_space<vmem>>, %arg7: memref<1x128xf32, #tpu.memory_space<vmem>>, %arg8: memref<16x128xf32, #tpu.memory_space<vmem>>, %arg9: memref<16x128xf32, #tpu.memory_space<vmem>>) attributes {dimension_semantics = [#tpu.dimension_semantics<parallel>], iteration_bounds = array<i64: 2>, scalar_prefetch = 0 : i64, scratch_operands = 1 : i64, tpu.core_type = #tpu.core_type<tc>, window_params = [{transform_indices = @transform_0, window_bounds = array<i64: 16, 128>}, {pipeline_mode = #tpu.pipeline_mode<synchronous>, transform_indices = @transform_1, window_bounds = array<i64: 128, 384>}, {pipeline_mode = #tpu.pipeline_mode<synchronous>, transform_indices = @transform_2, window_bounds = array<i64: 1, 384>}, {pipeline_mode = #tpu.pipeline_mode<synchronous>, transform_indices = @transform_3, window_bounds = array<i64: 1, 128>}, {pipeline_mode = #tpu.pipeline_mode<synchronous>, transform_indices = @transform_4, window_bounds = array<i64: 1, 128>}, {pipeline_mode = #tpu.pipeline_mode<synchronous>, transform_indices = @transform_5, window_bounds = array<i64: 128, 128>}, {pipeline_mode = #tpu.pipeline_mode<synchronous>, transform_indices = @transform_6, window_bounds = array<i64: 1, 128>}, {transform_indices = @transform_7, window_bounds = array<i64: 16, 128>}]} {
    %c0 = arith.constant 0 : index
    %c0_0 = arith.constant 0 : index
    %0 = vector.load %arg1[%c0, %c0_0] : memref<16x128xf32, #tpu.memory_space<vmem>>, vector<16x128xf32>
    %c0_1 = arith.constant 0 : index
    %c0_2 = arith.constant 0 : index
    %1 = vector.load %arg2[%c0_1, %c0_2] : memref<128x384xf32, #tpu.memory_space<vmem>>, vector<128x384xf32>
    %cst = arith.constant dense<0.000000e+00> : vector<16x384xf32>
    %2 = tpu.matmul %0, %1, %cst {dimension_numbers = #tpu.dot_dimension_numbers<[1], [0], [0], [1], [0, 0, 1, 1], [], []>} : vector<16x128xf32>, vector<128x384xf32>, vector<16x384xf32> -> vector<16x384xf32>
    %c0_3 = arith.constant 0 : index
    %c0_4 = arith.constant 0 : index
    %3 = vector.load %arg3[%c0_3, %c0_4] : memref<1x384xf32, #tpu.memory_space<vmem>>, vector<1x384xf32>
    %4 = vector.broadcast %3 : vector<1x384xf32> to vector<16x384xf32>
    %5 = arith.addf %2, %4 : vector<16x384xf32>
    %6 = vector.extract_strided_slice %5 {offsets = [0, 0], sizes = [16, 32], strides = [1, 1]} : vector<16x384xf32> to vector<16x32xf32>
    %7 = vector.shape_cast %6 : vector<16x32xf32> to vector<2x8x32xf32>
    %8 = vector.extract_strided_slice %5 {offsets = [0, 128], sizes = [16, 32], strides = [1, 1]} : vector<16x384xf32> to vector<16x32xf32>
    %9 = vector.shape_cast %8 : vector<16x32xf32> to vector<2x8x32xf32>
    %10 = vector.extract_strided_slice %5 {offsets = [0, 256], sizes = [16, 32], strides = [1, 1]} : vector<16x384xf32> to vector<16x32xf32>
    %11 = vector.shape_cast %10 : vector<16x32xf32> to vector<2x8x32xf32>
    "tpu.trace_start"() <{level = 10 : i32, message = "wqd,wkd->wqk"}> : () -> ()
    %cst_5 = arith.constant dense<0.000000e+00> : vector<2x8x8xf32>
    %12 = tpu.matmul %7, %9, %cst_5 {dimension_numbers = #tpu.dot_dimension_numbers<[2], [2], [1], [1], [0, 0, 0, 1, 1, 1], [0], [0]>} : vector<2x8x32xf32>, vector<2x8x32xf32>, vector<2x8x8xf32> -> vector<2x8x8xf32>
    "tpu.trace_stop"() : () -> ()
    %cst_6 = arith.constant 0.0883883461 : f32
    %13 = vector.broadcast %cst_6 : f32 to vector<2x8x8xf32>
    %14 = arith.mulf %12, %13 : vector<2x8x8xf32>
    %cst_7 = arith.constant dense<0xFF800000> : vector<2x8xf32>
    %15 = vector.multi_reduction <maximumf>, %14, %cst_7 [2] : vector<2x8x8xf32> to vector<2x8xf32>
    %16 = vector.shape_cast %15 : vector<2x8xf32> to vector<2x8x1xf32>
    %cst_8 = arith.constant 1.000000e+00 : f32
    %17 = vector.broadcast %cst_8 : f32 to vector<2x8x1xf32>
    %18 = arith.subf %16, %17 : vector<2x8x1xf32>
    %cst_9 = arith.constant 0.353553385 : f32
    %19 = vector.broadcast %cst_9 : f32 to vector<2x8x1xf32>
    %20 = arith.subf %16, %19 : vector<2x8x1xf32>
    %21 = vector.broadcast %18 : vector<2x8x1xf32> to vector<2x8x8xf32>
    %22 = arith.subf %14, %21 : vector<2x8x8xf32>
    %cst_10 = arith.constant 0.000000e+00 : f32
    %23 = vector.broadcast %cst_10 : f32 to vector<2x8x8xf32>
    %24 = arith.maximumf %22, %23 : vector<2x8x8xf32>
    %25 = arith.mulf %24, %24 : vector<2x8x8xf32>
    %cst_11 = arith.constant dense<0.000000e+00> : vector<2x8xf32>
    %26 = vector.multi_reduction <add>, %25, %cst_11 [2] : vector<2x8x8xf32> to vector<2x8xf32>
    %27 = vector.shape_cast %26 : vector<2x8xf32> to vector<2x8x1xf32>
    %cst_12 = arith.constant 1.000000e+00 : f32
    %28 = vector.broadcast %cst_12 : f32 to vector<2x8x1xf32>
    %29 = arith.subf %27, %28 : vector<2x8x1xf32>
    %30 = arith.subf %20, %18 : vector<2x8x1xf32>
    %cst_13 = arith.constant 0.000000e+00 : f32
    %31 = vector.broadcast %cst_13 : f32 to vector<2x8x8xf32>
    %c0_i32 = arith.constant 0 : i32
    %cst_14 = arith.constant 5.000000e-01 : f32
    %32 = vector.broadcast %cst_14 : f32 to vector<2x8x1xf32>
    %33 = arith.mulf %30, %32 : vector<2x8x1xf32>
    %34 = arith.addf %18, %33 : vector<2x8x1xf32>
    %35 = vector.broadcast %34 : vector<2x8x1xf32> to vector<2x8x8xf32>
    %36 = arith.subf %14, %35 : vector<2x8x8xf32>
    %cst_15 = arith.constant 0.000000e+00 : f32
    %37 = vector.broadcast %cst_15 : f32 to vector<2x8x8xf32>
    %38 = arith.maximumf %36, %37 : vector<2x8x8xf32>
    %39 = arith.mulf %38, %38 : vector<2x8x8xf32>
    %cst_16 = arith.constant dense<0.000000e+00> : vector<2x8xf32>
    %40 = vector.multi_reduction <add>, %39, %cst_16 [2] : vector<2x8x8xf32> to vector<2x8xf32>
    %41 = vector.shape_cast %40 : vector<2x8xf32> to vector<2x8x1xf32>
    %cst_17 = arith.constant 1.000000e+00 : f32
    %42 = vector.broadcast %cst_17 : f32 to vector<2x8x1xf32>
    %43 = arith.subf %41, %42 : vector<2x8x1xf32>
    %44 = arith.mulf %43, %29 : vector<2x8x1xf32>
    %cst_18 = arith.constant 0.000000e+00 : f32
    %45 = vector.broadcast %cst_18 : f32 to vector<2x8x1xf32>
    %46 = arith.cmpf oge, %44, %45 : vector<2x8x1xf32>
    %47 = arith.select %46, %34, %18 : vector<2x8x1xi1>, vector<2x8x1xf32>
    %c1_i32 = arith.constant 1 : i32
    %cst_19 = arith.constant 5.000000e-01 : f32
    %48 = vector.broadcast %cst_19 : f32 to vector<2x8x1xf32>
    %49 = arith.mulf %33, %48 : vector<2x8x1xf32>
    %50 = arith.addf %47, %49 : vector<2x8x1xf32>
    %51 = vector.broadcast %50 : vector<2x8x1xf32> to vector<2x8x8xf32>
    %52 = arith.subf %14, %51 : vector<2x8x8xf32>
    %cst_20 = arith.constant 0.000000e+00 : f32
    %53 = vector.broadcast %cst_20 : f32 to vector<2x8x8xf32>
    %54 = arith.maximumf %52, %53 : vector<2x8x8xf32>
    %55 = arith.mulf %54, %54 : vector<2x8x8xf32>
    %cst_21 = arith.constant dense<0.000000e+00> : vector<2x8xf32>
    %56 = vector.multi_reduction <add>, %55, %cst_21 [2] : vector<2x8x8xf32> to vector<2x8xf32>
    %57 = vector.shape_cast %56 : vector<2x8xf32> to vector<2x8x1xf32>
    %cst_22 = arith.constant 1.000000e+00 : f32
    %58 = vector.broadcast %cst_22 : f32 to vector<2x8x1xf32>
    %59 = arith.subf %57, %58 : vector<2x8x1xf32>
    %60 = arith.mulf %59, %29 : vector<2x8x1xf32>
    %cst_23 = arith.constant 0.000000e+00 : f32
    %61 = vector.broadcast %cst_23 : f32 to vector<2x8x1xf32>
    %62 = arith.cmpf oge, %60, %61 : vector<2x8x1xf32>
    %63 = arith.select %62, %50, %47 : vector<2x8x1xi1>, vector<2x8x1xf32>
    %c2_i32 = arith.constant 2 : i32
    %cst_24 = arith.constant 5.000000e-01 : f32
    %64 = vector.broadcast %cst_24 : f32 to vector<2x8x1xf32>
    %65 = arith.mulf %49, %64 : vector<2x8x1xf32>
    %66 = arith.addf %63, %65 : vector<2x8x1xf32>
    %67 = vector.broadcast %66 : vector<2x8x1xf32> to vector<2x8x8xf32>
    %68 = arith.subf %14, %67 : vector<2x8x8xf32>
    %cst_25 = arith.constant 0.000000e+00 : f32
    %69 = vector.broadcast %cst_25 : f32 to vector<2x8x8xf32>
    %70 = arith.maximumf %68, %69 : vector<2x8x8xf32>
    %71 = arith.mulf %70, %70 : vector<2x8x8xf32>
    %cst_26 = arith.constant dense<0.000000e+00> : vector<2x8xf32>
    %72 = vector.multi_reduction <add>, %71, %cst_26 [2] : vector<2x8x8xf32> to vector<2x8xf32>
    %73 = vector.shape_cast %72 : vector<2x8xf32> to vector<2x8x1xf32>
    %cst_27 = arith.constant 1.000000e+00 : f32
    %74 = vector.broadcast %cst_27 : f32 to vector<2x8x1xf32>
    %75 = arith.subf %73, %74 : vector<2x8x1xf32>
    %76 = arith.mulf %75, %29 : vector<2x8x1xf32>
    %cst_28 = arith.constant 0.000000e+00 : f32
    %77 = vector.broadcast %cst_28 : f32 to vector<2x8x1xf32>
    %78 = arith.cmpf oge, %76, %77 : vector<2x8x1xf32>
    %79 = arith.select %78, %66, %63 : vector<2x8x1xi1>, vector<2x8x1xf32>
    %c3_i32 = arith.constant 3 : i32
    %cst_29 = arith.constant 5.000000e-01 : f32
    %80 = vector.broadcast %cst_29 : f32 to vector<2x8x1xf32>
    %81 = arith.mulf %65, %80 : vector<2x8x1xf32>
    %82 = arith.addf %79, %81 : vector<2x8x1xf32>
    %83 = vector.broadcast %82 : vector<2x8x1xf32> to vector<2x8x8xf32>
    %84 = arith.subf %14, %83 : vector<2x8x8xf32>
    %cst_30 = arith.constant 0.000000e+00 : f32
    %85 = vector.broadcast %cst_30 : f32 to vector<2x8x8xf32>
    %86 = arith.maximumf %84, %85 : vector<2x8x8xf32>
    %87 = arith.mulf %86, %86 : vector<2x8x8xf32>
    %cst_31 = arith.constant dense<0.000000e+00> : vector<2x8xf32>
    %88 = vector.multi_reduction <add>, %87, %cst_31 [2] : vector<2x8x8xf32> to vector<2x8xf32>
    %89 = vector.shape_cast %88 : vector<2x8xf32> to vector<2x8x1xf32>
    %cst_32 = arith.constant 1.000000e+00 : f32
    %90 = vector.broadcast %cst_32 : f32 to vector<2x8x1xf32>
    %91 = arith.subf %89, %90 : vector<2x8x1xf32>
    %92 = arith.mulf %91, %29 : vector<2x8x1xf32>
    %cst_33 = arith.constant 0.000000e+00 : f32
    %93 = vector.broadcast %cst_33 : f32 to vector<2x8x1xf32>
    %94 = arith.cmpf oge, %92, %93 : vector<2x8x1xf32>
    %95 = arith.select %94, %82, %79 : vector<2x8x1xi1>, vector<2x8x1xf32>
    %c4_i32 = arith.constant 4 : i32
    %cst_34 = arith.constant 5.000000e-01 : f32
    %96 = vector.broadcast %cst_34 : f32 to vector<2x8x1xf32>
    %97 = arith.mulf %81, %96 : vector<2x8x1xf32>
    %98 = arith.addf %95, %97 : vector<2x8x1xf32>
    %99 = vector.broadcast %98 : vector<2x8x1xf32> to vector<2x8x8xf32>
    %100 = arith.subf %14, %99 : vector<2x8x8xf32>
    %cst_35 = arith.constant 0.000000e+00 : f32
    %101 = vector.broadcast %cst_35 : f32 to vector<2x8x8xf32>
    %102 = arith.maximumf %100, %101 : vector<2x8x8xf32>
    %103 = arith.mulf %102, %102 : vector<2x8x8xf32>
    %cst_36 = arith.constant dense<0.000000e+00> : vector<2x8xf32>
    %104 = vector.multi_reduction <add>, %103, %cst_36 [2] : vector<2x8x8xf32> to vector<2x8xf32>
    %105 = vector.shape_cast %104 : vector<2x8xf32> to vector<2x8x1xf32>
    %cst_37 = arith.constant 1.000000e+00 : f32
    %106 = vector.broadcast %cst_37 : f32 to vector<2x8x1xf32>
    %107 = arith.subf %105, %106 : vector<2x8x1xf32>
    %108 = arith.mulf %107, %29 : vector<2x8x1xf32>
    %cst_38 = arith.constant 0.000000e+00 : f32
    %109 = vector.broadcast %cst_38 : f32 to vector<2x8x1xf32>
    %110 = arith.cmpf oge, %108, %109 : vector<2x8x1xf32>
    %111 = arith.select %110, %98, %95 : vector<2x8x1xi1>, vector<2x8x1xf32>
    %c5_i32 = arith.constant 5 : i32
    %cst_39 = arith.constant 5.000000e-01 : f32
    %112 = vector.broadcast %cst_39 : f32 to vector<2x8x1xf32>
    %113 = arith.mulf %97, %112 : vector<2x8x1xf32>
    %114 = arith.addf %111, %113 : vector<2x8x1xf32>
    %115 = vector.broadcast %114 : vector<2x8x1xf32> to vector<2x8x8xf32>
    %116 = arith.subf %14, %115 : vector<2x8x8xf32>
    %cst_40 = arith.constant 0.000000e+00 : f32
    %117 = vector.broadcast %cst_40 : f32 to vector<2x8x8xf32>
    %118 = arith.maximumf %116, %117 : vector<2x8x8xf32>
    %119 = arith.mulf %118, %118 : vector<2x8x8xf32>
    %cst_41 = arith.constant dense<0.000000e+00> : vector<2x8xf32>
    %120 = vector.multi_reduction <add>, %119, %cst_41 [2] : vector<2x8x8xf32> to vector<2x8xf32>
    %121 = vector.shape_cast %120 : vector<2x8xf32> to vector<2x8x1xf32>
    %cst_42 = arith.constant 1.000000e+00 : f32
    %122 = vector.broadcast %cst_42 : f32 to vector<2x8x1xf32>
    %123 = arith.subf %121, %122 : vector<2x8x1xf32>
    %124 = arith.mulf %123, %29 : vector<2x8x1xf32>
    %cst_43 = arith.constant 0.000000e+00 : f32
    %125 = vector.broadcast %cst_43 : f32 to vector<2x8x1xf32>
    %126 = arith.cmpf oge, %124, %125 : vector<2x8x1xf32>
    %127 = arith.select %126, %114, %111 : vector<2x8x1xi1>, vector<2x8x1xf32>
    %c6_i32 = arith.constant 6 : i32
    %cst_44 = arith.constant 5.000000e-01 : f32
    %128 = vector.broadcast %cst_44 : f32 to vector<2x8x1xf32>
    %129 = arith.mulf %113, %128 : vector<2x8x1xf32>
    %130 = arith.addf %127, %129 : vector<2x8x1xf32>
    %131 = vector.broadcast %130 : vector<2x8x1xf32> to vector<2x8x8xf32>
    %132 = arith.subf %14, %131 : vector<2x8x8xf32>
    %cst_45 = arith.constant 0.000000e+00 : f32
    %133 = vector.broadcast %cst_45 : f32 to vector<2x8x8xf32>
    %134 = arith.maximumf %132, %133 : vector<2x8x8xf32>
    %135 = arith.mulf %134, %134 : vector<2x8x8xf32>
    %cst_46 = arith.constant dense<0.000000e+00> : vector<2x8xf32>
    %136 = vector.multi_reduction <add>, %135, %cst_46 [2] : vector<2x8x8xf32> to vector<2x8xf32>
    %137 = vector.shape_cast %136 : vector<2x8xf32> to vector<2x8x1xf32>
    %cst_47 = arith.constant 1.000000e+00 : f32
    %138 = vector.broadcast %cst_47 : f32 to vector<2x8x1xf32>
    %139 = arith.subf %137, %138 : vector<2x8x1xf32>
    %140 = arith.mulf %139, %29 : vector<2x8x1xf32>
    %cst_48 = arith.constant 0.000000e+00 : f32
    %141 = vector.broadcast %cst_48 : f32 to vector<2x8x1xf32>
    %142 = arith.cmpf oge, %140, %141 : vector<2x8x1xf32>
    %143 = arith.select %142, %130, %127 : vector<2x8x1xi1>, vector<2x8x1xf32>
    %c7_i32 = arith.constant 7 : i32
    %cst_49 = arith.constant 5.000000e-01 : f32
    %144 = vector.broadcast %cst_49 : f32 to vector<2x8x1xf32>
    %145 = arith.mulf %129, %144 : vector<2x8x1xf32>
    %146 = arith.addf %143, %145 : vector<2x8x1xf32>
    %147 = vector.broadcast %146 : vector<2x8x1xf32> to vector<2x8x8xf32>
    %148 = arith.subf %14, %147 : vector<2x8x8xf32>
    %cst_50 = arith.constant 0.000000e+00 : f32
    %149 = vector.broadcast %cst_50 : f32 to vector<2x8x8xf32>
    %150 = arith.maximumf %148, %149 : vector<2x8x8xf32>
    %151 = arith.mulf %150, %150 : vector<2x8x8xf32>
    %cst_51 = arith.constant dense<0.000000e+00> : vector<2x8xf32>
    %152 = vector.multi_reduction <add>, %151, %cst_51 [2] : vector<2x8x8xf32> to vector<2x8xf32>
    %153 = vector.shape_cast %152 : vector<2x8xf32> to vector<2x8x1xf32>
    %cst_52 = arith.constant 1.000000e+00 : f32
    %154 = vector.broadcast %cst_52 : f32 to vector<2x8x1xf32>
    %155 = arith.subf %153, %154 : vector<2x8x1xf32>
    %156 = arith.mulf %155, %29 : vector<2x8x1xf32>
    %cst_53 = arith.constant 0.000000e+00 : f32
    %157 = vector.broadcast %cst_53 : f32 to vector<2x8x1xf32>
    %158 = arith.cmpf oge, %156, %157 : vector<2x8x1xf32>
    %159 = arith.select %158, %146, %143 : vector<2x8x1xi1>, vector<2x8x1xf32>
    %c8_i32 = arith.constant 8 : i32
    %cst_54 = arith.constant 5.000000e-01 : f32
    %160 = vector.broadcast %cst_54 : f32 to vector<2x8x1xf32>
    %161 = arith.mulf %145, %160 : vector<2x8x1xf32>
    %162 = arith.addf %159, %161 : vector<2x8x1xf32>
    %163 = vector.broadcast %162 : vector<2x8x1xf32> to vector<2x8x8xf32>
    %164 = arith.subf %14, %163 : vector<2x8x8xf32>
    %cst_55 = arith.constant 0.000000e+00 : f32
    %165 = vector.broadcast %cst_55 : f32 to vector<2x8x8xf32>
    %166 = arith.maximumf %164, %165 : vector<2x8x8xf32>
    %167 = arith.mulf %166, %166 : vector<2x8x8xf32>
    %cst_56 = arith.constant dense<0.000000e+00> : vector<2x8xf32>
    %168 = vector.multi_reduction <add>, %167, %cst_56 [2] : vector<2x8x8xf32> to vector<2x8xf32>
    %169 = vector.shape_cast %168 : vector<2x8xf32> to vector<2x8x1xf32>
    %cst_57 = arith.constant 1.000000e+00 : f32
    %170 = vector.broadcast %cst_57 : f32 to vector<2x8x1xf32>
    %171 = arith.subf %169, %170 : vector<2x8x1xf32>
    %172 = arith.mulf %171, %29 : vector<2x8x1xf32>
    %cst_58 = arith.constant 0.000000e+00 : f32
    %173 = vector.broadcast %cst_58 : f32 to vector<2x8x1xf32>
    %174 = arith.cmpf oge, %172, %173 : vector<2x8x1xf32>
    %175 = arith.select %174, %162, %159 : vector<2x8x1xi1>, vector<2x8x1xf32>
    %c9_i32 = arith.constant 9 : i32
    %cst_59 = arith.constant 5.000000e-01 : f32
    %176 = vector.broadcast %cst_59 : f32 to vector<2x8x1xf32>
    %177 = arith.mulf %161, %176 : vector<2x8x1xf32>
    %178 = arith.addf %175, %177 : vector<2x8x1xf32>
    %179 = vector.broadcast %178 : vector<2x8x1xf32> to vector<2x8x8xf32>
    %180 = arith.subf %14, %179 : vector<2x8x8xf32>
    %cst_60 = arith.constant 0.000000e+00 : f32
    %181 = vector.broadcast %cst_60 : f32 to vector<2x8x8xf32>
    %182 = arith.maximumf %180, %181 : vector<2x8x8xf32>
    %183 = arith.mulf %182, %182 : vector<2x8x8xf32>
    %cst_61 = arith.constant dense<0.000000e+00> : vector<2x8xf32>
    %184 = vector.multi_reduction <add>, %183, %cst_61 [2] : vector<2x8x8xf32> to vector<2x8xf32>
    %185 = vector.shape_cast %184 : vector<2x8xf32> to vector<2x8x1xf32>
    %cst_62 = arith.constant 1.000000e+00 : f32
    %186 = vector.broadcast %cst_62 : f32 to vector<2x8x1xf32>
    %187 = arith.subf %185, %186 : vector<2x8x1xf32>
    %188 = arith.mulf %187, %29 : vector<2x8x1xf32>
    %cst_63 = arith.constant 0.000000e+00 : f32
    %189 = vector.broadcast %cst_63 : f32 to vector<2x8x1xf32>
    %190 = arith.cmpf oge, %188, %189 : vector<2x8x1xf32>
    %191 = arith.select %190, %178, %175 : vector<2x8x1xi1>, vector<2x8x1xf32>
    %c10_i32 = arith.constant 10 : i32
    %cst_64 = arith.constant 5.000000e-01 : f32
    %192 = vector.broadcast %cst_64 : f32 to vector<2x8x1xf32>
    %193 = arith.mulf %177, %192 : vector<2x8x1xf32>
    %194 = arith.addf %191, %193 : vector<2x8x1xf32>
    %195 = vector.broadcast %194 : vector<2x8x1xf32> to vector<2x8x8xf32>
    %196 = arith.subf %14, %195 : vector<2x8x8xf32>
    %cst_65 = arith.constant 0.000000e+00 : f32
    %197 = vector.broadcast %cst_65 : f32 to vector<2x8x8xf32>
    %198 = arith.maximumf %196, %197 : vector<2x8x8xf32>
    %199 = arith.mulf %198, %198 : vector<2x8x8xf32>
    %cst_66 = arith.constant dense<0.000000e+00> : vector<2x8xf32>
    %200 = vector.multi_reduction <add>, %199, %cst_66 [2] : vector<2x8x8xf32> to vector<2x8xf32>
    %201 = vector.shape_cast %200 : vector<2x8xf32> to vector<2x8x1xf32>
    %cst_67 = arith.constant 1.000000e+00 : f32
    %202 = vector.broadcast %cst_67 : f32 to vector<2x8x1xf32>
    %203 = arith.subf %201, %202 : vector<2x8x1xf32>
    %204 = arith.mulf %203, %29 : vector<2x8x1xf32>
    %cst_68 = arith.constant 0.000000e+00 : f32
    %205 = vector.broadcast %cst_68 : f32 to vector<2x8x1xf32>
    %206 = arith.cmpf oge, %204, %205 : vector<2x8x1xf32>
    %207 = arith.select %206, %194, %191 : vector<2x8x1xi1>, vector<2x8x1xf32>
    %c11_i32 = arith.constant 11 : i32
    %cst_69 = arith.constant 5.000000e-01 : f32
    %208 = vector.broadcast %cst_69 : f32 to vector<2x8x1xf32>
    %209 = arith.mulf %193, %208 : vector<2x8x1xf32>
    %210 = arith.addf %207, %209 : vector<2x8x1xf32>
    %211 = vector.broadcast %210 : vector<2x8x1xf32> to vector<2x8x8xf32>
    %212 = arith.subf %14, %211 : vector<2x8x8xf32>
    %cst_70 = arith.constant 0.000000e+00 : f32
    %213 = vector.broadcast %cst_70 : f32 to vector<2x8x8xf32>
    %214 = arith.maximumf %212, %213 : vector<2x8x8xf32>
    %215 = arith.mulf %214, %214 : vector<2x8x8xf32>
    %cst_71 = arith.constant dense<0.000000e+00> : vector<2x8xf32>
    %216 = vector.multi_reduction <add>, %215, %cst_71 [2] : vector<2x8x8xf32> to vector<2x8xf32>
    %217 = vector.shape_cast %216 : vector<2x8xf32> to vector<2x8x1xf32>
    %cst_72 = arith.constant 1.000000e+00 : f32
    %218 = vector.broadcast %cst_72 : f32 to vector<2x8x1xf32>
    %219 = arith.subf %217, %218 : vector<2x8x1xf32>
    %220 = arith.mulf %219, %29 : vector<2x8x1xf32>
    %cst_73 = arith.constant 0.000000e+00 : f32
    %221 = vector.broadcast %cst_73 : f32 to vector<2x8x1xf32>
    %222 = arith.cmpf oge, %220, %221 : vector<2x8x1xf32>
    %223 = arith.select %222, %210, %207 : vector<2x8x1xi1>, vector<2x8x1xf32>
    %c12_i32 = arith.constant 12 : i32
    %cst_74 = arith.constant 5.000000e-01 : f32
    %224 = vector.broadcast %cst_74 : f32 to vector<2x8x1xf32>
    %225 = arith.mulf %209, %224 : vector<2x8x1xf32>
    %226 = arith.addf %223, %225 : vector<2x8x1xf32>
    %227 = vector.broadcast %226 : vector<2x8x1xf32> to vector<2x8x8xf32>
    %228 = arith.subf %14, %227 : vector<2x8x8xf32>
    %cst_75 = arith.constant 0.000000e+00 : f32
    %229 = vector.broadcast %cst_75 : f32 to vector<2x8x8xf32>
    %230 = arith.maximumf %228, %229 : vector<2x8x8xf32>
    %231 = arith.mulf %230, %230 : vector<2x8x8xf32>
    %cst_76 = arith.constant dense<0.000000e+00> : vector<2x8xf32>
    %232 = vector.multi_reduction <add>, %231, %cst_76 [2] : vector<2x8x8xf32> to vector<2x8xf32>
    %233 = vector.shape_cast %232 : vector<2x8xf32> to vector<2x8x1xf32>
    %cst_77 = arith.constant 1.000000e+00 : f32
    %234 = vector.broadcast %cst_77 : f32 to vector<2x8x1xf32>
    %235 = arith.subf %233, %234 : vector<2x8x1xf32>
    %236 = arith.mulf %235, %29 : vector<2x8x1xf32>
    %cst_78 = arith.constant 0.000000e+00 : f32
    %237 = vector.broadcast %cst_78 : f32 to vector<2x8x1xf32>
    %238 = arith.cmpf oge, %236, %237 : vector<2x8x1xf32>
    %239 = arith.select %238, %226, %223 : vector<2x8x1xi1>, vector<2x8x1xf32>
    %c13_i32 = arith.constant 13 : i32
    %cst_79 = arith.constant 5.000000e-01 : f32
    %240 = vector.broadcast %cst_79 : f32 to vector<2x8x1xf32>
    %241 = arith.mulf %225, %240 : vector<2x8x1xf32>
    %242 = arith.addf %239, %241 : vector<2x8x1xf32>
    %243 = vector.broadcast %242 : vector<2x8x1xf32> to vector<2x8x8xf32>
    %244 = arith.subf %14, %243 : vector<2x8x8xf32>
    %cst_80 = arith.constant 0.000000e+00 : f32
    %245 = vector.broadcast %cst_80 : f32 to vector<2x8x8xf32>
    %246 = arith.maximumf %244, %245 : vector<2x8x8xf32>
    %247 = arith.mulf %246, %246 : vector<2x8x8xf32>
    %cst_81 = arith.constant dense<0.000000e+00> : vector<2x8xf32>
    %248 = vector.multi_reduction <add>, %247, %cst_81 [2] : vector<2x8x8xf32> to vector<2x8xf32>
    %249 = vector.shape_cast %248 : vector<2x8xf32> to vector<2x8x1xf32>
    %cst_82 = arith.constant 1.000000e+00 : f32
    %250 = vector.broadcast %cst_82 : f32 to vector<2x8x1xf32>
    %251 = arith.subf %249, %250 : vector<2x8x1xf32>
    %252 = arith.mulf %251, %29 : vector<2x8x1xf32>
    %cst_83 = arith.constant 0.000000e+00 : f32
    %253 = vector.broadcast %cst_83 : f32 to vector<2x8x1xf32>
    %254 = arith.cmpf oge, %252, %253 : vector<2x8x1xf32>
    %255 = arith.select %254, %242, %239 : vector<2x8x1xi1>, vector<2x8x1xf32>
    %c14_i32 = arith.constant 14 : i32
    %cst_84 = arith.constant 5.000000e-01 : f32
    %256 = vector.broadcast %cst_84 : f32 to vector<2x8x1xf32>
    %257 = arith.mulf %241, %256 : vector<2x8x1xf32>
    %258 = arith.addf %255, %257 : vector<2x8x1xf32>
    %259 = vector.broadcast %258 : vector<2x8x1xf32> to vector<2x8x8xf32>
    %260 = arith.subf %14, %259 : vector<2x8x8xf32>
    %cst_85 = arith.constant 0.000000e+00 : f32
    %261 = vector.broadcast %cst_85 : f32 to vector<2x8x8xf32>
    %262 = arith.maximumf %260, %261 : vector<2x8x8xf32>
    %263 = arith.mulf %262, %262 : vector<2x8x8xf32>
    %cst_86 = arith.constant dense<0.000000e+00> : vector<2x8xf32>
    %264 = vector.multi_reduction <add>, %263, %cst_86 [2] : vector<2x8x8xf32> to vector<2x8xf32>
    %265 = vector.shape_cast %264 : vector<2x8xf32> to vector<2x8x1xf32>
    %cst_87 = arith.constant 1.000000e+00 : f32
    %266 = vector.broadcast %cst_87 : f32 to vector<2x8x1xf32>
    %267 = arith.subf %265, %266 : vector<2x8x1xf32>
    %268 = arith.mulf %267, %29 : vector<2x8x1xf32>
    %cst_88 = arith.constant 0.000000e+00 : f32
    %269 = vector.broadcast %cst_88 : f32 to vector<2x8x1xf32>
    %270 = arith.cmpf oge, %268, %269 : vector<2x8x1xf32>
    %271 = arith.select %270, %258, %255 : vector<2x8x1xi1>, vector<2x8x1xf32>
    %c15_i32 = arith.constant 15 : i32
    %cst_89 = arith.constant 5.000000e-01 : f32
    %272 = vector.broadcast %cst_89 : f32 to vector<2x8x1xf32>
    %273 = arith.mulf %257, %272 : vector<2x8x1xf32>
    %274 = arith.addf %271, %273 : vector<2x8x1xf32>
    %275 = vector.broadcast %274 : vector<2x8x1xf32> to vector<2x8x8xf32>
    %276 = arith.subf %14, %275 : vector<2x8x8xf32>
    %cst_90 = arith.constant 0.000000e+00 : f32
    %277 = vector.broadcast %cst_90 : f32 to vector<2x8x8xf32>
    %278 = arith.maximumf %276, %277 : vector<2x8x8xf32>
    %279 = arith.mulf %278, %278 : vector<2x8x8xf32>
    %cst_91 = arith.constant dense<0.000000e+00> : vector<2x8xf32>
    %280 = vector.multi_reduction <add>, %279, %cst_91 [2] : vector<2x8x8xf32> to vector<2x8xf32>
    %281 = vector.shape_cast %280 : vector<2x8xf32> to vector<2x8x1xf32>
    %cst_92 = arith.constant 1.000000e+00 : f32
    %282 = vector.broadcast %cst_92 : f32 to vector<2x8x1xf32>
    %283 = arith.subf %281, %282 : vector<2x8x1xf32>
    %284 = arith.mulf %283, %29 : vector<2x8x1xf32>
    %cst_93 = arith.constant 0.000000e+00 : f32
    %285 = vector.broadcast %cst_93 : f32 to vector<2x8x1xf32>
    %286 = arith.cmpf oge, %284, %285 : vector<2x8x1xf32>
    %287 = arith.select %286, %274, %271 : vector<2x8x1xi1>, vector<2x8x1xf32>
    %c16_i32 = arith.constant 16 : i32
    %cst_94 = arith.constant 5.000000e-01 : f32
    %288 = vector.broadcast %cst_94 : f32 to vector<2x8x1xf32>
    %289 = arith.mulf %273, %288 : vector<2x8x1xf32>
    %290 = arith.addf %287, %289 : vector<2x8x1xf32>
    %291 = vector.broadcast %290 : vector<2x8x1xf32> to vector<2x8x8xf32>
    %292 = arith.subf %14, %291 : vector<2x8x8xf32>
    %cst_95 = arith.constant 0.000000e+00 : f32
    %293 = vector.broadcast %cst_95 : f32 to vector<2x8x8xf32>
    %294 = arith.maximumf %292, %293 : vector<2x8x8xf32>
    %295 = arith.mulf %294, %294 : vector<2x8x8xf32>
    %cst_96 = arith.constant dense<0.000000e+00> : vector<2x8xf32>
    %296 = vector.multi_reduction <add>, %295, %cst_96 [2] : vector<2x8x8xf32> to vector<2x8xf32>
    %297 = vector.shape_cast %296 : vector<2x8xf32> to vector<2x8x1xf32>
    %cst_97 = arith.constant 1.000000e+00 : f32
    %298 = vector.broadcast %cst_97 : f32 to vector<2x8x1xf32>
    %299 = arith.subf %297, %298 : vector<2x8x1xf32>
    %300 = arith.mulf %299, %29 : vector<2x8x1xf32>
    %cst_98 = arith.constant 0.000000e+00 : f32
    %301 = vector.broadcast %cst_98 : f32 to vector<2x8x1xf32>
    %302 = arith.cmpf oge, %300, %301 : vector<2x8x1xf32>
    %303 = arith.select %302, %290, %287 : vector<2x8x1xi1>, vector<2x8x1xf32>
    %c17_i32 = arith.constant 17 : i32
    %cst_99 = arith.constant 5.000000e-01 : f32
    %304 = vector.broadcast %cst_99 : f32 to vector<2x8x1xf32>
    %305 = arith.mulf %289, %304 : vector<2x8x1xf32>
    %306 = arith.addf %303, %305 : vector<2x8x1xf32>
    %307 = vector.broadcast %306 : vector<2x8x1xf32> to vector<2x8x8xf32>
    %308 = arith.subf %14, %307 : vector<2x8x8xf32>
    %cst_100 = arith.constant 0.000000e+00 : f32
    %309 = vector.broadcast %cst_100 : f32 to vector<2x8x8xf32>
    %310 = arith.maximumf %308, %309 : vector<2x8x8xf32>
    %311 = arith.mulf %310, %310 : vector<2x8x8xf32>
    %cst_101 = arith.constant dense<0.000000e+00> : vector<2x8xf32>
    %312 = vector.multi_reduction <add>, %311, %cst_101 [2] : vector<2x8x8xf32> to vector<2x8xf32>
    %313 = vector.shape_cast %312 : vector<2x8xf32> to vector<2x8x1xf32>
    %cst_102 = arith.constant 1.000000e+00 : f32
    %314 = vector.broadcast %cst_102 : f32 to vector<2x8x1xf32>
    %315 = arith.subf %313, %314 : vector<2x8x1xf32>
    %316 = arith.mulf %315, %29 : vector<2x8x1xf32>
    %cst_103 = arith.constant 0.000000e+00 : f32
    %317 = vector.broadcast %cst_103 : f32 to vector<2x8x1xf32>
    %318 = arith.cmpf oge, %316, %317 : vector<2x8x1xf32>
    %319 = arith.select %318, %306, %303 : vector<2x8x1xi1>, vector<2x8x1xf32>
    %c18_i32 = arith.constant 18 : i32
    %cst_104 = arith.constant 5.000000e-01 : f32
    %320 = vector.broadcast %cst_104 : f32 to vector<2x8x1xf32>
    %321 = arith.mulf %305, %320 : vector<2x8x1xf32>
    %322 = arith.addf %319, %321 : vector<2x8x1xf32>
    %323 = vector.broadcast %322 : vector<2x8x1xf32> to vector<2x8x8xf32>
    %324 = arith.subf %14, %323 : vector<2x8x8xf32>
    %cst_105 = arith.constant 0.000000e+00 : f32
    %325 = vector.broadcast %cst_105 : f32 to vector<2x8x8xf32>
    %326 = arith.maximumf %324, %325 : vector<2x8x8xf32>
    %327 = arith.mulf %326, %326 : vector<2x8x8xf32>
    %cst_106 = arith.constant dense<0.000000e+00> : vector<2x8xf32>
    %328 = vector.multi_reduction <add>, %327, %cst_106 [2] : vector<2x8x8xf32> to vector<2x8xf32>
    %329 = vector.shape_cast %328 : vector<2x8xf32> to vector<2x8x1xf32>
    %cst_107 = arith.constant 1.000000e+00 : f32
    %330 = vector.broadcast %cst_107 : f32 to vector<2x8x1xf32>
    %331 = arith.subf %329, %330 : vector<2x8x1xf32>
    %332 = arith.mulf %331, %29 : vector<2x8x1xf32>
    %cst_108 = arith.constant 0.000000e+00 : f32
    %333 = vector.broadcast %cst_108 : f32 to vector<2x8x1xf32>
    %334 = arith.cmpf oge, %332, %333 : vector<2x8x1xf32>
    %335 = arith.select %334, %322, %319 : vector<2x8x1xi1>, vector<2x8x1xf32>
    %c19_i32 = arith.constant 19 : i32
    %cst_109 = arith.constant 5.000000e-01 : f32
    %336 = vector.broadcast %cst_109 : f32 to vector<2x8x1xf32>
    %337 = arith.mulf %321, %336 : vector<2x8x1xf32>
    %338 = arith.addf %335, %337 : vector<2x8x1xf32>
    %339 = vector.broadcast %338 : vector<2x8x1xf32> to vector<2x8x8xf32>
    %340 = arith.subf %14, %339 : vector<2x8x8xf32>
    %cst_110 = arith.constant 0.000000e+00 : f32
    %341 = vector.broadcast %cst_110 : f32 to vector<2x8x8xf32>
    %342 = arith.maximumf %340, %341 : vector<2x8x8xf32>
    %343 = arith.mulf %342, %342 : vector<2x8x8xf32>
    %cst_111 = arith.constant dense<0.000000e+00> : vector<2x8xf32>
    %344 = vector.multi_reduction <add>, %343, %cst_111 [2] : vector<2x8x8xf32> to vector<2x8xf32>
    %345 = vector.shape_cast %344 : vector<2x8xf32> to vector<2x8x1xf32>
    %cst_112 = arith.constant 1.000000e+00 : f32
    %346 = vector.broadcast %cst_112 : f32 to vector<2x8x1xf32>
    %347 = arith.subf %345, %346 : vector<2x8x1xf32>
    %348 = arith.mulf %347, %29 : vector<2x8x1xf32>
    %cst_113 = arith.constant 0.000000e+00 : f32
    %349 = vector.broadcast %cst_113 : f32 to vector<2x8x1xf32>
    %350 = arith.cmpf oge, %348, %349 : vector<2x8x1xf32>
    %351 = arith.select %350, %338, %335 : vector<2x8x1xi1>, vector<2x8x1xf32>
    %c20_i32 = arith.constant 20 : i32
    %cst_114 = arith.constant 5.000000e-01 : f32
    %352 = vector.broadcast %cst_114 : f32 to vector<2x8x1xf32>
    %353 = arith.mulf %337, %352 : vector<2x8x1xf32>
    %354 = arith.addf %351, %353 : vector<2x8x1xf32>
    %355 = vector.broadcast %354 : vector<2x8x1xf32> to vector<2x8x8xf32>
    %356 = arith.subf %14, %355 : vector<2x8x8xf32>
    %cst_115 = arith.constant 0.000000e+00 : f32
    %357 = vector.broadcast %cst_115 : f32 to vector<2x8x8xf32>
    %358 = arith.maximumf %356, %357 : vector<2x8x8xf32>
    %359 = arith.mulf %358, %358 : vector<2x8x8xf32>
    %cst_116 = arith.constant dense<0.000000e+00> : vector<2x8xf32>
    %360 = vector.multi_reduction <add>, %359, %cst_116 [2] : vector<2x8x8xf32> to vector<2x8xf32>
    %361 = vector.shape_cast %360 : vector<2x8xf32> to vector<2x8x1xf32>
    %cst_117 = arith.constant 1.000000e+00 : f32
    %362 = vector.broadcast %cst_117 : f32 to vector<2x8x1xf32>
    %363 = arith.subf %361, %362 : vector<2x8x1xf32>
    %364 = arith.mulf %363, %29 : vector<2x8x1xf32>
    %cst_118 = arith.constant 0.000000e+00 : f32
    %365 = vector.broadcast %cst_118 : f32 to vector<2x8x1xf32>
    %366 = arith.cmpf oge, %364, %365 : vector<2x8x1xf32>
    %367 = arith.select %366, %354, %351 : vector<2x8x1xi1>, vector<2x8x1xf32>
    %c21_i32 = arith.constant 21 : i32
    %cst_119 = arith.constant 5.000000e-01 : f32
    %368 = vector.broadcast %cst_119 : f32 to vector<2x8x1xf32>
    %369 = arith.mulf %353, %368 : vector<2x8x1xf32>
    %370 = arith.addf %367, %369 : vector<2x8x1xf32>
    %371 = vector.broadcast %370 : vector<2x8x1xf32> to vector<2x8x8xf32>
    %372 = arith.subf %14, %371 : vector<2x8x8xf32>
    %cst_120 = arith.constant 0.000000e+00 : f32
    %373 = vector.broadcast %cst_120 : f32 to vector<2x8x8xf32>
    %374 = arith.maximumf %372, %373 : vector<2x8x8xf32>
    %375 = arith.mulf %374, %374 : vector<2x8x8xf32>
    %cst_121 = arith.constant dense<0.000000e+00> : vector<2x8xf32>
    %376 = vector.multi_reduction <add>, %375, %cst_121 [2] : vector<2x8x8xf32> to vector<2x8xf32>
    %377 = vector.shape_cast %376 : vector<2x8xf32> to vector<2x8x1xf32>
    %cst_122 = arith.constant 1.000000e+00 : f32
    %378 = vector.broadcast %cst_122 : f32 to vector<2x8x1xf32>
    %379 = arith.subf %377, %378 : vector<2x8x1xf32>
    %380 = arith.mulf %379, %29 : vector<2x8x1xf32>
    %cst_123 = arith.constant 0.000000e+00 : f32
    %381 = vector.broadcast %cst_123 : f32 to vector<2x8x1xf32>
    %382 = arith.cmpf oge, %380, %381 : vector<2x8x1xf32>
    %383 = arith.select %382, %370, %367 : vector<2x8x1xi1>, vector<2x8x1xf32>
    %c22_i32 = arith.constant 22 : i32
    %cst_124 = arith.constant 5.000000e-01 : f32
    %384 = vector.broadcast %cst_124 : f32 to vector<2x8x1xf32>
    %385 = arith.mulf %369, %384 : vector<2x8x1xf32>
    %386 = arith.addf %383, %385 : vector<2x8x1xf32>
    %387 = vector.broadcast %386 : vector<2x8x1xf32> to vector<2x8x8xf32>
    %388 = arith.subf %14, %387 : vector<2x8x8xf32>
    %cst_125 = arith.constant 0.000000e+00 : f32
    %389 = vector.broadcast %cst_125 : f32 to vector<2x8x8xf32>
    %390 = arith.maximumf %388, %389 : vector<2x8x8xf32>
    %391 = arith.mulf %390, %390 : vector<2x8x8xf32>
    %cst_126 = arith.constant dense<0.000000e+00> : vector<2x8xf32>
    %392 = vector.multi_reduction <add>, %391, %cst_126 [2] : vector<2x8x8xf32> to vector<2x8xf32>
    %393 = vector.shape_cast %392 : vector<2x8xf32> to vector<2x8x1xf32>
    %cst_127 = arith.constant 1.000000e+00 : f32
    %394 = vector.broadcast %cst_127 : f32 to vector<2x8x1xf32>
    %395 = arith.subf %393, %394 : vector<2x8x1xf32>
    %396 = arith.mulf %395, %29 : vector<2x8x1xf32>
    %cst_128 = arith.constant 0.000000e+00 : f32
    %397 = vector.broadcast %cst_128 : f32 to vector<2x8x1xf32>
    %398 = arith.cmpf oge, %396, %397 : vector<2x8x1xf32>
    %399 = arith.select %398, %386, %383 : vector<2x8x1xi1>, vector<2x8x1xf32>
    %c23_i32 = arith.constant 23 : i32
    %cst_129 = arith.constant 5.000000e-01 : f32
    %400 = vector.broadcast %cst_129 : f32 to vector<2x8x1xf32>
    %401 = arith.mulf %385, %400 : vector<2x8x1xf32>
    %402 = arith.addf %399, %401 : vector<2x8x1xf32>
    %403 = vector.broadcast %402 : vector<2x8x1xf32> to vector<2x8x8xf32>
    %404 = arith.subf %14, %403 : vector<2x8x8xf32>
    %cst_130 = arith.constant 0.000000e+00 : f32
    %405 = vector.broadcast %cst_130 : f32 to vector<2x8x8xf32>
    %406 = arith.maximumf %404, %405 : vector<2x8x8xf32>
    %407 = arith.mulf %406, %406 : vector<2x8x8xf32>
    %cst_131 = arith.constant dense<0.000000e+00> : vector<2x8xf32>
    %408 = vector.multi_reduction <add>, %407, %cst_131 [2] : vector<2x8x8xf32> to vector<2x8xf32>
    %409 = vector.shape_cast %408 : vector<2x8xf32> to vector<2x8x1xf32>
    %cst_132 = arith.constant 1.000000e+00 : f32
    %410 = vector.broadcast %cst_132 : f32 to vector<2x8x1xf32>
    %411 = arith.subf %409, %410 : vector<2x8x1xf32>
    %412 = arith.mulf %411, %29 : vector<2x8x1xf32>
    %cst_133 = arith.constant 0.000000e+00 : f32
    %413 = vector.broadcast %cst_133 : f32 to vector<2x8x1xf32>
    %414 = arith.cmpf oge, %412, %413 : vector<2x8x1xf32>
    %415 = arith.select %414, %402, %399 : vector<2x8x1xi1>, vector<2x8x1xf32>
    %c24_i32 = arith.constant 24 : i32
    %cst_134 = arith.constant 5.000000e-01 : f32
    %416 = vector.broadcast %cst_134 : f32 to vector<2x8x1xf32>
    %417 = arith.mulf %401, %416 : vector<2x8x1xf32>
    %418 = arith.addf %415, %417 : vector<2x8x1xf32>
    %419 = vector.broadcast %418 : vector<2x8x1xf32> to vector<2x8x8xf32>
    %420 = arith.subf %14, %419 : vector<2x8x8xf32>
    %cst_135 = arith.constant 0.000000e+00 : f32
    %421 = vector.broadcast %cst_135 : f32 to vector<2x8x8xf32>
    %422 = arith.maximumf %420, %421 : vector<2x8x8xf32>
    %423 = arith.mulf %422, %422 : vector<2x8x8xf32>
    %cst_136 = arith.constant dense<0.000000e+00> : vector<2x8xf32>
    %424 = vector.multi_reduction <add>, %423, %cst_136 [2] : vector<2x8x8xf32> to vector<2x8xf32>
    %425 = vector.shape_cast %424 : vector<2x8xf32> to vector<2x8x1xf32>
    %cst_137 = arith.constant 1.000000e+00 : f32
    %426 = vector.broadcast %cst_137 : f32 to vector<2x8x1xf32>
    %427 = arith.subf %425, %426 : vector<2x8x1xf32>
    %428 = arith.mulf %427, %29 : vector<2x8x1xf32>
    %cst_138 = arith.constant 0.000000e+00 : f32
    %429 = vector.broadcast %cst_138 : f32 to vector<2x8x1xf32>
    %430 = arith.cmpf oge, %428, %429 : vector<2x8x1xf32>
    %431 = arith.select %430, %418, %415 : vector<2x8x1xi1>, vector<2x8x1xf32>
    %c25_i32 = arith.constant 25 : i32
    %cst_139 = arith.constant 5.000000e-01 : f32
    %432 = vector.broadcast %cst_139 : f32 to vector<2x8x1xf32>
    %433 = arith.mulf %417, %432 : vector<2x8x1xf32>
    %434 = arith.addf %431, %433 : vector<2x8x1xf32>
    %435 = vector.broadcast %434 : vector<2x8x1xf32> to vector<2x8x8xf32>
    %436 = arith.subf %14, %435 : vector<2x8x8xf32>
    %cst_140 = arith.constant 0.000000e+00 : f32
    %437 = vector.broadcast %cst_140 : f32 to vector<2x8x8xf32>
    %438 = arith.maximumf %436, %437 : vector<2x8x8xf32>
    %439 = arith.mulf %438, %438 : vector<2x8x8xf32>
    %cst_141 = arith.constant dense<0.000000e+00> : vector<2x8xf32>
    %440 = vector.multi_reduction <add>, %439, %cst_141 [2] : vector<2x8x8xf32> to vector<2x8xf32>
    %441 = vector.shape_cast %440 : vector<2x8xf32> to vector<2x8x1xf32>
    %cst_142 = arith.constant 1.000000e+00 : f32
    %442 = vector.broadcast %cst_142 : f32 to vector<2x8x1xf32>
    %443 = arith.subf %441, %442 : vector<2x8x1xf32>
    %444 = arith.mulf %443, %29 : vector<2x8x1xf32>
    %cst_143 = arith.constant 0.000000e+00 : f32
    %445 = vector.broadcast %cst_143 : f32 to vector<2x8x1xf32>
    %446 = arith.cmpf oge, %444, %445 : vector<2x8x1xf32>
    %447 = arith.select %446, %434, %431 : vector<2x8x1xi1>, vector<2x8x1xf32>
    %c26_i32 = arith.constant 26 : i32
    %cst_144 = arith.constant 5.000000e-01 : f32
    %448 = vector.broadcast %cst_144 : f32 to vector<2x8x1xf32>
    %449 = arith.mulf %433, %448 : vector<2x8x1xf32>
    %450 = arith.addf %447, %449 : vector<2x8x1xf32>
    %451 = vector.broadcast %450 : vector<2x8x1xf32> to vector<2x8x8xf32>
    %452 = arith.subf %14, %451 : vector<2x8x8xf32>
    %cst_145 = arith.constant 0.000000e+00 : f32
    %453 = vector.broadcast %cst_145 : f32 to vector<2x8x8xf32>
    %454 = arith.maximumf %452, %453 : vector<2x8x8xf32>
    %455 = arith.mulf %454, %454 : vector<2x8x8xf32>
    %cst_146 = arith.constant dense<0.000000e+00> : vector<2x8xf32>
    %456 = vector.multi_reduction <add>, %455, %cst_146 [2] : vector<2x8x8xf32> to vector<2x8xf32>
    %457 = vector.shape_cast %456 : vector<2x8xf32> to vector<2x8x1xf32>
    %cst_147 = arith.constant 1.000000e+00 : f32
    %458 = vector.broadcast %cst_147 : f32 to vector<2x8x1xf32>
    %459 = arith.subf %457, %458 : vector<2x8x1xf32>
    %460 = arith.mulf %459, %29 : vector<2x8x1xf32>
    %cst_148 = arith.constant 0.000000e+00 : f32
    %461 = vector.broadcast %cst_148 : f32 to vector<2x8x1xf32>
    %462 = arith.cmpf oge, %460, %461 : vector<2x8x1xf32>
    %463 = arith.select %462, %450, %447 : vector<2x8x1xi1>, vector<2x8x1xf32>
    %c27_i32 = arith.constant 27 : i32
    %cst_149 = arith.constant 5.000000e-01 : f32
    %464 = vector.broadcast %cst_149 : f32 to vector<2x8x1xf32>
    %465 = arith.mulf %449, %464 : vector<2x8x1xf32>
    %466 = arith.addf %463, %465 : vector<2x8x1xf32>
    %467 = vector.broadcast %466 : vector<2x8x1xf32> to vector<2x8x8xf32>
    %468 = arith.subf %14, %467 : vector<2x8x8xf32>
    %cst_150 = arith.constant 0.000000e+00 : f32
    %469 = vector.broadcast %cst_150 : f32 to vector<2x8x8xf32>
    %470 = arith.maximumf %468, %469 : vector<2x8x8xf32>
    %471 = arith.mulf %470, %470 : vector<2x8x8xf32>
    %cst_151 = arith.constant dense<0.000000e+00> : vector<2x8xf32>
    %472 = vector.multi_reduction <add>, %471, %cst_151 [2] : vector<2x8x8xf32> to vector<2x8xf32>
    %473 = vector.shape_cast %472 : vector<2x8xf32> to vector<2x8x1xf32>
    %cst_152 = arith.constant 1.000000e+00 : f32
    %474 = vector.broadcast %cst_152 : f32 to vector<2x8x1xf32>
    %475 = arith.subf %473, %474 : vector<2x8x1xf32>
    %476 = arith.mulf %475, %29 : vector<2x8x1xf32>
    %cst_153 = arith.constant 0.000000e+00 : f32
    %477 = vector.broadcast %cst_153 : f32 to vector<2x8x1xf32>
    %478 = arith.cmpf oge, %476, %477 : vector<2x8x1xf32>
    %479 = arith.select %478, %466, %463 : vector<2x8x1xi1>, vector<2x8x1xf32>
    %c28_i32 = arith.constant 28 : i32
    %cst_154 = arith.constant 5.000000e-01 : f32
    %480 = vector.broadcast %cst_154 : f32 to vector<2x8x1xf32>
    %481 = arith.mulf %465, %480 : vector<2x8x1xf32>
    %482 = arith.addf %479, %481 : vector<2x8x1xf32>
    %483 = vector.broadcast %482 : vector<2x8x1xf32> to vector<2x8x8xf32>
    %484 = arith.subf %14, %483 : vector<2x8x8xf32>
    %cst_155 = arith.constant 0.000000e+00 : f32
    %485 = vector.broadcast %cst_155 : f32 to vector<2x8x8xf32>
    %486 = arith.maximumf %484, %485 : vector<2x8x8xf32>
    %487 = arith.mulf %486, %486 : vector<2x8x8xf32>
    %cst_156 = arith.constant dense<0.000000e+00> : vector<2x8xf32>
    %488 = vector.multi_reduction <add>, %487, %cst_156 [2] : vector<2x8x8xf32> to vector<2x8xf32>
    %489 = vector.shape_cast %488 : vector<2x8xf32> to vector<2x8x1xf32>
    %cst_157 = arith.constant 1.000000e+00 : f32
    %490 = vector.broadcast %cst_157 : f32 to vector<2x8x1xf32>
    %491 = arith.subf %489, %490 : vector<2x8x1xf32>
    %492 = arith.mulf %491, %29 : vector<2x8x1xf32>
    %cst_158 = arith.constant 0.000000e+00 : f32
    %493 = vector.broadcast %cst_158 : f32 to vector<2x8x1xf32>
    %494 = arith.cmpf oge, %492, %493 : vector<2x8x1xf32>
    %495 = arith.select %494, %482, %479 : vector<2x8x1xi1>, vector<2x8x1xf32>
    %c29_i32 = arith.constant 29 : i32
    %cst_159 = arith.constant 5.000000e-01 : f32
    %496 = vector.broadcast %cst_159 : f32 to vector<2x8x1xf32>
    %497 = arith.mulf %481, %496 : vector<2x8x1xf32>
    %498 = arith.addf %495, %497 : vector<2x8x1xf32>
    %499 = vector.broadcast %498 : vector<2x8x1xf32> to vector<2x8x8xf32>
    %500 = arith.subf %14, %499 : vector<2x8x8xf32>
    %cst_160 = arith.constant 0.000000e+00 : f32
    %501 = vector.broadcast %cst_160 : f32 to vector<2x8x8xf32>
    %502 = arith.maximumf %500, %501 : vector<2x8x8xf32>
    %503 = arith.mulf %502, %502 : vector<2x8x8xf32>
    %cst_161 = arith.constant dense<0.000000e+00> : vector<2x8xf32>
    %504 = vector.multi_reduction <add>, %503, %cst_161 [2] : vector<2x8x8xf32> to vector<2x8xf32>
    %505 = vector.shape_cast %504 : vector<2x8xf32> to vector<2x8x1xf32>
    %cst_162 = arith.constant 1.000000e+00 : f32
    %506 = vector.broadcast %cst_162 : f32 to vector<2x8x1xf32>
    %507 = arith.subf %505, %506 : vector<2x8x1xf32>
    %508 = arith.mulf %507, %29 : vector<2x8x1xf32>
    %cst_163 = arith.constant 0.000000e+00 : f32
    %509 = vector.broadcast %cst_163 : f32 to vector<2x8x1xf32>
    %510 = arith.cmpf oge, %508, %509 : vector<2x8x1xf32>
    %511 = arith.select %510, %498, %495 : vector<2x8x1xi1>, vector<2x8x1xf32>
    %cst_164 = arith.constant dense<0.000000e+00> : vector<2x8xf32>
    %512 = vector.multi_reduction <add>, %503, %cst_164 [2] : vector<2x8x8xf32> to vector<2x8xf32>
    %513 = vector.shape_cast %512 : vector<2x8xf32> to vector<2x8x1xf32>
    %514 = tpu.reciprocal %513 {approx = true} : vector<2x8x1xf32> -> vector<2x8x1xf32>
    %515 = vector.broadcast %514 : vector<2x8x1xf32> to vector<2x8x8xf32>
    %516 = arith.mulf %503, %515 : vector<2x8x8xf32>
    "tpu.trace_start"() <{level = 10 : i32, message = "wqk,wkd->wqd"}> : () -> ()
    %cst_165 = arith.constant dense<0.000000e+00> : vector<2x8x32xf32>
    %517 = tpu.matmul %516, %11, %cst_165 {dimension_numbers = #tpu.dot_dimension_numbers<[2], [1], [1], [2], [0, 0, 0, 1, 1, 2], [0], [0]>} : vector<2x8x8xf32>, vector<2x8x32xf32>, vector<2x8x32xf32> -> vector<2x8x32xf32>
    "tpu.trace_stop"() : () -> ()
    %518 = vector.shape_cast %517 : vector<2x8x32xf32> to vector<16x32xf32>
    %c0_166 = arith.constant 0 : index
    %c0_167 = arith.constant 0 : index
    %519 = vector.load %arg9[%c0_166, %c0_167] : memref<16x128xf32, #tpu.memory_space<vmem>>, vector<16x32xf32>
    tpu.vector_store %arg9[%c0_166, %c0_167], %518 {strides = array<i32>} : memref<16x128xf32, #tpu.memory_space<vmem>>, vector<16x32xf32>,
    %520 = vector.extract_strided_slice %5 {offsets = [0, 32], sizes = [16, 32], strides = [1, 1]} : vector<16x384xf32> to vector<16x32xf32>
    %521 = vector.shape_cast %520 : vector<16x32xf32> to vector<2x8x32xf32>
    %522 = vector.extract_strided_slice %5 {offsets = [0, 160], sizes = [16, 32], strides = [1, 1]} : vector<16x384xf32> to vector<16x32xf32>
    %523 = vector.shape_cast %522 : vector<16x32xf32> to vector<2x8x32xf32>
    %524 = vector.extract_strided_slice %5 {offsets = [0, 288], sizes = [16, 32], strides = [1, 1]} : vector<16x384xf32> to vector<16x32xf32>
    %525 = vector.shape_cast %524 : vector<16x32xf32> to vector<2x8x32xf32>
    "tpu.trace_start"() <{level = 10 : i32, message = "wqd,wkd->wqk"}> : () -> ()
    %cst_168 = arith.constant dense<0.000000e+00> : vector<2x8x8xf32>
    %526 = tpu.matmul %521, %523, %cst_168 {dimension_numbers = #tpu.dot_dimension_numbers<[2], [2], [1], [1], [0, 0, 0, 1, 1, 1], [0], [0]>} : vector<2x8x32xf32>, vector<2x8x32xf32>, vector<2x8x8xf32> -> vector<2x8x8xf32>
    "tpu.trace_stop"() : () -> ()
    %cst_169 = arith.constant 0.0883883461 : f32
    %527 = vector.broadcast %cst_169 : f32 to vector<2x8x8xf32>
    %528 = arith.mulf %526, %527 : vector<2x8x8xf32>
    %cst_170 = arith.constant dense<0xFF800000> : vector<2x8xf32>
    %529 = vector.multi_reduction <maximumf>, %528, %cst_170 [2] : vector<2x8x8xf32> to vector<2x8xf32>
    %530 = vector.shape_cast %529 : vector<2x8xf32> to vector<2x8x1xf32>
    %cst_171 = arith.constant 1.000000e+00 : f32
    %531 = vector.broadcast %cst_171 : f32 to vector<2x8x1xf32>
    %532 = arith.subf %530, %531 : vector<2x8x1xf32>
    %cst_172 = arith.constant 0.353553385 : f32
    %533 = vector.broadcast %cst_172 : f32 to vector<2x8x1xf32>
    %534 = arith.subf %530, %533 : vector<2x8x1xf32>
    %535 = vector.broadcast %532 : vector<2x8x1xf32> to vector<2x8x8xf32>
    %536 = arith.subf %528, %535 : vector<2x8x8xf32>
    %cst_173 = arith.constant 0.000000e+00 : f32
    %537 = vector.broadcast %cst_173 : f32 to vector<2x8x8xf32>
    %538 = arith.maximumf %536, %537 : vector<2x8x8xf32>
    %539 = arith.mulf %538, %538 : vector<2x8x8xf32>
    %cst_174 = arith.constant dense<0.000000e+00> : vector<2x8xf32>
    %540 = vector.multi_reduction <add>, %539, %cst_174 [2] : vector<2x8x8xf32> to vector<2x8xf32>
    %541 = vector.shape_cast %540 : vector<2x8xf32> to vector<2x8x1xf32>
    %cst_175 = arith.constant 1.000000e+00 : f32
    %542 = vector.broadcast %cst_175 : f32 to vector<2x8x1xf32>
    %543 = arith.subf %541, %542 : vector<2x8x1xf32>
    %544 = arith.subf %534, %532 : vector<2x8x1xf32>
    %cst_176 = arith.constant 0.000000e+00 : f32
    %545 = vector.broadcast %cst_176 : f32 to vector<2x8x8xf32>
    %c0_i32_177 = arith.constant 0 : i32
    %cst_178 = arith.constant 5.000000e-01 : f32
    %546 = vector.broadcast %cst_178 : f32 to vector<2x8x1xf32>
    %547 = arith.mulf %544, %546 : vector<2x8x1xf32>
    %548 = arith.addf %532, %547 : vector<2x8x1xf32>
    %549 = vector.broadcast %548 : vector<2x8x1xf32> to vector<2x8x8xf32>
    %550 = arith.subf %528, %549 : vector<2x8x8xf32>
    %cst_179 = arith.constant 0.000000e+00 : f32
    %551 = vector.broadcast %cst_179 : f32 to vector<2x8x8xf32>
    %552 = arith.maximumf %550, %551 : vector<2x8x8xf32>
    %553 = arith.mulf %552, %552 : vector<2x8x8xf32>
    %cst_180 = arith.constant dense<0.000000e+00> : vector<2x8xf32>
    %554 = vector.multi_reduction <add>, %553, %cst_180 [2] : vector<2x8x8xf32> to vector<2x8xf32>
    %555 = vector.shape_cast %554 : vector<2x8xf32> to vector<2x8x1xf32>
    %cst_181 = arith.constant 1.000000e+00 : f32
    %556 = vector.broadcast %cst_181 : f32 to vector<2x8x1xf32>
    %557 = arith.subf %555, %556 : vector<2x8x1xf32>
    %558 = arith.mulf %557, %543 : vector<2x8x1xf32>
    %cst_182 = arith.constant 0.000000e+00 : f32
    %559 = vector.broadcast %cst_182 : f32 to vector<2x8x1xf32>
    %560 = arith.cmpf oge, %558, %559 : vector<2x8x1xf32>
    %561 = arith.select %560, %548, %532 : vector<2x8x1xi1>, vector<2x8x1xf32>
    %c1_i32_183 = arith.constant 1 : i32
    %cst_184 = arith.constant 5.000000e-01 : f32
    %562 = vector.broadcast %cst_184 : f32 to vector<2x8x1xf32>
    %563 = arith.mulf %547, %562 : vector<2x8x1xf32>
    %564 = arith.addf %561, %563 : vector<2x8x1xf32>
    %565 = vector.broadcast %564 : vector<2x8x1xf32> to vector<2x8x8xf32>
    %566 = arith.subf %528, %565 : vector<2x8x8xf32>
    %cst_185 = arith.constant 0.000000e+00 : f32
    %567 = vector.broadcast %cst_185 : f32 to vector<2x8x8xf32>
    %568 = arith.maximumf %566, %567 : vector<2x8x8xf32>
    %569 = arith.mulf %568, %568 : vector<2x8x8xf32>
    %cst_186 = arith.constant dense<0.000000e+00> : vector<2x8xf32>
    %570 = vector.multi_reduction <add>, %569, %cst_186 [2] : vector<2x8x8xf32> to vector<2x8xf32>
    %571 = vector.shape_cast %570 : vector<2x8xf32> to vector<2x8x1xf32>
    %cst_187 = arith.constant 1.000000e+00 : f32
    %572 = vector.broadcast %cst_187 : f32 to vector<2x8x1xf32>
    %573 = arith.subf %571, %572 : vector<2x8x1xf32>
    %574 = arith.mulf %573, %543 : vector<2x8x1xf32>
    %cst_188 = arith.constant 0.000000e+00 : f32
    %575 = vector.broadcast %cst_188 : f32 to vector<2x8x1xf32>
    %576 = arith.cmpf oge, %574, %575 : vector<2x8x1xf32>
    %577 = arith.select %576, %564, %561 : vector<2x8x1xi1>, vector<2x8x1xf32>
    %c2_i32_189 = arith.constant 2 : i32
    %cst_190 = arith.constant 5.000000e-01 : f32
    %578 = vector.broadcast %cst_190 : f32 to vector<2x8x1xf32>
    %579 = arith.mulf %563, %578 : vector<2x8x1xf32>
    %580 = arith.addf %577, %579 : vector<2x8x1xf32>
    %581 = vector.broadcast %580 : vector<2x8x1xf32> to vector<2x8x8xf32>
    %582 = arith.subf %528, %581 : vector<2x8x8xf32>
    %cst_191 = arith.constant 0.000000e+00 : f32
    %583 = vector.broadcast %cst_191 : f32 to vector<2x8x8xf32>
    %584 = arith.maximumf %582, %583 : vector<2x8x8xf32>
    %585 = arith.mulf %584, %584 : vector<2x8x8xf32>
    %cst_192 = arith.constant dense<0.000000e+00> : vector<2x8xf32>
    %586 = vector.multi_reduction <add>, %585, %cst_192 [2] : vector<2x8x8xf32> to vector<2x8xf32>
    %587 = vector.shape_cast %586 : vector<2x8xf32> to vector<2x8x1xf32>
    %cst_193 = arith.constant 1.000000e+00 : f32
    %588 = vector.broadcast %cst_193 : f32 to vector<2x8x1xf32>
    %589 = arith.subf %587, %588 : vector<2x8x1xf32>
    %590 = arith.mulf %589, %543 : vector<2x8x1xf32>
    %cst_194 = arith.constant 0.000000e+00 : f32
    %591 = vector.broadcast %cst_194 : f32 to vector<2x8x1xf32>
    %592 = arith.cmpf oge, %590, %591 : vector<2x8x1xf32>
    %593 = arith.select %592, %580, %577 : vector<2x8x1xi1>, vector<2x8x1xf32>
    %c3_i32_195 = arith.constant 3 : i32
    %cst_196 = arith.constant 5.000000e-01 : f32
    %594 = vector.broadcast %cst_196 : f32 to vector<2x8x1xf32>
    %595 = arith.mulf %579, %594 : vector<2x8x1xf32>
    %596 = arith.addf %593, %595 : vector<2x8x1xf32>
    %597 = vector.broadcast %596 : vector<2x8x1xf32> to vector<2x8x8xf32>
    %598 = arith.subf %528, %597 : vector<2x8x8xf32>
    %cst_197 = arith.constant 0.000000e+00 : f32
    %599 = vector.broadcast %cst_197 : f32 to vector<2x8x8xf32>
    %600 = arith.maximumf %598, %599 : vector<2x8x8xf32>
    %601 = arith.mulf %600, %600 : vector<2x8x8xf32>
    %cst_198 = arith.constant dense<0.000000e+00> : vector<2x8xf32>
    %602 = vector.multi_reduction <add>, %601, %cst_198 [2] : vector<2x8x8xf32> to vector<2x8xf32>
    %603 = vector.shape_cast %602 : vector<2x8xf32> to vector<2x8x1xf32>
    %cst_199 = arith.constant 1.000000e+00 : f32
    %604 = vector.broadcast %cst_199 : f32 to vector<2x8x1xf32>
    %605 = arith.subf %603, %604 : vector<2x8x1xf32>
    %606 = arith.mulf %605, %543 : vector<2x8x1xf32>
    %cst_200 = arith.constant 0.000000e+00 : f32
    %607 = vector.broadcast %cst_200 : f32 to vector<2x8x1xf32>
    %608 = arith.cmpf oge, %606, %607 : vector<2x8x1xf32>
    %609 = arith.select %608, %596, %593 : vector<2x8x1xi1>, vector<2x8x1xf32>
    %c4_i32_201 = arith.constant 4 : i32
    %cst_202 = arith.constant 5.000000e-01 : f32
    %610 = vector.broadcast %cst_202 : f32 to vector<2x8x1xf32>
    %611 = arith.mulf %595, %610 : vector<2x8x1xf32>
    %612 = arith.addf %609, %611 : vector<2x8x1xf32>
    %613 = vector.broadcast %612 : vector<2x8x1xf32> to vector<2x8x8xf32>
    %614 = arith.subf %528, %613 : vector<2x8x8xf32>
    %cst_203 = arith.constant 0.000000e+00 : f32
    %615 = vector.broadcast %cst_203 : f32 to vector<2x8x8xf32>
    %616 = arith.maximumf %614, %615 : vector<2x8x8xf32>
    %617 = arith.mulf %616, %616 : vector<2x8x8xf32>
    %cst_204 = arith.constant dense<0.000000e+00> : vector<2x8xf32>
    %618 = vector.multi_reduction <add>, %617, %cst_204 [2] : vector<2x8x8xf32> to vector<2x8xf32>
    %619 = vector.shape_cast %618 : vector<2x8xf32> to vector<2x8x1xf32>
    %cst_205 = arith.constant 1.000000e+00 : f32
    %620 = vector.broadcast %cst_205 : f32 to vector<2x8x1xf32>
    %621 = arith.subf %619, %620 : vector<2x8x1xf32>
    %622 = arith.mulf %621, %543 : vector<2x8x1xf32>
    %cst_206 = arith.constant 0.000000e+00 : f32
    %623 = vector.broadcast %cst_206 : f32 to vector<2x8x1xf32>
    %624 = arith.cmpf oge, %622, %623 : vector<2x8x1xf32>
    %625 = arith.select %624, %612, %609 : vector<2x8x1xi1>, vector<2x8x1xf32>
    %c5_i32_207 = arith.constant 5 : i32
    %cst_208 = arith.constant 5.000000e-01 : f32
    %626 = vector.broadcast %cst_208 : f32 to vector<2x8x1xf32>
    %627 = arith.mulf %611, %626 : vector<2x8x1xf32>
    %628 = arith.addf %625, %627 : vector<2x8x1xf32>
    %629 = vector.broadcast %628 : vector<2x8x1xf32> to vector<2x8x8xf32>
    %630 = arith.subf %528, %629 : vector<2x8x8xf32>
    %cst_209 = arith.constant 0.000000e+00 : f32
    %631 = vector.broadcast %cst_209 : f32 to vector<2x8x8xf32>
    %632 = arith.maximumf %630, %631 : vector<2x8x8xf32>
    %633 = arith.mulf %632, %632 : vector<2x8x8xf32>
    %cst_210 = arith.constant dense<0.000000e+00> : vector<2x8xf32>
    %634 = vector.multi_reduction <add>, %633, %cst_210 [2] : vector<2x8x8xf32> to vector<2x8xf32>
    %635 = vector.shape_cast %634 : vector<2x8xf32> to vector<2x8x1xf32>
    %cst_211 = arith.constant 1.000000e+00 : f32
    %636 = vector.broadcast %cst_211 : f32 to vector<2x8x1xf32>
    %637 = arith.subf %635, %636 : vector<2x8x1xf32>
    %638 = arith.mulf %637, %543 : vector<2x8x1xf32>
    %cst_212 = arith.constant 0.000000e+00 : f32
    %639 = vector.broadcast %cst_212 : f32 to vector<2x8x1xf32>
    %640 = arith.cmpf oge, %638, %639 : vector<2x8x1xf32>
    %641 = arith.select %640, %628, %625 : vector<2x8x1xi1>, vector<2x8x1xf32>
    %c6_i32_213 = arith.constant 6 : i32
    %cst_214 = arith.constant 5.000000e-01 : f32
    %642 = vector.broadcast %cst_214 : f32 to vector<2x8x1xf32>
    %643 = arith.mulf %627, %642 : vector<2x8x1xf32>
    %644 = arith.addf %641, %643 : vector<2x8x1xf32>
    %645 = vector.broadcast %644 : vector<2x8x1xf32> to vector<2x8x8xf32>
    %646 = arith.subf %528, %645 : vector<2x8x8xf32>
    %cst_215 = arith.constant 0.000000e+00 : f32
    %647 = vector.broadcast %cst_215 : f32 to vector<2x8x8xf32>
    %648 = arith.maximumf %646, %647 : vector<2x8x8xf32>
    %649 = arith.mulf %648, %648 : vector<2x8x8xf32>
    %cst_216 = arith.constant dense<0.000000e+00> : vector<2x8xf32>
    %650 = vector.multi_reduction <add>, %649, %cst_216 [2] : vector<2x8x8xf32> to vector<2x8xf32>
    %651 = vector.shape_cast %650 : vector<2x8xf32> to vector<2x8x1xf32>
    %cst_217 = arith.constant 1.000000e+00 : f32
    %652 = vector.broadcast %cst_217 : f32 to vector<2x8x1xf32>
    %653 = arith.subf %651, %652 : vector<2x8x1xf32>
    %654 = arith.mulf %653, %543 : vector<2x8x1xf32>
    %cst_218 = arith.constant 0.000000e+00 : f32
    %655 = vector.broadcast %cst_218 : f32 to vector<2x8x1xf32>
    %656 = arith.cmpf oge, %654, %655 : vector<2x8x1xf32>
    %657 = arith.select %656, %644, %641 : vector<2x8x1xi1>, vector<2x8x1xf32>
    %c7_i32_219 = arith.constant 7 : i32
    %cst_220 = arith.constant 5.000000e-01 : f32
    %658 = vector.broadcast %cst_220 : f32 to vector<2x8x1xf32>
    %659 = arith.mulf %643, %658 : vector<2x8x1xf32>
    %660 = arith.addf %657, %659 : vector<2x8x1xf32>
    %661 = vector.broadcast %660 : vector<2x8x1xf32> to vector<2x8x8xf32>
    %662 = arith.subf %528, %661 : vector<2x8x8xf32>
    %cst_221 = arith.constant 0.000000e+00 : f32
    %663 = vector.broadcast %cst_221 : f32 to vector<2x8x8xf32>
    %664 = arith.maximumf %662, %663 : vector<2x8x8xf32>
    %665 = arith.mulf %664, %664 : vector<2x8x8xf32>
    %cst_222 = arith.constant dense<0.000000e+00> : vector<2x8xf32>
    %666 = vector.multi_reduction <add>, %665, %cst_222 [2] : vector<2x8x8xf32> to vector<2x8xf32>
    %667 = vector.shape_cast %666 : vector<2x8xf32> to vector<2x8x1xf32>
    %cst_223 = arith.constant 1.000000e+00 : f32
    %668 = vector.broadcast %cst_223 : f32 to vector<2x8x1xf32>
    %669 = arith.subf %667, %668 : vector<2x8x1xf32>
    %670 = arith.mulf %669, %543 : vector<2x8x1xf32>
    %cst_224 = arith.constant 0.000000e+00 : f32
    %671 = vector.broadcast %cst_224 : f32 to vector<2x8x1xf32>
    %672 = arith.cmpf oge, %670, %671 : vector<2x8x1xf32>
    %673 = arith.select %672, %660, %657 : vector<2x8x1xi1>, vector<2x8x1xf32>
    %c8_i32_225 = arith.constant 8 : i32
    %cst_226 = arith.constant 5.000000e-01 : f32
    %674 = vector.broadcast %cst_226 : f32 to vector<2x8x1xf32>
    %675 = arith.mulf %659, %674 : vector<2x8x1xf32>
    %676 = arith.addf %673, %675 : vector<2x8x1xf32>
    %677 = vector.broadcast %676 : vector<2x8x1xf32> to vector<2x8x8xf32>
    %678 = arith.subf %528, %677 : vector<2x8x8xf32>
    %cst_227 = arith.constant 0.000000e+00 : f32
    %679 = vector.broadcast %cst_227 : f32 to vector<2x8x8xf32>
    %680 = arith.maximumf %678, %679 : vector<2x8x8xf32>
    %681 = arith.mulf %680, %680 : vector<2x8x8xf32>
    %cst_228 = arith.constant dense<0.000000e+00> : vector<2x8xf32>
    %682 = vector.multi_reduction <add>, %681, %cst_228 [2] : vector<2x8x8xf32> to vector<2x8xf32>
    %683 = vector.shape_cast %682 : vector<2x8xf32> to vector<2x8x1xf32>
    %cst_229 = arith.constant 1.000000e+00 : f32
    %684 = vector.broadcast %cst_229 : f32 to vector<2x8x1xf32>
    %685 = arith.subf %683, %684 : vector<2x8x1xf32>
    %686 = arith.mulf %685, %543 : vector<2x8x1xf32>
    %cst_230 = arith.constant 0.000000e+00 : f32
    %687 = vector.broadcast %cst_230 : f32 to vector<2x8x1xf32>
    %688 = arith.cmpf oge, %686, %687 : vector<2x8x1xf32>
    %689 = arith.select %688, %676, %673 : vector<2x8x1xi1>, vector<2x8x1xf32>
    %c9_i32_231 = arith.constant 9 : i32
    %cst_232 = arith.constant 5.000000e-01 : f32
    %690 = vector.broadcast %cst_232 : f32 to vector<2x8x1xf32>
    %691 = arith.mulf %675, %690 : vector<2x8x1xf32>
    %692 = arith.addf %689, %691 : vector<2x8x1xf32>
    %693 = vector.broadcast %692 : vector<2x8x1xf32> to vector<2x8x8xf32>
    %694 = arith.subf %528, %693 : vector<2x8x8xf32>
    %cst_233 = arith.constant 0.000000e+00 : f32
    %695 = vector.broadcast %cst_233 : f32 to vector<2x8x8xf32>
    %696 = arith.maximumf %694, %695 : vector<2x8x8xf32>
    %697 = arith.mulf %696, %696 : vector<2x8x8xf32>
    %cst_234 = arith.constant dense<0.000000e+00> : vector<2x8xf32>
    %698 = vector.multi_reduction <add>, %697, %cst_234 [2] : vector<2x8x8xf32> to vector<2x8xf32>
    %699 = vector.shape_cast %698 : vector<2x8xf32> to vector<2x8x1xf32>
    %cst_235 = arith.constant 1.000000e+00 : f32
    %700 = vector.broadcast %cst_235 : f32 to vector<2x8x1xf32>
    %701 = arith.subf %699, %700 : vector<2x8x1xf32>
    %702 = arith.mulf %701, %543 : vector<2x8x1xf32>
    %cst_236 = arith.constant 0.000000e+00 : f32
    %703 = vector.broadcast %cst_236 : f32 to vector<2x8x1xf32>
    %704 = arith.cmpf oge, %702, %703 : vector<2x8x1xf32>
    %705 = arith.select %704, %692, %689 : vector<2x8x1xi1>, vector<2x8x1xf32>
    %c10_i32_237 = arith.constant 10 : i32
    %cst_238 = arith.constant 5.000000e-01 : f32
    %706 = vector.broadcast %cst_238 : f32 to vector<2x8x1xf32>
    %707 = arith.mulf %691, %706 : vector<2x8x1xf32>
    %708 = arith.addf %705, %707 : vector<2x8x1xf32>
    %709 = vector.broadcast %708 : vector<2x8x1xf32> to vector<2x8x8xf32>
    %710 = arith.subf %528, %709 : vector<2x8x8xf32>
    %cst_239 = arith.constant 0.000000e+00 : f32
    %711 = vector.broadcast %cst_239 : f32 to vector<2x8x8xf32>
    %712 = arith.maximumf %710, %711 : vector<2x8x8xf32>
    %713 = arith.mulf %712, %712 : vector<2x8x8xf32>
    %cst_240 = arith.constant dense<0.000000e+00> : vector<2x8xf32>
    %714 = vector.multi_reduction <add>, %713, %cst_240 [2] : vector<2x8x8xf32> to vector<2x8xf32>
    %715 = vector.shape_cast %714 : vector<2x8xf32> to vector<2x8x1xf32>
    %cst_241 = arith.constant 1.000000e+00 : f32
    %716 = vector.broadcast %cst_241 : f32 to vector<2x8x1xf32>
    %717 = arith.subf %715, %716 : vector<2x8x1xf32>
    %718 = arith.mulf %717, %543 : vector<2x8x1xf32>
    %cst_242 = arith.constant 0.000000e+00 : f32
    %719 = vector.broadcast %cst_242 : f32 to vector<2x8x1xf32>
    %720 = arith.cmpf oge, %718, %719 : vector<2x8x1xf32>
    %721 = arith.select %720, %708, %705 : vector<2x8x1xi1>, vector<2x8x1xf32>
    %c11_i32_243 = arith.constant 11 : i32
    %cst_244 = arith.constant 5.000000e-01 : f32
    %722 = vector.broadcast %cst_244 : f32 to vector<2x8x1xf32>
    %723 = arith.mulf %707, %722 : vector<2x8x1xf32>
    %724 = arith.addf %721, %723 : vector<2x8x1xf32>
    %725 = vector.broadcast %724 : vector<2x8x1xf32> to vector<2x8x8xf32>
    %726 = arith.subf %528, %725 : vector<2x8x8xf32>
    %cst_245 = arith.constant 0.000000e+00 : f32
    %727 = vector.broadcast %cst_245 : f32 to vector<2x8x8xf32>
    %728 = arith.maximumf %726, %727 : vector<2x8x8xf32>
    %729 = arith.mulf %728, %728 : vector<2x8x8xf32>
    %cst_246 = arith.constant dense<0.000000e+00> : vector<2x8xf32>
    %730 = vector.multi_reduction <add>, %729, %cst_246 [2] : vector<2x8x8xf32> to vector<2x8xf32>
    %731 = vector.shape_cast %730 : vector<2x8xf32> to vector<2x8x1xf32>
    %cst_247 = arith.constant 1.000000e+00 : f32
    %732 = vector.broadcast %cst_247 : f32 to vector<2x8x1xf32>
    %733 = arith.subf %731, %732 : vector<2x8x1xf32>
    %734 = arith.mulf %733, %543 : vector<2x8x1xf32>
    %cst_248 = arith.constant 0.000000e+00 : f32
    %735 = vector.broadcast %cst_248 : f32 to vector<2x8x1xf32>
    %736 = arith.cmpf oge, %734, %735 : vector<2x8x1xf32>
    %737 = arith.select %736, %724, %721 : vector<2x8x1xi1>, vector<2x8x1xf32>
    %c12_i32_249 = arith.constant 12 : i32
    %cst_250 = arith.constant 5.000000e-01 : f32
    %738 = vector.broadcast %cst_250 : f32 to vector<2x8x1xf32>
    %739 = arith.mulf %723, %738 : vector<2x8x1xf32>
    %740 = arith.addf %737, %739 : vector<2x8x1xf32>
    %741 = vector.broadcast %740 : vector<2x8x1xf32> to vector<2x8x8xf32>
    %742 = arith.subf %528, %741 : vector<2x8x8xf32>
    %cst_251 = arith.constant 0.000000e+00 : f32
    %743 = vector.broadcast %cst_251 : f32 to vector<2x8x8xf32>
    %744 = arith.maximumf %742, %743 : vector<2x8x8xf32>
    %745 = arith.mulf %744, %744 : vector<2x8x8xf32>
    %cst_252 = arith.constant dense<0.000000e+00> : vector<2x8xf32>
    %746 = vector.multi_reduction <add>, %745, %cst_252 [2] : vector<2x8x8xf32> to vector<2x8xf32>
    %747 = vector.shape_cast %746 : vector<2x8xf32> to vector<2x8x1xf32>
    %cst_253 = arith.constant 1.000000e+00 : f32
    %748 = vector.broadcast %cst_253 : f32 to vector<2x8x1xf32>
    %749 = arith.subf %747, %748 : vector<2x8x1xf32>
    %750 = arith.mulf %749, %543 : vector<2x8x1xf32>
    %cst_254 = arith.constant 0.000000e+00 : f32
    %751 = vector.broadcast %cst_254 : f32 to vector<2x8x1xf32>
    %752 = arith.cmpf oge, %750, %751 : vector<2x8x1xf32>
    %753 = arith.select %752, %740, %737 : vector<2x8x1xi1>, vector<2x8x1xf32>
    %c13_i32_255 = arith.constant 13 : i32
    %cst_256 = arith.constant 5.000000e-01 : f32
    %754 = vector.broadcast %cst_256 : f32 to vector<2x8x1xf32>
    %755 = arith.mulf %739, %754 : vector<2x8x1xf32>
    %756 = arith.addf %753, %755 : vector<2x8x1xf32>
    %757 = vector.broadcast %756 : vector<2x8x1xf32> to vector<2x8x8xf32>
    %758 = arith.subf %528, %757 : vector<2x8x8xf32>
    %cst_257 = arith.constant 0.000000e+00 : f32
    %759 = vector.broadcast %cst_257 : f32 to vector<2x8x8xf32>
    %760 = arith.maximumf %758, %759 : vector<2x8x8xf32>
    %761 = arith.mulf %760, %760 : vector<2x8x8xf32>
    %cst_258 = arith.constant dense<0.000000e+00> : vector<2x8xf32>
    %762 = vector.multi_reduction <add>, %761, %cst_258 [2] : vector<2x8x8xf32> to vector<2x8xf32>
    %763 = vector.shape_cast %762 : vector<2x8xf32> to vector<2x8x1xf32>
    %cst_259 = arith.constant 1.000000e+00 : f32
    %764 = vector.broadcast %cst_259 : f32 to vector<2x8x1xf32>
    %765 = arith.subf %763, %764 : vector<2x8x1xf32>
    %766 = arith.mulf %765, %543 : vector<2x8x1xf32>
    %cst_260 = arith.constant 0.000000e+00 : f32
    %767 = vector.broadcast %cst_260 : f32 to vector<2x8x1xf32>
    %768 = arith.cmpf oge, %766, %767 : vector<2x8x1xf32>
    %769 = arith.select %768, %756, %753 : vector<2x8x1xi1>, vector<2x8x1xf32>
    %c14_i32_261 = arith.constant 14 : i32
    %cst_262 = arith.constant 5.000000e-01 : f32
    %770 = vector.broadcast %cst_262 : f32 to vector<2x8x1xf32>
    %771 = arith.mulf %755, %770 : vector<2x8x1xf32>
    %772 = arith.addf %769, %771 : vector<2x8x1xf32>
    %773 = vector.broadcast %772 : vector<2x8x1xf32> to vector<2x8x8xf32>
    %774 = arith.subf %528, %773 : vector<2x8x8xf32>
    %cst_263 = arith.constant 0.000000e+00 : f32
    %775 = vector.broadcast %cst_263 : f32 to vector<2x8x8xf32>
    %776 = arith.maximumf %774, %775 : vector<2x8x8xf32>
    %777 = arith.mulf %776, %776 : vector<2x8x8xf32>
    %cst_264 = arith.constant dense<0.000000e+00> : vector<2x8xf32>
    %778 = vector.multi_reduction <add>, %777, %cst_264 [2] : vector<2x8x8xf32> to vector<2x8xf32>
    %779 = vector.shape_cast %778 : vector<2x8xf32> to vector<2x8x1xf32>
    %cst_265 = arith.constant 1.000000e+00 : f32
    %780 = vector.broadcast %cst_265 : f32 to vector<2x8x1xf32>
    %781 = arith.subf %779, %780 : vector<2x8x1xf32>
    %782 = arith.mulf %781, %543 : vector<2x8x1xf32>
    %cst_266 = arith.constant 0.000000e+00 : f32
    %783 = vector.broadcast %cst_266 : f32 to vector<2x8x1xf32>
    %784 = arith.cmpf oge, %782, %783 : vector<2x8x1xf32>
    %785 = arith.select %784, %772, %769 : vector<2x8x1xi1>, vector<2x8x1xf32>
    %c15_i32_267 = arith.constant 15 : i32
    %cst_268 = arith.constant 5.000000e-01 : f32
    %786 = vector.broadcast %cst_268 : f32 to vector<2x8x1xf32>
    %787 = arith.mulf %771, %786 : vector<2x8x1xf32>
    %788 = arith.addf %785, %787 : vector<2x8x1xf32>
    %789 = vector.broadcast %788 : vector<2x8x1xf32> to vector<2x8x8xf32>
    %790 = arith.subf %528, %789 : vector<2x8x8xf32>
    %cst_269 = arith.constant 0.000000e+00 : f32
    %791 = vector.broadcast %cst_269 : f32 to vector<2x8x8xf32>
    %792 = arith.maximumf %790, %791 : vector<2x8x8xf32>
    %793 = arith.mulf %792, %792 : vector<2x8x8xf32>
    %cst_270 = arith.constant dense<0.000000e+00> : vector<2x8xf32>
    %794 = vector.multi_reduction <add>, %793, %cst_270 [2] : vector<2x8x8xf32> to vector<2x8xf32>
    %795 = vector.shape_cast %794 : vector<2x8xf32> to vector<2x8x1xf32>
    %cst_271 = arith.constant 1.000000e+00 : f32
    %796 = vector.broadcast %cst_271 : f32 to vector<2x8x1xf32>
    %797 = arith.subf %795, %796 : vector<2x8x1xf32>
    %798 = arith.mulf %797, %543 : vector<2x8x1xf32>
    %cst_272 = arith.constant 0.000000e+00 : f32
    %799 = vector.broadcast %cst_272 : f32 to vector<2x8x1xf32>
    %800 = arith.cmpf oge, %798, %799 : vector<2x8x1xf32>
    %801 = arith.select %800, %788, %785 : vector<2x8x1xi1>, vector<2x8x1xf32>
    %c16_i32_273 = arith.constant 16 : i32
    %cst_274 = arith.constant 5.000000e-01 : f32
    %802 = vector.broadcast %cst_274 : f32 to vector<2x8x1xf32>
    %803 = arith.mulf %787, %802 : vector<2x8x1xf32>
    %804 = arith.addf %801, %803 : vector<2x8x1xf32>
    %805 = vector.broadcast %804 : vector<2x8x1xf32> to vector<2x8x8xf32>
    %806 = arith.subf %528, %805 : vector<2x8x8xf32>
    %cst_275 = arith.constant 0.000000e+00 : f32
    %807 = vector.broadcast %cst_275 : f32 to vector<2x8x8xf32>
    %808 = arith.maximumf %806, %807 : vector<2x8x8xf32>
    %809 = arith.mulf %808, %808 : vector<2x8x8xf32>
    %cst_276 = arith.constant dense<0.000000e+00> : vector<2x8xf32>
    %810 = vector.multi_reduction <add>, %809, %cst_276 [2] : vector<2x8x8xf32> to vector<2x8xf32>
    %811 = vector.shape_cast %810 : vector<2x8xf32> to vector<2x8x1xf32>
    %cst_277 = arith.constant 1.000000e+00 : f32
    %812 = vector.broadcast %cst_277 : f32 to vector<2x8x1xf32>
    %813 = arith.subf %811, %812 : vector<2x8x1xf32>
    %814 = arith.mulf %813, %543 : vector<2x8x1xf32>
    %cst_278 = arith.constant 0.000000e+00 : f32
    %815 = vector.broadcast %cst_278 : f32 to vector<2x8x1xf32>
    %816 = arith.cmpf oge, %814, %815 : vector<2x8x1xf32>
    %817 = arith.select %816, %804, %801 : vector<2x8x1xi1>, vector<2x8x1xf32>
    %c17_i32_279 = arith.constant 17 : i32
    %cst_280 = arith.constant 5.000000e-01 : f32
    %818 = vector.broadcast %cst_280 : f32 to vector<2x8x1xf32>
    %819 = arith.mulf %803, %818 : vector<2x8x1xf32>
    %820 = arith.addf %817, %819 : vector<2x8x1xf32>
    %821 = vector.broadcast %820 : vector<2x8x1xf32> to vector<2x8x8xf32>
    %822 = arith.subf %528, %821 : vector<2x8x8xf32>
    %cst_281 = arith.constant 0.000000e+00 : f32
    %823 = vector.broadcast %cst_281 : f32 to vector<2x8x8xf32>
    %824 = arith.maximumf %822, %823 : vector<2x8x8xf32>
    %825 = arith.mulf %824, %824 : vector<2x8x8xf32>
    %cst_282 = arith.constant dense<0.000000e+00> : vector<2x8xf32>
    %826 = vector.multi_reduction <add>, %825, %cst_282 [2] : vector<2x8x8xf32> to vector<2x8xf32>
    %827 = vector.shape_cast %826 : vector<2x8xf32> to vector<2x8x1xf32>
    %cst_283 = arith.constant 1.000000e+00 : f32
    %828 = vector.broadcast %cst_283 : f32 to vector<2x8x1xf32>
    %829 = arith.subf %827, %828 : vector<2x8x1xf32>
    %830 = arith.mulf %829, %543 : vector<2x8x1xf32>
    %cst_284 = arith.constant 0.000000e+00 : f32
    %831 = vector.broadcast %cst_284 : f32 to vector<2x8x1xf32>
    %832 = arith.cmpf oge, %830, %831 : vector<2x8x1xf32>
    %833 = arith.select %832, %820, %817 : vector<2x8x1xi1>, vector<2x8x1xf32>
    %c18_i32_285 = arith.constant 18 : i32
    %cst_286 = arith.constant 5.000000e-01 : f32
    %834 = vector.broadcast %cst_286 : f32 to vector<2x8x1xf32>
    %835 = arith.mulf %819, %834 : vector<2x8x1xf32>
    %836 = arith.addf %833, %835 : vector<2x8x1xf32>
    %837 = vector.broadcast %836 : vector<2x8x1xf32> to vector<2x8x8xf32>
    %838 = arith.subf %528, %837 : vector<2x8x8xf32>
    %cst_287 = arith.constant 0.000000e+00 : f32
    %839 = vector.broadcast %cst_287 : f32 to vector<2x8x8xf32>
    %840 = arith.maximumf %838, %839 : vector<2x8x8xf32>
    %841 = arith.mulf %840, %840 : vector<2x8x8xf32>
    %cst_288 = arith.constant dense<0.000000e+00> : vector<2x8xf32>
    %842 = vector.multi_reduction <add>, %841, %cst_288 [2] : vector<2x8x8xf32> to vector<2x8xf32>
    %843 = vector.shape_cast %842 : vector<2x8xf32> to vector<2x8x1xf32>
    %cst_289 = arith.constant 1.000000e+00 : f32
    %844 = vector.broadcast %cst_289 : f32 to vector<2x8x1xf32>
    %845 = arith.subf %843, %844 : vector<2x8x1xf32>
    %846 = arith.mulf %845, %543 : vector<2x8x1xf32>
    %cst_290 = arith.constant 0.000000e+00 : f32
    %847 = vector.broadcast %cst_290 : f32 to vector<2x8x1xf32>
    %848 = arith.cmpf oge, %846, %847 : vector<2x8x1xf32>
    %849 = arith.select %848, %836, %833 : vector<2x8x1xi1>, vector<2x8x1xf32>
    %c19_i32_291 = arith.constant 19 : i32
    %cst_292 = arith.constant 5.000000e-01 : f32
    %850 = vector.broadcast %cst_292 : f32 to vector<2x8x1xf32>
    %851 = arith.mulf %835, %850 : vector<2x8x1xf32>
    %852 = arith.addf %849, %851 : vector<2x8x1xf32>
    %853 = vector.broadcast %852 : vector<2x8x1xf32> to vector<2x8x8xf32>
    %854 = arith.subf %528, %853 : vector<2x8x8xf32>
    %cst_293 = arith.constant 0.000000e+00 : f32
    %855 = vector.broadcast %cst_293 : f32 to vector<2x8x8xf32>
    %856 = arith.maximumf %854, %855 : vector<2x8x8xf32>
    %857 = arith.mulf %856, %856 : vector<2x8x8xf32>
    %cst_294 = arith.constant dense<0.000000e+00> : vector<2x8xf32>
    %858 = vector.multi_reduction <add>, %857, %cst_294 [2] : vector<2x8x8xf32> to vector<2x8xf32>
    %859 = vector.shape_cast %858 : vector<2x8xf32> to vector<2x8x1xf32>
    %cst_295 = arith.constant 1.000000e+00 : f32
    %860 = vector.broadcast %cst_295 : f32 to vector<2x8x1xf32>
    %861 = arith.subf %859, %860 : vector<2x8x1xf32>
    %862 = arith.mulf %861, %543 : vector<2x8x1xf32>
    %cst_296 = arith.constant 0.000000e+00 : f32
    %863 = vector.broadcast %cst_296 : f32 to vector<2x8x1xf32>
    %864 = arith.cmpf oge, %862, %863 : vector<2x8x1xf32>
    %865 = arith.select %864, %852, %849 : vector<2x8x1xi1>, vector<2x8x1xf32>
    %c20_i32_297 = arith.constant 20 : i32
    %cst_298 = arith.constant 5.000000e-01 : f32
    %866 = vector.broadcast %cst_298 : f32 to vector<2x8x1xf32>
    %867 = arith.mulf %851, %866 : vector<2x8x1xf32>
    %868 = arith.addf %865, %867 : vector<2x8x1xf32>
    %869 = vector.broadcast %868 : vector<2x8x1xf32> to vector<2x8x8xf32>
    %870 = arith.subf %528, %869 : vector<2x8x8xf32>
    %cst_299 = arith.constant 0.000000e+00 : f32
    %871 = vector.broadcast %cst_299 : f32 to vector<2x8x8xf32>
    %872 = arith.maximumf %870, %871 : vector<2x8x8xf32>
    %873 = arith.mulf %872, %872 : vector<2x8x8xf32>
    %cst_300 = arith.constant dense<0.000000e+00> : vector<2x8xf32>
    %874 = vector.multi_reduction <add>, %873, %cst_300 [2] : vector<2x8x8xf32> to vector<2x8xf32>
    %875 = vector.shape_cast %874 : vector<2x8xf32> to vector<2x8x1xf32>
    %cst_301 = arith.constant 1.000000e+00 : f32
    %876 = vector.broadcast %cst_301 : f32 to vector<2x8x1xf32>
    %877 = arith.subf %875, %876 : vector<2x8x1xf32>
    %878 = arith.mulf %877, %543 : vector<2x8x1xf32>
    %cst_302 = arith.constant 0.000000e+00 : f32
    %879 = vector.broadcast %cst_302 : f32 to vector<2x8x1xf32>
    %880 = arith.cmpf oge, %878, %879 : vector<2x8x1xf32>
    %881 = arith.select %880, %868, %865 : vector<2x8x1xi1>, vector<2x8x1xf32>
    %c21_i32_303 = arith.constant 21 : i32
    %cst_304 = arith.constant 5.000000e-01 : f32
    %882 = vector.broadcast %cst_304 : f32 to vector<2x8x1xf32>
    %883 = arith.mulf %867, %882 : vector<2x8x1xf32>
    %884 = arith.addf %881, %883 : vector<2x8x1xf32>
    %885 = vector.broadcast %884 : vector<2x8x1xf32> to vector<2x8x8xf32>
    %886 = arith.subf %528, %885 : vector<2x8x8xf32>
    %cst_305 = arith.constant 0.000000e+00 : f32
    %887 = vector.broadcast %cst_305 : f32 to vector<2x8x8xf32>
    %888 = arith.maximumf %886, %887 : vector<2x8x8xf32>
    %889 = arith.mulf %888, %888 : vector<2x8x8xf32>
    %cst_306 = arith.constant dense<0.000000e+00> : vector<2x8xf32>
    %890 = vector.multi_reduction <add>, %889, %cst_306 [2] : vector<2x8x8xf32> to vector<2x8xf32>
    %891 = vector.shape_cast %890 : vector<2x8xf32> to vector<2x8x1xf32>
    %cst_307 = arith.constant 1.000000e+00 : f32
    %892 = vector.broadcast %cst_307 : f32 to vector<2x8x1xf32>
    %893 = arith.subf %891, %892 : vector<2x8x1xf32>
    %894 = arith.mulf %893, %543 : vector<2x8x1xf32>
    %cst_308 = arith.constant 0.000000e+00 : f32
    %895 = vector.broadcast %cst_308 : f32 to vector<2x8x1xf32>
    %896 = arith.cmpf oge, %894, %895 : vector<2x8x1xf32>
    %897 = arith.select %896, %884, %881 : vector<2x8x1xi1>, vector<2x8x1xf32>
    %c22_i32_309 = arith.constant 22 : i32
    %cst_310 = arith.constant 5.000000e-01 : f32
    %898 = vector.broadcast %cst_310 : f32 to vector<2x8x1xf32>
    %899 = arith.mulf %883, %898 : vector<2x8x1xf32>
    %900 = arith.addf %897, %899 : vector<2x8x1xf32>
    %901 = vector.broadcast %900 : vector<2x8x1xf32> to vector<2x8x8xf32>
    %902 = arith.subf %528, %901 : vector<2x8x8xf32>
    %cst_311 = arith.constant 0.000000e+00 : f32
    %903 = vector.broadcast %cst_311 : f32 to vector<2x8x8xf32>
    %904 = arith.maximumf %902, %903 : vector<2x8x8xf32>
    %905 = arith.mulf %904, %904 : vector<2x8x8xf32>
    %cst_312 = arith.constant dense<0.000000e+00> : vector<2x8xf32>
    %906 = vector.multi_reduction <add>, %905, %cst_312 [2] : vector<2x8x8xf32> to vector<2x8xf32>
    %907 = vector.shape_cast %906 : vector<2x8xf32> to vector<2x8x1xf32>
    %cst_313 = arith.constant 1.000000e+00 : f32
    %908 = vector.broadcast %cst_313 : f32 to vector<2x8x1xf32>
    %909 = arith.subf %907, %908 : vector<2x8x1xf32>
    %910 = arith.mulf %909, %543 : vector<2x8x1xf32>
    %cst_314 = arith.constant 0.000000e+00 : f32
    %911 = vector.broadcast %cst_314 : f32 to vector<2x8x1xf32>
    %912 = arith.cmpf oge, %910, %911 : vector<2x8x1xf32>
    %913 = arith.select %912, %900, %897 : vector<2x8x1xi1>, vector<2x8x1xf32>
    %c23_i32_315 = arith.constant 23 : i32
    %cst_316 = arith.constant 5.000000e-01 : f32
    %914 = vector.broadcast %cst_316 : f32 to vector<2x8x1xf32>
    %915 = arith.mulf %899, %914 : vector<2x8x1xf32>
    %916 = arith.addf %913, %915 : vector<2x8x1xf32>
    %917 = vector.broadcast %916 : vector<2x8x1xf32> to vector<2x8x8xf32>
    %918 = arith.subf %528, %917 : vector<2x8x8xf32>
    %cst_317 = arith.constant 0.000000e+00 : f32
    %919 = vector.broadcast %cst_317 : f32 to vector<2x8x8xf32>
    %920 = arith.maximumf %918, %919 : vector<2x8x8xf32>
    %921 = arith.mulf %920, %920 : vector<2x8x8xf32>
    %cst_318 = arith.constant dense<0.000000e+00> : vector<2x8xf32>
    %922 = vector.multi_reduction <add>, %921, %cst_318 [2] : vector<2x8x8xf32> to vector<2x8xf32>
    %923 = vector.shape_cast %922 : vector<2x8xf32> to vector<2x8x1xf32>
    %cst_319 = arith.constant 1.000000e+00 : f32
    %924 = vector.broadcast %cst_319 : f32 to vector<2x8x1xf32>
    %925 = arith.subf %923, %924 : vector<2x8x1xf32>
    %926 = arith.mulf %925, %543 : vector<2x8x1xf32>
    %cst_320 = arith.constant 0.000000e+00 : f32
    %927 = vector.broadcast %cst_320 : f32 to vector<2x8x1xf32>
    %928 = arith.cmpf oge, %926, %927 : vector<2x8x1xf32>
    %929 = arith.select %928, %916, %913 : vector<2x8x1xi1>, vector<2x8x1xf32>
    %c24_i32_321 = arith.constant 24 : i32
    %cst_322 = arith.constant 5.000000e-01 : f32
    %930 = vector.broadcast %cst_322 : f32 to vector<2x8x1xf32>
    %931 = arith.mulf %915, %930 : vector<2x8x1xf32>
    %932 = arith.addf %929, %931 : vector<2x8x1xf32>
    %933 = vector.broadcast %932 : vector<2x8x1xf32> to vector<2x8x8xf32>
    %934 = arith.subf %528, %933 : vector<2x8x8xf32>
    %cst_323 = arith.constant 0.000000e+00 : f32
    %935 = vector.broadcast %cst_323 : f32 to vector<2x8x8xf32>
    %936 = arith.maximumf %934, %935 : vector<2x8x8xf32>
    %937 = arith.mulf %936, %936 : vector<2x8x8xf32>
    %cst_324 = arith.constant dense<0.000000e+00> : vector<2x8xf32>
    %938 = vector.multi_reduction <add>, %937, %cst_324 [2] : vector<2x8x8xf32> to vector<2x8xf32>
    %939 = vector.shape_cast %938 : vector<2x8xf32> to vector<2x8x1xf32>
    %cst_325 = arith.constant 1.000000e+00 : f32
    %940 = vector.broadcast %cst_325 : f32 to vector<2x8x1xf32>
    %941 = arith.subf %939, %940 : vector<2x8x1xf32>
    %942 = arith.mulf %941, %543 : vector<2x8x1xf32>
    %cst_326 = arith.constant 0.000000e+00 : f32
    %943 = vector.broadcast %cst_326 : f32 to vector<2x8x1xf32>
    %944 = arith.cmpf oge, %942, %943 : vector<2x8x1xf32>
    %945 = arith.select %944, %932, %929 : vector<2x8x1xi1>, vector<2x8x1xf32>
    %c25_i32_327 = arith.constant 25 : i32
    %cst_328 = arith.constant 5.000000e-01 : f32
    %946 = vector.broadcast %cst_328 : f32 to vector<2x8x1xf32>
    %947 = arith.mulf %931, %946 : vector<2x8x1xf32>
    %948 = arith.addf %945, %947 : vector<2x8x1xf32>
    %949 = vector.broadcast %948 : vector<2x8x1xf32> to vector<2x8x8xf32>
    %950 = arith.subf %528, %949 : vector<2x8x8xf32>
    %cst_329 = arith.constant 0.000000e+00 : f32
    %951 = vector.broadcast %cst_329 : f32 to vector<2x8x8xf32>
    %952 = arith.maximumf %950, %951 : vector<2x8x8xf32>
    %953 = arith.mulf %952, %952 : vector<2x8x8xf32>
    %cst_330 = arith.constant dense<0.000000e+00> : vector<2x8xf32>
    %954 = vector.multi_reduction <add>, %953, %cst_330 [2] : vector<2x8x8xf32> to vector<2x8xf32>
    %955 = vector.shape_cast %954 : vector<2x8xf32> to vector<2x8x1xf32>
    %cst_331 = arith.constant 1.000000e+00 : f32
    %956 = vector.broadcast %cst_331 : f32 to vector<2x8x1xf32>
    %957 = arith.subf %955, %956 : vector<2x8x1xf32>
    %958 = arith.mulf %957, %543 : vector<2x8x1xf32>
    %cst_332 = arith.constant 0.000000e+00 : f32
    %959 = vector.broadcast %cst_332 : f32 to vector<2x8x1xf32>
    %960 = arith.cmpf oge, %958, %959 : vector<2x8x1xf32>
    %961 = arith.select %960, %948, %945 : vector<2x8x1xi1>, vector<2x8x1xf32>
    %c26_i32_333 = arith.constant 26 : i32
    %cst_334 = arith.constant 5.000000e-01 : f32
    %962 = vector.broadcast %cst_334 : f32 to vector<2x8x1xf32>
    %963 = arith.mulf %947, %962 : vector<2x8x1xf32>
    %964 = arith.addf %961, %963 : vector<2x8x1xf32>
    %965 = vector.broadcast %964 : vector<2x8x1xf32> to vector<2x8x8xf32>
    %966 = arith.subf %528, %965 : vector<2x8x8xf32>
    %cst_335 = arith.constant 0.000000e+00 : f32
    %967 = vector.broadcast %cst_335 : f32 to vector<2x8x8xf32>
    %968 = arith.maximumf %966, %967 : vector<2x8x8xf32>
    %969 = arith.mulf %968, %968 : vector<2x8x8xf32>
    %cst_336 = arith.constant dense<0.000000e+00> : vector<2x8xf32>
    %970 = vector.multi_reduction <add>, %969, %cst_336 [2] : vector<2x8x8xf32> to vector<2x8xf32>
    %971 = vector.shape_cast %970 : vector<2x8xf32> to vector<2x8x1xf32>
    %cst_337 = arith.constant 1.000000e+00 : f32
    %972 = vector.broadcast %cst_337 : f32 to vector<2x8x1xf32>
    %973 = arith.subf %971, %972 : vector<2x8x1xf32>
    %974 = arith.mulf %973, %543 : vector<2x8x1xf32>
    %cst_338 = arith.constant 0.000000e+00 : f32
    %975 = vector.broadcast %cst_338 : f32 to vector<2x8x1xf32>
    %976 = arith.cmpf oge, %974, %975 : vector<2x8x1xf32>
    %977 = arith.select %976, %964, %961 : vector<2x8x1xi1>, vector<2x8x1xf32>
    %c27_i32_339 = arith.constant 27 : i32
    %cst_340 = arith.constant 5.000000e-01 : f32
    %978 = vector.broadcast %cst_340 : f32 to vector<2x8x1xf32>
    %979 = arith.mulf %963, %978 : vector<2x8x1xf32>
    %980 = arith.addf %977, %979 : vector<2x8x1xf32>
    %981 = vector.broadcast %980 : vector<2x8x1xf32> to vector<2x8x8xf32>
    %982 = arith.subf %528, %981 : vector<2x8x8xf32>
    %cst_341 = arith.constant 0.000000e+00 : f32
    %983 = vector.broadcast %cst_341 : f32 to vector<2x8x8xf32>
    %984 = arith.maximumf %982, %983 : vector<2x8x8xf32>
    %985 = arith.mulf %984, %984 : vector<2x8x8xf32>
    %cst_342 = arith.constant dense<0.000000e+00> : vector<2x8xf32>
    %986 = vector.multi_reduction <add>, %985, %cst_342 [2] : vector<2x8x8xf32> to vector<2x8xf32>
    %987 = vector.shape_cast %986 : vector<2x8xf32> to vector<2x8x1xf32>
    %cst_343 = arith.constant 1.000000e+00 : f32
    %988 = vector.broadcast %cst_343 : f32 to vector<2x8x1xf32>
    %989 = arith.subf %987, %988 : vector<2x8x1xf32>
    %990 = arith.mulf %989, %543 : vector<2x8x1xf32>
    %cst_344 = arith.constant 0.000000e+00 : f32
    %991 = vector.broadcast %cst_344 : f32 to vector<2x8x1xf32>
    %992 = arith.cmpf oge, %990, %991 : vector<2x8x1xf32>
    %993 = arith.select %992, %980, %977 : vector<2x8x1xi1>, vector<2x8x1xf32>
    %c28_i32_345 = arith.constant 28 : i32
    %cst_346 = arith.constant 5.000000e-01 : f32
    %994 = vector.broadcast %cst_346 : f32 to vector<2x8x1xf32>
    %995 = arith.mulf %979, %994 : vector<2x8x1xf32>
    %996 = arith.addf %993, %995 : vector<2x8x1xf32>
    %997 = vector.broadcast %996 : vector<2x8x1xf32> to vector<2x8x8xf32>
    %998 = arith.subf %528, %997 : vector<2x8x8xf32>
    %cst_347 = arith.constant 0.000000e+00 : f32
    %999 = vector.broadcast %cst_347 : f32 to vector<2x8x8xf32>
    %1000 = arith.maximumf %998, %999 : vector<2x8x8xf32>
    %1001 = arith.mulf %1000, %1000 : vector<2x8x8xf32>
    %cst_348 = arith.constant dense<0.000000e+00> : vector<2x8xf32>
    %1002 = vector.multi_reduction <add>, %1001, %cst_348 [2] : vector<2x8x8xf32> to vector<2x8xf32>
    %1003 = vector.shape_cast %1002 : vector<2x8xf32> to vector<2x8x1xf32>
    %cst_349 = arith.constant 1.000000e+00 : f32
    %1004 = vector.broadcast %cst_349 : f32 to vector<2x8x1xf32>
    %1005 = arith.subf %1003, %1004 : vector<2x8x1xf32>
    %1006 = arith.mulf %1005, %543 : vector<2x8x1xf32>
    %cst_350 = arith.constant 0.000000e+00 : f32
    %1007 = vector.broadcast %cst_350 : f32 to vector<2x8x1xf32>
    %1008 = arith.cmpf oge, %1006, %1007 : vector<2x8x1xf32>
    %1009 = arith.select %1008, %996, %993 : vector<2x8x1xi1>, vector<2x8x1xf32>
    %c29_i32_351 = arith.constant 29 : i32
    %cst_352 = arith.constant 5.000000e-01 : f32
    %1010 = vector.broadcast %cst_352 : f32 to vector<2x8x1xf32>
    %1011 = arith.mulf %995, %1010 : vector<2x8x1xf32>
    %1012 = arith.addf %1009, %1011 : vector<2x8x1xf32>
    %1013 = vector.broadcast %1012 : vector<2x8x1xf32> to vector<2x8x8xf32>
    %1014 = arith.subf %528, %1013 : vector<2x8x8xf32>
    %cst_353 = arith.constant 0.000000e+00 : f32
    %1015 = vector.broadcast %cst_353 : f32 to vector<2x8x8xf32>
    %1016 = arith.maximumf %1014, %1015 : vector<2x8x8xf32>
    %1017 = arith.mulf %1016, %1016 : vector<2x8x8xf32>
    %cst_354 = arith.constant dense<0.000000e+00> : vector<2x8xf32>
    %1018 = vector.multi_reduction <add>, %1017, %cst_354 [2] : vector<2x8x8xf32> to vector<2x8xf32>
    %1019 = vector.shape_cast %1018 : vector<2x8xf32> to vector<2x8x1xf32>
    %cst_355 = arith.constant 1.000000e+00 : f32
    %1020 = vector.broadcast %cst_355 : f32 to vector<2x8x1xf32>
    %1021 = arith.subf %1019, %1020 : vector<2x8x1xf32>
    %1022 = arith.mulf %1021, %543 : vector<2x8x1xf32>
    %cst_356 = arith.constant 0.000000e+00 : f32
    %1023 = vector.broadcast %cst_356 : f32 to vector<2x8x1xf32>
    %1024 = arith.cmpf oge, %1022, %1023 : vector<2x8x1xf32>
    %1025 = arith.select %1024, %1012, %1009 : vector<2x8x1xi1>, vector<2x8x1xf32>
    %cst_357 = arith.constant dense<0.000000e+00> : vector<2x8xf32>
    %1026 = vector.multi_reduction <add>, %1017, %cst_357 [2] : vector<2x8x8xf32> to vector<2x8xf32>
    %1027 = vector.shape_cast %1026 : vector<2x8xf32> to vector<2x8x1xf32>
    %1028 = tpu.reciprocal %1027 {approx = true} : vector<2x8x1xf32> -> vector<2x8x1xf32>
    %1029 = vector.broadcast %1028 : vector<2x8x1xf32> to vector<2x8x8xf32>
    %1030 = arith.mulf %1017, %1029 : vector<2x8x8xf32>
    "tpu.trace_start"() <{level = 10 : i32, message = "wqk,wkd->wqd"}> : () -> ()
    %cst_358 = arith.constant dense<0.000000e+00> : vector<2x8x32xf32>
    %1031 = tpu.matmul %1030, %525, %cst_358 {dimension_numbers = #tpu.dot_dimension_numbers<[2], [1], [1], [2], [0, 0, 0, 1, 1, 2], [0], [0]>} : vector<2x8x8xf32>, vector<2x8x32xf32>, vector<2x8x32xf32> -> vector<2x8x32xf32>
    "tpu.trace_stop"() : () -> ()
    %1032 = vector.shape_cast %1031 : vector<2x8x32xf32> to vector<16x32xf32>
    %c0_359 = arith.constant 0 : index
    %c32 = arith.constant 32 : index
    %1033 = vector.load %arg9[%c0_359, %c32] : memref<16x128xf32, #tpu.memory_space<vmem>>, vector<16x32xf32>
    tpu.vector_store %arg9[%c0_359, %c32], %1032 {strides = array<i32>} : memref<16x128xf32, #tpu.memory_space<vmem>>, vector<16x32xf32>,
    %1034 = vector.extract_strided_slice %5 {offsets = [0, 64], sizes = [16, 32], strides = [1, 1]} : vector<16x384xf32> to vector<16x32xf32>
    %1035 = vector.shape_cast %1034 : vector<16x32xf32> to vector<2x8x32xf32>
    %1036 = vector.extract_strided_slice %5 {offsets = [0, 192], sizes = [16, 32], strides = [1, 1]} : vector<16x384xf32> to vector<16x32xf32>
    %1037 = vector.shape_cast %1036 : vector<16x32xf32> to vector<2x8x32xf32>
    %1038 = vector.extract_strided_slice %5 {offsets = [0, 320], sizes = [16, 32], strides = [1, 1]} : vector<16x384xf32> to vector<16x32xf32>
    %1039 = vector.shape_cast %1038 : vector<16x32xf32> to vector<2x8x32xf32>
    "tpu.trace_start"() <{level = 10 : i32, message = "wqd,wkd->wqk"}> : () -> ()
    %cst_360 = arith.constant dense<0.000000e+00> : vector<2x8x8xf32>
    %1040 = tpu.matmul %1035, %1037, %cst_360 {dimension_numbers = #tpu.dot_dimension_numbers<[2], [2], [1], [1], [0, 0, 0, 1, 1, 1], [0], [0]>} : vector<2x8x32xf32>, vector<2x8x32xf32>, vector<2x8x8xf32> -> vector<2x8x8xf32>
    "tpu.trace_stop"() : () -> ()
    %cst_361 = arith.constant 0.0883883461 : f32
    %1041 = vector.broadcast %cst_361 : f32 to vector<2x8x8xf32>
    %1042 = arith.mulf %1040, %1041 : vector<2x8x8xf32>
    %cst_362 = arith.constant dense<0xFF800000> : vector<2x8xf32>
    %1043 = vector.multi_reduction <maximumf>, %1042, %cst_362 [2] : vector<2x8x8xf32> to vector<2x8xf32>
    %1044 = vector.shape_cast %1043 : vector<2x8xf32> to vector<2x8x1xf32>
    %cst_363 = arith.constant 1.000000e+00 : f32
    %1045 = vector.broadcast %cst_363 : f32 to vector<2x8x1xf32>
    %1046 = arith.subf %1044, %1045 : vector<2x8x1xf32>
    %cst_364 = arith.constant 0.353553385 : f32
    %1047 = vector.broadcast %cst_364 : f32 to vector<2x8x1xf32>
    %1048 = arith.subf %1044, %1047 : vector<2x8x1xf32>
    %1049 = vector.broadcast %1046 : vector<2x8x1xf32> to vector<2x8x8xf32>
    %1050 = arith.subf %1042, %1049 : vector<2x8x8xf32>
    %cst_365 = arith.constant 0.000000e+00 : f32
    %1051 = vector.broadcast %cst_365 : f32 to vector<2x8x8xf32>
    %1052 = arith.maximumf %1050, %1051 : vector<2x8x8xf32>
    %1053 = arith.mulf %1052, %1052 : vector<2x8x8xf32>
    %cst_366 = arith.constant dense<0.000000e+00> : vector<2x8xf32>
    %1054 = vector.multi_reduction <add>, %1053, %cst_366 [2] : vector<2x8x8xf32> to vector<2x8xf32>
    %1055 = vector.shape_cast %1054 : vector<2x8xf32> to vector<2x8x1xf32>
    %cst_367 = arith.constant 1.000000e+00 : f32
    %1056 = vector.broadcast %cst_367 : f32 to vector<2x8x1xf32>
    %1057 = arith.subf %1055, %1056 : vector<2x8x1xf32>
    %1058 = arith.subf %1048, %1046 : vector<2x8x1xf32>
    %cst_368 = arith.constant 0.000000e+00 : f32
    %1059 = vector.broadcast %cst_368 : f32 to vector<2x8x8xf32>
    %c0_i32_369 = arith.constant 0 : i32
    %cst_370 = arith.constant 5.000000e-01 : f32
    %1060 = vector.broadcast %cst_370 : f32 to vector<2x8x1xf32>
    %1061 = arith.mulf %1058, %1060 : vector<2x8x1xf32>
    %1062 = arith.addf %1046, %1061 : vector<2x8x1xf32>
    %1063 = vector.broadcast %1062 : vector<2x8x1xf32> to vector<2x8x8xf32>
    %1064 = arith.subf %1042, %1063 : vector<2x8x8xf32>
    %cst_371 = arith.constant 0.000000e+00 : f32
    %1065 = vector.broadcast %cst_371 : f32 to vector<2x8x8xf32>
    %1066 = arith.maximumf %1064, %1065 : vector<2x8x8xf32>
    %1067 = arith.mulf %1066, %1066 : vector<2x8x8xf32>
    %cst_372 = arith.constant dense<0.000000e+00> : vector<2x8xf32>
    %1068 = vector.multi_reduction <add>, %1067, %cst_372 [2] : vector<2x8x8xf32> to vector<2x8xf32>
    %1069 = vector.shape_cast %1068 : vector<2x8xf32> to vector<2x8x1xf32>
    %cst_373 = arith.constant 1.000000e+00 : f32
    %1070 = vector.broadcast %cst_373 : f32 to vector<2x8x1xf32>
    %1071 = arith.subf %1069, %1070 : vector<2x8x1xf32>
    %1072 = arith.mulf %1071, %1057 : vector<2x8x1xf32>
    %cst_374 = arith.constant 0.000000e+00 : f32
    %1073 = vector.broadcast %cst_374 : f32 to vector<2x8x1xf32>
    %1074 = arith.cmpf oge, %1072, %1073 : vector<2x8x1xf32>
    %1075 = arith.select %1074, %1062, %1046 : vector<2x8x1xi1>, vector<2x8x1xf32>
    %c1_i32_375 = arith.constant 1 : i32
    %cst_376 = arith.constant 5.000000e-01 : f32
    %1076 = vector.broadcast %cst_376 : f32 to vector<2x8x1xf32>
    %1077 = arith.mulf %1061, %1076 : vector<2x8x1xf32>
    %1078 = arith.addf %1075, %1077 : vector<2x8x1xf32>
    %1079 = vector.broadcast %1078 : vector<2x8x1xf32> to vector<2x8x8xf32>
    %1080 = arith.subf %1042, %1079 : vector<2x8x8xf32>
    %cst_377 = arith.constant 0.000000e+00 : f32
    %1081 = vector.broadcast %cst_377 : f32 to vector<2x8x8xf32>
    %1082 = arith.maximumf %1080, %1081 : vector<2x8x8xf32>
    %1083 = arith.mulf %1082, %1082 : vector<2x8x8xf32>
    %cst_378 = arith.constant dense<0.000000e+00> : vector<2x8xf32>
    %1084 = vector.multi_reduction <add>, %1083, %cst_378 [2] : vector<2x8x8xf32> to vector<2x8xf32>
    %1085 = vector.shape_cast %1084 : vector<2x8xf32> to vector<2x8x1xf32>
    %cst_379 = arith.constant 1.000000e+00 : f32
    %1086 = vector.broadcast %cst_379 : f32 to vector<2x8x1xf32>
    %1087 = arith.subf %1085, %1086 : vector<2x8x1xf32>
    %1088 = arith.mulf %1087, %1057 : vector<2x8x1xf32>
    %cst_380 = arith.constant 0.000000e+00 : f32
    %1089 = vector.broadcast %cst_380 : f32 to vector<2x8x1xf32>
    %1090 = arith.cmpf oge, %1088, %1089 : vector<2x8x1xf32>
    %1091 = arith.select %1090, %1078, %1075 : vector<2x8x1xi1>, vector<2x8x1xf32>
    %c2_i32_381 = arith.constant 2 : i32
    %cst_382 = arith.constant 5.000000e-01 : f32
    %1092 = vector.broadcast %cst_382 : f32 to vector<2x8x1xf32>
    %1093 = arith.mulf %1077, %1092 : vector<2x8x1xf32>
    %1094 = arith.addf %1091, %1093 : vector<2x8x1xf32>
    %1095 = vector.broadcast %1094 : vector<2x8x1xf32> to vector<2x8x8xf32>
    %1096 = arith.subf %1042, %1095 : vector<2x8x8xf32>
    %cst_383 = arith.constant 0.000000e+00 : f32
    %1097 = vector.broadcast %cst_383 : f32 to vector<2x8x8xf32>
    %1098 = arith.maximumf %1096, %1097 : vector<2x8x8xf32>
    %1099 = arith.mulf %1098, %1098 : vector<2x8x8xf32>
    %cst_384 = arith.constant dense<0.000000e+00> : vector<2x8xf32>
    %1100 = vector.multi_reduction <add>, %1099, %cst_384 [2] : vector<2x8x8xf32> to vector<2x8xf32>
    %1101 = vector.shape_cast %1100 : vector<2x8xf32> to vector<2x8x1xf32>
    %cst_385 = arith.constant 1.000000e+00 : f32
    %1102 = vector.broadcast %cst_385 : f32 to vector<2x8x1xf32>
    %1103 = arith.subf %1101, %1102 : vector<2x8x1xf32>
    %1104 = arith.mulf %1103, %1057 : vector<2x8x1xf32>
    %cst_386 = arith.constant 0.000000e+00 : f32
    %1105 = vector.broadcast %cst_386 : f32 to vector<2x8x1xf32>
    %1106 = arith.cmpf oge, %1104, %1105 : vector<2x8x1xf32>
    %1107 = arith.select %1106, %1094, %1091 : vector<2x8x1xi1>, vector<2x8x1xf32>
    %c3_i32_387 = arith.constant 3 : i32
    %cst_388 = arith.constant 5.000000e-01 : f32
    %1108 = vector.broadcast %cst_388 : f32 to vector<2x8x1xf32>
    %1109 = arith.mulf %1093, %1108 : vector<2x8x1xf32>
    %1110 = arith.addf %1107, %1109 : vector<2x8x1xf32>
    %1111 = vector.broadcast %1110 : vector<2x8x1xf32> to vector<2x8x8xf32>
    %1112 = arith.subf %1042, %1111 : vector<2x8x8xf32>
    %cst_389 = arith.constant 0.000000e+00 : f32
    %1113 = vector.broadcast %cst_389 : f32 to vector<2x8x8xf32>
    %1114 = arith.maximumf %1112, %1113 : vector<2x8x8xf32>
    %1115 = arith.mulf %1114, %1114 : vector<2x8x8xf32>
    %cst_390 = arith.constant dense<0.000000e+00> : vector<2x8xf32>
    %1116 = vector.multi_reduction <add>, %1115, %cst_390 [2] : vector<2x8x8xf32> to vector<2x8xf32>
    %1117 = vector.shape_cast %1116 : vector<2x8xf32> to vector<2x8x1xf32>
    %cst_391 = arith.constant 1.000000e+00 : f32
    %1118 = vector.broadcast %cst_391 : f32 to vector<2x8x1xf32>
    %1119 = arith.subf %1117, %1118 : vector<2x8x1xf32>
    %1120 = arith.mulf %1119, %1057 : vector<2x8x1xf32>
    %cst_392 = arith.constant 0.000000e+00 : f32
    %1121 = vector.broadcast %cst_392 : f32 to vector<2x8x1xf32>
    %1122 = arith.cmpf oge, %1120, %1121 : vector<2x8x1xf32>
    %1123 = arith.select %1122, %1110, %1107 : vector<2x8x1xi1>, vector<2x8x1xf32>
    %c4_i32_393 = arith.constant 4 : i32
    %cst_394 = arith.constant 5.000000e-01 : f32
    %1124 = vector.broadcast %cst_394 : f32 to vector<2x8x1xf32>
    %1125 = arith.mulf %1109, %1124 : vector<2x8x1xf32>
    %1126 = arith.addf %1123, %1125 : vector<2x8x1xf32>
    %1127 = vector.broadcast %1126 : vector<2x8x1xf32> to vector<2x8x8xf32>
    %1128 = arith.subf %1042, %1127 : vector<2x8x8xf32>
    %cst_395 = arith.constant 0.000000e+00 : f32
    %1129 = vector.broadcast %cst_395 : f32 to vector<2x8x8xf32>
    %1130 = arith.maximumf %1128, %1129 : vector<2x8x8xf32>
    %1131 = arith.mulf %1130, %1130 : vector<2x8x8xf32>
    %cst_396 = arith.constant dense<0.000000e+00> : vector<2x8xf32>
    %1132 = vector.multi_reduction <add>, %1131, %cst_396 [2] : vector<2x8x8xf32> to vector<2x8xf32>
    %1133 = vector.shape_cast %1132 : vector<2x8xf32> to vector<2x8x1xf32>
    %cst_397 = arith.constant 1.000000e+00 : f32
    %1134 = vector.broadcast %cst_397 : f32 to vector<2x8x1xf32>
    %1135 = arith.subf %1133, %1134 : vector<2x8x1xf32>
    %1136 = arith.mulf %1135, %1057 : vector<2x8x1xf32>
    %cst_398 = arith.constant 0.000000e+00 : f32
    %1137 = vector.broadcast %cst_398 : f32 to vector<2x8x1xf32>
    %1138 = arith.cmpf oge, %1136, %1137 : vector<2x8x1xf32>
    %1139 = arith.select %1138, %1126, %1123 : vector<2x8x1xi1>, vector<2x8x1xf32>
    %c5_i32_399 = arith.constant 5 : i32
    %cst_400 = arith.constant 5.000000e-01 : f32
    %1140 = vector.broadcast %cst_400 : f32 to vector<2x8x1xf32>
    %1141 = arith.mulf %1125, %1140 : vector<2x8x1xf32>
    %1142 = arith.addf %1139, %1141 : vector<2x8x1xf32>
    %1143 = vector.broadcast %1142 : vector<2x8x1xf32> to vector<2x8x8xf32>
    %1144 = arith.subf %1042, %1143 : vector<2x8x8xf32>
    %cst_401 = arith.constant 0.000000e+00 : f32
    %1145 = vector.broadcast %cst_401 : f32 to vector<2x8x8xf32>
    %1146 = arith.maximumf %1144, %1145 : vector<2x8x8xf32>
    %1147 = arith.mulf %1146, %1146 : vector<2x8x8xf32>
    %cst_402 = arith.constant dense<0.000000e+00> : vector<2x8xf32>
    %1148 = vector.multi_reduction <add>, %1147, %cst_402 [2] : vector<2x8x8xf32> to vector<2x8xf32>
    %1149 = vector.shape_cast %1148 : vector<2x8xf32> to vector<2x8x1xf32>
    %cst_403 = arith.constant 1.000000e+00 : f32
    %1150 = vector.broadcast %cst_403 : f32 to vector<2x8x1xf32>
    %1151 = arith.subf %1149, %1150 : vector<2x8x1xf32>
    %1152 = arith.mulf %1151, %1057 : vector<2x8x1xf32>
    %cst_404 = arith.constant 0.000000e+00 : f32
    %1153 = vector.broadcast %cst_404 : f32 to vector<2x8x1xf32>
    %1154 = arith.cmpf oge, %1152, %1153 : vector<2x8x1xf32>
    %1155 = arith.select %1154, %1142, %1139 : vector<2x8x1xi1>, vector<2x8x1xf32>
    %c6_i32_405 = arith.constant 6 : i32
    %cst_406 = arith.constant 5.000000e-01 : f32
    %1156 = vector.broadcast %cst_406 : f32 to vector<2x8x1xf32>
    %1157 = arith.mulf %1141, %1156 : vector<2x8x1xf32>
    %1158 = arith.addf %1155, %1157 : vector<2x8x1xf32>
    %1159 = vector.broadcast %1158 : vector<2x8x1xf32> to vector<2x8x8xf32>
    %1160 = arith.subf %1042, %1159 : vector<2x8x8xf32>
    %cst_407 = arith.constant 0.000000e+00 : f32
    %1161 = vector.broadcast %cst_407 : f32 to vector<2x8x8xf32>
    %1162 = arith.maximumf %1160, %1161 : vector<2x8x8xf32>
    %1163 = arith.mulf %1162, %1162 : vector<2x8x8xf32>
    %cst_408 = arith.constant dense<0.000000e+00> : vector<2x8xf32>
    %1164 = vector.multi_reduction <add>, %1163, %cst_408 [2] : vector<2x8x8xf32> to vector<2x8xf32>
    %1165 = vector.shape_cast %1164 : vector<2x8xf32> to vector<2x8x1xf32>
    %cst_409 = arith.constant 1.000000e+00 : f32
    %1166 = vector.broadcast %cst_409 : f32 to vector<2x8x1xf32>
    %1167 = arith.subf %1165, %1166 : vector<2x8x1xf32>
    %1168 = arith.mulf %1167, %1057 : vector<2x8x1xf32>
    %cst_410 = arith.constant 0.000000e+00 : f32
    %1169 = vector.broadcast %cst_410 : f32 to vector<2x8x1xf32>
    %1170 = arith.cmpf oge, %1168, %1169 : vector<2x8x1xf32>
    %1171 = arith.select %1170, %1158, %1155 : vector<2x8x1xi1>, vector<2x8x1xf32>
    %c7_i32_411 = arith.constant 7 : i32
    %cst_412 = arith.constant 5.000000e-01 : f32
    %1172 = vector.broadcast %cst_412 : f32 to vector<2x8x1xf32>
    %1173 = arith.mulf %1157, %1172 : vector<2x8x1xf32>
    %1174 = arith.addf %1171, %1173 : vector<2x8x1xf32>
    %1175 = vector.broadcast %1174 : vector<2x8x1xf32> to vector<2x8x8xf32>
    %1176 = arith.subf %1042, %1175 : vector<2x8x8xf32>
    %cst_413 = arith.constant 0.000000e+00 : f32
    %1177 = vector.broadcast %cst_413 : f32 to vector<2x8x8xf32>
    %1178 = arith.maximumf %1176, %1177 : vector<2x8x8xf32>
    %1179 = arith.mulf %1178, %1178 : vector<2x8x8xf32>
    %cst_414 = arith.constant dense<0.000000e+00> : vector<2x8xf32>
    %1180 = vector.multi_reduction <add>, %1179, %cst_414 [2] : vector<2x8x8xf32> to vector<2x8xf32>
    %1181 = vector.shape_cast %1180 : vector<2x8xf32> to vector<2x8x1xf32>
    %cst_415 = arith.constant 1.000000e+00 : f32
    %1182 = vector.broadcast %cst_415 : f32 to vector<2x8x1xf32>
    %1183 = arith.subf %1181, %1182 : vector<2x8x1xf32>
    %1184 = arith.mulf %1183, %1057 : vector<2x8x1xf32>
    %cst_416 = arith.constant 0.000000e+00 : f32
    %1185 = vector.broadcast %cst_416 : f32 to vector<2x8x1xf32>
    %1186 = arith.cmpf oge, %1184, %1185 : vector<2x8x1xf32>
    %1187 = arith.select %1186, %1174, %1171 : vector<2x8x1xi1>, vector<2x8x1xf32>
    %c8_i32_417 = arith.constant 8 : i32
    %cst_418 = arith.constant 5.000000e-01 : f32
    %1188 = vector.broadcast %cst_418 : f32 to vector<2x8x1xf32>
    %1189 = arith.mulf %1173, %1188 : vector<2x8x1xf32>
    %1190 = arith.addf %1187, %1189 : vector<2x8x1xf32>
    %1191 = vector.broadcast %1190 : vector<2x8x1xf32> to vector<2x8x8xf32>
    %1192 = arith.subf %1042, %1191 : vector<2x8x8xf32>
    %cst_419 = arith.constant 0.000000e+00 : f32
    %1193 = vector.broadcast %cst_419 : f32 to vector<2x8x8xf32>
    %1194 = arith.maximumf %1192, %1193 : vector<2x8x8xf32>
    %1195 = arith.mulf %1194, %1194 : vector<2x8x8xf32>
    %cst_420 = arith.constant dense<0.000000e+00> : vector<2x8xf32>
    %1196 = vector.multi_reduction <add>, %1195, %cst_420 [2] : vector<2x8x8xf32> to vector<2x8xf32>
    %1197 = vector.shape_cast %1196 : vector<2x8xf32> to vector<2x8x1xf32>
    %cst_421 = arith.constant 1.000000e+00 : f32
    %1198 = vector.broadcast %cst_421 : f32 to vector<2x8x1xf32>
    %1199 = arith.subf %1197, %1198 : vector<2x8x1xf32>
    %1200 = arith.mulf %1199, %1057 : vector<2x8x1xf32>
    %cst_422 = arith.constant 0.000000e+00 : f32
    %1201 = vector.broadcast %cst_422 : f32 to vector<2x8x1xf32>
    %1202 = arith.cmpf oge, %1200, %1201 : vector<2x8x1xf32>
    %1203 = arith.select %1202, %1190, %1187 : vector<2x8x1xi1>, vector<2x8x1xf32>
    %c9_i32_423 = arith.constant 9 : i32
    %cst_424 = arith.constant 5.000000e-01 : f32
    %1204 = vector.broadcast %cst_424 : f32 to vector<2x8x1xf32>
    %1205 = arith.mulf %1189, %1204 : vector<2x8x1xf32>
    %1206 = arith.addf %1203, %1205 : vector<2x8x1xf32>
    %1207 = vector.broadcast %1206 : vector<2x8x1xf32> to vector<2x8x8xf32>
    %1208 = arith.subf %1042, %1207 : vector<2x8x8xf32>
    %cst_425 = arith.constant 0.000000e+00 : f32
    %1209 = vector.broadcast %cst_425 : f32 to vector<2x8x8xf32>
    %1210 = arith.maximumf %1208, %1209 : vector<2x8x8xf32>
    %1211 = arith.mulf %1210, %1210 : vector<2x8x8xf32>
    %cst_426 = arith.constant dense<0.000000e+00> : vector<2x8xf32>
    %1212 = vector.multi_reduction <add>, %1211, %cst_426 [2] : vector<2x8x8xf32> to vector<2x8xf32>
    %1213 = vector.shape_cast %1212 : vector<2x8xf32> to vector<2x8x1xf32>
    %cst_427 = arith.constant 1.000000e+00 : f32
    %1214 = vector.broadcast %cst_427 : f32 to vector<2x8x1xf32>
    %1215 = arith.subf %1213, %1214 : vector<2x8x1xf32>
    %1216 = arith.mulf %1215, %1057 : vector<2x8x1xf32>
    %cst_428 = arith.constant 0.000000e+00 : f32
    %1217 = vector.broadcast %cst_428 : f32 to vector<2x8x1xf32>
    %1218 = arith.cmpf oge, %1216, %1217 : vector<2x8x1xf32>
    %1219 = arith.select %1218, %1206, %1203 : vector<2x8x1xi1>, vector<2x8x1xf32>
    %c10_i32_429 = arith.constant 10 : i32
    %cst_430 = arith.constant 5.000000e-01 : f32
    %1220 = vector.broadcast %cst_430 : f32 to vector<2x8x1xf32>
    %1221 = arith.mulf %1205, %1220 : vector<2x8x1xf32>
    %1222 = arith.addf %1219, %1221 : vector<2x8x1xf32>
    %1223 = vector.broadcast %1222 : vector<2x8x1xf32> to vector<2x8x8xf32>
    %1224 = arith.subf %1042, %1223 : vector<2x8x8xf32>
    %cst_431 = arith.constant 0.000000e+00 : f32
    %1225 = vector.broadcast %cst_431 : f32 to vector<2x8x8xf32>
    %1226 = arith.maximumf %1224, %1225 : vector<2x8x8xf32>
    %1227 = arith.mulf %1226, %1226 : vector<2x8x8xf32>
    %cst_432 = arith.constant dense<0.000000e+00> : vector<2x8xf32>
    %1228 = vector.multi_reduction <add>, %1227, %cst_432 [2] : vector<2x8x8xf32> to vector<2x8xf32>
    %1229 = vector.shape_cast %1228 : vector<2x8xf32> to vector<2x8x1xf32>
    %cst_433 = arith.constant 1.000000e+00 : f32
    %1230 = vector.broadcast %cst_433 : f32 to vector<2x8x1xf32>
    %1231 = arith.subf %1229, %1230 : vector<2x8x1xf32>
    %1232 = arith.mulf %1231, %1057 : vector<2x8x1xf32>
    %cst_434 = arith.constant 0.000000e+00 : f32
    %1233 = vector.broadcast %cst_434 : f32 to vector<2x8x1xf32>
    %1234 = arith.cmpf oge, %1232, %1233 : vector<2x8x1xf32>
    %1235 = arith.select %1234, %1222, %1219 : vector<2x8x1xi1>, vector<2x8x1xf32>
    %c11_i32_435 = arith.constant 11 : i32
    %cst_436 = arith.constant 5.000000e-01 : f32
    %1236 = vector.broadcast %cst_436 : f32 to vector<2x8x1xf32>
    %1237 = arith.mulf %1221, %1236 : vector<2x8x1xf32>
    %1238 = arith.addf %1235, %1237 : vector<2x8x1xf32>
    %1239 = vector.broadcast %1238 : vector<2x8x1xf32> to vector<2x8x8xf32>
    %1240 = arith.subf %1042, %1239 : vector<2x8x8xf32>
    %cst_437 = arith.constant 0.000000e+00 : f32
    %1241 = vector.broadcast %cst_437 : f32 to vector<2x8x8xf32>
    %1242 = arith.maximumf %1240, %1241 : vector<2x8x8xf32>
    %1243 = arith.mulf %1242, %1242 : vector<2x8x8xf32>
    %cst_438 = arith.constant dense<0.000000e+00> : vector<2x8xf32>
    %1244 = vector.multi_reduction <add>, %1243, %cst_438 [2] : vector<2x8x8xf32> to vector<2x8xf32>
    %1245 = vector.shape_cast %1244 : vector<2x8xf32> to vector<2x8x1xf32>
    %cst_439 = arith.constant 1.000000e+00 : f32
    %1246 = vector.broadcast %cst_439 : f32 to vector<2x8x1xf32>
    %1247 = arith.subf %1245, %1246 : vector<2x8x1xf32>
    %1248 = arith.mulf %1247, %1057 : vector<2x8x1xf32>
    %cst_440 = arith.constant 0.000000e+00 : f32
    %1249 = vector.broadcast %cst_440 : f32 to vector<2x8x1xf32>
    %1250 = arith.cmpf oge, %1248, %1249 : vector<2x8x1xf32>
    %1251 = arith.select %1250, %1238, %1235 : vector<2x8x1xi1>, vector<2x8x1xf32>
    %c12_i32_441 = arith.constant 12 : i32
    %cst_442 = arith.constant 5.000000e-01 : f32
    %1252 = vector.broadcast %cst_442 : f32 to vector<2x8x1xf32>
    %1253 = arith.mulf %1237, %1252 : vector<2x8x1xf32>
    %1254 = arith.addf %1251, %1253 : vector<2x8x1xf32>
    %1255 = vector.broadcast %1254 : vector<2x8x1xf32> to vector<2x8x8xf32>
    %1256 = arith.subf %1042, %1255 : vector<2x8x8xf32>
    %cst_443 = arith.constant 0.000000e+00 : f32
    %1257 = vector.broadcast %cst_443 : f32 to vector<2x8x8xf32>
    %1258 = arith.maximumf %1256, %1257 : vector<2x8x8xf32>
    %1259 = arith.mulf %1258, %1258 : vector<2x8x8xf32>
    %cst_444 = arith.constant dense<0.000000e+00> : vector<2x8xf32>
    %1260 = vector.multi_reduction <add>, %1259, %cst_444 [2] : vector<2x8x8xf32> to vector<2x8xf32>
    %1261 = vector.shape_cast %1260 : vector<2x8xf32> to vector<2x8x1xf32>
    %cst_445 = arith.constant 1.000000e+00 : f32
    %1262 = vector.broadcast %cst_445 : f32 to vector<2x8x1xf32>
    %1263 = arith.subf %1261, %1262 : vector<2x8x1xf32>
    %1264 = arith.mulf %1263, %1057 : vector<2x8x1xf32>
    %cst_446 = arith.constant 0.000000e+00 : f32
    %1265 = vector.broadcast %cst_446 : f32 to vector<2x8x1xf32>
    %1266 = arith.cmpf oge, %1264, %1265 : vector<2x8x1xf32>
    %1267 = arith.select %1266, %1254, %1251 : vector<2x8x1xi1>, vector<2x8x1xf32>
    %c13_i32_447 = arith.constant 13 : i32
    %cst_448 = arith.constant 5.000000e-01 : f32
    %1268 = vector.broadcast %cst_448 : f32 to vector<2x8x1xf32>
    %1269 = arith.mulf %1253, %1268 : vector<2x8x1xf32>
    %1270 = arith.addf %1267, %1269 : vector<2x8x1xf32>
    %1271 = vector.broadcast %1270 : vector<2x8x1xf32> to vector<2x8x8xf32>
    %1272 = arith.subf %1042, %1271 : vector<2x8x8xf32>
    %cst_449 = arith.constant 0.000000e+00 : f32
    %1273 = vector.broadcast %cst_449 : f32 to vector<2x8x8xf32>
    %1274 = arith.maximumf %1272, %1273 : vector<2x8x8xf32>
    %1275 = arith.mulf %1274, %1274 : vector<2x8x8xf32>
    %cst_450 = arith.constant dense<0.000000e+00> : vector<2x8xf32>
    %1276 = vector.multi_reduction <add>, %1275, %cst_450 [2] : vector<2x8x8xf32> to vector<2x8xf32>
    %1277 = vector.shape_cast %1276 : vector<2x8xf32> to vector<2x8x1xf32>
    %cst_451 = arith.constant 1.000000e+00 : f32
    %1278 = vector.broadcast %cst_451 : f32 to vector<2x8x1xf32>
    %1279 = arith.subf %1277, %1278 : vector<2x8x1xf32>
    %1280 = arith.mulf %1279, %1057 : vector<2x8x1xf32>
    %cst_452 = arith.constant 0.000000e+00 : f32
    %1281 = vector.broadcast %cst_452 : f32 to vector<2x8x1xf32>
    %1282 = arith.cmpf oge, %1280, %1281 : vector<2x8x1xf32>
    %1283 = arith.select %1282, %1270, %1267 : vector<2x8x1xi1>, vector<2x8x1xf32>
    %c14_i32_453 = arith.constant 14 : i32
    %cst_454 = arith.constant 5.000000e-01 : f32
    %1284 = vector.broadcast %cst_454 : f32 to vector<2x8x1xf32>
    %1285 = arith.mulf %1269, %1284 : vector<2x8x1xf32>
    %1286 = arith.addf %1283, %1285 : vector<2x8x1xf32>
    %1287 = vector.broadcast %1286 : vector<2x8x1xf32> to vector<2x8x8xf32>
    %1288 = arith.subf %1042, %1287 : vector<2x8x8xf32>
    %cst_455 = arith.constant 0.000000e+00 : f32
    %1289 = vector.broadcast %cst_455 : f32 to vector<2x8x8xf32>
    %1290 = arith.maximumf %1288, %1289 : vector<2x8x8xf32>
    %1291 = arith.mulf %1290, %1290 : vector<2x8x8xf32>
    %cst_456 = arith.constant dense<0.000000e+00> : vector<2x8xf32>
    %1292 = vector.multi_reduction <add>, %1291, %cst_456 [2] : vector<2x8x8xf32> to vector<2x8xf32>
    %1293 = vector.shape_cast %1292 : vector<2x8xf32> to vector<2x8x1xf32>
    %cst_457 = arith.constant 1.000000e+00 : f32
    %1294 = vector.broadcast %cst_457 : f32 to vector<2x8x1xf32>
    %1295 = arith.subf %1293, %1294 : vector<2x8x1xf32>
    %1296 = arith.mulf %1295, %1057 : vector<2x8x1xf32>
    %cst_458 = arith.constant 0.000000e+00 : f32
    %1297 = vector.broadcast %cst_458 : f32 to vector<2x8x1xf32>
    %1298 = arith.cmpf oge, %1296, %1297 : vector<2x8x1xf32>
    %1299 = arith.select %1298, %1286, %1283 : vector<2x8x1xi1>, vector<2x8x1xf32>
    %c15_i32_459 = arith.constant 15 : i32
    %cst_460 = arith.constant 5.000000e-01 : f32
    %1300 = vector.broadcast %cst_460 : f32 to vector<2x8x1xf32>
    %1301 = arith.mulf %1285, %1300 : vector<2x8x1xf32>
    %1302 = arith.addf %1299, %1301 : vector<2x8x1xf32>
    %1303 = vector.broadcast %1302 : vector<2x8x1xf32> to vector<2x8x8xf32>
    %1304 = arith.subf %1042, %1303 : vector<2x8x8xf32>
    %cst_461 = arith.constant 0.000000e+00 : f32
    %1305 = vector.broadcast %cst_461 : f32 to vector<2x8x8xf32>
    %1306 = arith.maximumf %1304, %1305 : vector<2x8x8xf32>
    %1307 = arith.mulf %1306, %1306 : vector<2x8x8xf32>
    %cst_462 = arith.constant dense<0.000000e+00> : vector<2x8xf32>
    %1308 = vector.multi_reduction <add>, %1307, %cst_462 [2] : vector<2x8x8xf32> to vector<2x8xf32>
    %1309 = vector.shape_cast %1308 : vector<2x8xf32> to vector<2x8x1xf32>
    %cst_463 = arith.constant 1.000000e+00 : f32
    %1310 = vector.broadcast %cst_463 : f32 to vector<2x8x1xf32>
    %1311 = arith.subf %1309, %1310 : vector<2x8x1xf32>
    %1312 = arith.mulf %1311, %1057 : vector<2x8x1xf32>
    %cst_464 = arith.constant 0.000000e+00 : f32
    %1313 = vector.broadcast %cst_464 : f32 to vector<2x8x1xf32>
    %1314 = arith.cmpf oge, %1312, %1313 : vector<2x8x1xf32>
    %1315 = arith.select %1314, %1302, %1299 : vector<2x8x1xi1>, vector<2x8x1xf32>
    %c16_i32_465 = arith.constant 16 : i32
    %cst_466 = arith.constant 5.000000e-01 : f32
    %1316 = vector.broadcast %cst_466 : f32 to vector<2x8x1xf32>
    %1317 = arith.mulf %1301, %1316 : vector<2x8x1xf32>
    %1318 = arith.addf %1315, %1317 : vector<2x8x1xf32>
    %1319 = vector.broadcast %1318 : vector<2x8x1xf32> to vector<2x8x8xf32>
    %1320 = arith.subf %1042, %1319 : vector<2x8x8xf32>
    %cst_467 = arith.constant 0.000000e+00 : f32
    %1321 = vector.broadcast %cst_467 : f32 to vector<2x8x8xf32>
    %1322 = arith.maximumf %1320, %1321 : vector<2x8x8xf32>
    %1323 = arith.mulf %1322, %1322 : vector<2x8x8xf32>
    %cst_468 = arith.constant dense<0.000000e+00> : vector<2x8xf32>
    %1324 = vector.multi_reduction <add>, %1323, %cst_468 [2] : vector<2x8x8xf32> to vector<2x8xf32>
    %1325 = vector.shape_cast %1324 : vector<2x8xf32> to vector<2x8x1xf32>
    %cst_469 = arith.constant 1.000000e+00 : f32
    %1326 = vector.broadcast %cst_469 : f32 to vector<2x8x1xf32>
    %1327 = arith.subf %1325, %1326 : vector<2x8x1xf32>
    %1328 = arith.mulf %1327, %1057 : vector<2x8x1xf32>
    %cst_470 = arith.constant 0.000000e+00 : f32
    %1329 = vector.broadcast %cst_470 : f32 to vector<2x8x1xf32>
    %1330 = arith.cmpf oge, %1328, %1329 : vector<2x8x1xf32>
    %1331 = arith.select %1330, %1318, %1315 : vector<2x8x1xi1>, vector<2x8x1xf32>
    %c17_i32_471 = arith.constant 17 : i32
    %cst_472 = arith.constant 5.000000e-01 : f32
    %1332 = vector.broadcast %cst_472 : f32 to vector<2x8x1xf32>
    %1333 = arith.mulf %1317, %1332 : vector<2x8x1xf32>
    %1334 = arith.addf %1331, %1333 : vector<2x8x1xf32>
    %1335 = vector.broadcast %1334 : vector<2x8x1xf32> to vector<2x8x8xf32>
    %1336 = arith.subf %1042, %1335 : vector<2x8x8xf32>
    %cst_473 = arith.constant 0.000000e+00 : f32
    %1337 = vector.broadcast %cst_473 : f32 to vector<2x8x8xf32>
    %1338 = arith.maximumf %1336, %1337 : vector<2x8x8xf32>
    %1339 = arith.mulf %1338, %1338 : vector<2x8x8xf32>
    %cst_474 = arith.constant dense<0.000000e+00> : vector<2x8xf32>
    %1340 = vector.multi_reduction <add>, %1339, %cst_474 [2] : vector<2x8x8xf32> to vector<2x8xf32>
    %1341 = vector.shape_cast %1340 : vector<2x8xf32> to vector<2x8x1xf32>
    %cst_475 = arith.constant 1.000000e+00 : f32
    %1342 = vector.broadcast %cst_475 : f32 to vector<2x8x1xf32>
    %1343 = arith.subf %1341, %1342 : vector<2x8x1xf32>
    %1344 = arith.mulf %1343, %1057 : vector<2x8x1xf32>
    %cst_476 = arith.constant 0.000000e+00 : f32
    %1345 = vector.broadcast %cst_476 : f32 to vector<2x8x1xf32>
    %1346 = arith.cmpf oge, %1344, %1345 : vector<2x8x1xf32>
    %1347 = arith.select %1346, %1334, %1331 : vector<2x8x1xi1>, vector<2x8x1xf32>
    %c18_i32_477 = arith.constant 18 : i32
    %cst_478 = arith.constant 5.000000e-01 : f32
    %1348 = vector.broadcast %cst_478 : f32 to vector<2x8x1xf32>
    %1349 = arith.mulf %1333, %1348 : vector<2x8x1xf32>
    %1350 = arith.addf %1347, %1349 : vector<2x8x1xf32>
    %1351 = vector.broadcast %1350 : vector<2x8x1xf32> to vector<2x8x8xf32>
    %1352 = arith.subf %1042, %1351 : vector<2x8x8xf32>
    %cst_479 = arith.constant 0.000000e+00 : f32
    %1353 = vector.broadcast %cst_479 : f32 to vector<2x8x8xf32>
    %1354 = arith.maximumf %1352, %1353 : vector<2x8x8xf32>
    %1355 = arith.mulf %1354, %1354 : vector<2x8x8xf32>
    %cst_480 = arith.constant dense<0.000000e+00> : vector<2x8xf32>
    %1356 = vector.multi_reduction <add>, %1355, %cst_480 [2] : vector<2x8x8xf32> to vector<2x8xf32>
    %1357 = vector.shape_cast %1356 : vector<2x8xf32> to vector<2x8x1xf32>
    %cst_481 = arith.constant 1.000000e+00 : f32
    %1358 = vector.broadcast %cst_481 : f32 to vector<2x8x1xf32>
    %1359 = arith.subf %1357, %1358 : vector<2x8x1xf32>
    %1360 = arith.mulf %1359, %1057 : vector<2x8x1xf32>
    %cst_482 = arith.constant 0.000000e+00 : f32
    %1361 = vector.broadcast %cst_482 : f32 to vector<2x8x1xf32>
    %1362 = arith.cmpf oge, %1360, %1361 : vector<2x8x1xf32>
    %1363 = arith.select %1362, %1350, %1347 : vector<2x8x1xi1>, vector<2x8x1xf32>
    %c19_i32_483 = arith.constant 19 : i32
    %cst_484 = arith.constant 5.000000e-01 : f32
    %1364 = vector.broadcast %cst_484 : f32 to vector<2x8x1xf32>
    %1365 = arith.mulf %1349, %1364 : vector<2x8x1xf32>
    %1366 = arith.addf %1363, %1365 : vector<2x8x1xf32>
    %1367 = vector.broadcast %1366 : vector<2x8x1xf32> to vector<2x8x8xf32>
    %1368 = arith.subf %1042, %1367 : vector<2x8x8xf32>
    %cst_485 = arith.constant 0.000000e+00 : f32
    %1369 = vector.broadcast %cst_485 : f32 to vector<2x8x8xf32>
    %1370 = arith.maximumf %1368, %1369 : vector<2x8x8xf32>
    %1371 = arith.mulf %1370, %1370 : vector<2x8x8xf32>
    %cst_486 = arith.constant dense<0.000000e+00> : vector<2x8xf32>
    %1372 = vector.multi_reduction <add>, %1371, %cst_486 [2] : vector<2x8x8xf32> to vector<2x8xf32>
    %1373 = vector.shape_cast %1372 : vector<2x8xf32> to vector<2x8x1xf32>
    %cst_487 = arith.constant 1.000000e+00 : f32
    %1374 = vector.broadcast %cst_487 : f32 to vector<2x8x1xf32>
    %1375 = arith.subf %1373, %1374 : vector<2x8x1xf32>
    %1376 = arith.mulf %1375, %1057 : vector<2x8x1xf32>
    %cst_488 = arith.constant 0.000000e+00 : f32
    %1377 = vector.broadcast %cst_488 : f32 to vector<2x8x1xf32>
    %1378 = arith.cmpf oge, %1376, %1377 : vector<2x8x1xf32>
    %1379 = arith.select %1378, %1366, %1363 : vector<2x8x1xi1>, vector<2x8x1xf32>
    %c20_i32_489 = arith.constant 20 : i32
    %cst_490 = arith.constant 5.000000e-01 : f32
    %1380 = vector.broadcast %cst_490 : f32 to vector<2x8x1xf32>
    %1381 = arith.mulf %1365, %1380 : vector<2x8x1xf32>
    %1382 = arith.addf %1379, %1381 : vector<2x8x1xf32>
    %1383 = vector.broadcast %1382 : vector<2x8x1xf32> to vector<2x8x8xf32>
    %1384 = arith.subf %1042, %1383 : vector<2x8x8xf32>
    %cst_491 = arith.constant 0.000000e+00 : f32
    %1385 = vector.broadcast %cst_491 : f32 to vector<2x8x8xf32>
    %1386 = arith.maximumf %1384, %1385 : vector<2x8x8xf32>
    %1387 = arith.mulf %1386, %1386 : vector<2x8x8xf32>
    %cst_492 = arith.constant dense<0.000000e+00> : vector<2x8xf32>
    %1388 = vector.multi_reduction <add>, %1387, %cst_492 [2] : vector<2x8x8xf32> to vector<2x8xf32>
    %1389 = vector.shape_cast %1388 : vector<2x8xf32> to vector<2x8x1xf32>
    %cst_493 = arith.constant 1.000000e+00 : f32
    %1390 = vector.broadcast %cst_493 : f32 to vector<2x8x1xf32>
    %1391 = arith.subf %1389, %1390 : vector<2x8x1xf32>
    %1392 = arith.mulf %1391, %1057 : vector<2x8x1xf32>
    %cst_494 = arith.constant 0.000000e+00 : f32
    %1393 = vector.broadcast %cst_494 : f32 to vector<2x8x1xf32>
    %1394 = arith.cmpf oge, %1392, %1393 : vector<2x8x1xf32>
    %1395 = arith.select %1394, %1382, %1379 : vector<2x8x1xi1>, vector<2x8x1xf32>
    %c21_i32_495 = arith.constant 21 : i32
    %cst_496 = arith.constant 5.000000e-01 : f32
    %1396 = vector.broadcast %cst_496 : f32 to vector<2x8x1xf32>
    %1397 = arith.mulf %1381, %1396 : vector<2x8x1xf32>
    %1398 = arith.addf %1395, %1397 : vector<2x8x1xf32>
    %1399 = vector.broadcast %1398 : vector<2x8x1xf32> to vector<2x8x8xf32>
    %1400 = arith.subf %1042, %1399 : vector<2x8x8xf32>
    %cst_497 = arith.constant 0.000000e+00 : f32
    %1401 = vector.broadcast %cst_497 : f32 to vector<2x8x8xf32>
    %1402 = arith.maximumf %1400, %1401 : vector<2x8x8xf32>
    %1403 = arith.mulf %1402, %1402 : vector<2x8x8xf32>
    %cst_498 = arith.constant dense<0.000000e+00> : vector<2x8xf32>
    %1404 = vector.multi_reduction <add>, %1403, %cst_498 [2] : vector<2x8x8xf32> to vector<2x8xf32>
    %1405 = vector.shape_cast %1404 : vector<2x8xf32> to vector<2x8x1xf32>
    %cst_499 = arith.constant 1.000000e+00 : f32
    %1406 = vector.broadcast %cst_499 : f32 to vector<2x8x1xf32>
    %1407 = arith.subf %1405, %1406 : vector<2x8x1xf32>
    %1408 = arith.mulf %1407, %1057 : vector<2x8x1xf32>
    %cst_500 = arith.constant 0.000000e+00 : f32
    %1409 = vector.broadcast %cst_500 : f32 to vector<2x8x1xf32>
    %1410 = arith.cmpf oge, %1408, %1409 : vector<2x8x1xf32>
    %1411 = arith.select %1410, %1398, %1395 : vector<2x8x1xi1>, vector<2x8x1xf32>
    %c22_i32_501 = arith.constant 22 : i32
    %cst_502 = arith.constant 5.000000e-01 : f32
    %1412 = vector.broadcast %cst_502 : f32 to vector<2x8x1xf32>
    %1413 = arith.mulf %1397, %1412 : vector<2x8x1xf32>
    %1414 = arith.addf %1411, %1413 : vector<2x8x1xf32>
    %1415 = vector.broadcast %1414 : vector<2x8x1xf32> to vector<2x8x8xf32>
    %1416 = arith.subf %1042, %1415 : vector<2x8x8xf32>
    %cst_503 = arith.constant 0.000000e+00 : f32
    %1417 = vector.broadcast %cst_503 : f32 to vector<2x8x8xf32>
    %1418 = arith.maximumf %1416, %1417 : vector<2x8x8xf32>
    %1419 = arith.mulf %1418, %1418 : vector<2x8x8xf32>
    %cst_504 = arith.constant dense<0.000000e+00> : vector<2x8xf32>
    %1420 = vector.multi_reduction <add>, %1419, %cst_504 [2] : vector<2x8x8xf32> to vector<2x8xf32>
    %1421 = vector.shape_cast %1420 : vector<2x8xf32> to vector<2x8x1xf32>
    %cst_505 = arith.constant 1.000000e+00 : f32
    %1422 = vector.broadcast %cst_505 : f32 to vector<2x8x1xf32>
    %1423 = arith.subf %1421, %1422 : vector<2x8x1xf32>
    %1424 = arith.mulf %1423, %1057 : vector<2x8x1xf32>
    %cst_506 = arith.constant 0.000000e+00 : f32
    %1425 = vector.broadcast %cst_506 : f32 to vector<2x8x1xf32>
    %1426 = arith.cmpf oge, %1424, %1425 : vector<2x8x1xf32>
    %1427 = arith.select %1426, %1414, %1411 : vector<2x8x1xi1>, vector<2x8x1xf32>
    %c23_i32_507 = arith.constant 23 : i32
    %cst_508 = arith.constant 5.000000e-01 : f32
    %1428 = vector.broadcast %cst_508 : f32 to vector<2x8x1xf32>
    %1429 = arith.mulf %1413, %1428 : vector<2x8x1xf32>
    %1430 = arith.addf %1427, %1429 : vector<2x8x1xf32>
    %1431 = vector.broadcast %1430 : vector<2x8x1xf32> to vector<2x8x8xf32>
    %1432 = arith.subf %1042, %1431 : vector<2x8x8xf32>
    %cst_509 = arith.constant 0.000000e+00 : f32
    %1433 = vector.broadcast %cst_509 : f32 to vector<2x8x8xf32>
    %1434 = arith.maximumf %1432, %1433 : vector<2x8x8xf32>
    %1435 = arith.mulf %1434, %1434 : vector<2x8x8xf32>
    %cst_510 = arith.constant dense<0.000000e+00> : vector<2x8xf32>
    %1436 = vector.multi_reduction <add>, %1435, %cst_510 [2] : vector<2x8x8xf32> to vector<2x8xf32>
    %1437 = vector.shape_cast %1436 : vector<2x8xf32> to vector<2x8x1xf32>
    %cst_511 = arith.constant 1.000000e+00 : f32
    %1438 = vector.broadcast %cst_511 : f32 to vector<2x8x1xf32>
    %1439 = arith.subf %1437, %1438 : vector<2x8x1xf32>
    %1440 = arith.mulf %1439, %1057 : vector<2x8x1xf32>
    %cst_512 = arith.constant 0.000000e+00 : f32
    %1441 = vector.broadcast %cst_512 : f32 to vector<2x8x1xf32>
    %1442 = arith.cmpf oge, %1440, %1441 : vector<2x8x1xf32>
    %1443 = arith.select %1442, %1430, %1427 : vector<2x8x1xi1>, vector<2x8x1xf32>
    %c24_i32_513 = arith.constant 24 : i32
    %cst_514 = arith.constant 5.000000e-01 : f32
    %1444 = vector.broadcast %cst_514 : f32 to vector<2x8x1xf32>
    %1445 = arith.mulf %1429, %1444 : vector<2x8x1xf32>
    %1446 = arith.addf %1443, %1445 : vector<2x8x1xf32>
    %1447 = vector.broadcast %1446 : vector<2x8x1xf32> to vector<2x8x8xf32>
    %1448 = arith.subf %1042, %1447 : vector<2x8x8xf32>
    %cst_515 = arith.constant 0.000000e+00 : f32
    %1449 = vector.broadcast %cst_515 : f32 to vector<2x8x8xf32>
    %1450 = arith.maximumf %1448, %1449 : vector<2x8x8xf32>
    %1451 = arith.mulf %1450, %1450 : vector<2x8x8xf32>
    %cst_516 = arith.constant dense<0.000000e+00> : vector<2x8xf32>
    %1452 = vector.multi_reduction <add>, %1451, %cst_516 [2] : vector<2x8x8xf32> to vector<2x8xf32>
    %1453 = vector.shape_cast %1452 : vector<2x8xf32> to vector<2x8x1xf32>
    %cst_517 = arith.constant 1.000000e+00 : f32
    %1454 = vector.broadcast %cst_517 : f32 to vector<2x8x1xf32>
    %1455 = arith.subf %1453, %1454 : vector<2x8x1xf32>
    %1456 = arith.mulf %1455, %1057 : vector<2x8x1xf32>
    %cst_518 = arith.constant 0.000000e+00 : f32
    %1457 = vector.broadcast %cst_518 : f32 to vector<2x8x1xf32>
    %1458 = arith.cmpf oge, %1456, %1457 : vector<2x8x1xf32>
    %1459 = arith.select %1458, %1446, %1443 : vector<2x8x1xi1>, vector<2x8x1xf32>
    %c25_i32_519 = arith.constant 25 : i32
    %cst_520 = arith.constant 5.000000e-01 : f32
    %1460 = vector.broadcast %cst_520 : f32 to vector<2x8x1xf32>
    %1461 = arith.mulf %1445, %1460 : vector<2x8x1xf32>
    %1462 = arith.addf %1459, %1461 : vector<2x8x1xf32>
    %1463 = vector.broadcast %1462 : vector<2x8x1xf32> to vector<2x8x8xf32>
    %1464 = arith.subf %1042, %1463 : vector<2x8x8xf32>
    %cst_521 = arith.constant 0.000000e+00 : f32
    %1465 = vector.broadcast %cst_521 : f32 to vector<2x8x8xf32>
    %1466 = arith.maximumf %1464, %1465 : vector<2x8x8xf32>
    %1467 = arith.mulf %1466, %1466 : vector<2x8x8xf32>
    %cst_522 = arith.constant dense<0.000000e+00> : vector<2x8xf32>
    %1468 = vector.multi_reduction <add>, %1467, %cst_522 [2] : vector<2x8x8xf32> to vector<2x8xf32>
    %1469 = vector.shape_cast %1468 : vector<2x8xf32> to vector<2x8x1xf32>
    %cst_523 = arith.constant 1.000000e+00 : f32
    %1470 = vector.broadcast %cst_523 : f32 to vector<2x8x1xf32>
    %1471 = arith.subf %1469, %1470 : vector<2x8x1xf32>
    %1472 = arith.mulf %1471, %1057 : vector<2x8x1xf32>
    %cst_524 = arith.constant 0.000000e+00 : f32
    %1473 = vector.broadcast %cst_524 : f32 to vector<2x8x1xf32>
    %1474 = arith.cmpf oge, %1472, %1473 : vector<2x8x1xf32>
    %1475 = arith.select %1474, %1462, %1459 : vector<2x8x1xi1>, vector<2x8x1xf32>
    %c26_i32_525 = arith.constant 26 : i32
    %cst_526 = arith.constant 5.000000e-01 : f32
    %1476 = vector.broadcast %cst_526 : f32 to vector<2x8x1xf32>
    %1477 = arith.mulf %1461, %1476 : vector<2x8x1xf32>
    %1478 = arith.addf %1475, %1477 : vector<2x8x1xf32>
    %1479 = vector.broadcast %1478 : vector<2x8x1xf32> to vector<2x8x8xf32>
    %1480 = arith.subf %1042, %1479 : vector<2x8x8xf32>
    %cst_527 = arith.constant 0.000000e+00 : f32
    %1481 = vector.broadcast %cst_527 : f32 to vector<2x8x8xf32>
    %1482 = arith.maximumf %1480, %1481 : vector<2x8x8xf32>
    %1483 = arith.mulf %1482, %1482 : vector<2x8x8xf32>
    %cst_528 = arith.constant dense<0.000000e+00> : vector<2x8xf32>
    %1484 = vector.multi_reduction <add>, %1483, %cst_528 [2] : vector<2x8x8xf32> to vector<2x8xf32>
    %1485 = vector.shape_cast %1484 : vector<2x8xf32> to vector<2x8x1xf32>
    %cst_529 = arith.constant 1.000000e+00 : f32
    %1486 = vector.broadcast %cst_529 : f32 to vector<2x8x1xf32>
    %1487 = arith.subf %1485, %1486 : vector<2x8x1xf32>
    %1488 = arith.mulf %1487, %1057 : vector<2x8x1xf32>
    %cst_530 = arith.constant 0.000000e+00 : f32
    %1489 = vector.broadcast %cst_530 : f32 to vector<2x8x1xf32>
    %1490 = arith.cmpf oge, %1488, %1489 : vector<2x8x1xf32>
    %1491 = arith.select %1490, %1478, %1475 : vector<2x8x1xi1>, vector<2x8x1xf32>
    %c27_i32_531 = arith.constant 27 : i32
    %cst_532 = arith.constant 5.000000e-01 : f32
    %1492 = vector.broadcast %cst_532 : f32 to vector<2x8x1xf32>
    %1493 = arith.mulf %1477, %1492 : vector<2x8x1xf32>
    %1494 = arith.addf %1491, %1493 : vector<2x8x1xf32>
    %1495 = vector.broadcast %1494 : vector<2x8x1xf32> to vector<2x8x8xf32>
    %1496 = arith.subf %1042, %1495 : vector<2x8x8xf32>
    %cst_533 = arith.constant 0.000000e+00 : f32
    %1497 = vector.broadcast %cst_533 : f32 to vector<2x8x8xf32>
    %1498 = arith.maximumf %1496, %1497 : vector<2x8x8xf32>
    %1499 = arith.mulf %1498, %1498 : vector<2x8x8xf32>
    %cst_534 = arith.constant dense<0.000000e+00> : vector<2x8xf32>
    %1500 = vector.multi_reduction <add>, %1499, %cst_534 [2] : vector<2x8x8xf32> to vector<2x8xf32>
    %1501 = vector.shape_cast %1500 : vector<2x8xf32> to vector<2x8x1xf32>
    %cst_535 = arith.constant 1.000000e+00 : f32
    %1502 = vector.broadcast %cst_535 : f32 to vector<2x8x1xf32>
    %1503 = arith.subf %1501, %1502 : vector<2x8x1xf32>
    %1504 = arith.mulf %1503, %1057 : vector<2x8x1xf32>
    %cst_536 = arith.constant 0.000000e+00 : f32
    %1505 = vector.broadcast %cst_536 : f32 to vector<2x8x1xf32>
    %1506 = arith.cmpf oge, %1504, %1505 : vector<2x8x1xf32>
    %1507 = arith.select %1506, %1494, %1491 : vector<2x8x1xi1>, vector<2x8x1xf32>
    %c28_i32_537 = arith.constant 28 : i32
    %cst_538 = arith.constant 5.000000e-01 : f32
    %1508 = vector.broadcast %cst_538 : f32 to vector<2x8x1xf32>
    %1509 = arith.mulf %1493, %1508 : vector<2x8x1xf32>
    %1510 = arith.addf %1507, %1509 : vector<2x8x1xf32>
    %1511 = vector.broadcast %1510 : vector<2x8x1xf32> to vector<2x8x8xf32>
    %1512 = arith.subf %1042, %1511 : vector<2x8x8xf32>
    %cst_539 = arith.constant 0.000000e+00 : f32
    %1513 = vector.broadcast %cst_539 : f32 to vector<2x8x8xf32>
    %1514 = arith.maximumf %1512, %1513 : vector<2x8x8xf32>
    %1515 = arith.mulf %1514, %1514 : vector<2x8x8xf32>
    %cst_540 = arith.constant dense<0.000000e+00> : vector<2x8xf32>
    %1516 = vector.multi_reduction <add>, %1515, %cst_540 [2] : vector<2x8x8xf32> to vector<2x8xf32>
    %1517 = vector.shape_cast %1516 : vector<2x8xf32> to vector<2x8x1xf32>
    %cst_541 = arith.constant 1.000000e+00 : f32
    %1518 = vector.broadcast %cst_541 : f32 to vector<2x8x1xf32>
    %1519 = arith.subf %1517, %1518 : vector<2x8x1xf32>
    %1520 = arith.mulf %1519, %1057 : vector<2x8x1xf32>
    %cst_542 = arith.constant 0.000000e+00 : f32
    %1521 = vector.broadcast %cst_542 : f32 to vector<2x8x1xf32>
    %1522 = arith.cmpf oge, %1520, %1521 : vector<2x8x1xf32>
    %1523 = arith.select %1522, %1510, %1507 : vector<2x8x1xi1>, vector<2x8x1xf32>
    %c29_i32_543 = arith.constant 29 : i32
    %cst_544 = arith.constant 5.000000e-01 : f32
    %1524 = vector.broadcast %cst_544 : f32 to vector<2x8x1xf32>
    %1525 = arith.mulf %1509, %1524 : vector<2x8x1xf32>
    %1526 = arith.addf %1523, %1525 : vector<2x8x1xf32>
    %1527 = vector.broadcast %1526 : vector<2x8x1xf32> to vector<2x8x8xf32>
    %1528 = arith.subf %1042, %1527 : vector<2x8x8xf32>
    %cst_545 = arith.constant 0.000000e+00 : f32
    %1529 = vector.broadcast %cst_545 : f32 to vector<2x8x8xf32>
    %1530 = arith.maximumf %1528, %1529 : vector<2x8x8xf32>
    %1531 = arith.mulf %1530, %1530 : vector<2x8x8xf32>
    %cst_546 = arith.constant dense<0.000000e+00> : vector<2x8xf32>
    %1532 = vector.multi_reduction <add>, %1531, %cst_546 [2] : vector<2x8x8xf32> to vector<2x8xf32>
    %1533 = vector.shape_cast %1532 : vector<2x8xf32> to vector<2x8x1xf32>
    %cst_547 = arith.constant 1.000000e+00 : f32
    %1534 = vector.broadcast %cst_547 : f32 to vector<2x8x1xf32>
    %1535 = arith.subf %1533, %1534 : vector<2x8x1xf32>
    %1536 = arith.mulf %1535, %1057 : vector<2x8x1xf32>
    %cst_548 = arith.constant 0.000000e+00 : f32
    %1537 = vector.broadcast %cst_548 : f32 to vector<2x8x1xf32>
    %1538 = arith.cmpf oge, %1536, %1537 : vector<2x8x1xf32>
    %1539 = arith.select %1538, %1526, %1523 : vector<2x8x1xi1>, vector<2x8x1xf32>
    %cst_549 = arith.constant dense<0.000000e+00> : vector<2x8xf32>
    %1540 = vector.multi_reduction <add>, %1531, %cst_549 [2] : vector<2x8x8xf32> to vector<2x8xf32>
    %1541 = vector.shape_cast %1540 : vector<2x8xf32> to vector<2x8x1xf32>
    %1542 = tpu.reciprocal %1541 {approx = true} : vector<2x8x1xf32> -> vector<2x8x1xf32>
    %1543 = vector.broadcast %1542 : vector<2x8x1xf32> to vector<2x8x8xf32>
    %1544 = arith.mulf %1531, %1543 : vector<2x8x8xf32>
    "tpu.trace_start"() <{level = 10 : i32, message = "wqk,wkd->wqd"}> : () -> ()
    %cst_550 = arith.constant dense<0.000000e+00> : vector<2x8x32xf32>
    %1545 = tpu.matmul %1544, %1039, %cst_550 {dimension_numbers = #tpu.dot_dimension_numbers<[2], [1], [1], [2], [0, 0, 0, 1, 1, 2], [0], [0]>} : vector<2x8x8xf32>, vector<2x8x32xf32>, vector<2x8x32xf32> -> vector<2x8x32xf32>
    "tpu.trace_stop"() : () -> ()
    %1546 = vector.shape_cast %1545 : vector<2x8x32xf32> to vector<16x32xf32>
    %c0_551 = arith.constant 0 : index
    %c64 = arith.constant 64 : index
    %1547 = vector.load %arg9[%c0_551, %c64] : memref<16x128xf32, #tpu.memory_space<vmem>>, vector<16x32xf32>
    tpu.vector_store %arg9[%c0_551, %c64], %1546 {strides = array<i32>} : memref<16x128xf32, #tpu.memory_space<vmem>>, vector<16x32xf32>,
    %1548 = vector.extract_strided_slice %5 {offsets = [0, 96], sizes = [16, 32], strides = [1, 1]} : vector<16x384xf32> to vector<16x32xf32>
    %1549 = vector.shape_cast %1548 : vector<16x32xf32> to vector<2x8x32xf32>
    %1550 = vector.extract_strided_slice %5 {offsets = [0, 224], sizes = [16, 32], strides = [1, 1]} : vector<16x384xf32> to vector<16x32xf32>
    %1551 = vector.shape_cast %1550 : vector<16x32xf32> to vector<2x8x32xf32>
    %1552 = vector.extract_strided_slice %5 {offsets = [0, 352], sizes = [16, 32], strides = [1, 1]} : vector<16x384xf32> to vector<16x32xf32>
    %1553 = vector.shape_cast %1552 : vector<16x32xf32> to vector<2x8x32xf32>
    "tpu.trace_start"() <{level = 10 : i32, message = "wqd,wkd->wqk"}> : () -> ()
    %cst_552 = arith.constant dense<0.000000e+00> : vector<2x8x8xf32>
    %1554 = tpu.matmul %1549, %1551, %cst_552 {dimension_numbers = #tpu.dot_dimension_numbers<[2], [2], [1], [1], [0, 0, 0, 1, 1, 1], [0], [0]>} : vector<2x8x32xf32>, vector<2x8x32xf32>, vector<2x8x8xf32> -> vector<2x8x8xf32>
    "tpu.trace_stop"() : () -> ()
    %cst_553 = arith.constant 0.0883883461 : f32
    %1555 = vector.broadcast %cst_553 : f32 to vector<2x8x8xf32>
    %1556 = arith.mulf %1554, %1555 : vector<2x8x8xf32>
    %cst_554 = arith.constant dense<0xFF800000> : vector<2x8xf32>
    %1557 = vector.multi_reduction <maximumf>, %1556, %cst_554 [2] : vector<2x8x8xf32> to vector<2x8xf32>
    %1558 = vector.shape_cast %1557 : vector<2x8xf32> to vector<2x8x1xf32>
    %cst_555 = arith.constant 1.000000e+00 : f32
    %1559 = vector.broadcast %cst_555 : f32 to vector<2x8x1xf32>
    %1560 = arith.subf %1558, %1559 : vector<2x8x1xf32>
    %cst_556 = arith.constant 0.353553385 : f32
    %1561 = vector.broadcast %cst_556 : f32 to vector<2x8x1xf32>
    %1562 = arith.subf %1558, %1561 : vector<2x8x1xf32>
    %1563 = vector.broadcast %1560 : vector<2x8x1xf32> to vector<2x8x8xf32>
    %1564 = arith.subf %1556, %1563 : vector<2x8x8xf32>
    %cst_557 = arith.constant 0.000000e+00 : f32
    %1565 = vector.broadcast %cst_557 : f32 to vector<2x8x8xf32>
    %1566 = arith.maximumf %1564, %1565 : vector<2x8x8xf32>
    %1567 = arith.mulf %1566, %1566 : vector<2x8x8xf32>
    %cst_558 = arith.constant dense<0.000000e+00> : vector<2x8xf32>
    %1568 = vector.multi_reduction <add>, %1567, %cst_558 [2] : vector<2x8x8xf32> to vector<2x8xf32>
    %1569 = vector.shape_cast %1568 : vector<2x8xf32> to vector<2x8x1xf32>
    %cst_559 = arith.constant 1.000000e+00 : f32
    %1570 = vector.broadcast %cst_559 : f32 to vector<2x8x1xf32>
    %1571 = arith.subf %1569, %1570 : vector<2x8x1xf32>
    %1572 = arith.subf %1562, %1560 : vector<2x8x1xf32>
    %cst_560 = arith.constant 0.000000e+00 : f32
    %1573 = vector.broadcast %cst_560 : f32 to vector<2x8x8xf32>
    %c0_i32_561 = arith.constant 0 : i32
    %cst_562 = arith.constant 5.000000e-01 : f32
    %1574 = vector.broadcast %cst_562 : f32 to vector<2x8x1xf32>
    %1575 = arith.mulf %1572, %1574 : vector<2x8x1xf32>
    %1576 = arith.addf %1560, %1575 : vector<2x8x1xf32>
    %1577 = vector.broadcast %1576 : vector<2x8x1xf32> to vector<2x8x8xf32>
    %1578 = arith.subf %1556, %1577 : vector<2x8x8xf32>
    %cst_563 = arith.constant 0.000000e+00 : f32
    %1579 = vector.broadcast %cst_563 : f32 to vector<2x8x8xf32>
    %1580 = arith.maximumf %1578, %1579 : vector<2x8x8xf32>
    %1581 = arith.mulf %1580, %1580 : vector<2x8x8xf32>
    %cst_564 = arith.constant dense<0.000000e+00> : vector<2x8xf32>
    %1582 = vector.multi_reduction <add>, %1581, %cst_564 [2] : vector<2x8x8xf32> to vector<2x8xf32>
    %1583 = vector.shape_cast %1582 : vector<2x8xf32> to vector<2x8x1xf32>
    %cst_565 = arith.constant 1.000000e+00 : f32
    %1584 = vector.broadcast %cst_565 : f32 to vector<2x8x1xf32>
    %1585 = arith.subf %1583, %1584 : vector<2x8x1xf32>
    %1586 = arith.mulf %1585, %1571 : vector<2x8x1xf32>
    %cst_566 = arith.constant 0.000000e+00 : f32
    %1587 = vector.broadcast %cst_566 : f32 to vector<2x8x1xf32>
    %1588 = arith.cmpf oge, %1586, %1587 : vector<2x8x1xf32>
    %1589 = arith.select %1588, %1576, %1560 : vector<2x8x1xi1>, vector<2x8x1xf32>
    %c1_i32_567 = arith.constant 1 : i32
    %cst_568 = arith.constant 5.000000e-01 : f32
    %1590 = vector.broadcast %cst_568 : f32 to vector<2x8x1xf32>
    %1591 = arith.mulf %1575, %1590 : vector<2x8x1xf32>
    %1592 = arith.addf %1589, %1591 : vector<2x8x1xf32>
    %1593 = vector.broadcast %1592 : vector<2x8x1xf32> to vector<2x8x8xf32>
    %1594 = arith.subf %1556, %1593 : vector<2x8x8xf32>
    %cst_569 = arith.constant 0.000000e+00 : f32
    %1595 = vector.broadcast %cst_569 : f32 to vector<2x8x8xf32>
    %1596 = arith.maximumf %1594, %1595 : vector<2x8x8xf32>
    %1597 = arith.mulf %1596, %1596 : vector<2x8x8xf32>
    %cst_570 = arith.constant dense<0.000000e+00> : vector<2x8xf32>
    %1598 = vector.multi_reduction <add>, %1597, %cst_570 [2] : vector<2x8x8xf32> to vector<2x8xf32>
    %1599 = vector.shape_cast %1598 : vector<2x8xf32> to vector<2x8x1xf32>
    %cst_571 = arith.constant 1.000000e+00 : f32
    %1600 = vector.broadcast %cst_571 : f32 to vector<2x8x1xf32>
    %1601 = arith.subf %1599, %1600 : vector<2x8x1xf32>
    %1602 = arith.mulf %1601, %1571 : vector<2x8x1xf32>
    %cst_572 = arith.constant 0.000000e+00 : f32
    %1603 = vector.broadcast %cst_572 : f32 to vector<2x8x1xf32>
    %1604 = arith.cmpf oge, %1602, %1603 : vector<2x8x1xf32>
    %1605 = arith.select %1604, %1592, %1589 : vector<2x8x1xi1>, vector<2x8x1xf32>
    %c2_i32_573 = arith.constant 2 : i32
    %cst_574 = arith.constant 5.000000e-01 : f32
    %1606 = vector.broadcast %cst_574 : f32 to vector<2x8x1xf32>
    %1607 = arith.mulf %1591, %1606 : vector<2x8x1xf32>
    %1608 = arith.addf %1605, %1607 : vector<2x8x1xf32>
    %1609 = vector.broadcast %1608 : vector<2x8x1xf32> to vector<2x8x8xf32>
    %1610 = arith.subf %1556, %1609 : vector<2x8x8xf32>
    %cst_575 = arith.constant 0.000000e+00 : f32
    %1611 = vector.broadcast %cst_575 : f32 to vector<2x8x8xf32>
    %1612 = arith.maximumf %1610, %1611 : vector<2x8x8xf32>
    %1613 = arith.mulf %1612, %1612 : vector<2x8x8xf32>
    %cst_576 = arith.constant dense<0.000000e+00> : vector<2x8xf32>
    %1614 = vector.multi_reduction <add>, %1613, %cst_576 [2] : vector<2x8x8xf32> to vector<2x8xf32>
    %1615 = vector.shape_cast %1614 : vector<2x8xf32> to vector<2x8x1xf32>
    %cst_577 = arith.constant 1.000000e+00 : f32
    %1616 = vector.broadcast %cst_577 : f32 to vector<2x8x1xf32>
    %1617 = arith.subf %1615, %1616 : vector<2x8x1xf32>
    %1618 = arith.mulf %1617, %1571 : vector<2x8x1xf32>
    %cst_578 = arith.constant 0.000000e+00 : f32
    %1619 = vector.broadcast %cst_578 : f32 to vector<2x8x1xf32>
    %1620 = arith.cmpf oge, %1618, %1619 : vector<2x8x1xf32>
    %1621 = arith.select %1620, %1608, %1605 : vector<2x8x1xi1>, vector<2x8x1xf32>
    %c3_i32_579 = arith.constant 3 : i32
    %cst_580 = arith.constant 5.000000e-01 : f32
    %1622 = vector.broadcast %cst_580 : f32 to vector<2x8x1xf32>
    %1623 = arith.mulf %1607, %1622 : vector<2x8x1xf32>
    %1624 = arith.addf %1621, %1623 : vector<2x8x1xf32>
    %1625 = vector.broadcast %1624 : vector<2x8x1xf32> to vector<2x8x8xf32>
    %1626 = arith.subf %1556, %1625 : vector<2x8x8xf32>
    %cst_581 = arith.constant 0.000000e+00 : f32
    %1627 = vector.broadcast %cst_581 : f32 to vector<2x8x8xf32>
    %1628 = arith.maximumf %1626, %1627 : vector<2x8x8xf32>
    %1629 = arith.mulf %1628, %1628 : vector<2x8x8xf32>
    %cst_582 = arith.constant dense<0.000000e+00> : vector<2x8xf32>
    %1630 = vector.multi_reduction <add>, %1629, %cst_582 [2] : vector<2x8x8xf32> to vector<2x8xf32>
    %1631 = vector.shape_cast %1630 : vector<2x8xf32> to vector<2x8x1xf32>
    %cst_583 = arith.constant 1.000000e+00 : f32
    %1632 = vector.broadcast %cst_583 : f32 to vector<2x8x1xf32>
    %1633 = arith.subf %1631, %1632 : vector<2x8x1xf32>
    %1634 = arith.mulf %1633, %1571 : vector<2x8x1xf32>
    %cst_584 = arith.constant 0.000000e+00 : f32
    %1635 = vector.broadcast %cst_584 : f32 to vector<2x8x1xf32>
    %1636 = arith.cmpf oge, %1634, %1635 : vector<2x8x1xf32>
    %1637 = arith.select %1636, %1624, %1621 : vector<2x8x1xi1>, vector<2x8x1xf32>
    %c4_i32_585 = arith.constant 4 : i32
    %cst_586 = arith.constant 5.000000e-01 : f32
    %1638 = vector.broadcast %cst_586 : f32 to vector<2x8x1xf32>
    %1639 = arith.mulf %1623, %1638 : vector<2x8x1xf32>
    %1640 = arith.addf %1637, %1639 : vector<2x8x1xf32>
    %1641 = vector.broadcast %1640 : vector<2x8x1xf32> to vector<2x8x8xf32>
    %1642 = arith.subf %1556, %1641 : vector<2x8x8xf32>
    %cst_587 = arith.constant 0.000000e+00 : f32
    %1643 = vector.broadcast %cst_587 : f32 to vector<2x8x8xf32>
    %1644 = arith.maximumf %1642, %1643 : vector<2x8x8xf32>
    %1645 = arith.mulf %1644, %1644 : vector<2x8x8xf32>
    %cst_588 = arith.constant dense<0.000000e+00> : vector<2x8xf32>
    %1646 = vector.multi_reduction <add>, %1645, %cst_588 [2] : vector<2x8x8xf32> to vector<2x8xf32>
    %1647 = vector.shape_cast %1646 : vector<2x8xf32> to vector<2x8x1xf32>
    %cst_589 = arith.constant 1.000000e+00 : f32
    %1648 = vector.broadcast %cst_589 : f32 to vector<2x8x1xf32>
    %1649 = arith.subf %1647, %1648 : vector<2x8x1xf32>
    %1650 = arith.mulf %1649, %1571 : vector<2x8x1xf32>
    %cst_590 = arith.constant 0.000000e+00 : f32
    %1651 = vector.broadcast %cst_590 : f32 to vector<2x8x1xf32>
    %1652 = arith.cmpf oge, %1650, %1651 : vector<2x8x1xf32>
    %1653 = arith.select %1652, %1640, %1637 : vector<2x8x1xi1>, vector<2x8x1xf32>
    %c5_i32_591 = arith.constant 5 : i32
    %cst_592 = arith.constant 5.000000e-01 : f32
    %1654 = vector.broadcast %cst_592 : f32 to vector<2x8x1xf32>
    %1655 = arith.mulf %1639, %1654 : vector<2x8x1xf32>
    %1656 = arith.addf %1653, %1655 : vector<2x8x1xf32>
    %1657 = vector.broadcast %1656 : vector<2x8x1xf32> to vector<2x8x8xf32>
    %1658 = arith.subf %1556, %1657 : vector<2x8x8xf32>
    %cst_593 = arith.constant 0.000000e+00 : f32
    %1659 = vector.broadcast %cst_593 : f32 to vector<2x8x8xf32>
    %1660 = arith.maximumf %1658, %1659 : vector<2x8x8xf32>
    %1661 = arith.mulf %1660, %1660 : vector<2x8x8xf32>
    %cst_594 = arith.constant dense<0.000000e+00> : vector<2x8xf32>
    %1662 = vector.multi_reduction <add>, %1661, %cst_594 [2] : vector<2x8x8xf32> to vector<2x8xf32>
    %1663 = vector.shape_cast %1662 : vector<2x8xf32> to vector<2x8x1xf32>
    %cst_595 = arith.constant 1.000000e+00 : f32
    %1664 = vector.broadcast %cst_595 : f32 to vector<2x8x1xf32>
    %1665 = arith.subf %1663, %1664 : vector<2x8x1xf32>
    %1666 = arith.mulf %1665, %1571 : vector<2x8x1xf32>
    %cst_596 = arith.constant 0.000000e+00 : f32
    %1667 = vector.broadcast %cst_596 : f32 to vector<2x8x1xf32>
    %1668 = arith.cmpf oge, %1666, %1667 : vector<2x8x1xf32>
    %1669 = arith.select %1668, %1656, %1653 : vector<2x8x1xi1>, vector<2x8x1xf32>
    %c6_i32_597 = arith.constant 6 : i32
    %cst_598 = arith.constant 5.000000e-01 : f32
    %1670 = vector.broadcast %cst_598 : f32 to vector<2x8x1xf32>
    %1671 = arith.mulf %1655, %1670 : vector<2x8x1xf32>
    %1672 = arith.addf %1669, %1671 : vector<2x8x1xf32>
    %1673 = vector.broadcast %1672 : vector<2x8x1xf32> to vector<2x8x8xf32>
    %1674 = arith.subf %1556, %1673 : vector<2x8x8xf32>
    %cst_599 = arith.constant 0.000000e+00 : f32
    %1675 = vector.broadcast %cst_599 : f32 to vector<2x8x8xf32>
    %1676 = arith.maximumf %1674, %1675 : vector<2x8x8xf32>
    %1677 = arith.mulf %1676, %1676 : vector<2x8x8xf32>
    %cst_600 = arith.constant dense<0.000000e+00> : vector<2x8xf32>
    %1678 = vector.multi_reduction <add>, %1677, %cst_600 [2] : vector<2x8x8xf32> to vector<2x8xf32>
    %1679 = vector.shape_cast %1678 : vector<2x8xf32> to vector<2x8x1xf32>
    %cst_601 = arith.constant 1.000000e+00 : f32
    %1680 = vector.broadcast %cst_601 : f32 to vector<2x8x1xf32>
    %1681 = arith.subf %1679, %1680 : vector<2x8x1xf32>
    %1682 = arith.mulf %1681, %1571 : vector<2x8x1xf32>
    %cst_602 = arith.constant 0.000000e+00 : f32
    %1683 = vector.broadcast %cst_602 : f32 to vector<2x8x1xf32>
    %1684 = arith.cmpf oge, %1682, %1683 : vector<2x8x1xf32>
    %1685 = arith.select %1684, %1672, %1669 : vector<2x8x1xi1>, vector<2x8x1xf32>
    %c7_i32_603 = arith.constant 7 : i32
    %cst_604 = arith.constant 5.000000e-01 : f32
    %1686 = vector.broadcast %cst_604 : f32 to vector<2x8x1xf32>
    %1687 = arith.mulf %1671, %1686 : vector<2x8x1xf32>
    %1688 = arith.addf %1685, %1687 : vector<2x8x1xf32>
    %1689 = vector.broadcast %1688 : vector<2x8x1xf32> to vector<2x8x8xf32>
    %1690 = arith.subf %1556, %1689 : vector<2x8x8xf32>
    %cst_605 = arith.constant 0.000000e+00 : f32
    %1691 = vector.broadcast %cst_605 : f32 to vector<2x8x8xf32>
    %1692 = arith.maximumf %1690, %1691 : vector<2x8x8xf32>
    %1693 = arith.mulf %1692, %1692 : vector<2x8x8xf32>
    %cst_606 = arith.constant dense<0.000000e+00> : vector<2x8xf32>
    %1694 = vector.multi_reduction <add>, %1693, %cst_606 [2] : vector<2x8x8xf32> to vector<2x8xf32>
    %1695 = vector.shape_cast %1694 : vector<2x8xf32> to vector<2x8x1xf32>
    %cst_607 = arith.constant 1.000000e+00 : f32
    %1696 = vector.broadcast %cst_607 : f32 to vector<2x8x1xf32>
    %1697 = arith.subf %1695, %1696 : vector<2x8x1xf32>
    %1698 = arith.mulf %1697, %1571 : vector<2x8x1xf32>
    %cst_608 = arith.constant 0.000000e+00 : f32
    %1699 = vector.broadcast %cst_608 : f32 to vector<2x8x1xf32>
    %1700 = arith.cmpf oge, %1698, %1699 : vector<2x8x1xf32>
    %1701 = arith.select %1700, %1688, %1685 : vector<2x8x1xi1>, vector<2x8x1xf32>
    %c8_i32_609 = arith.constant 8 : i32
    %cst_610 = arith.constant 5.000000e-01 : f32
    %1702 = vector.broadcast %cst_610 : f32 to vector<2x8x1xf32>
    %1703 = arith.mulf %1687, %1702 : vector<2x8x1xf32>
    %1704 = arith.addf %1701, %1703 : vector<2x8x1xf32>
    %1705 = vector.broadcast %1704 : vector<2x8x1xf32> to vector<2x8x8xf32>
    %1706 = arith.subf %1556, %1705 : vector<2x8x8xf32>
    %cst_611 = arith.constant 0.000000e+00 : f32
    %1707 = vector.broadcast %cst_611 : f32 to vector<2x8x8xf32>
    %1708 = arith.maximumf %1706, %1707 : vector<2x8x8xf32>
    %1709 = arith.mulf %1708, %1708 : vector<2x8x8xf32>
    %cst_612 = arith.constant dense<0.000000e+00> : vector<2x8xf32>
    %1710 = vector.multi_reduction <add>, %1709, %cst_612 [2] : vector<2x8x8xf32> to vector<2x8xf32>
    %1711 = vector.shape_cast %1710 : vector<2x8xf32> to vector<2x8x1xf32>
    %cst_613 = arith.constant 1.000000e+00 : f32
    %1712 = vector.broadcast %cst_613 : f32 to vector<2x8x1xf32>
    %1713 = arith.subf %1711, %1712 : vector<2x8x1xf32>
    %1714 = arith.mulf %1713, %1571 : vector<2x8x1xf32>
    %cst_614 = arith.constant 0.000000e+00 : f32
    %1715 = vector.broadcast %cst_614 : f32 to vector<2x8x1xf32>
    %1716 = arith.cmpf oge, %1714, %1715 : vector<2x8x1xf32>
    %1717 = arith.select %1716, %1704, %1701 : vector<2x8x1xi1>, vector<2x8x1xf32>
    %c9_i32_615 = arith.constant 9 : i32
    %cst_616 = arith.constant 5.000000e-01 : f32
    %1718 = vector.broadcast %cst_616 : f32 to vector<2x8x1xf32>
    %1719 = arith.mulf %1703, %1718 : vector<2x8x1xf32>
    %1720 = arith.addf %1717, %1719 : vector<2x8x1xf32>
    %1721 = vector.broadcast %1720 : vector<2x8x1xf32> to vector<2x8x8xf32>
    %1722 = arith.subf %1556, %1721 : vector<2x8x8xf32>
    %cst_617 = arith.constant 0.000000e+00 : f32
    %1723 = vector.broadcast %cst_617 : f32 to vector<2x8x8xf32>
    %1724 = arith.maximumf %1722, %1723 : vector<2x8x8xf32>
    %1725 = arith.mulf %1724, %1724 : vector<2x8x8xf32>
    %cst_618 = arith.constant dense<0.000000e+00> : vector<2x8xf32>
    %1726 = vector.multi_reduction <add>, %1725, %cst_618 [2] : vector<2x8x8xf32> to vector<2x8xf32>
    %1727 = vector.shape_cast %1726 : vector<2x8xf32> to vector<2x8x1xf32>
    %cst_619 = arith.constant 1.000000e+00 : f32
    %1728 = vector.broadcast %cst_619 : f32 to vector<2x8x1xf32>
    %1729 = arith.subf %1727, %1728 : vector<2x8x1xf32>
    %1730 = arith.mulf %1729, %1571 : vector<2x8x1xf32>
    %cst_620 = arith.constant 0.000000e+00 : f32
    %1731 = vector.broadcast %cst_620 : f32 to vector<2x8x1xf32>
    %1732 = arith.cmpf oge, %1730, %1731 : vector<2x8x1xf32>
    %1733 = arith.select %1732, %1720, %1717 : vector<2x8x1xi1>, vector<2x8x1xf32>
    %c10_i32_621 = arith.constant 10 : i32
    %cst_622 = arith.constant 5.000000e-01 : f32
    %1734 = vector.broadcast %cst_622 : f32 to vector<2x8x1xf32>
    %1735 = arith.mulf %1719, %1734 : vector<2x8x1xf32>
    %1736 = arith.addf %1733, %1735 : vector<2x8x1xf32>
    %1737 = vector.broadcast %1736 : vector<2x8x1xf32> to vector<2x8x8xf32>
    %1738 = arith.subf %1556, %1737 : vector<2x8x8xf32>
    %cst_623 = arith.constant 0.000000e+00 : f32
    %1739 = vector.broadcast %cst_623 : f32 to vector<2x8x8xf32>
    %1740 = arith.maximumf %1738, %1739 : vector<2x8x8xf32>
    %1741 = arith.mulf %1740, %1740 : vector<2x8x8xf32>
    %cst_624 = arith.constant dense<0.000000e+00> : vector<2x8xf32>
    %1742 = vector.multi_reduction <add>, %1741, %cst_624 [2] : vector<2x8x8xf32> to vector<2x8xf32>
    %1743 = vector.shape_cast %1742 : vector<2x8xf32> to vector<2x8x1xf32>
    %cst_625 = arith.constant 1.000000e+00 : f32
    %1744 = vector.broadcast %cst_625 : f32 to vector<2x8x1xf32>
    %1745 = arith.subf %1743, %1744 : vector<2x8x1xf32>
    %1746 = arith.mulf %1745, %1571 : vector<2x8x1xf32>
    %cst_626 = arith.constant 0.000000e+00 : f32
    %1747 = vector.broadcast %cst_626 : f32 to vector<2x8x1xf32>
    %1748 = arith.cmpf oge, %1746, %1747 : vector<2x8x1xf32>
    %1749 = arith.select %1748, %1736, %1733 : vector<2x8x1xi1>, vector<2x8x1xf32>
    %c11_i32_627 = arith.constant 11 : i32
    %cst_628 = arith.constant 5.000000e-01 : f32
    %1750 = vector.broadcast %cst_628 : f32 to vector<2x8x1xf32>
    %1751 = arith.mulf %1735, %1750 : vector<2x8x1xf32>
    %1752 = arith.addf %1749, %1751 : vector<2x8x1xf32>
    %1753 = vector.broadcast %1752 : vector<2x8x1xf32> to vector<2x8x8xf32>
    %1754 = arith.subf %1556, %1753 : vector<2x8x8xf32>
    %cst_629 = arith.constant 0.000000e+00 : f32
    %1755 = vector.broadcast %cst_629 : f32 to vector<2x8x8xf32>
    %1756 = arith.maximumf %1754, %1755 : vector<2x8x8xf32>
    %1757 = arith.mulf %1756, %1756 : vector<2x8x8xf32>
    %cst_630 = arith.constant dense<0.000000e+00> : vector<2x8xf32>
    %1758 = vector.multi_reduction <add>, %1757, %cst_630 [2] : vector<2x8x8xf32> to vector<2x8xf32>
    %1759 = vector.shape_cast %1758 : vector<2x8xf32> to vector<2x8x1xf32>
    %cst_631 = arith.constant 1.000000e+00 : f32
    %1760 = vector.broadcast %cst_631 : f32 to vector<2x8x1xf32>
    %1761 = arith.subf %1759, %1760 : vector<2x8x1xf32>
    %1762 = arith.mulf %1761, %1571 : vector<2x8x1xf32>
    %cst_632 = arith.constant 0.000000e+00 : f32
    %1763 = vector.broadcast %cst_632 : f32 to vector<2x8x1xf32>
    %1764 = arith.cmpf oge, %1762, %1763 : vector<2x8x1xf32>
    %1765 = arith.select %1764, %1752, %1749 : vector<2x8x1xi1>, vector<2x8x1xf32>
    %c12_i32_633 = arith.constant 12 : i32
    %cst_634 = arith.constant 5.000000e-01 : f32
    %1766 = vector.broadcast %cst_634 : f32 to vector<2x8x1xf32>
    %1767 = arith.mulf %1751, %1766 : vector<2x8x1xf32>
    %1768 = arith.addf %1765, %1767 : vector<2x8x1xf32>
    %1769 = vector.broadcast %1768 : vector<2x8x1xf32> to vector<2x8x8xf32>
    %1770 = arith.subf %1556, %1769 : vector<2x8x8xf32>
    %cst_635 = arith.constant 0.000000e+00 : f32
    %1771 = vector.broadcast %cst_635 : f32 to vector<2x8x8xf32>
    %1772 = arith.maximumf %1770, %1771 : vector<2x8x8xf32>
    %1773 = arith.mulf %1772, %1772 : vector<2x8x8xf32>
    %cst_636 = arith.constant dense<0.000000e+00> : vector<2x8xf32>
    %1774 = vector.multi_reduction <add>, %1773, %cst_636 [2] : vector<2x8x8xf32> to vector<2x8xf32>
    %1775 = vector.shape_cast %1774 : vector<2x8xf32> to vector<2x8x1xf32>
    %cst_637 = arith.constant 1.000000e+00 : f32
    %1776 = vector.broadcast %cst_637 : f32 to vector<2x8x1xf32>
    %1777 = arith.subf %1775, %1776 : vector<2x8x1xf32>
    %1778 = arith.mulf %1777, %1571 : vector<2x8x1xf32>
    %cst_638 = arith.constant 0.000000e+00 : f32
    %1779 = vector.broadcast %cst_638 : f32 to vector<2x8x1xf32>
    %1780 = arith.cmpf oge, %1778, %1779 : vector<2x8x1xf32>
    %1781 = arith.select %1780, %1768, %1765 : vector<2x8x1xi1>, vector<2x8x1xf32>
    %c13_i32_639 = arith.constant 13 : i32
    %cst_640 = arith.constant 5.000000e-01 : f32
    %1782 = vector.broadcast %cst_640 : f32 to vector<2x8x1xf32>
    %1783 = arith.mulf %1767, %1782 : vector<2x8x1xf32>
    %1784 = arith.addf %1781, %1783 : vector<2x8x1xf32>
    %1785 = vector.broadcast %1784 : vector<2x8x1xf32> to vector<2x8x8xf32>
    %1786 = arith.subf %1556, %1785 : vector<2x8x8xf32>
    %cst_641 = arith.constant 0.000000e+00 : f32
    %1787 = vector.broadcast %cst_641 : f32 to vector<2x8x8xf32>
    %1788 = arith.maximumf %1786, %1787 : vector<2x8x8xf32>
    %1789 = arith.mulf %1788, %1788 : vector<2x8x8xf32>
    %cst_642 = arith.constant dense<0.000000e+00> : vector<2x8xf32>
    %1790 = vector.multi_reduction <add>, %1789, %cst_642 [2] : vector<2x8x8xf32> to vector<2x8xf32>
    %1791 = vector.shape_cast %1790 : vector<2x8xf32> to vector<2x8x1xf32>
    %cst_643 = arith.constant 1.000000e+00 : f32
    %1792 = vector.broadcast %cst_643 : f32 to vector<2x8x1xf32>
    %1793 = arith.subf %1791, %1792 : vector<2x8x1xf32>
    %1794 = arith.mulf %1793, %1571 : vector<2x8x1xf32>
    %cst_644 = arith.constant 0.000000e+00 : f32
    %1795 = vector.broadcast %cst_644 : f32 to vector<2x8x1xf32>
    %1796 = arith.cmpf oge, %1794, %1795 : vector<2x8x1xf32>
    %1797 = arith.select %1796, %1784, %1781 : vector<2x8x1xi1>, vector<2x8x1xf32>
    %c14_i32_645 = arith.constant 14 : i32
    %cst_646 = arith.constant 5.000000e-01 : f32
    %1798 = vector.broadcast %cst_646 : f32 to vector<2x8x1xf32>
    %1799 = arith.mulf %1783, %1798 : vector<2x8x1xf32>
    %1800 = arith.addf %1797, %1799 : vector<2x8x1xf32>
    %1801 = vector.broadcast %1800 : vector<2x8x1xf32> to vector<2x8x8xf32>
    %1802 = arith.subf %1556, %1801 : vector<2x8x8xf32>
    %cst_647 = arith.constant 0.000000e+00 : f32
    %1803 = vector.broadcast %cst_647 : f32 to vector<2x8x8xf32>
    %1804 = arith.maximumf %1802, %1803 : vector<2x8x8xf32>
    %1805 = arith.mulf %1804, %1804 : vector<2x8x8xf32>
    %cst_648 = arith.constant dense<0.000000e+00> : vector<2x8xf32>
    %1806 = vector.multi_reduction <add>, %1805, %cst_648 [2] : vector<2x8x8xf32> to vector<2x8xf32>
    %1807 = vector.shape_cast %1806 : vector<2x8xf32> to vector<2x8x1xf32>
    %cst_649 = arith.constant 1.000000e+00 : f32
    %1808 = vector.broadcast %cst_649 : f32 to vector<2x8x1xf32>
    %1809 = arith.subf %1807, %1808 : vector<2x8x1xf32>
    %1810 = arith.mulf %1809, %1571 : vector<2x8x1xf32>
    %cst_650 = arith.constant 0.000000e+00 : f32
    %1811 = vector.broadcast %cst_650 : f32 to vector<2x8x1xf32>
    %1812 = arith.cmpf oge, %1810, %1811 : vector<2x8x1xf32>
    %1813 = arith.select %1812, %1800, %1797 : vector<2x8x1xi1>, vector<2x8x1xf32>
    %c15_i32_651 = arith.constant 15 : i32
    %cst_652 = arith.constant 5.000000e-01 : f32
    %1814 = vector.broadcast %cst_652 : f32 to vector<2x8x1xf32>
    %1815 = arith.mulf %1799, %1814 : vector<2x8x1xf32>
    %1816 = arith.addf %1813, %1815 : vector<2x8x1xf32>
    %1817 = vector.broadcast %1816 : vector<2x8x1xf32> to vector<2x8x8xf32>
    %1818 = arith.subf %1556, %1817 : vector<2x8x8xf32>
    %cst_653 = arith.constant 0.000000e+00 : f32
    %1819 = vector.broadcast %cst_653 : f32 to vector<2x8x8xf32>
    %1820 = arith.maximumf %1818, %1819 : vector<2x8x8xf32>
    %1821 = arith.mulf %1820, %1820 : vector<2x8x8xf32>
    %cst_654 = arith.constant dense<0.000000e+00> : vector<2x8xf32>
    %1822 = vector.multi_reduction <add>, %1821, %cst_654 [2] : vector<2x8x8xf32> to vector<2x8xf32>
    %1823 = vector.shape_cast %1822 : vector<2x8xf32> to vector<2x8x1xf32>
    %cst_655 = arith.constant 1.000000e+00 : f32
    %1824 = vector.broadcast %cst_655 : f32 to vector<2x8x1xf32>
    %1825 = arith.subf %1823, %1824 : vector<2x8x1xf32>
    %1826 = arith.mulf %1825, %1571 : vector<2x8x1xf32>
    %cst_656 = arith.constant 0.000000e+00 : f32
    %1827 = vector.broadcast %cst_656 : f32 to vector<2x8x1xf32>
    %1828 = arith.cmpf oge, %1826, %1827 : vector<2x8x1xf32>
    %1829 = arith.select %1828, %1816, %1813 : vector<2x8x1xi1>, vector<2x8x1xf32>
    %c16_i32_657 = arith.constant 16 : i32
    %cst_658 = arith.constant 5.000000e-01 : f32
    %1830 = vector.broadcast %cst_658 : f32 to vector<2x8x1xf32>
    %1831 = arith.mulf %1815, %1830 : vector<2x8x1xf32>
    %1832 = arith.addf %1829, %1831 : vector<2x8x1xf32>
    %1833 = vector.broadcast %1832 : vector<2x8x1xf32> to vector<2x8x8xf32>
    %1834 = arith.subf %1556, %1833 : vector<2x8x8xf32>
    %cst_659 = arith.constant 0.000000e+00 : f32
    %1835 = vector.broadcast %cst_659 : f32 to vector<2x8x8xf32>
    %1836 = arith.maximumf %1834, %1835 : vector<2x8x8xf32>
    %1837 = arith.mulf %1836, %1836 : vector<2x8x8xf32>
    %cst_660 = arith.constant dense<0.000000e+00> : vector<2x8xf32>
    %1838 = vector.multi_reduction <add>, %1837, %cst_660 [2] : vector<2x8x8xf32> to vector<2x8xf32>
    %1839 = vector.shape_cast %1838 : vector<2x8xf32> to vector<2x8x1xf32>
    %cst_661 = arith.constant 1.000000e+00 : f32
    %1840 = vector.broadcast %cst_661 : f32 to vector<2x8x1xf32>
    %1841 = arith.subf %1839, %1840 : vector<2x8x1xf32>
    %1842 = arith.mulf %1841, %1571 : vector<2x8x1xf32>
    %cst_662 = arith.constant 0.000000e+00 : f32
    %1843 = vector.broadcast %cst_662 : f32 to vector<2x8x1xf32>
    %1844 = arith.cmpf oge, %1842, %1843 : vector<2x8x1xf32>
    %1845 = arith.select %1844, %1832, %1829 : vector<2x8x1xi1>, vector<2x8x1xf32>
    %c17_i32_663 = arith.constant 17 : i32
    %cst_664 = arith.constant 5.000000e-01 : f32
    %1846 = vector.broadcast %cst_664 : f32 to vector<2x8x1xf32>
    %1847 = arith.mulf %1831, %1846 : vector<2x8x1xf32>
    %1848 = arith.addf %1845, %1847 : vector<2x8x1xf32>
    %1849 = vector.broadcast %1848 : vector<2x8x1xf32> to vector<2x8x8xf32>
    %1850 = arith.subf %1556, %1849 : vector<2x8x8xf32>
    %cst_665 = arith.constant 0.000000e+00 : f32
    %1851 = vector.broadcast %cst_665 : f32 to vector<2x8x8xf32>
    %1852 = arith.maximumf %1850, %1851 : vector<2x8x8xf32>
    %1853 = arith.mulf %1852, %1852 : vector<2x8x8xf32>
    %cst_666 = arith.constant dense<0.000000e+00> : vector<2x8xf32>
    %1854 = vector.multi_reduction <add>, %1853, %cst_666 [2] : vector<2x8x8xf32> to vector<2x8xf32>
    %1855 = vector.shape_cast %1854 : vector<2x8xf32> to vector<2x8x1xf32>
    %cst_667 = arith.constant 1.000000e+00 : f32
    %1856 = vector.broadcast %cst_667 : f32 to vector<2x8x1xf32>
    %1857 = arith.subf %1855, %1856 : vector<2x8x1xf32>
    %1858 = arith.mulf %1857, %1571 : vector<2x8x1xf32>
    %cst_668 = arith.constant 0.000000e+00 : f32
    %1859 = vector.broadcast %cst_668 : f32 to vector<2x8x1xf32>
    %1860 = arith.cmpf oge, %1858, %1859 : vector<2x8x1xf32>
    %1861 = arith.select %1860, %1848, %1845 : vector<2x8x1xi1>, vector<2x8x1xf32>
    %c18_i32_669 = arith.constant 18 : i32
    %cst_670 = arith.constant 5.000000e-01 : f32
    %1862 = vector.broadcast %cst_670 : f32 to vector<2x8x1xf32>
    %1863 = arith.mulf %1847, %1862 : vector<2x8x1xf32>
    %1864 = arith.addf %1861, %1863 : vector<2x8x1xf32>
    %1865 = vector.broadcast %1864 : vector<2x8x1xf32> to vector<2x8x8xf32>
    %1866 = arith.subf %1556, %1865 : vector<2x8x8xf32>
    %cst_671 = arith.constant 0.000000e+00 : f32
    %1867 = vector.broadcast %cst_671 : f32 to vector<2x8x8xf32>
    %1868 = arith.maximumf %1866, %1867 : vector<2x8x8xf32>
    %1869 = arith.mulf %1868, %1868 : vector<2x8x8xf32>
    %cst_672 = arith.constant dense<0.000000e+00> : vector<2x8xf32>
    %1870 = vector.multi_reduction <add>, %1869, %cst_672 [2] : vector<2x8x8xf32> to vector<2x8xf32>
    %1871 = vector.shape_cast %1870 : vector<2x8xf32> to vector<2x8x1xf32>
    %cst_673 = arith.constant 1.000000e+00 : f32
    %1872 = vector.broadcast %cst_673 : f32 to vector<2x8x1xf32>
    %1873 = arith.subf %1871, %1872 : vector<2x8x1xf32>
    %1874 = arith.mulf %1873, %1571 : vector<2x8x1xf32>
    %cst_674 = arith.constant 0.000000e+00 : f32
    %1875 = vector.broadcast %cst_674 : f32 to vector<2x8x1xf32>
    %1876 = arith.cmpf oge, %1874, %1875 : vector<2x8x1xf32>
    %1877 = arith.select %1876, %1864, %1861 : vector<2x8x1xi1>, vector<2x8x1xf32>
    %c19_i32_675 = arith.constant 19 : i32
    %cst_676 = arith.constant 5.000000e-01 : f32
    %1878 = vector.broadcast %cst_676 : f32 to vector<2x8x1xf32>
    %1879 = arith.mulf %1863, %1878 : vector<2x8x1xf32>
    %1880 = arith.addf %1877, %1879 : vector<2x8x1xf32>
    %1881 = vector.broadcast %1880 : vector<2x8x1xf32> to vector<2x8x8xf32>
    %1882 = arith.subf %1556, %1881 : vector<2x8x8xf32>
    %cst_677 = arith.constant 0.000000e+00 : f32
    %1883 = vector.broadcast %cst_677 : f32 to vector<2x8x8xf32>
    %1884 = arith.maximumf %1882, %1883 : vector<2x8x8xf32>
    %1885 = arith.mulf %1884, %1884 : vector<2x8x8xf32>
    %cst_678 = arith.constant dense<0.000000e+00> : vector<2x8xf32>
    %1886 = vector.multi_reduction <add>, %1885, %cst_678 [2] : vector<2x8x8xf32> to vector<2x8xf32>
    %1887 = vector.shape_cast %1886 : vector<2x8xf32> to vector<2x8x1xf32>
    %cst_679 = arith.constant 1.000000e+00 : f32
    %1888 = vector.broadcast %cst_679 : f32 to vector<2x8x1xf32>
    %1889 = arith.subf %1887, %1888 : vector<2x8x1xf32>
    %1890 = arith.mulf %1889, %1571 : vector<2x8x1xf32>
    %cst_680 = arith.constant 0.000000e+00 : f32
    %1891 = vector.broadcast %cst_680 : f32 to vector<2x8x1xf32>
    %1892 = arith.cmpf oge, %1890, %1891 : vector<2x8x1xf32>
    %1893 = arith.select %1892, %1880, %1877 : vector<2x8x1xi1>, vector<2x8x1xf32>
    %c20_i32_681 = arith.constant 20 : i32
    %cst_682 = arith.constant 5.000000e-01 : f32
    %1894 = vector.broadcast %cst_682 : f32 to vector<2x8x1xf32>
    %1895 = arith.mulf %1879, %1894 : vector<2x8x1xf32>
    %1896 = arith.addf %1893, %1895 : vector<2x8x1xf32>
    %1897 = vector.broadcast %1896 : vector<2x8x1xf32> to vector<2x8x8xf32>
    %1898 = arith.subf %1556, %1897 : vector<2x8x8xf32>
    %cst_683 = arith.constant 0.000000e+00 : f32
    %1899 = vector.broadcast %cst_683 : f32 to vector<2x8x8xf32>
    %1900 = arith.maximumf %1898, %1899 : vector<2x8x8xf32>
    %1901 = arith.mulf %1900, %1900 : vector<2x8x8xf32>
    %cst_684 = arith.constant dense<0.000000e+00> : vector<2x8xf32>
    %1902 = vector.multi_reduction <add>, %1901, %cst_684 [2] : vector<2x8x8xf32> to vector<2x8xf32>
    %1903 = vector.shape_cast %1902 : vector<2x8xf32> to vector<2x8x1xf32>
    %cst_685 = arith.constant 1.000000e+00 : f32
    %1904 = vector.broadcast %cst_685 : f32 to vector<2x8x1xf32>
    %1905 = arith.subf %1903, %1904 : vector<2x8x1xf32>
    %1906 = arith.mulf %1905, %1571 : vector<2x8x1xf32>
    %cst_686 = arith.constant 0.000000e+00 : f32
    %1907 = vector.broadcast %cst_686 : f32 to vector<2x8x1xf32>
    %1908 = arith.cmpf oge, %1906, %1907 : vector<2x8x1xf32>
    %1909 = arith.select %1908, %1896, %1893 : vector<2x8x1xi1>, vector<2x8x1xf32>
    %c21_i32_687 = arith.constant 21 : i32
    %cst_688 = arith.constant 5.000000e-01 : f32
    %1910 = vector.broadcast %cst_688 : f32 to vector<2x8x1xf32>
    %1911 = arith.mulf %1895, %1910 : vector<2x8x1xf32>
    %1912 = arith.addf %1909, %1911 : vector<2x8x1xf32>
    %1913 = vector.broadcast %1912 : vector<2x8x1xf32> to vector<2x8x8xf32>
    %1914 = arith.subf %1556, %1913 : vector<2x8x8xf32>
    %cst_689 = arith.constant 0.000000e+00 : f32
    %1915 = vector.broadcast %cst_689 : f32 to vector<2x8x8xf32>
    %1916 = arith.maximumf %1914, %1915 : vector<2x8x8xf32>
    %1917 = arith.mulf %1916, %1916 : vector<2x8x8xf32>
    %cst_690 = arith.constant dense<0.000000e+00> : vector<2x8xf32>
    %1918 = vector.multi_reduction <add>, %1917, %cst_690 [2] : vector<2x8x8xf32> to vector<2x8xf32>
    %1919 = vector.shape_cast %1918 : vector<2x8xf32> to vector<2x8x1xf32>
    %cst_691 = arith.constant 1.000000e+00 : f32
    %1920 = vector.broadcast %cst_691 : f32 to vector<2x8x1xf32>
    %1921 = arith.subf %1919, %1920 : vector<2x8x1xf32>
    %1922 = arith.mulf %1921, %1571 : vector<2x8x1xf32>
    %cst_692 = arith.constant 0.000000e+00 : f32
    %1923 = vector.broadcast %cst_692 : f32 to vector<2x8x1xf32>
    %1924 = arith.cmpf oge, %1922, %1923 : vector<2x8x1xf32>
    %1925 = arith.select %1924, %1912, %1909 : vector<2x8x1xi1>, vector<2x8x1xf32>
    %c22_i32_693 = arith.constant 22 : i32
    %cst_694 = arith.constant 5.000000e-01 : f32
    %1926 = vector.broadcast %cst_694 : f32 to vector<2x8x1xf32>
    %1927 = arith.mulf %1911, %1926 : vector<2x8x1xf32>
    %1928 = arith.addf %1925, %1927 : vector<2x8x1xf32>
    %1929 = vector.broadcast %1928 : vector<2x8x1xf32> to vector<2x8x8xf32>
    %1930 = arith.subf %1556, %1929 : vector<2x8x8xf32>
    %cst_695 = arith.constant 0.000000e+00 : f32
    %1931 = vector.broadcast %cst_695 : f32 to vector<2x8x8xf32>
    %1932 = arith.maximumf %1930, %1931 : vector<2x8x8xf32>
    %1933 = arith.mulf %1932, %1932 : vector<2x8x8xf32>
    %cst_696 = arith.constant dense<0.000000e+00> : vector<2x8xf32>
    %1934 = vector.multi_reduction <add>, %1933, %cst_696 [2] : vector<2x8x8xf32> to vector<2x8xf32>
    %1935 = vector.shape_cast %1934 : vector<2x8xf32> to vector<2x8x1xf32>
    %cst_697 = arith.constant 1.000000e+00 : f32
    %1936 = vector.broadcast %cst_697 : f32 to vector<2x8x1xf32>
    %1937 = arith.subf %1935, %1936 : vector<2x8x1xf32>
    %1938 = arith.mulf %1937, %1571 : vector<2x8x1xf32>
    %cst_698 = arith.constant 0.000000e+00 : f32
    %1939 = vector.broadcast %cst_698 : f32 to vector<2x8x1xf32>
    %1940 = arith.cmpf oge, %1938, %1939 : vector<2x8x1xf32>
    %1941 = arith.select %1940, %1928, %1925 : vector<2x8x1xi1>, vector<2x8x1xf32>
    %c23_i32_699 = arith.constant 23 : i32
    %cst_700 = arith.constant 5.000000e-01 : f32
    %1942 = vector.broadcast %cst_700 : f32 to vector<2x8x1xf32>
    %1943 = arith.mulf %1927, %1942 : vector<2x8x1xf32>
    %1944 = arith.addf %1941, %1943 : vector<2x8x1xf32>
    %1945 = vector.broadcast %1944 : vector<2x8x1xf32> to vector<2x8x8xf32>
    %1946 = arith.subf %1556, %1945 : vector<2x8x8xf32>
    %cst_701 = arith.constant 0.000000e+00 : f32
    %1947 = vector.broadcast %cst_701 : f32 to vector<2x8x8xf32>
    %1948 = arith.maximumf %1946, %1947 : vector<2x8x8xf32>
    %1949 = arith.mulf %1948, %1948 : vector<2x8x8xf32>
    %cst_702 = arith.constant dense<0.000000e+00> : vector<2x8xf32>
    %1950 = vector.multi_reduction <add>, %1949, %cst_702 [2] : vector<2x8x8xf32> to vector<2x8xf32>
    %1951 = vector.shape_cast %1950 : vector<2x8xf32> to vector<2x8x1xf32>
    %cst_703 = arith.constant 1.000000e+00 : f32
    %1952 = vector.broadcast %cst_703 : f32 to vector<2x8x1xf32>
    %1953 = arith.subf %1951, %1952 : vector<2x8x1xf32>
    %1954 = arith.mulf %1953, %1571 : vector<2x8x1xf32>
    %cst_704 = arith.constant 0.000000e+00 : f32
    %1955 = vector.broadcast %cst_704 : f32 to vector<2x8x1xf32>
    %1956 = arith.cmpf oge, %1954, %1955 : vector<2x8x1xf32>
    %1957 = arith.select %1956, %1944, %1941 : vector<2x8x1xi1>, vector<2x8x1xf32>
    %c24_i32_705 = arith.constant 24 : i32
    %cst_706 = arith.constant 5.000000e-01 : f32
    %1958 = vector.broadcast %cst_706 : f32 to vector<2x8x1xf32>
    %1959 = arith.mulf %1943, %1958 : vector<2x8x1xf32>
    %1960 = arith.addf %1957, %1959 : vector<2x8x1xf32>
    %1961 = vector.broadcast %1960 : vector<2x8x1xf32> to vector<2x8x8xf32>
    %1962 = arith.subf %1556, %1961 : vector<2x8x8xf32>
    %cst_707 = arith.constant 0.000000e+00 : f32
    %1963 = vector.broadcast %cst_707 : f32 to vector<2x8x8xf32>
    %1964 = arith.maximumf %1962, %1963 : vector<2x8x8xf32>
    %1965 = arith.mulf %1964, %1964 : vector<2x8x8xf32>
    %cst_708 = arith.constant dense<0.000000e+00> : vector<2x8xf32>
    %1966 = vector.multi_reduction <add>, %1965, %cst_708 [2] : vector<2x8x8xf32> to vector<2x8xf32>
    %1967 = vector.shape_cast %1966 : vector<2x8xf32> to vector<2x8x1xf32>
    %cst_709 = arith.constant 1.000000e+00 : f32
    %1968 = vector.broadcast %cst_709 : f32 to vector<2x8x1xf32>
    %1969 = arith.subf %1967, %1968 : vector<2x8x1xf32>
    %1970 = arith.mulf %1969, %1571 : vector<2x8x1xf32>
    %cst_710 = arith.constant 0.000000e+00 : f32
    %1971 = vector.broadcast %cst_710 : f32 to vector<2x8x1xf32>
    %1972 = arith.cmpf oge, %1970, %1971 : vector<2x8x1xf32>
    %1973 = arith.select %1972, %1960, %1957 : vector<2x8x1xi1>, vector<2x8x1xf32>
    %c25_i32_711 = arith.constant 25 : i32
    %cst_712 = arith.constant 5.000000e-01 : f32
    %1974 = vector.broadcast %cst_712 : f32 to vector<2x8x1xf32>
    %1975 = arith.mulf %1959, %1974 : vector<2x8x1xf32>
    %1976 = arith.addf %1973, %1975 : vector<2x8x1xf32>
    %1977 = vector.broadcast %1976 : vector<2x8x1xf32> to vector<2x8x8xf32>
    %1978 = arith.subf %1556, %1977 : vector<2x8x8xf32>
    %cst_713 = arith.constant 0.000000e+00 : f32
    %1979 = vector.broadcast %cst_713 : f32 to vector<2x8x8xf32>
    %1980 = arith.maximumf %1978, %1979 : vector<2x8x8xf32>
    %1981 = arith.mulf %1980, %1980 : vector<2x8x8xf32>
    %cst_714 = arith.constant dense<0.000000e+00> : vector<2x8xf32>
    %1982 = vector.multi_reduction <add>, %1981, %cst_714 [2] : vector<2x8x8xf32> to vector<2x8xf32>
    %1983 = vector.shape_cast %1982 : vector<2x8xf32> to vector<2x8x1xf32>
    %cst_715 = arith.constant 1.000000e+00 : f32
    %1984 = vector.broadcast %cst_715 : f32 to vector<2x8x1xf32>
    %1985 = arith.subf %1983, %1984 : vector<2x8x1xf32>
    %1986 = arith.mulf %1985, %1571 : vector<2x8x1xf32>
    %cst_716 = arith.constant 0.000000e+00 : f32
    %1987 = vector.broadcast %cst_716 : f32 to vector<2x8x1xf32>
    %1988 = arith.cmpf oge, %1986, %1987 : vector<2x8x1xf32>
    %1989 = arith.select %1988, %1976, %1973 : vector<2x8x1xi1>, vector<2x8x1xf32>
    %c26_i32_717 = arith.constant 26 : i32
    %cst_718 = arith.constant 5.000000e-01 : f32
    %1990 = vector.broadcast %cst_718 : f32 to vector<2x8x1xf32>
    %1991 = arith.mulf %1975, %1990 : vector<2x8x1xf32>
    %1992 = arith.addf %1989, %1991 : vector<2x8x1xf32>
    %1993 = vector.broadcast %1992 : vector<2x8x1xf32> to vector<2x8x8xf32>
    %1994 = arith.subf %1556, %1993 : vector<2x8x8xf32>
    %cst_719 = arith.constant 0.000000e+00 : f32
    %1995 = vector.broadcast %cst_719 : f32 to vector<2x8x8xf32>
    %1996 = arith.maximumf %1994, %1995 : vector<2x8x8xf32>
    %1997 = arith.mulf %1996, %1996 : vector<2x8x8xf32>
    %cst_720 = arith.constant dense<0.000000e+00> : vector<2x8xf32>
    %1998 = vector.multi_reduction <add>, %1997, %cst_720 [2] : vector<2x8x8xf32> to vector<2x8xf32>
    %1999 = vector.shape_cast %1998 : vector<2x8xf32> to vector<2x8x1xf32>
    %cst_721 = arith.constant 1.000000e+00 : f32
    %2000 = vector.broadcast %cst_721 : f32 to vector<2x8x1xf32>
    %2001 = arith.subf %1999, %2000 : vector<2x8x1xf32>
    %2002 = arith.mulf %2001, %1571 : vector<2x8x1xf32>
    %cst_722 = arith.constant 0.000000e+00 : f32
    %2003 = vector.broadcast %cst_722 : f32 to vector<2x8x1xf32>
    %2004 = arith.cmpf oge, %2002, %2003 : vector<2x8x1xf32>
    %2005 = arith.select %2004, %1992, %1989 : vector<2x8x1xi1>, vector<2x8x1xf32>
    %c27_i32_723 = arith.constant 27 : i32
    %cst_724 = arith.constant 5.000000e-01 : f32
    %2006 = vector.broadcast %cst_724 : f32 to vector<2x8x1xf32>
    %2007 = arith.mulf %1991, %2006 : vector<2x8x1xf32>
    %2008 = arith.addf %2005, %2007 : vector<2x8x1xf32>
    %2009 = vector.broadcast %2008 : vector<2x8x1xf32> to vector<2x8x8xf32>
    %2010 = arith.subf %1556, %2009 : vector<2x8x8xf32>
    %cst_725 = arith.constant 0.000000e+00 : f32
    %2011 = vector.broadcast %cst_725 : f32 to vector<2x8x8xf32>
    %2012 = arith.maximumf %2010, %2011 : vector<2x8x8xf32>
    %2013 = arith.mulf %2012, %2012 : vector<2x8x8xf32>
    %cst_726 = arith.constant dense<0.000000e+00> : vector<2x8xf32>
    %2014 = vector.multi_reduction <add>, %2013, %cst_726 [2] : vector<2x8x8xf32> to vector<2x8xf32>
    %2015 = vector.shape_cast %2014 : vector<2x8xf32> to vector<2x8x1xf32>
    %cst_727 = arith.constant 1.000000e+00 : f32
    %2016 = vector.broadcast %cst_727 : f32 to vector<2x8x1xf32>
    %2017 = arith.subf %2015, %2016 : vector<2x8x1xf32>
    %2018 = arith.mulf %2017, %1571 : vector<2x8x1xf32>
    %cst_728 = arith.constant 0.000000e+00 : f32
    %2019 = vector.broadcast %cst_728 : f32 to vector<2x8x1xf32>
    %2020 = arith.cmpf oge, %2018, %2019 : vector<2x8x1xf32>
    %2021 = arith.select %2020, %2008, %2005 : vector<2x8x1xi1>, vector<2x8x1xf32>
    %c28_i32_729 = arith.constant 28 : i32
    %cst_730 = arith.constant 5.000000e-01 : f32
    %2022 = vector.broadcast %cst_730 : f32 to vector<2x8x1xf32>
    %2023 = arith.mulf %2007, %2022 : vector<2x8x1xf32>
    %2024 = arith.addf %2021, %2023 : vector<2x8x1xf32>
    %2025 = vector.broadcast %2024 : vector<2x8x1xf32> to vector<2x8x8xf32>
    %2026 = arith.subf %1556, %2025 : vector<2x8x8xf32>
    %cst_731 = arith.constant 0.000000e+00 : f32
    %2027 = vector.broadcast %cst_731 : f32 to vector<2x8x8xf32>
    %2028 = arith.maximumf %2026, %2027 : vector<2x8x8xf32>
    %2029 = arith.mulf %2028, %2028 : vector<2x8x8xf32>
    %cst_732 = arith.constant dense<0.000000e+00> : vector<2x8xf32>
    %2030 = vector.multi_reduction <add>, %2029, %cst_732 [2] : vector<2x8x8xf32> to vector<2x8xf32>
    %2031 = vector.shape_cast %2030 : vector<2x8xf32> to vector<2x8x1xf32>
    %cst_733 = arith.constant 1.000000e+00 : f32
    %2032 = vector.broadcast %cst_733 : f32 to vector<2x8x1xf32>
    %2033 = arith.subf %2031, %2032 : vector<2x8x1xf32>
    %2034 = arith.mulf %2033, %1571 : vector<2x8x1xf32>
    %cst_734 = arith.constant 0.000000e+00 : f32
    %2035 = vector.broadcast %cst_734 : f32 to vector<2x8x1xf32>
    %2036 = arith.cmpf oge, %2034, %2035 : vector<2x8x1xf32>
    %2037 = arith.select %2036, %2024, %2021 : vector<2x8x1xi1>, vector<2x8x1xf32>
    %c29_i32_735 = arith.constant 29 : i32
    %cst_736 = arith.constant 5.000000e-01 : f32
    %2038 = vector.broadcast %cst_736 : f32 to vector<2x8x1xf32>
    %2039 = arith.mulf %2023, %2038 : vector<2x8x1xf32>
    %2040 = arith.addf %2037, %2039 : vector<2x8x1xf32>
    %2041 = vector.broadcast %2040 : vector<2x8x1xf32> to vector<2x8x8xf32>
    %2042 = arith.subf %1556, %2041 : vector<2x8x8xf32>
    %cst_737 = arith.constant 0.000000e+00 : f32
    %2043 = vector.broadcast %cst_737 : f32 to vector<2x8x8xf32>
    %2044 = arith.maximumf %2042, %2043 : vector<2x8x8xf32>
    %2045 = arith.mulf %2044, %2044 : vector<2x8x8xf32>
    %cst_738 = arith.constant dense<0.000000e+00> : vector<2x8xf32>
    %2046 = vector.multi_reduction <add>, %2045, %cst_738 [2] : vector<2x8x8xf32> to vector<2x8xf32>
    %2047 = vector.shape_cast %2046 : vector<2x8xf32> to vector<2x8x1xf32>
    %cst_739 = arith.constant 1.000000e+00 : f32
    %2048 = vector.broadcast %cst_739 : f32 to vector<2x8x1xf32>
    %2049 = arith.subf %2047, %2048 : vector<2x8x1xf32>
    %2050 = arith.mulf %2049, %1571 : vector<2x8x1xf32>
    %cst_740 = arith.constant 0.000000e+00 : f32
    %2051 = vector.broadcast %cst_740 : f32 to vector<2x8x1xf32>
    %2052 = arith.cmpf oge, %2050, %2051 : vector<2x8x1xf32>
    %2053 = arith.select %2052, %2040, %2037 : vector<2x8x1xi1>, vector<2x8x1xf32>
    %cst_741 = arith.constant dense<0.000000e+00> : vector<2x8xf32>
    %2054 = vector.multi_reduction <add>, %2045, %cst_741 [2] : vector<2x8x8xf32> to vector<2x8xf32>
    %2055 = vector.shape_cast %2054 : vector<2x8xf32> to vector<2x8x1xf32>
    %2056 = tpu.reciprocal %2055 {approx = true} : vector<2x8x1xf32> -> vector<2x8x1xf32>
    %2057 = vector.broadcast %2056 : vector<2x8x1xf32> to vector<2x8x8xf32>
    %2058 = arith.mulf %2045, %2057 : vector<2x8x8xf32>
    "tpu.trace_start"() <{level = 10 : i32, message = "wqk,wkd->wqd"}> : () -> ()
    %cst_742 = arith.constant dense<0.000000e+00> : vector<2x8x32xf32>
    %2059 = tpu.matmul %2058, %1553, %cst_742 {dimension_numbers = #tpu.dot_dimension_numbers<[2], [1], [1], [2], [0, 0, 0, 1, 1, 2], [0], [0]>} : vector<2x8x8xf32>, vector<2x8x32xf32>, vector<2x8x32xf32> -> vector<2x8x32xf32>
    "tpu.trace_stop"() : () -> ()
    %2060 = vector.shape_cast %2059 : vector<2x8x32xf32> to vector<16x32xf32>
    %c0_743 = arith.constant 0 : index
    %c96 = arith.constant 96 : index
    %2061 = vector.load %arg9[%c0_743, %c96] : memref<16x128xf32, #tpu.memory_space<vmem>>, vector<16x32xf32>
    tpu.vector_store %arg9[%c0_743, %c96], %2060 {strides = array<i32>} : memref<16x128xf32, #tpu.memory_space<vmem>>, vector<16x32xf32>,
    %c0_744 = arith.constant 0 : index
    %c0_745 = arith.constant 0 : index
    %2062 = vector.load %arg9[%c0_744, %c0_745] : memref<16x128xf32, #tpu.memory_space<vmem>>, vector<16x128xf32>
    %cst_746 = arith.constant dense<0.000000e+00> : vector<16xf32>
    %2063 = vector.multi_reduction <add>, %2062, %cst_746 [1] : vector<16x128xf32> to vector<16xf32>
    %2064 = vector.shape_cast %2063 : vector<16xf32> to vector<16x1xf32>
    %cst_747 = arith.constant 1.280000e+02 : f32
    %2065 = vector.broadcast %cst_747 : f32 to vector<16x1xf32>
    %2066 = arith.divf %2064, %2065 : vector<16x1xf32>
    %2067 = vector.broadcast %2066 : vector<16x1xf32> to vector<16x128xf32>
    %2068 = arith.subf %2062, %2067 : vector<16x128xf32>
    %2069 = arith.mulf %2068, %2068 : vector<16x128xf32>
    %cst_748 = arith.constant dense<0.000000e+00> : vector<16xf32>
    %2070 = vector.multi_reduction <add>, %2069, %cst_748 [1] : vector<16x128xf32> to vector<16xf32>
    %2071 = vector.shape_cast %2070 : vector<16xf32> to vector<16x1xf32>
    %cst_749 = arith.constant 1.280000e+02 : f32
    %2072 = vector.broadcast %cst_749 : f32 to vector<16x1xf32>
    %2073 = arith.divf %2071, %2072 : vector<16x1xf32>
    %cst_750 = arith.constant 9.99999974E-6 : f32
    %2074 = vector.broadcast %cst_750 : f32 to vector<16x1xf32>
    %2075 = arith.addf %2073, %2074 : vector<16x1xf32>
    %2076 = math.rsqrt %2075 : vector<16x1xf32>
    %2077 = vector.broadcast %2076 : vector<16x1xf32> to vector<16x128xf32>
    %2078 = arith.mulf %2068, %2077 : vector<16x128xf32>
    %c0_751 = arith.constant 0 : index
    %c0_752 = arith.constant 0 : index
    %2079 = vector.load %arg4[%c0_751, %c0_752] : memref<1x128xf32, #tpu.memory_space<vmem>>, vector<1x128xf32>
    %2080 = vector.broadcast %2079 : vector<1x128xf32> to vector<16x128xf32>
    %2081 = arith.mulf %2078, %2080 : vector<16x128xf32>
    %c0_753 = arith.constant 0 : index
    %c0_754 = arith.constant 0 : index
    %2082 = vector.load %arg5[%c0_753, %c0_754] : memref<1x128xf32, #tpu.memory_space<vmem>>, vector<1x128xf32>
    %2083 = vector.broadcast %2082 : vector<1x128xf32> to vector<16x128xf32>
    %2084 = arith.addf %2081, %2083 : vector<16x128xf32>
    %c0_755 = arith.constant 0 : index
    %c0_756 = arith.constant 0 : index
    %2085 = vector.load %arg6[%c0_755, %c0_756] : memref<128x128xf32, #tpu.memory_space<vmem>>, vector<128x128xf32>
    %cst_757 = arith.constant dense<0.000000e+00> : vector<16x128xf32>
    %2086 = tpu.matmul %2084, %2085, %cst_757 {dimension_numbers = #tpu.dot_dimension_numbers<[1], [0], [0], [1], [0, 0, 1, 1], [], []>} : vector<16x128xf32>, vector<128x128xf32>, vector<16x128xf32> -> vector<16x128xf32>
    %c0_758 = arith.constant 0 : index
    %c0_759 = arith.constant 0 : index
    %2087 = vector.load %arg7[%c0_758, %c0_759] : memref<1x128xf32, #tpu.memory_space<vmem>>, vector<1x128xf32>
    %2088 = vector.broadcast %2087 : vector<1x128xf32> to vector<16x128xf32>
    %2089 = arith.addf %2086, %2088 : vector<16x128xf32>
    %c0_760 = arith.constant 0 : index
    %c0_761 = arith.constant 0 : index
    %2090 = vector.load %arg8[%c0_760, %c0_761] : memref<16x128xf32, #tpu.memory_space<vmem>>, vector<16x128xf32>
    tpu.vector_store %arg8[%c0_760, %c0_761], %2089 {strides = array<i32>} : memref<16x128xf32, #tpu.memory_space<vmem>>, vector<16x128xf32>,
    return
  }
  func.func @transform_0(%arg0: i32) -> (i32, i32) {
    %c0_i32 = arith.constant 0 : i32
    %c0_i32_0 = arith.constant 0 : i32
    return %arg0, %c0_i32 : i32, i32
  }
  func.func @transform_1(%arg0: i32) -> (i32, i32) {
    %c0_i32 = arith.constant 0 : i32
    %c0_i32_0 = arith.constant 0 : i32
    %c0_i32_1 = arith.constant 0 : i32
    return %c0_i32, %c0_i32_0 : i32, i32
  }
  func.func @transform_2(%arg0: i32) -> (i32, i32) {
    %c0_i32 = arith.constant 0 : i32
    %c0_i32_0 = arith.constant 0 : i32
    %c0_i32_1 = arith.constant 0 : i32
    return %c0_i32, %c0_i32_0 : i32, i32
  }
  func.func @transform_3(%arg0: i32) -> (i32, i32) {
    %c0_i32 = arith.constant 0 : i32
    %c0_i32_0 = arith.constant 0 : i32
    %c0_i32_1 = arith.constant 0 : i32
    return %c0_i32, %c0_i32_0 : i32, i32
  }
  func.func @transform_4(%arg0: i32) -> (i32, i32) {
    %c0_i32 = arith.constant 0 : i32
    %c0_i32_0 = arith.constant 0 : i32
    %c0_i32_1 = arith.constant 0 : i32
    return %c0_i32, %c0_i32_0 : i32, i32
  }
  func.func @transform_5(%arg0: i32) -> (i32, i32) {
    %c0_i32 = arith.constant 0 : i32
    %c0_i32_0 = arith.constant 0 : i32
    %c0_i32_1 = arith.constant 0 : i32
    return %c0_i32, %c0_i32_0 : i32, i32
  }
  func.func @transform_6(%arg0: i32) -> (i32, i32) {
    %c0_i32 = arith.constant 0 : i32
    %c0_i32_0 = arith.constant 0 : i32
    %c0_i32_1 = arith.constant 0 : i32
    return %c0_i32, %c0_i32_0 : i32, i32
  }
  func.func @transform_7(%arg0: i32) -> (i32, i32) {
    %c0_i32 = arith.constant 0 : i32
    %c0_i32_0 = arith.constant 0 : i32
    return %arg0, %c0_i32 : i32, i32
  }
}

</mosaic_0001>

<llo_original>
// kernel: flash_attention_forward.1
$region0: #{flash_attention_forward.1}
  #allocation0 [shape = 'u32[]', space=smem, size = 0x4, offset = 0x4, fixed_abs, tag = 'smem constant byte address 0x4 - core index']
  #allocation1 [shape = 'u32[144,128]{1,0:T(1,128)}', space=vmem, size = 0x12000, scoped, tag = 'internal scratch']
  #allocation2 [shape = 'f32[16,128]{1,0:T(8,128)}', space=vmem, size = 0x2000, scoped, tag = 'scratch operand']
  %s0 = inlined_call_operand.vmem [shape: f32[32,128], index: 0, kind: input, shape index: {}]
  %s1 = inlined_call_operand.vmem [shape: f32[128,384], index: 1, kind: input, shape index: {}]
  %s2 = inlined_call_operand.vmem [shape: f32[1,384], index: 2, kind: input, shape index: {}]
  %s3 = inlined_call_operand.vmem [shape: f32[1,128], index: 3, kind: input, shape index: {}]
  %s4 = inlined_call_operand.vmem [shape: f32[1,128], index: 4, kind: input, shape index: {}]
  %s5 = inlined_call_operand.vmem [shape: f32[128,128], index: 5, kind: input, shape index: {}]
  %s6 = inlined_call_operand.vmem [shape: f32[1,128], index: 6, kind: input, shape index: {}]
  %s7 = inlined_call_operand.hbm [shape: f32[32,128], index: 7, kind: output, shape index: {}]
  %s8 = sld [smem:[#allocation0]]
  $region61: #{flash_attention_forward.1} parent=0
    _
  %s10 = ssub.s32 1, %s8
  %s11 = scalar_select 0, %s10, %s8
  $region1: #{flash_attention_forward.1} parent=0
    #allocation3 [shape = 'u8[16384]{0}', space=vmem, size = 0x4000, scoped, tag = 'output window, operand 0']
    #allocation4 [shape = 's32[2]{0}', space=sflag, size = 0x8, scoped, tag = 'scoped memory for flash_attention_forward.1']
    %12 = vsyncpa [#allocation4], 0
    %s13 = scalar_lea.sflag [#allocation4], 1
    %14 = vsyncpa %s13, 0
    loop: start=0, step=1, limit=4
    $region2: #{flash_attention_forward.1} parent=1 // loop_pre_header
      _
    $region3: #{flash_attention_forward.1} parent=1 // loop_header
      %s16 = sphi 0, %s20
      %p17 = scmp.ge.s32.totalorder %s16, 4
      %s26 = sphi 0, %s28
      %s29 = sphi 0, %s26
      %s30 = sphi 0, %s29
      %s46 = sphi 0, %s30
      %s50 = sphi 0, %s50
      %s52 = sphi 0, %s50
      %s53 = sphi 0, %s52
      %s67 = sphi 0, %s53
      %s71 = sphi 0, %s71
      %s73 = sphi 0, %s71
      %s74 = sphi 0, %s73
      %s88 = sphi 0, %s74
      %s92 = sphi 0, %s92
      %s94 = sphi 0, %s92
      %s95 = sphi 0, %s94
      %s109 = sphi 0, %s95
      %s113 = sphi 0, %s113
      %s115 = sphi 0, %s113
      %s116 = sphi 0, %s115
      %s130 = sphi 0, %s116
      %s134 = sphi 0, %s134
      %s136 = sphi 0, %s134
      %s137 = sphi 0, %s136
      %s151 = sphi 0, %s137
      %s155 = sphi 0, %s155
      %s157 = sphi 0, %s155
      %s158 = sphi 0, %s157
      %s172 = sphi 0, %s158
      %s178 = sphi 0, %s180
      %s181 = sphi 0, %s178
      %s182 = sphi 0, %s181
      %s198 = sphi 0, %s182
    $region4: #{flash_attention_forward.1} parent=1 // loop_header_branch
      %19 = sbr.rel (%p17) target = $region8
    $region5: #{flash_attention_forward.1} parent=1 // loop_body
      %s21 = ssub.s32 %s16, 1
      %s22 = ssub.s32 %s16, 2
      %s23 = sadd.s32 %s16, 1
      %s24 = ssub.s32 %s16, %s23
      %p25 = scmp.eq.s32.totalorder %s24, 0
      %s27 = sadd.s32 %s26, 1
      %s28 = scalar_select %p25, %s26, %s27
      %p31 = pneg %p25
      %p32 = scmp.eq.s32.totalorder %s16, 1
      %p33 = por %p31, %p32
      %p34 = scmp.ne.s32.totalorder %s26, %s29
      %p35 = scmp.eq.s32.totalorder %s16, 0
      %p36 = por %p34, %p35
      %p37 = scmp.ne.s32.totalorder %s26, %s29
      %p38 = scmp.eq.s32.totalorder %s21, 1
      %p39 = por %p37, %p38
      %p40 = scmp.ne.s32.totalorder %s29, %s30
      %p41 = scmp.eq.s32.totalorder %s21, 0
      %p42 = por %p40, %p41
      %p43 = scmp.ne.s32.totalorder %s29, %s30
      %p44 = scmp.eq.s32.totalorder %s22, 1
      %p45 = por %p43, %p44
      %p47 = scmp.ne.s32.totalorder %s30, %s46
      %p48 = scmp.eq.s32.totalorder %s22, 0
      %p49 = por %p47, %p48
      %s51 = sadd.s32 %s50, 1
      %p54 = scmp.eq.s32.totalorder %s16, 1
      %p55 = scmp.ne.s32.totalorder %s50, %s52
      %p56 = scmp.eq.s32.totalorder %s16, 0
      %p57 = por %p55, %p56
      %p58 = scmp.ne.s32.totalorder %s50, %s52
      %p59 = scmp.eq.s32.totalorder %s21, 1
      %p60 = por %p58, %p59
      %p61 = scmp.ne.s32.totalorder %s52, %s53
      %p62 = scmp.eq.s32.totalorder %s21, 0
      %p63 = por %p61, %p62
      %p64 = scmp.ne.s32.totalorder %s52, %s53
      %p65 = scmp.eq.s32.totalorder %s22, 1
      %p66 = por %p64, %p65
      %p68 = scmp.ne.s32.totalorder %s53, %s67
      %p69 = scmp.eq.s32.totalorder %s22, 0
      %p70 = por %p68, %p69
      %s72 = sadd.s32 %s71, 1
      %p75 = scmp.eq.s32.totalorder %s16, 1
      %p76 = scmp.ne.s32.totalorder %s71, %s73
      %p77 = scmp.eq.s32.totalorder %s16, 0
      %p78 = por %p76, %p77
      %p79 = scmp.ne.s32.totalorder %s71, %s73
      %p80 = scmp.eq.s32.totalorder %s21, 1
      %p81 = por %p79, %p80
      %p82 = scmp.ne.s32.totalorder %s73, %s74
      %p83 = scmp.eq.s32.totalorder %s21, 0
      %p84 = por %p82, %p83
      %p85 = scmp.ne.s32.totalorder %s73, %s74
      %p86 = scmp.eq.s32.totalorder %s22, 1
      %p87 = por %p85, %p86
      %p89 = scmp.ne.s32.totalorder %s74, %s88
      %p90 = scmp.eq.s32.totalorder %s22, 0
      %p91 = por %p89, %p90
      %s93 = sadd.s32 %s92, 1
      %p96 = scmp.eq.s32.totalorder %s16, 1
      %p97 = scmp.ne.s32.totalorder %s92, %s94
      %p98 = scmp.eq.s32.totalorder %s16, 0
      %p99 = por %p97, %p98
      %p100 = scmp.ne.s32.totalorder %s92, %s94
      %p101 = scmp.eq.s32.totalorder %s21, 1
      %p102 = por %p100, %p101
      %p103 = scmp.ne.s32.totalorder %s94, %s95
      %p104 = scmp.eq.s32.totalorder %s21, 0
      %p105 = por %p103, %p104
      %p106 = scmp.ne.s32.totalorder %s94, %s95
      %p107 = scmp.eq.s32.totalorder %s22, 1
      %p108 = por %p106, %p107
      %p110 = scmp.ne.s32.totalorder %s95, %s109
      %p111 = scmp.eq.s32.totalorder %s22, 0
      %p112 = por %p110, %p111
      %s114 = sadd.s32 %s113, 1
      %p117 = scmp.eq.s32.totalorder %s16, 1
      %p118 = scmp.ne.s32.totalorder %s113, %s115
      %p119 = scmp.eq.s32.totalorder %s16, 0
      %p120 = por %p118, %p119
      %p121 = scmp.ne.s32.totalorder %s113, %s115
      %p122 = scmp.eq.s32.totalorder %s21, 1
      %p123 = por %p121, %p122
      %p124 = scmp.ne.s32.totalorder %s115, %s116
      %p125 = scmp.eq.s32.totalorder %s21, 0
      %p126 = por %p124, %p125
      %p127 = scmp.ne.s32.totalorder %s115, %s116
      %p128 = scmp.eq.s32.totalorder %s22, 1
      %p129 = por %p127, %p128
      %p131 = scmp.ne.s32.totalorder %s116, %s130
      %p132 = scmp.eq.s32.totalorder %s22, 0
      %p133 = por %p131, %p132
      %s135 = sadd.s32 %s134, 1
      %p138 = scmp.eq.s32.totalorder %s16, 1
      %p139 = scmp.ne.s32.totalorder %s134, %s136
      %p140 = scmp.eq.s32.totalorder %s16, 0
      %p141 = por %p139, %p140
      %p142 = scmp.ne.s32.totalorder %s134, %s136
      %p143 = scmp.eq.s32.totalorder %s21, 1
      %p144 = por %p142, %p143
      %p145 = scmp.ne.s32.totalorder %s136, %s137
      %p146 = scmp.eq.s32.totalorder %s21, 0
      %p147 = por %p145, %p146
      %p148 = scmp.ne.s32.totalorder %s136, %s137
      %p149 = scmp.eq.s32.totalorder %s22, 1
      %p150 = por %p148, %p149
      %p152 = scmp.ne.s32.totalorder %s137, %s151
      %p153 = scmp.eq.s32.totalorder %s22, 0
      %p154 = por %p152, %p153
      %s156 = sadd.s32 %s155, 1
      %p159 = scmp.eq.s32.totalorder %s16, 1
      %p160 = scmp.ne.s32.totalorder %s155, %s157
      %p161 = scmp.eq.s32.totalorder %s16, 0
      %p162 = por %p160, %p161
      %p163 = scmp.ne.s32.totalorder %s155, %s157
      %p164 = scmp.eq.s32.totalorder %s21, 1
      %p165 = por %p163, %p164
      %p166 = scmp.ne.s32.totalorder %s157, %s158
      %p167 = scmp.eq.s32.totalorder %s21, 0
      %p168 = por %p166, %p167
      %p169 = scmp.ne.s32.totalorder %s157, %s158
      %p170 = scmp.eq.s32.totalorder %s22, 1
      %p171 = por %p169, %p170
      %p173 = scmp.ne.s32.totalorder %s158, %s172
      %p174 = scmp.eq.s32.totalorder %s22, 0
      %p175 = por %p173, %p174
      %s176 = ssub.s32 %s16, %s23
      %p177 = scmp.eq.s32.totalorder %s176, 0
      %s179 = sadd.s32 %s178, 1
      %s180 = scalar_select %p177, %s178, %s179
      %p183 = pneg %p177
      %p184 = scmp.eq.s32.totalorder %s16, 1
      %p185 = por %p183, %p184
      %p186 = scmp.ne.s32.totalorder %s178, %s181
      %p187 = scmp.eq.s32.totalorder %s16, 0
      %p188 = por %p186, %p187
      %p189 = scmp.ne.s32.totalorder %s178, %s181
      %p190 = scmp.eq.s32.totalorder %s21, 1
      %p191 = por %p189, %p190
      %p192 = scmp.ne.s32.totalorder %s181, %s182
      %p193 = scmp.eq.s32.totalorder %s21, 0
      %p194 = por %p192, %p193
      %p195 = scmp.ne.s32.totalorder %s181, %s182
      %p196 = scmp.eq.s32.totalorder %s22, 1
      %p197 = por %p195, %p196
      %p199 = scmp.ne.s32.totalorder %s182, %s198
      %p200 = scmp.eq.s32.totalorder %s22, 0
      %p201 = por %p199, %p200
      %p202 = scmp.le.s32.totalorder 1, %s16
      %p203 = scmp.lt.s32.totalorder %s16, 3
      %p204 = pnand %p202, %p203
      %p205 = pneg %p204
      // Predicated region
      $region9: #{flash_attention_forward.1} parent=5 // pred_check
        _
      $region10: #{flash_attention_forward.1} parent=5 // pred_check_branch
        %207 = sbr.rel (%p204) target = $region12
      $region11: #{flash_attention_forward.1} parent=5 // pred_region
        %s208 = ssub.s32 %s16, 1
        // Predicated region
        $region13: #{flash_attention_forward.1} parent=11 // pred_check
          %p209 = pneg %p63
        $region14: #{flash_attention_forward.1} parent=11 // pred_check_branch
          %211 = sbr.rel (%p209) target = $region16
        $region15: #{flash_attention_forward.1} parent=11 // pred_region
          _
        $region16: #{flash_attention_forward.1} parent=11 // pred_fallthru
          _
        // Predicated region
        $region17: #{flash_attention_forward.1} parent=11 // pred_check
          %p212 = pneg %p84
        $region18: #{flash_attention_forward.1} parent=11 // pred_check_branch
          %214 = sbr.rel (%p212) target = $region20
        $region19: #{flash_attention_forward.1} parent=11 // pred_region
          _
        $region20: #{flash_attention_forward.1} parent=11 // pred_fallthru
          _
        // Predicated region
        $region21: #{flash_attention_forward.1} parent=11 // pred_check
          %p215 = pneg %p105
        $region22: #{flash_attention_forward.1} parent=11 // pred_check_branch
          %217 = sbr.rel (%p215) target = $region24
        $region23: #{flash_attention_forward.1} parent=11 // pred_region
          _
        $region24: #{flash_attention_forward.1} parent=11 // pred_fallthru
          _
        // Predicated region
        $region25: #{flash_attention_forward.1} parent=11 // pred_check
          %p218 = pneg %p126
        $region26: #{flash_attention_forward.1} parent=11 // pred_check_branch
          %220 = sbr.rel (%p218) target = $region28
        $region27: #{flash_attention_forward.1} parent=11 // pred_region
          _
        $region28: #{flash_attention_forward.1} parent=11 // pred_fallthru
          _
        // Predicated region
        $region29: #{flash_attention_forward.1} parent=11 // pred_check
          %p221 = pneg %p147
        $region30: #{flash_attention_forward.1} parent=11 // pred_check_branch
          %223 = sbr.rel (%p221) target = $region32
        $region31: #{flash_attention_forward.1} parent=11 // pred_region
          _
        $region32: #{flash_attention_forward.1} parent=11 // pred_fallthru
          _
        // Predicated region
        $region33: #{flash_attention_forward.1} parent=11 // pred_check
          %p224 = pneg %p168
        $region34: #{flash_attention_forward.1} parent=11 // pred_check_branch
          %226 = sbr.rel (%p224) target = $region36
        $region35: #{flash_attention_forward.1} parent=11 // pred_region
          _
        $region36: #{flash_attention_forward.1} parent=11 // pred_fallthru
          _
      $region12: #{flash_attention_forward.1} parent=5 // pred_fallthru
        _
      %p227 = scmp.lt.s32.totalorder %s16, 2
      // Predicated region
      $region37: #{flash_attention_forward.1} parent=5 // pred_check
        %p228 = pneg %p227
      $region38: #{flash_attention_forward.1} parent=5 // pred_check_branch
        %230 = sbr.rel (%p228) target = $region40
      $region39: #{flash_attention_forward.1} parent=5 // pred_region
        // Predicated region
        $region41: #{flash_attention_forward.1} parent=39 // pred_check
          %p231 = pneg %p36
        $region42: #{flash_attention_forward.1} parent=39 // pred_check_branch
          %233 = sbr.rel (%p231) target = $region44
        $region43: #{flash_attention_forward.1} parent=39 // pred_region
          %s234 = smul.u32 2, %s16
          %p235 = scmp.lt.s32.totalorder %s234, 3
          %s236 = scalar_select %p235, %s234, 3
          %s237 = smul.addr %s236, 8
          %s238 = scalar_lea.vmem %s0, %s237
          %s239 = smul.u32 2, %s16
        $region44: #{flash_attention_forward.1} parent=39 // pred_fallthru
          _
      $region40: #{flash_attention_forward.1} parent=5 // pred_fallthru
        _
      %p240 = scmp.le.s32.totalorder 1, %s16
      %p241 = scmp.lt.s32.totalorder %s16, 3
      %p242 = pnand %p240, %p241
      %p243 = pneg %p242
      // Predicated region
      $region45: #{flash_attention_forward.1} parent=5 // pred_check
        _
      $region46: #{flash_attention_forward.1} parent=5 // pred_check_branch
        %245 = sbr.rel (%p242) target = $region48
      $region47: #{flash_attention_forward.1} parent=5 // pred_region
        %s246 = ssub.s32 %s16, 1
        %s247 = smul.u32 2, %s21
        %p248 = scmp.lt.s32.totalorder %s247, 3
        %s249 = scalar_select %p248, %s247, 3
        %s250 = smul.addr %s249, 8
        %s251 = scalar_lea.vmem %s0, %s250
        %p252 = pneg %p42
        %p253 = pneg %p39
        %p254 = pneg %p63
        %p255 = pneg %p60
        %p256 = pneg %p84
        %p257 = pneg %p81
        %p258 = pneg %p105
        %p259 = pneg %p102
        %p260 = pneg %p126
        %p261 = pneg %p123
        %p262 = pneg %p147
        %p263 = pneg %p144
        %p264 = pneg %p168
        %p265 = pneg %p165
        %p266 = pneg %p194
        %p267 = pneg %p191
        %s268 = sand.u32 %s181, 1
        %s269 = scalar_lea.sflag [#allocation4], %s268
        %s270 = sand.u32 %s181, 1
        %s271 = smul.addr %s270, 16
        %s272 = scalar_lea.vmem [#allocation3], %s271
        %s273 = smul.u32 2, %s21
        %p274 = scmp.lt.s32.totalorder %s273, 3
        %s275 = scalar_select %p274, %s273, 3
        %s276 = smul.addr %s275, 8
        %s277 = scalar_lea.vmem %s0, %s276
        %s278 = smul.u32 2, %s21
        %s279 = smul.u32 2, %s21
        %v280 = vld [vmem:[%s277] sm:$0xff]
        %v281 = vld [vmem:[%s277 + $0x8] sm:$0xff]
        %v282 = vld [vmem:[%s1] sm:$0xff]
        %v283 = vld [vmem:[%s1 + $0x8] sm:$0xff]
        %v284 = vld [vmem:[%s1 + $0x10] sm:$0xff]
        %v285 = vld [vmem:[%s1 + $0x18] sm:$0xff]
        %v286 = vld [vmem:[%s1 + $0x20] sm:$0xff]
        %v287 = vld [vmem:[%s1 + $0x28] sm:$0xff]
        %v288 = vld [vmem:[%s1 + $0x30] sm:$0xff]
        %v289 = vld [vmem:[%s1 + $0x38] sm:$0xff]
        %v290 = vld [vmem:[%s1 + $0x40] sm:$0xff]
        %v291 = vld [vmem:[%s1 + $0x48] sm:$0xff]
        %v292 = vld [vmem:[%s1 + $0x50] sm:$0xff]
        %v293 = vld [vmem:[%s1 + $0x58] sm:$0xff]
        %v294 = vld [vmem:[%s1 + $0x60] sm:$0xff]
        %v295 = vld [vmem:[%s1 + $0x68] sm:$0xff]
        %v296 = vld [vmem:[%s1 + $0x70] sm:$0xff]
        %v297 = vld [vmem:[%s1 + $0x78] sm:$0xff]
        %v298 = vld [vmem:[%s1 + $0x80] sm:$0xff]
        %v299 = vld [vmem:[%s1 + $0x88] sm:$0xff]
        %v300 = vld [vmem:[%s1 + $0x90] sm:$0xff]
        %v301 = vld [vmem:[%s1 + $0x98] sm:$0xff]
        %v302 = vld [vmem:[%s1 + $0xa0] sm:$0xff]
        %v303 = vld [vmem:[%s1 + $0xa8] sm:$0xff]
        %v304 = vld [vmem:[%s1 + $0xb0] sm:$0xff]
        %v305 = vld [vmem:[%s1 + $0xb8] sm:$0xff]
        %v306 = vld [vmem:[%s1 + $0xc0] sm:$0xff]
        %v307 = vld [vmem:[%s1 + $0xc8] sm:$0xff]
        %v308 = vld [vmem:[%s1 + $0xd0] sm:$0xff]
        %v309 = vld [vmem:[%s1 + $0xd8] sm:$0xff]
        %v310 = vld [vmem:[%s1 + $0xe0] sm:$0xff]
        %v311 = vld [vmem:[%s1 + $0xe8] sm:$0xff]
        %v312 = vld [vmem:[%s1 + $0xf0] sm:$0xff]
        %v313 = vld [vmem:[%s1 + $0xf8] sm:$0xff]
        %v314 = vld [vmem:[%s1 + $0x100] sm:$0xff]
        %v315 = vld [vmem:[%s1 + $0x108] sm:$0xff]
        %v316 = vld [vmem:[%s1 + $0x110] sm:$0xff]
        %v317 = vld [vmem:[%s1 + $0x118] sm:$0xff]
        %v318 = vld [vmem:[%s1 + $0x120] sm:$0xff]
        %v319 = vld [vmem:[%s1 + $0x128] sm:$0xff]
        %v320 = vld [vmem:[%s1 + $0x130] sm:$0xff]
        %v321 = vld [vmem:[%s1 + $0x138] sm:$0xff]
        %v322 = vld [vmem:[%s1 + $0x140] sm:$0xff]
        %v323 = vld [vmem:[%s1 + $0x148] sm:$0xff]
        %v324 = vld [vmem:[%s1 + $0x150] sm:$0xff]
        %v325 = vld [vmem:[%s1 + $0x158] sm:$0xff]
        %v326 = vld [vmem:[%s1 + $0x160] sm:$0xff]
        %v327 = vld [vmem:[%s1 + $0x168] sm:$0xff]
        %v328 = vld [vmem:[%s1 + $0x170] sm:$0xff]
        %v329 = vld [vmem:[%s1 + $0x178] sm:$0xff]
        %v330 = vld [vmem:[%s2] sm:$0x7]
        %v332 = vlaneseq
        %v333 = vshrl.u32 %v332, 7
        %v334 = vsub.s32 0, %v333
        %v335 = vrot.slane %v330, %v334
        %v336 = vlaneseq
        %v337 = vshrl.u32 %v336, 7
        %v338 = vsub.s32 1, %v337
        %v339 = vrot.slane %v330, %v338
        %v340 = vlaneseq
        %v341 = vshrl.u32 %v340, 7
        %v342 = vsub.s32 2, %v341
        %v343 = vrot.slane %v330, %v342
        %347 = vmatprep.subr.mxu0 %v283
        %348 = vmatpush1.msra.mxu0 %v282
        %349 = vmatprep.subr.mxu0 %v286
        %350 = vmatpush1.msra.mxu0 %v285
        %351 = vmatprep.subr.mxu0 %v289
        %352 = vmatpush1.msra.mxu0 %v288
        %353 = vmatprep.subr.mxu0 %v292
        %354 = vmatpush1.msra.mxu0 %v291
        %355 = vmatprep.subr.mxu0 %v295
        %356 = vmatpush1.msra.mxu0 %v294
        %357 = vmatprep.subr.mxu0 %v298
        %358 = vmatpush1.msra.mxu0 %v297
        %359 = vmatprep.subr.mxu0 %v301
        %360 = vmatpush1.msra.mxu0 %v300
        %361 = vmatprep.subr.mxu0 %v304
        %362 = vmatpush1.msra.mxu0 %v303
        %363 = vmatprep.subr.mxu0 %v307
        %364 = vmatpush1.msra.mxu0 %v306
        %365 = vmatprep.subr.mxu0 %v310
        %366 = vmatpush1.msra.mxu0 %v309
        %367 = vmatprep.subr.mxu0 %v313
        %368 = vmatpush1.msra.mxu0 %v312
        %369 = vmatprep.subr.mxu0 %v316
        %370 = vmatpush1.msra.mxu0 %v315
        %371 = vmatprep.subr.mxu0 %v319
        %372 = vmatpush1.msra.mxu0 %v318
        %373 = vmatprep.subr.mxu0 %v322
        %374 = vmatpush1.msra.mxu0 %v321
        %375 = vmatprep.subr.mxu0 %v325
        %376 = vmatpush1.msra.mxu0 %v324
        %377 = vmatprep.subr.mxu0 %v328
        %378 = vmatpush1.msra.mxu0 %v327
        %379 = vmatprep.subr.mxu0 0.0
        %380 = vmatpush1.msra.mxu0 0.0
        %381 = vmatprep.subr.mxu0 0.0
        %382 = vmatpush1.msra.mxu0 0.0
        %383 = vmatprep.subr.mxu0 0.0
        %384 = vmatpush1.msra.mxu0 0.0
        %385 = vmatprep.subr.mxu0 0.0
        %386 = vmatpush1.msra.mxu0 0.0
        %387 = vmatprep.subr.mxu0 0.0
        %388 = vmatpush1.msra.mxu0 0.0
        %389 = vmatprep.subr.mxu0 0.0
        %390 = vmatpush1.msra.mxu0 0.0
        %391 = vmatprep.subr.mxu0 0.0
        %392 = vmatpush1.msra.mxu0 0.0
        %393 = vmatprep.subr.mxu0 0.0
        %394 = vmatpush1.msra.mxu0 0.0
        %395 = vmatprep.subr.mxu0 0.0
        %396 = vmatpush1.msra.mxu0 0.0
        %397 = vmatprep.subr.mxu0 0.0
        %398 = vmatpush1.msra.mxu0 0.0
        %399 = vmatprep.subr.mxu0 0.0
        %400 = vmatpush1.msra.mxu0 0.0
        %401 = vmatprep.subr.mxu0 0.0
        %402 = vmatpush1.msra.mxu0 0.0
        %403 = vmatprep.subr.mxu0 0.0
        %404 = vmatpush1.msra.mxu0 0.0
        %405 = vmatprep.subr.mxu0 0.0
        %406 = vmatpush1.msra.mxu0 0.0
        %407 = vmatprep.subr.mxu0 0.0
        %408 = vmatpush1.msra.mxu0 0.0
        %409 = vmatprep.subr.mxu0 0.0
        %410 = vmatpush1.msra.mxu0 0.0
        %411 = vmatprep.mubr.f32.mxu0 0.0
        %412 = vmatmul.mubr.f32.gmra.mrb[0].mxu0 %v280
        %v413 = vpop.f32.mrb[0].mxu0
        %v414 = vadd.f32 %v335, %v413
        %v415 = vpop.f32.mrb[0].mxu0
        %v416 = vadd.f32 %v339, %v415
        %417 = vmatprep.mubr.f32.mxu0 0.0
        %418 = vmatmul.mubr.f32.gmra.mrb[0].mxu0 %v281
        %v419 = vpop.f32.mrb[0].mxu0
        %v420 = vadd.f32 %v335, %v419
        %v421 = vpop.f32.mrb[0].mxu0
        %v422 = vadd.f32 %v339, %v421
        %423 = vdwg.mxu0
        %424 = vmatprep.subr.mxu0 0.0
        %425 = vmatpush1.msra.mxu0 %v284
        %426 = vmatprep.subr.mxu0 0.0
        %427 = vmatpush1.msra.mxu0 %v287
        %428 = vmatprep.subr.mxu0 0.0
        %429 = vmatpush1.msra.mxu0 %v290
        %430 = vmatprep.subr.mxu0 0.0
        %431 = vmatpush1.msra.mxu0 %v293
        %432 = vmatprep.subr.mxu0 0.0
        %433 = vmatpush1.msra.mxu0 %v296
        %434 = vmatprep.subr.mxu0 0.0
        %435 = vmatpush1.msra.mxu0 %v299
        %436 = vmatprep.subr.mxu0 0.0
        %437 = vmatpush1.msra.mxu0 %v302
        %438 = vmatprep.subr.mxu0 0.0
        %439 = vmatpush1.msra.mxu0 %v305
        %440 = vmatprep.subr.mxu0 0.0
        %441 = vmatpush1.msra.mxu0 %v308
        %442 = vmatprep.subr.mxu0 0.0
        %443 = vmatpush1.msra.mxu0 %v311
        %444 = vmatprep.subr.mxu0 0.0
        %445 = vmatpush1.msra.mxu0 %v314
        %446 = vmatprep.subr.mxu0 0.0
        %447 = vmatpush1.msra.mxu0 %v317
        %448 = vmatprep.subr.mxu0 0.0
        %449 = vmatpush1.msra.mxu0 %v320
        %450 = vmatprep.subr.mxu0 0.0
        %451 = vmatpush1.msra.mxu0 %v323
        %452 = vmatprep.subr.mxu0 0.0
        %453 = vmatpush1.msra.mxu0 %v326
        %454 = vmatprep.subr.mxu0 0.0
        %455 = vmatpush1.msra.mxu0 %v329
        %456 = vmatprep.subr.mxu0 0.0
        %457 = vmatpush1.msra.mxu0 0.0
        %458 = vmatprep.subr.mxu0 0.0
        %459 = vmatpush1.msra.mxu0 0.0
        %460 = vmatprep.subr.mxu0 0.0
        %461 = vmatpush1.msra.mxu0 0.0
        %462 = vmatprep.subr.mxu0 0.0
        %463 = vmatpush1.msra.mxu0 0.0
        %464 = vmatprep.subr.mxu0 0.0
        %465 = vmatpush1.msra.mxu0 0.0
        %466 = vmatprep.subr.mxu0 0.0
        %467 = vmatpush1.msra.mxu0 0.0
        %468 = vmatprep.subr.mxu0 0.0
        %469 = vmatpush1.msra.mxu0 0.0
        %470 = vmatprep.subr.mxu0 0.0
        %471 = vmatpush1.msra.mxu0 0.0
        %472 = vmatprep.subr.mxu0 0.0
        %473 = vmatpush1.msra.mxu0 0.0
        %474 = vmatprep.subr.mxu0 0.0
        %475 = vmatpush1.msra.mxu0 0.0
        %476 = vmatprep.subr.mxu0 0.0
        %477 = vmatpush1.msra.mxu0 0.0
        %478 = vmatprep.subr.mxu0 0.0
        %479 = vmatpush1.msra.mxu0 0.0
        %480 = vmatprep.subr.mxu0 0.0
        %481 = vmatpush1.msra.mxu0 0.0
        %482 = vmatprep.subr.mxu0 0.0
        %483 = vmatpush1.msra.mxu0 0.0
        %484 = vmatprep.subr.mxu0 0.0
        %485 = vmatpush1.msra.mxu0 0.0
        %486 = vmatprep.subr.mxu0 0.0
        %487 = vmatpush1.msra.mxu0 0.0
        %488 = vmatprep.mubr.f32.mxu0 0.0
        %489 = vmatmul.mubr.f32.gmra.mrb[0].mxu0 %v280
        %v490 = vpop.f32.mrb[0].mxu0
        %v491 = vadd.f32 %v343, %v490
        %v492 = vpop.f32.mrb[0].mxu0
        %493 = vmatprep.mubr.f32.mxu0 0.0
        %494 = vmatmul.mubr.f32.gmra.mrb[0].mxu0 %v281
        %v495 = vpop.f32.mrb[0].mxu0
        %v496 = vadd.f32 %v343, %v495
        %v497 = vpop.f32.mrb[0].mxu0
        %498 = vdwg.mxu0
        %vm499 = vcmask 261120
        %v501 = vsel %vm499, %v414, 0
        %v504 = vsel %vm499, %v416, 0
        %506 = vmatprep.subr.mxu0 0.0
        %507 = vmatpush1.xpose.msra.mxu0 %v504
        %508 = vmatprep.subr.mxu0 0.0
        %509 = vmatpush1.xpose.msra.mxu0 0.0
        %510 = vmatprep.subr.mxu0 0.0
        %511 = vmatpush1.xpose.msra.mxu0 0.0
        %512 = vmatprep.subr.mxu0 0.0
        %513 = vmatpush1.xpose.msra.mxu0 0.0
        %514 = vmatprep.subr.mxu0 0.0
        %515 = vmatpush1.xpose.msra.mxu0 0.0
        %516 = vmatprep.subr.mxu0 0.0
        %517 = vmatpush1.xpose.msra.mxu0 0.0
        %518 = vmatprep.subr.mxu0 0.0
        %519 = vmatpush1.xpose.msra.mxu0 0.0
        %520 = vmatprep.subr.mxu0 0.0
        %521 = vmatpush1.xpose.msra.mxu0 0.0
        %522 = vmatprep.subr.mxu0 0.0
        %523 = vmatpush1.xpose.msra.mxu0 0.0
        %524 = vmatprep.subr.mxu0 0.0
        %525 = vmatpush1.xpose.msra.mxu0 0.0
        %526 = vmatprep.subr.mxu0 0.0
        %527 = vmatpush1.xpose.msra.mxu0 0.0
        %528 = vmatprep.subr.mxu0 0.0
        %529 = vmatpush1.xpose.msra.mxu0 0.0
        %530 = vmatprep.subr.mxu0 0.0
        %531 = vmatpush1.xpose.msra.mxu0 0.0
        %532 = vmatprep.subr.mxu0 0.0
        %533 = vmatpush1.xpose.msra.mxu0 0.0
        %534 = vmatprep.subr.mxu0 0.0
        %535 = vmatpush1.xpose.msra.mxu0 0.0
        %536 = vmatprep.subr.mxu0 0.0
        %537 = vmatpush1.xpose.msra.mxu0 0.0
        %538 = vmatprep.subr.mxu0 0.0
        %539 = vmatpush1.xpose.msra.mxu0 0.0
        %540 = vmatprep.subr.mxu0 0.0
        %541 = vmatpush1.xpose.msra.mxu0 0.0
        %542 = vmatprep.subr.mxu0 0.0
        %543 = vmatpush1.xpose.msra.mxu0 0.0
        %544 = vmatprep.subr.mxu0 0.0
        %545 = vmatpush1.xpose.msra.mxu0 0.0
        %546 = vmatprep.subr.mxu0 0.0
        %547 = vmatpush1.xpose.msra.mxu0 0.0
        %548 = vmatprep.subr.mxu0 0.0
        %549 = vmatpush1.xpose.msra.mxu0 0.0
        %550 = vmatprep.subr.mxu0 0.0
        %551 = vmatpush1.xpose.msra.mxu0 0.0
        %552 = vmatprep.subr.mxu0 0.0
        %553 = vmatpush1.xpose.msra.mxu0 0.0
        %554 = vmatprep.subr.mxu0 0.0
        %555 = vmatpush1.xpose.msra.mxu0 0.0
        %556 = vmatprep.subr.mxu0 0.0
        %557 = vmatpush1.xpose.msra.mxu0 0.0
        %558 = vmatprep.subr.mxu0 0.0
        %559 = vmatpush1.xpose.msra.mxu0 0.0
        %560 = vmatprep.subr.mxu0 0.0
        %561 = vmatpush1.xpose.msra.mxu0 0.0
        %562 = vmatprep.subr.mxu0 0.0
        %563 = vmatpush1.xpose.msra.mxu0 0.0
        %564 = vmatprep.subr.mxu0 0.0
        %565 = vmatpush1.xpose.msra.mxu0 0.0
        %566 = vmatprep.subr.mxu0 0.0
        %567 = vmatpush1.xpose.msra.mxu0 0.0
        %568 = vmatprep.subr.mxu0 0.0
        %569 = vmatpush1.xpose.msra.mxu0 0.0
        %570 = vmatprep.mubr.f32.mxu0 0.0
        %571 = vmatmul.mubr.f32.gmra.mrb[0].mxu0 %v501
        %v572 = vpop.f32.mrb[0].mxu0
        %v573 = vadd.f32 0.0, %v572
        %v574 = vpop.f32.mrb[0].mxu0
        %575 = vdwg.mxu0
        %v577 = vsel %vm499, %v420, 0
        %v580 = vsel %vm499, %v422, 0
        %582 = vmatprep.subr.mxu0 0.0
        %583 = vmatpush1.xpose.msra.mxu0 %v580
        %584 = vmatprep.subr.mxu0 0.0
        %585 = vmatpush1.xpose.msra.mxu0 0.0
        %586 = vmatprep.subr.mxu0 0.0
        %587 = vmatpush1.xpose.msra.mxu0 0.0
        %588 = vmatprep.subr.mxu0 0.0
        %589 = vmatpush1.xpose.msra.mxu0 0.0
        %590 = vmatprep.subr.mxu0 0.0
        %591 = vmatpush1.xpose.msra.mxu0 0.0
        %592 = vmatprep.subr.mxu0 0.0
        %593 = vmatpush1.xpose.msra.mxu0 0.0
        %594 = vmatprep.subr.mxu0 0.0
        %595 = vmatpush1.xpose.msra.mxu0 0.0
        %596 = vmatprep.subr.mxu0 0.0
        %597 = vmatpush1.xpose.msra.mxu0 0.0
        %598 = vmatprep.subr.mxu0 0.0
        %599 = vmatpush1.xpose.msra.mxu0 0.0
        %600 = vmatprep.subr.mxu0 0.0
        %601 = vmatpush1.xpose.msra.mxu0 0.0
        %602 = vmatprep.subr.mxu0 0.0
        %603 = vmatpush1.xpose.msra.mxu0 0.0
        %604 = vmatprep.subr.mxu0 0.0
        %605 = vmatpush1.xpose.msra.mxu0 0.0
        %606 = vmatprep.subr.mxu0 0.0
        %607 = vmatpush1.xpose.msra.mxu0 0.0
        %608 = vmatprep.subr.mxu0 0.0
        %609 = vmatpush1.xpose.msra.mxu0 0.0
        %610 = vmatprep.subr.mxu0 0.0
        %611 = vmatpush1.xpose.msra.mxu0 0.0
        %612 = vmatprep.subr.mxu0 0.0
        %613 = vmatpush1.xpose.msra.mxu0 0.0
        %614 = vmatprep.subr.mxu0 0.0
        %615 = vmatpush1.xpose.msra.mxu0 0.0
        %616 = vmatprep.subr.mxu0 0.0
        %617 = vmatpush1.xpose.msra.mxu0 0.0
        %618 = vmatprep.subr.mxu0 0.0
        %619 = vmatpush1.xpose.msra.mxu0 0.0
        %620 = vmatprep.subr.mxu0 0.0
        %621 = vmatpush1.xpose.msra.mxu0 0.0
        %622 = vmatprep.subr.mxu0 0.0
        %623 = vmatpush1.xpose.msra.mxu0 0.0
        %624 = vmatprep.subr.mxu0 0.0
        %625 = vmatpush1.xpose.msra.mxu0 0.0
        %626 = vmatprep.subr.mxu0 0.0
        %627 = vmatpush1.xpose.msra.mxu0 0.0
        %628 = vmatprep.subr.mxu0 0.0
        %629 = vmatpush1.xpose.msra.mxu0 0.0
        %630 = vmatprep.subr.mxu0 0.0
        %631 = vmatpush1.xpose.msra.mxu0 0.0
        %632 = vmatprep.subr.mxu0 0.0
        %633 = vmatpush1.xpose.msra.mxu0 0.0
        %634 = vmatprep.subr.mxu0 0.0
        %635 = vmatpush1.xpose.msra.mxu0 0.0
        %636 = vmatprep.subr.mxu0 0.0
        %637 = vmatpush1.xpose.msra.mxu0 0.0
        %638 = vmatprep.subr.mxu0 0.0
        %639 = vmatpush1.xpose.msra.mxu0 0.0
        %640 = vmatprep.subr.mxu0 0.0
        %641 = vmatpush1.xpose.msra.mxu0 0.0
        %642 = vmatprep.subr.mxu0 0.0
        %643 = vmatpush1.xpose.msra.mxu0 0.0
        %644 = vmatprep.subr.mxu0 0.0
        %645 = vmatpush1.xpose.msra.mxu0 0.0
        %646 = vmatprep.mubr.f32.mxu0 0.0
        %647 = vmatmul.mubr.f32.gmra.mrb[0].mxu0 %v577
        %v648 = vpop.f32.mrb[0].mxu0
        %v649 = vadd.f32 0.0, %v648
        %v650 = vpop.f32.mrb[0].mxu0
        %651 = vdwg.mxu0
        %v652 = vmul.f32 %v573, 0.088388346
        %v653 = vmul.f32 %v649, 0.088388346
        %vm654 = vcmask 64512
        %v655 = vsel %vm654, %v652, -inf
        %656 = vmax.xlane.f32.xlu0 %v655
        %v657 = vpop.xlane.xlu0 %656
        %v658 = vsel %vm654, %v653, -inf
        %659 = vmax.xlane.f32.xlu0 %v658
        %v660 = vpop.xlane.xlu0 %659
        %v661 = vsub.f32 %v657, 1.0
        %v662 = vsub.f32 %v660, 1.0
        %v663 = vsub.f32 %v657, 0.35355338
        %v664 = vsub.f32 %v660, 0.35355338
        %v665 = vsub.f32 %v652, %v661
        %v666 = vsub.f32 %v653, %v662
        %v667 = vmax.f32 %v665, 0.0
        %v668 = vmax.f32 %v666, 0.0
        %v669 = vmul.f32 %v667, %v667
        %v670 = vmul.f32 %v668, %v668
        %v671 = vsel %vm654, %v669, 0.0
        %672 = vadd.xlane.f32.xlu0 %v671
        %v673 = vpop.xlane.xlu0 %672
        %v674 = vsel %vm654, %v670, 0.0
        %675 = vadd.xlane.f32.xlu0 %v674
        %v676 = vpop.xlane.xlu0 %675
        %v677 = vsub.f32 %v673, 1.0
        %v678 = vsub.f32 %v676, 1.0
        %v679 = vsub.f32 %v663, %v661
        %v680 = vsub.f32 %v664, %v662
        %v681 = vmul.f32 %v679, 0.5
        %v682 = vmul.f32 %v680, 0.5
        %v683 = vadd.f32 %v661, %v681
        %v684 = vadd.f32 %v662, %v682
        %v685 = vsub.f32 %v652, %v683
        %v686 = vsub.f32 %v653, %v684
        %v687 = vmax.f32 %v685, 0.0
        %v688 = vmax.f32 %v686, 0.0
        %v689 = vmul.f32 %v687, %v687
        %v690 = vmul.f32 %v688, %v688
        %v691 = vsel %vm654, %v689, 0.0
        %692 = vadd.xlane.f32.xlu0 %v691
        %v693 = vpop.xlane.xlu0 %692
        %v694 = vsel %vm654, %v690, 0.0
        %695 = vadd.xlane.f32.xlu0 %v694
        %v696 = vpop.xlane.xlu0 %695
        %v697 = vsub.f32 %v693, 1.0
        %v698 = vsub.f32 %v696, 1.0
        %v699 = vmul.f32 %v697, %v677
        %v700 = vmul.f32 %v698, %v678
        %vm701 = vcmp.ge.f32.partialorder %v699, 0.0
        %vm702 = vcmp.ge.f32.partialorder %v700, 0.0
        %v703 = vsel %vm701, %v683, %v661
        %v704 = vsel %vm702, %v684, %v662
        %v705 = vmul.f32 %v681, 0.5
        %v706 = vmul.f32 %v682, 0.5
        %v707 = vadd.f32 %v703, %v705
        %v708 = vadd.f32 %v704, %v706
        %v709 = vsub.f32 %v652, %v707
        %v710 = vsub.f32 %v653, %v708
        %v711 = vmax.f32 %v709, 0.0
        %v712 = vmax.f32 %v710, 0.0
        %v713 = vmul.f32 %v711, %v711
        %v714 = vmul.f32 %v712, %v712
        %v715 = vsel %vm654, %v713, 0.0
        %716 = vadd.xlane.f32.xlu0 %v715
        %v717 = vpop.xlane.xlu0 %716
        %v718 = vsel %vm654, %v714, 0.0
        %719 = vadd.xlane.f32.xlu0 %v718
        %v720 = vpop.xlane.xlu0 %719
        %v721 = vsub.f32 %v717, 1.0
        %v722 = vsub.f32 %v720, 1.0
        %v723 = vmul.f32 %v721, %v677
        %v724 = vmul.f32 %v722, %v678
        %vm725 = vcmp.ge.f32.partialorder %v723, 0.0
        %vm726 = vcmp.ge.f32.partialorder %v724, 0.0
        %v727 = vsel %vm725, %v707, %v703
        %v728 = vsel %vm726, %v708, %v704
        %v729 = vmul.f32 %v705, 0.5
        %v730 = vmul.f32 %v706, 0.5
        %v731 = vadd.f32 %v727, %v729
        %v732 = vadd.f32 %v728, %v730
        %v733 = vsub.f32 %v652, %v731
        %v734 = vsub.f32 %v653, %v732
        %v735 = vmax.f32 %v733, 0.0
        %v736 = vmax.f32 %v734, 0.0
        %v737 = vmul.f32 %v735, %v735
        %v738 = vmul.f32 %v736, %v736
        %v739 = vsel %vm654, %v737, 0.0
        %740 = vadd.xlane.f32.xlu0 %v739
        %v741 = vpop.xlane.xlu0 %740
        %v742 = vsel %vm654, %v738, 0.0
        %743 = vadd.xlane.f32.xlu0 %v742
        %v744 = vpop.xlane.xlu0 %743
        %v745 = vsub.f32 %v741, 1.0
        %v746 = vsub.f32 %v744, 1.0
        %v747 = vmul.f32 %v745, %v677
        %v748 = vmul.f32 %v746, %v678
        %vm749 = vcmp.ge.f32.partialorder %v747, 0.0
        %vm750 = vcmp.ge.f32.partialorder %v748, 0.0
        %v751 = vsel %vm749, %v731, %v727
        %v752 = vsel %vm750, %v732, %v728
        %v753 = vmul.f32 %v729, 0.5
        %v754 = vmul.f32 %v730, 0.5
        %v755 = vadd.f32 %v751, %v753
        %v756 = vadd.f32 %v752, %v754
        %v757 = vsub.f32 %v652, %v755
        %v758 = vsub.f32 %v653, %v756
        %v759 = vmax.f32 %v757, 0.0
        %v760 = vmax.f32 %v758, 0.0
        %v761 = vmul.f32 %v759, %v759
        %v762 = vmul.f32 %v760, %v760
        %v763 = vsel %vm654, %v761, 0.0
        %764 = vadd.xlane.f32.xlu0 %v763
        %v765 = vpop.xlane.xlu0 %764
        %v766 = vsel %vm654, %v762, 0.0
        %767 = vadd.xlane.f32.xlu0 %v766
        %v768 = vpop.xlane.xlu0 %767
        %v769 = vsub.f32 %v765, 1.0
        %v770 = vsub.f32 %v768, 1.0
        %v771 = vmul.f32 %v769, %v677
        %v772 = vmul.f32 %v770, %v678
        %vm773 = vcmp.ge.f32.partialorder %v771, 0.0
        %vm774 = vcmp.ge.f32.partialorder %v772, 0.0
        %v775 = vsel %vm773, %v755, %v751
        %v776 = vsel %vm774, %v756, %v752
        %v777 = vmul.f32 %v753, 0.5
        %v778 = vmul.f32 %v754, 0.5
        %v779 = vadd.f32 %v775, %v777
        %v780 = vadd.f32 %v776, %v778
        %v781 = vsub.f32 %v652, %v779
        %v782 = vsub.f32 %v653, %v780
        %v783 = vmax.f32 %v781, 0.0
        %v784 = vmax.f32 %v782, 0.0
        %v785 = vmul.f32 %v783, %v783
        %v786 = vmul.f32 %v784, %v784
        %v787 = vsel %vm654, %v785, 0.0
        %788 = vadd.xlane.f32.xlu0 %v787
        %v789 = vpop.xlane.xlu0 %788
        %v790 = vsel %vm654, %v786, 0.0
        %791 = vadd.xlane.f32.xlu0 %v790
        %v792 = vpop.xlane.xlu0 %791
        %v793 = vsub.f32 %v789, 1.0
        %v794 = vsub.f32 %v792, 1.0
        %v795 = vmul.f32 %v793, %v677
        %v796 = vmul.f32 %v794, %v678
        %vm797 = vcmp.ge.f32.partialorder %v795, 0.0
        %vm798 = vcmp.ge.f32.partialorder %v796, 0.0
        %v799 = vsel %vm797, %v779, %v775
        %v800 = vsel %vm798, %v780, %v776
        %v801 = vmul.f32 %v777, 0.5
        %v802 = vmul.f32 %v778, 0.5
        %v803 = vadd.f32 %v799, %v801
        %v804 = vadd.f32 %v800, %v802
        %v805 = vsub.f32 %v652, %v803
        %v806 = vsub.f32 %v653, %v804
        %v807 = vmax.f32 %v805, 0.0
        %v808 = vmax.f32 %v806, 0.0
        %v809 = vmul.f32 %v807, %v807
        %v810 = vmul.f32 %v808, %v808
        %v811 = vsel %vm654, %v809, 0.0
        %812 = vadd.xlane.f32.xlu0 %v811
        %v813 = vpop.xlane.xlu0 %812
        %v814 = vsel %vm654, %v810, 0.0
        %815 = vadd.xlane.f32.xlu0 %v814
        %v816 = vpop.xlane.xlu0 %815
        %v817 = vsub.f32 %v813, 1.0
        %v818 = vsub.f32 %v816, 1.0
        %v819 = vmul.f32 %v817, %v677
        %v820 = vmul.f32 %v818, %v678
        %vm821 = vcmp.ge.f32.partialorder %v819, 0.0
        %vm822 = vcmp.ge.f32.partialorder %v820, 0.0
        %v823 = vsel %vm821, %v803, %v799
        %v824 = vsel %vm822, %v804, %v800
        %v825 = vmul.f32 %v801, 0.5
        %v826 = vmul.f32 %v802, 0.5
        %v827 = vadd.f32 %v823, %v825
        %v828 = vadd.f32 %v824, %v826
        %v829 = vsub.f32 %v652, %v827
        %v830 = vsub.f32 %v653, %v828
        %v831 = vmax.f32 %v829, 0.0
        %v832 = vmax.f32 %v830, 0.0
        %v833 = vmul.f32 %v831, %v831
        %v834 = vmul.f32 %v832, %v832
        %v835 = vsel %vm654, %v833, 0.0
        %836 = vadd.xlane.f32.xlu0 %v835
        %v837 = vpop.xlane.xlu0 %836
        %v838 = vsel %vm654, %v834, 0.0
        %839 = vadd.xlane.f32.xlu0 %v838
        %v840 = vpop.xlane.xlu0 %839
        %v841 = vsub.f32 %v837, 1.0
        %v842 = vsub.f32 %v840, 1.0
        %v843 = vmul.f32 %v841, %v677
        %v844 = vmul.f32 %v842, %v678
        %vm845 = vcmp.ge.f32.partialorder %v843, 0.0
        %vm846 = vcmp.ge.f32.partialorder %v844, 0.0
        %v847 = vsel %vm845, %v827, %v823
        %v848 = vsel %vm846, %v828, %v824
        %v849 = vmul.f32 %v825, 0.5
        %v850 = vmul.f32 %v826, 0.5
        %v851 = vadd.f32 %v847, %v849
        %v852 = vadd.f32 %v848, %v850
        %v853 = vsub.f32 %v652, %v851
        %v854 = vsub.f32 %v653, %v852
        %v855 = vmax.f32 %v853, 0.0
        %v856 = vmax.f32 %v854, 0.0
        %v857 = vmul.f32 %v855, %v855
        %v858 = vmul.f32 %v856, %v856
        %v859 = vsel %vm654, %v857, 0.0
        %860 = vadd.xlane.f32.xlu0 %v859
        %v861 = vpop.xlane.xlu0 %860
        %v862 = vsel %vm654, %v858, 0.0
        %863 = vadd.xlane.f32.xlu0 %v862
        %v864 = vpop.xlane.xlu0 %863
        %v865 = vsub.f32 %v861, 1.0
        %v866 = vsub.f32 %v864, 1.0
        %v867 = vmul.f32 %v865, %v677
        %v868 = vmul.f32 %v866, %v678
        %vm869 = vcmp.ge.f32.partialorder %v867, 0.0
        %vm870 = vcmp.ge.f32.partialorder %v868, 0.0
        %v871 = vsel %vm869, %v851, %v847
        %v872 = vsel %vm870, %v852, %v848
        %v873 = vmul.f32 %v849, 0.5
        %v874 = vmul.f32 %v850, 0.5
        %v875 = vadd.f32 %v871, %v873
        %v876 = vadd.f32 %v872, %v874
        %v877 = vsub.f32 %v652, %v875
        %v878 = vsub.f32 %v653, %v876
        %v879 = vmax.f32 %v877, 0.0
        %v880 = vmax.f32 %v878, 0.0
        %v881 = vmul.f32 %v879, %v879
        %v882 = vmul.f32 %v880, %v880
        %v883 = vsel %vm654, %v881, 0.0
        %884 = vadd.xlane.f32.xlu0 %v883
        %v885 = vpop.xlane.xlu0 %884
        %v886 = vsel %vm654, %v882, 0.0
        %887 = vadd.xlane.f32.xlu0 %v886
        %v888 = vpop.xlane.xlu0 %887
        %v889 = vsub.f32 %v885, 1.0
        %v890 = vsub.f32 %v888, 1.0
        %v891 = vmul.f32 %v889, %v677
        %v892 = vmul.f32 %v890, %v678
        %vm893 = vcmp.ge.f32.partialorder %v891, 0.0
        %vm894 = vcmp.ge.f32.partialorder %v892, 0.0
        %v895 = vsel %vm893, %v875, %v871
        %v896 = vsel %vm894, %v876, %v872
        %v897 = vmul.f32 %v873, 0.5
        %v898 = vmul.f32 %v874, 0.5
        %v899 = vadd.f32 %v895, %v897
        %v900 = vadd.f32 %v896, %v898
        %v901 = vsub.f32 %v652, %v899
        %v902 = vsub.f32 %v653, %v900
        %v903 = vmax.f32 %v901, 0.0
        %v904 = vmax.f32 %v902, 0.0
        %v905 = vmul.f32 %v903, %v903
        %v906 = vmul.f32 %v904, %v904
        %v907 = vsel %vm654, %v905, 0.0
        %908 = vadd.xlane.f32.xlu0 %v907
        %v909 = vpop.xlane.xlu0 %908
        %v910 = vsel %vm654, %v906, 0.0
        %911 = vadd.xlane.f32.xlu0 %v910
        %v912 = vpop.xlane.xlu0 %911
        %v913 = vsub.f32 %v909, 1.0
        %v914 = vsub.f32 %v912, 1.0
        %v915 = vmul.f32 %v913, %v677
        %v916 = vmul.f32 %v914, %v678
        %vm917 = vcmp.ge.f32.partialorder %v915, 0.0
        %vm918 = vcmp.ge.f32.partialorder %v916, 0.0
        %v919 = vsel %vm917, %v899, %v895
        %v920 = vsel %vm918, %v900, %v896
        %v921 = vmul.f32 %v897, 0.5
        %v922 = vmul.f32 %v898, 0.5
        %v923 = vadd.f32 %v919, %v921
        %v924 = vadd.f32 %v920, %v922
        %v925 = vsub.f32 %v652, %v923
        %v926 = vsub.f32 %v653, %v924
        %v927 = vmax.f32 %v925, 0.0
        %v928 = vmax.f32 %v926, 0.0
        %v929 = vmul.f32 %v927, %v927
        %v930 = vmul.f32 %v928, %v928
        %v931 = vsel %vm654, %v929, 0.0
        %932 = vadd.xlane.f32.xlu0 %v931
        %v933 = vpop.xlane.xlu0 %932
        %v934 = vsel %vm654, %v930, 0.0
        %935 = vadd.xlane.f32.xlu0 %v934
        %v936 = vpop.xlane.xlu0 %935
        %v937 = vsub.f32 %v933, 1.0
        %v938 = vsub.f32 %v936, 1.0
        %v939 = vmul.f32 %v937, %v677
        %v940 = vmul.f32 %v938, %v678
        %vm941 = vcmp.ge.f32.partialorder %v939, 0.0
        %vm942 = vcmp.ge.f32.partialorder %v940, 0.0
        %v943 = vsel %vm941, %v923, %v919
        %v944 = vsel %vm942, %v924, %v920
        %v945 = vmul.f32 %v921, 0.5
        %v946 = vmul.f32 %v922, 0.5
        %v947 = vadd.f32 %v943, %v945
        %v948 = vadd.f32 %v944, %v946
        %v949 = vsub.f32 %v652, %v947
        %v950 = vsub.f32 %v653, %v948
        %v951 = vmax.f32 %v949, 0.0
        %v952 = vmax.f32 %v950, 0.0
        %v953 = vmul.f32 %v951, %v951
        %v954 = vmul.f32 %v952, %v952
        %v955 = vsel %vm654, %v953, 0.0
        %956 = vadd.xlane.f32.xlu0 %v955
        %v957 = vpop.xlane.xlu0 %956
        %v958 = vsel %vm654, %v954, 0.0
        %959 = vadd.xlane.f32.xlu0 %v958
        %v960 = vpop.xlane.xlu0 %959
        %v961 = vsub.f32 %v957, 1.0
        %v962 = vsub.f32 %v960, 1.0
        %v963 = vmul.f32 %v961, %v677
        %v964 = vmul.f32 %v962, %v678
        %vm965 = vcmp.ge.f32.partialorder %v963, 0.0
        %vm966 = vcmp.ge.f32.partialorder %v964, 0.0
        %v967 = vsel %vm965, %v947, %v943
        %v968 = vsel %vm966, %v948, %v944
        %v969 = vmul.f32 %v945, 0.5
        %v970 = vmul.f32 %v946, 0.5
        %v971 = vadd.f32 %v967, %v969
        %v972 = vadd.f32 %v968, %v970
        %v973 = vsub.f32 %v652, %v971
        %v974 = vsub.f32 %v653, %v972
        %v975 = vmax.f32 %v973, 0.0
        %v976 = vmax.f32 %v974, 0.0
        %v977 = vmul.f32 %v975, %v975
        %v978 = vmul.f32 %v976, %v976
        %v979 = vsel %vm654, %v977, 0.0
        %980 = vadd.xlane.f32.xlu0 %v979
        %v981 = vpop.xlane.xlu0 %980
        %v982 = vsel %vm654, %v978, 0.0
        %983 = vadd.xlane.f32.xlu0 %v982
        %v984 = vpop.xlane.xlu0 %983
        %v985 = vsub.f32 %v981, 1.0
        %v986 = vsub.f32 %v984, 1.0
        %v987 = vmul.f32 %v985, %v677
        %v988 = vmul.f32 %v986, %v678
        %vm989 = vcmp.ge.f32.partialorder %v987, 0.0
        %vm990 = vcmp.ge.f32.partialorder %v988, 0.0
        %v991 = vsel %vm989, %v971, %v967
        %v992 = vsel %vm990, %v972, %v968
        %v993 = vmul.f32 %v969, 0.5
        %v994 = vmul.f32 %v970, 0.5
        %v995 = vadd.f32 %v991, %v993
        %v996 = vadd.f32 %v992, %v994
        %v997 = vsub.f32 %v652, %v995
        %v998 = vsub.f32 %v653, %v996
        %v999 = vmax.f32 %v997, 0.0
        %v1000 = vmax.f32 %v998, 0.0
        %v1001 = vmul.f32 %v999, %v999
        %v1002 = vmul.f32 %v1000, %v1000
        %v1003 = vsel %vm654, %v1001, 0.0
        %1004 = vadd.xlane.f32.xlu0 %v1003
        %v1005 = vpop.xlane.xlu0 %1004
        %v1006 = vsel %vm654, %v1002, 0.0
        %1007 = vadd.xlane.f32.xlu0 %v1006
        %v1008 = vpop.xlane.xlu0 %1007
        %v1009 = vsub.f32 %v1005, 1.0
        %v1010 = vsub.f32 %v1008, 1.0
        %v1011 = vmul.f32 %v1009, %v677
        %v1012 = vmul.f32 %v1010, %v678
        %vm1013 = vcmp.ge.f32.partialorder %v1011, 0.0
        %vm1014 = vcmp.ge.f32.partialorder %v1012, 0.0
        %v1015 = vsel %vm1013, %v995, %v991
        %v1016 = vsel %vm1014, %v996, %v992
        %v1017 = vmul.f32 %v993, 0.5
        %v1018 = vmul.f32 %v994, 0.5
        %v1019 = vadd.f32 %v1015, %v1017
        %v1020 = vadd.f32 %v1016, %v1018
        %v1021 = vsub.f32 %v652, %v1019
        %v1022 = vsub.f32 %v653, %v1020
        %v1023 = vmax.f32 %v1021, 0.0
        %v1024 = vmax.f32 %v1022, 0.0
        %v1025 = vmul.f32 %v1023, %v1023
        %v1026 = vmul.f32 %v1024, %v1024
        %v1027 = vsel %vm654, %v1025, 0.0
        %1028 = vadd.xlane.f32.xlu0 %v1027
        %v1029 = vpop.xlane.xlu0 %1028
        %v1030 = vsel %vm654, %v1026, 0.0
        %1031 = vadd.xlane.f32.xlu0 %v1030
        %v1032 = vpop.xlane.xlu0 %1031
        %v1033 = vsub.f32 %v1029, 1.0
        %v1034 = vsub.f32 %v1032, 1.0
        %v1035 = vmul.f32 %v1033, %v677
        %v1036 = vmul.f32 %v1034, %v678
        %vm1037 = vcmp.ge.f32.partialorder %v1035, 0.0
        %vm1038 = vcmp.ge.f32.partialorder %v1036, 0.0
        %v1039 = vsel %vm1037, %v1019, %v1015
        %v1040 = vsel %vm1038, %v1020, %v1016
        %v1041 = vmul.f32 %v1017, 0.5
        %v1042 = vmul.f32 %v1018, 0.5
        %v1043 = vadd.f32 %v1039, %v1041
        %v1044 = vadd.f32 %v1040, %v1042
        %v1045 = vsub.f32 %v652, %v1043
        %v1046 = vsub.f32 %v653, %v1044
        %v1047 = vmax.f32 %v1045, 0.0
        %v1048 = vmax.f32 %v1046, 0.0
        %v1049 = vmul.f32 %v1047, %v1047
        %v1050 = vmul.f32 %v1048, %v1048
        %v1051 = vsel %vm654, %v1049, 0.0
        %1052 = vadd.xlane.f32.xlu0 %v1051
        %v1053 = vpop.xlane.xlu0 %1052
        %v1054 = vsel %vm654, %v1050, 0.0
        %1055 = vadd.xlane.f32.xlu0 %v1054
        %v1056 = vpop.xlane.xlu0 %1055
        %v1057 = vsub.f32 %v1053, 1.0
        %v1058 = vsub.f32 %v1056, 1.0
        %v1059 = vmul.f32 %v1057, %v677
        %v1060 = vmul.f32 %v1058, %v678
        %vm1061 = vcmp.ge.f32.partialorder %v1059, 0.0
        %vm1062 = vcmp.ge.f32.partialorder %v1060, 0.0
        %v1063 = vsel %vm1061, %v1043, %v1039
        %v1064 = vsel %vm1062, %v1044, %v1040
        %v1065 = vmul.f32 %v1041, 0.5
        %v1066 = vmul.f32 %v1042, 0.5
        %v1067 = vadd.f32 %v1063, %v1065
        %v1068 = vadd.f32 %v1064, %v1066
        %v1069 = vsub.f32 %v652, %v1067
        %v1070 = vsub.f32 %v653, %v1068
        %v1071 = vmax.f32 %v1069, 0.0
        %v1072 = vmax.f32 %v1070, 0.0
        %v1073 = vmul.f32 %v1071, %v1071
        %v1074 = vmul.f32 %v1072, %v1072
        %v1075 = vsel %vm654, %v1073, 0.0
        %1076 = vadd.xlane.f32.xlu0 %v1075
        %v1077 = vpop.xlane.xlu0 %1076
        %v1078 = vsel %vm654, %v1074, 0.0
        %1079 = vadd.xlane.f32.xlu0 %v1078
        %v1080 = vpop.xlane.xlu0 %1079
        %v1081 = vsub.f32 %v1077, 1.0
        %v1082 = vsub.f32 %v1080, 1.0
        %v1083 = vmul.f32 %v1081, %v677
        %v1084 = vmul.f32 %v1082, %v678
        %vm1085 = vcmp.ge.f32.partialorder %v1083, 0.0
        %vm1086 = vcmp.ge.f32.partialorder %v1084, 0.0
        %v1087 = vsel %vm1085, %v1067, %v1063
        %v1088 = vsel %vm1086, %v1068, %v1064
        %v1089 = vmul.f32 %v1065, 0.5
        %v1090 = vmul.f32 %v1066, 0.5
        %v1091 = vadd.f32 %v1087, %v1089
        %v1092 = vadd.f32 %v1088, %v1090
        %v1093 = vsub.f32 %v652, %v1091
        %v1094 = vsub.f32 %v653, %v1092
        %v1095 = vmax.f32 %v1093, 0.0
        %v1096 = vmax.f32 %v1094, 0.0
        %v1097 = vmul.f32 %v1095, %v1095
        %v1098 = vmul.f32 %v1096, %v1096
        %v1099 = vsel %vm654, %v1097, 0.0
        %1100 = vadd.xlane.f32.xlu0 %v1099
        %v1101 = vpop.xlane.xlu0 %1100
        %v1102 = vsel %vm654, %v1098, 0.0
        %1103 = vadd.xlane.f32.xlu0 %v1102
        %v1104 = vpop.xlane.xlu0 %1103
        %v1105 = vsub.f32 %v1101, 1.0
        %v1106 = vsub.f32 %v1104, 1.0
        %v1107 = vmul.f32 %v1105, %v677
        %v1108 = vmul.f32 %v1106, %v678
        %vm1109 = vcmp.ge.f32.partialorder %v1107, 0.0
        %vm1110 = vcmp.ge.f32.partialorder %v1108, 0.0
        %v1111 = vsel %vm1109, %v1091, %v1087
        %v1112 = vsel %vm1110, %v1092, %v1088
        %v1113 = vmul.f32 %v1089, 0.5
        %v1114 = vmul.f32 %v1090, 0.5
        %v1115 = vadd.f32 %v1111, %v1113
        %v1116 = vadd.f32 %v1112, %v1114
        %v1117 = vsub.f32 %v652, %v1115
        %v1118 = vsub.f32 %v653, %v1116
        %v1119 = vmax.f32 %v1117, 0.0
        %v1120 = vmax.f32 %v1118, 0.0
        %v1121 = vmul.f32 %v1119, %v1119
        %v1122 = vmul.f32 %v1120, %v1120
        %v1123 = vsel %vm654, %v1121, 0.0
        %1124 = vadd.xlane.f32.xlu0 %v1123
        %v1125 = vpop.xlane.xlu0 %1124
        %v1126 = vsel %vm654, %v1122, 0.0
        %1127 = vadd.xlane.f32.xlu0 %v1126
        %v1128 = vpop.xlane.xlu0 %1127
        %v1129 = vsub.f32 %v1125, 1.0
        %v1130 = vsub.f32 %v1128, 1.0
        %v1131 = vmul.f32 %v1129, %v677
        %v1132 = vmul.f32 %v1130, %v678
        %vm1133 = vcmp.ge.f32.partialorder %v1131, 0.0
        %vm1134 = vcmp.ge.f32.partialorder %v1132, 0.0
        %v1135 = vsel %vm1133, %v1115, %v1111
        %v1136 = vsel %vm1134, %v1116, %v1112
        %v1137 = vmul.f32 %v1113, 0.5
        %v1138 = vmul.f32 %v1114, 0.5
        %v1139 = vadd.f32 %v1135, %v1137
        %v1140 = vadd.f32 %v1136, %v1138
        %v1141 = vsub.f32 %v652, %v1139
        %v1142 = vsub.f32 %v653, %v1140
        %v1143 = vmax.f32 %v1141, 0.0
        %v1144 = vmax.f32 %v1142, 0.0
        %v1145 = vmul.f32 %v1143, %v1143
        %v1146 = vmul.f32 %v1144, %v1144
        %v1147 = vsel %vm654, %v1145, 0.0
        %1148 = vadd.xlane.f32.xlu0 %v1147
        %v1149 = vpop.xlane.xlu0 %1148
        %v1150 = vsel %vm654, %v1146, 0.0
        %1151 = vadd.xlane.f32.xlu0 %v1150
        %v1152 = vpop.xlane.xlu0 %1151
        %v1153 = vsub.f32 %v1149, 1.0
        %v1154 = vsub.f32 %v1152, 1.0
        %v1155 = vmul.f32 %v1153, %v677
        %v1156 = vmul.f32 %v1154, %v678
        %vm1157 = vcmp.ge.f32.partialorder %v1155, 0.0
        %vm1158 = vcmp.ge.f32.partialorder %v1156, 0.0
        %v1159 = vsel %vm1157, %v1139, %v1135
        %v1160 = vsel %vm1158, %v1140, %v1136
        %v1161 = vmul.f32 %v1137, 0.5
        %v1162 = vmul.f32 %v1138, 0.5
        %v1163 = vadd.f32 %v1159, %v1161
        %v1164 = vadd.f32 %v1160, %v1162
        %v1165 = vsub.f32 %v652, %v1163
        %v1166 = vsub.f32 %v653, %v1164
        %v1167 = vmax.f32 %v1165, 0.0
        %v1168 = vmax.f32 %v1166, 0.0
        %v1169 = vmul.f32 %v1167, %v1167
        %v1170 = vmul.f32 %v1168, %v1168
        %v1171 = vsel %vm654, %v1169, 0.0
        %1172 = vadd.xlane.f32.xlu0 %v1171
        %v1173 = vpop.xlane.xlu0 %1172
        %v1174 = vsel %vm654, %v1170, 0.0
        %1175 = vadd.xlane.f32.xlu0 %v1174
        %v1176 = vpop.xlane.xlu0 %1175
        %v1177 = vsub.f32 %v1173, 1.0
        %v1178 = vsub.f32 %v1176, 1.0
        %v1179 = vmul.f32 %v1177, %v677
        %v1180 = vmul.f32 %v1178, %v678
        %vm1181 = vcmp.ge.f32.partialorder %v1179, 0.0
        %vm1182 = vcmp.ge.f32.partialorder %v1180, 0.0
        %v1183 = vsel %vm1181, %v1163, %v1159
        %v1184 = vsel %vm1182, %v1164, %v1160
        %v1185 = vmul.f32 %v1161, 0.5
        %v1186 = vmul.f32 %v1162, 0.5
        %v1187 = vadd.f32 %v1183, %v1185
        %v1188 = vadd.f32 %v1184, %v1186
        %v1189 = vsub.f32 %v652, %v1187
        %v1190 = vsub.f32 %v653, %v1188
        %v1191 = vmax.f32 %v1189, 0.0
        %v1192 = vmax.f32 %v1190, 0.0
        %v1193 = vmul.f32 %v1191, %v1191
        %v1194 = vmul.f32 %v1192, %v1192
        %v1195 = vsel %vm654, %v1193, 0.0
        %1196 = vadd.xlane.f32.xlu0 %v1195
        %v1197 = vpop.xlane.xlu0 %1196
        %v1198 = vsel %vm654, %v1194, 0.0
        %1199 = vadd.xlane.f32.xlu0 %v1198
        %v1200 = vpop.xlane.xlu0 %1199
        %v1201 = vsub.f32 %v1197, 1.0
        %v1202 = vsub.f32 %v1200, 1.0
        %v1203 = vmul.f32 %v1201, %v677
        %v1204 = vmul.f32 %v1202, %v678
        %vm1205 = vcmp.ge.f32.partialorder %v1203, 0.0
        %vm1206 = vcmp.ge.f32.partialorder %v1204, 0.0
        %v1207 = vsel %vm1205, %v1187, %v1183
        %v1208 = vsel %vm1206, %v1188, %v1184
        %v1209 = vmul.f32 %v1185, 0.5
        %v1210 = vmul.f32 %v1186, 0.5
        %v1211 = vadd.f32 %v1207, %v1209
        %v1212 = vadd.f32 %v1208, %v1210
        %v1213 = vsub.f32 %v652, %v1211
        %v1214 = vsub.f32 %v653, %v1212
        %v1215 = vmax.f32 %v1213, 0.0
        %v1216 = vmax.f32 %v1214, 0.0
        %v1217 = vmul.f32 %v1215, %v1215
        %v1218 = vmul.f32 %v1216, %v1216
        %v1219 = vsel %vm654, %v1217, 0.0
        %1220 = vadd.xlane.f32.xlu0 %v1219
        %v1221 = vpop.xlane.xlu0 %1220
        %v1222 = vsel %vm654, %v1218, 0.0
        %1223 = vadd.xlane.f32.xlu0 %v1222
        %v1224 = vpop.xlane.xlu0 %1223
        %v1225 = vsub.f32 %v1221, 1.0
        %v1226 = vsub.f32 %v1224, 1.0
        %v1227 = vmul.f32 %v1225, %v677
        %v1228 = vmul.f32 %v1226, %v678
        %vm1229 = vcmp.ge.f32.partialorder %v1227, 0.0
        %vm1230 = vcmp.ge.f32.partialorder %v1228, 0.0
        %v1231 = vsel %vm1229, %v1211, %v1207
        %v1232 = vsel %vm1230, %v1212, %v1208
        %v1233 = vmul.f32 %v1209, 0.5
        %v1234 = vmul.f32 %v1210, 0.5
        %v1235 = vadd.f32 %v1231, %v1233
        %v1236 = vadd.f32 %v1232, %v1234
        %v1237 = vsub.f32 %v652, %v1235
        %v1238 = vsub.f32 %v653, %v1236
        %v1239 = vmax.f32 %v1237, 0.0
        %v1240 = vmax.f32 %v1238, 0.0
        %v1241 = vmul.f32 %v1239, %v1239
        %v1242 = vmul.f32 %v1240, %v1240
        %v1243 = vsel %vm654, %v1241, 0.0
        %1244 = vadd.xlane.f32.xlu0 %v1243
        %v1245 = vpop.xlane.xlu0 %1244
        %v1246 = vsel %vm654, %v1242, 0.0
        %1247 = vadd.xlane.f32.xlu0 %v1246
        %v1248 = vpop.xlane.xlu0 %1247
        %v1249 = vsub.f32 %v1245, 1.0
        %v1250 = vsub.f32 %v1248, 1.0
        %v1251 = vmul.f32 %v1249, %v677
        %v1252 = vmul.f32 %v1250, %v678
        %vm1253 = vcmp.ge.f32.partialorder %v1251, 0.0
        %vm1254 = vcmp.ge.f32.partialorder %v1252, 0.0
        %v1255 = vsel %vm1253, %v1235, %v1231
        %v1256 = vsel %vm1254, %v1236, %v1232
        %v1257 = vmul.f32 %v1233, 0.5
        %v1258 = vmul.f32 %v1234, 0.5
        %v1259 = vadd.f32 %v1255, %v1257
        %v1260 = vadd.f32 %v1256, %v1258
        %v1261 = vsub.f32 %v652, %v1259
        %v1262 = vsub.f32 %v653, %v1260
        %v1263 = vmax.f32 %v1261, 0.0
        %v1264 = vmax.f32 %v1262, 0.0
        %v1265 = vmul.f32 %v1263, %v1263
        %v1266 = vmul.f32 %v1264, %v1264
        %v1267 = vsel %vm654, %v1265, 0.0
        %1268 = vadd.xlane.f32.xlu0 %v1267
        %v1269 = vpop.xlane.xlu0 %1268
        %v1270 = vsel %vm654, %v1266, 0.0
        %1271 = vadd.xlane.f32.xlu0 %v1270
        %v1272 = vpop.xlane.xlu0 %1271
        %v1273 = vsub.f32 %v1269, 1.0
        %v1274 = vsub.f32 %v1272, 1.0
        %v1275 = vmul.f32 %v1273, %v677
        %v1276 = vmul.f32 %v1274, %v678
        %vm1277 = vcmp.ge.f32.partialorder %v1275, 0.0
        %vm1278 = vcmp.ge.f32.partialorder %v1276, 0.0
        %v1279 = vsel %vm1277, %v1259, %v1255
        %v1280 = vsel %vm1278, %v1260, %v1256
        %v1281 = vmul.f32 %v1257, 0.5
        %v1282 = vmul.f32 %v1258, 0.5
        %v1283 = vadd.f32 %v1279, %v1281
        %v1284 = vadd.f32 %v1280, %v1282
        %v1285 = vsub.f32 %v652, %v1283
        %v1286 = vsub.f32 %v653, %v1284
        %v1287 = vmax.f32 %v1285, 0.0
        %v1288 = vmax.f32 %v1286, 0.0
        %v1289 = vmul.f32 %v1287, %v1287
        %v1290 = vmul.f32 %v1288, %v1288
        %v1291 = vsel %vm654, %v1289, 0.0
        %1292 = vadd.xlane.f32.xlu0 %v1291
        %v1293 = vpop.xlane.xlu0 %1292
        %v1294 = vsel %vm654, %v1290, 0.0
        %1295 = vadd.xlane.f32.xlu0 %v1294
        %v1296 = vpop.xlane.xlu0 %1295
        %v1297 = vsub.f32 %v1293, 1.0
        %v1298 = vsub.f32 %v1296, 1.0
        %v1299 = vmul.f32 %v1297, %v677
        %v1300 = vmul.f32 %v1298, %v678
        %vm1301 = vcmp.ge.f32.partialorder %v1299, 0.0
        %vm1302 = vcmp.ge.f32.partialorder %v1300, 0.0
        %v1303 = vsel %vm1301, %v1283, %v1279
        %v1304 = vsel %vm1302, %v1284, %v1280
        %v1305 = vmul.f32 %v1281, 0.5
        %v1306 = vmul.f32 %v1282, 0.5
        %v1307 = vadd.f32 %v1303, %v1305
        %v1308 = vadd.f32 %v1304, %v1306
        %v1309 = vsub.f32 %v652, %v1307
        %v1310 = vsub.f32 %v653, %v1308
        %v1311 = vmax.f32 %v1309, 0.0
        %v1312 = vmax.f32 %v1310, 0.0
        %v1313 = vmul.f32 %v1311, %v1311
        %v1314 = vmul.f32 %v1312, %v1312
        %v1315 = vsel %vm654, %v1313, 0.0
        %1316 = vadd.xlane.f32.xlu0 %v1315
        %v1317 = vpop.xlane.xlu0 %1316
        %v1318 = vsel %vm654, %v1314, 0.0
        %1319 = vadd.xlane.f32.xlu0 %v1318
        %v1320 = vpop.xlane.xlu0 %1319
        %v1321 = vsub.f32 %v1317, 1.0
        %v1322 = vsub.f32 %v1320, 1.0
        %v1323 = vmul.f32 %v1321, %v677
        %v1324 = vmul.f32 %v1322, %v678
        %vm1325 = vcmp.ge.f32.partialorder %v1323, 0.0
        %vm1326 = vcmp.ge.f32.partialorder %v1324, 0.0
        %v1327 = vsel %vm1325, %v1307, %v1303
        %v1328 = vsel %vm1326, %v1308, %v1304
        %v1329 = vmul.f32 %v1305, 0.5
        %v1330 = vmul.f32 %v1306, 0.5
        %v1331 = vadd.f32 %v1327, %v1329
        %v1332 = vadd.f32 %v1328, %v1330
        %v1333 = vsub.f32 %v652, %v1331
        %v1334 = vsub.f32 %v653, %v1332
        %v1335 = vmax.f32 %v1333, 0.0
        %v1336 = vmax.f32 %v1334, 0.0
        %v1337 = vmul.f32 %v1335, %v1335
        %v1338 = vmul.f32 %v1336, %v1336
        %v1339 = vsel %vm654, %v1337, 0.0
        %1340 = vadd.xlane.f32.xlu0 %v1339
        %v1341 = vpop.xlane.xlu0 %1340
        %v1342 = vsel %vm654, %v1338, 0.0
        %1343 = vadd.xlane.f32.xlu0 %v1342
        %v1344 = vpop.xlane.xlu0 %1343
        %v1345 = vsub.f32 %v1341, 1.0
        %v1346 = vsub.f32 %v1344, 1.0
        %v1347 = vmul.f32 %v1345, %v677
        %v1348 = vmul.f32 %v1346, %v678
        %vm1349 = vcmp.ge.f32.partialorder %v1347, 0.0
        %vm1350 = vcmp.ge.f32.partialorder %v1348, 0.0
        %v1351 = vsel %vm1349, %v1331, %v1327
        %v1352 = vsel %vm1350, %v1332, %v1328
        %v1353 = vmul.f32 %v1329, 0.5
        %v1354 = vmul.f32 %v1330, 0.5
        %v1355 = vadd.f32 %v1351, %v1353
        %v1356 = vadd.f32 %v1352, %v1354
        %v1357 = vsub.f32 %v652, %v1355
        %v1358 = vsub.f32 %v653, %v1356
        %v1359 = vmax.f32 %v1357, 0.0
        %v1360 = vmax.f32 %v1358, 0.0
        %v1361 = vmul.f32 %v1359, %v1359
        %v1362 = vmul.f32 %v1360, %v1360
        %v1363 = vsel %vm654, %v1361, 0.0
        %1364 = vadd.xlane.f32.xlu0 %v1363
        %v1365 = vpop.xlane.xlu0 %1364
        %v1366 = vsel %vm654, %v1362, 0.0
        %1367 = vadd.xlane.f32.xlu0 %v1366
        %v1368 = vpop.xlane.xlu0 %1367
        %v1369 = vsub.f32 %v1365, 1.0
        %v1370 = vsub.f32 %v1368, 1.0
        %v1371 = vmul.f32 %v1369, %v677
        %v1372 = vmul.f32 %v1370, %v678
        %vm1373 = vcmp.ge.f32.partialorder %v1371, 0.0
        %vm1374 = vcmp.ge.f32.partialorder %v1372, 0.0
        %v1375 = vsel %vm1373, %v1355, %v1351
        %v1376 = vsel %vm1374, %v1356, %v1352
        %v1377 = vmul.f32 %v1353, 0.5
        %v1378 = vmul.f32 %v1354, 0.5
        %v1379 = vadd.f32 %v1375, %v1377
        %v1380 = vadd.f32 %v1376, %v1378
        %v1381 = vsub.f32 %v652, %v1379
        %v1382 = vsub.f32 %v653, %v1380
        %v1383 = vmax.f32 %v1381, 0.0
        %v1384 = vmax.f32 %v1382, 0.0
        %v1385 = vmul.f32 %v1383, %v1383
        %v1386 = vmul.f32 %v1384, %v1384
        %v1387 = vsel %vm654, %v1385, 0.0
        %1388 = vadd.xlane.f32.xlu0 %v1387
        %v1389 = vpop.xlane.xlu0 %1388
        %v1390 = vsel %vm654, %v1386, 0.0
        %1391 = vadd.xlane.f32.xlu0 %v1390
        %v1392 = vpop.xlane.xlu0 %1391
        %v1393 = vrcp.pop %v1389
        %v1394 = vrcp.pop %v1392
        %v1395 = vmul.f32 %v1385, %v1393
        %v1396 = vmul.f32 %v1386, %v1394
        %v1398 = vsel %vm654, %v1395, 0
        %1400 = vmatprep.subr.mxu0 0.0
        %1401 = vmatpush1.msra.mxu0 %v491
        %1402 = vmatprep.subr.mxu0 0.0
        %1403 = vmatpush1.msra.mxu0 0.0
        %1404 = vmatprep.subr.mxu0 0.0
        %1405 = vmatpush1.msra.mxu0 0.0
        %1406 = vmatprep.subr.mxu0 0.0
        %1407 = vmatpush1.msra.mxu0 0.0
        %1408 = vmatprep.subr.mxu0 0.0
        %1409 = vmatpush1.msra.mxu0 0.0
        %1410 = vmatprep.subr.mxu0 0.0
        %1411 = vmatpush1.msra.mxu0 0.0
        %1412 = vmatprep.subr.mxu0 0.0
        %1413 = vmatpush1.msra.mxu0 0.0
        %1414 = vmatprep.subr.mxu0 0.0
        %1415 = vmatpush1.msra.mxu0 0.0
        %1416 = vmatprep.subr.mxu0 0.0
        %1417 = vmatpush1.msra.mxu0 0.0
        %1418 = vmatprep.subr.mxu0 0.0
        %1419 = vmatpush1.msra.mxu0 0.0
        %1420 = vmatprep.subr.mxu0 0.0
        %1421 = vmatpush1.msra.mxu0 0.0
        %1422 = vmatprep.subr.mxu0 0.0
        %1423 = vmatpush1.msra.mxu0 0.0
        %1424 = vmatprep.subr.mxu0 0.0
        %1425 = vmatpush1.msra.mxu0 0.0
        %1426 = vmatprep.subr.mxu0 0.0
        %1427 = vmatpush1.msra.mxu0 0.0
        %1428 = vmatprep.subr.mxu0 0.0
        %1429 = vmatpush1.msra.mxu0 0.0
        %1430 = vmatprep.subr.mxu0 0.0
        %1431 = vmatpush1.msra.mxu0 0.0
        %1432 = vmatprep.subr.mxu0 0.0
        %1433 = vmatpush1.msra.mxu0 0.0
        %1434 = vmatprep.subr.mxu0 0.0
        %1435 = vmatpush1.msra.mxu0 0.0
        %1436 = vmatprep.subr.mxu0 0.0
        %1437 = vmatpush1.msra.mxu0 0.0
        %1438 = vmatprep.subr.mxu0 0.0
        %1439 = vmatpush1.msra.mxu0 0.0
        %1440 = vmatprep.subr.mxu0 0.0
        %1441 = vmatpush1.msra.mxu0 0.0
        %1442 = vmatprep.subr.mxu0 0.0
        %1443 = vmatpush1.msra.mxu0 0.0
        %1444 = vmatprep.subr.mxu0 0.0
        %1445 = vmatpush1.msra.mxu0 0.0
        %1446 = vmatprep.subr.mxu0 0.0
        %1447 = vmatpush1.msra.mxu0 0.0
        %1448 = vmatprep.subr.mxu0 0.0
        %1449 = vmatpush1.msra.mxu0 0.0
        %1450 = vmatprep.subr.mxu0 0.0
        %1451 = vmatpush1.msra.mxu0 0.0
        %1452 = vmatprep.subr.mxu0 0.0
        %1453 = vmatpush1.msra.mxu0 0.0
        %1454 = vmatprep.subr.mxu0 0.0
        %1455 = vmatpush1.msra.mxu0 0.0
        %1456 = vmatprep.subr.mxu0 0.0
        %1457 = vmatpush1.msra.mxu0 0.0
        %1458 = vmatprep.subr.mxu0 0.0
        %1459 = vmatpush1.msra.mxu0 0.0
        %1460 = vmatprep.subr.mxu0 0.0
        %1461 = vmatpush1.msra.mxu0 0.0
        %1462 = vmatprep.subr.mxu0 0.0
        %1463 = vmatpush1.msra.mxu0 0.0
        %1464 = vmatprep.mubr.f32.mxu0 0.0
        %1465 = vmatmul.mubr.f32.gmra.mrb[0].mxu0 %v1398
        %v1466 = vpop.f32.mrb[0].mxu0
        %v1467 = vadd.f32 0.0, %v1466
        %v1468 = vpop.f32.mrb[0].mxu0
        %1469 = vdwg.mxu0
        %v1471 = vsel %vm654, %v1396, 0
        %1473 = vmatprep.subr.mxu0 0.0
        %1474 = vmatpush1.msra.mxu0 %v496
        %1475 = vmatprep.subr.mxu0 0.0
        %1476 = vmatpush1.msra.mxu0 0.0
        %1477 = vmatprep.subr.mxu0 0.0
        %1478 = vmatpush1.msra.mxu0 0.0
        %1479 = vmatprep.subr.mxu0 0.0
        %1480 = vmatpush1.msra.mxu0 0.0
        %1481 = vmatprep.subr.mxu0 0.0
        %1482 = vmatpush1.msra.mxu0 0.0
        %1483 = vmatprep.subr.mxu0 0.0
        %1484 = vmatpush1.msra.mxu0 0.0
        %1485 = vmatprep.subr.mxu0 0.0
        %1486 = vmatpush1.msra.mxu0 0.0
        %1487 = vmatprep.subr.mxu0 0.0
        %1488 = vmatpush1.msra.mxu0 0.0
        %1489 = vmatprep.subr.mxu0 0.0
        %1490 = vmatpush1.msra.mxu0 0.0
        %1491 = vmatprep.subr.mxu0 0.0
        %1492 = vmatpush1.msra.mxu0 0.0
        %1493 = vmatprep.subr.mxu0 0.0
        %1494 = vmatpush1.msra.mxu0 0.0
        %1495 = vmatprep.subr.mxu0 0.0
        %1496 = vmatpush1.msra.mxu0 0.0
        %1497 = vmatprep.subr.mxu0 0.0
        %1498 = vmatpush1.msra.mxu0 0.0
        %1499 = vmatprep.subr.mxu0 0.0
        %1500 = vmatpush1.msra.mxu0 0.0
        %1501 = vmatprep.subr.mxu0 0.0
        %1502 = vmatpush1.msra.mxu0 0.0
        %1503 = vmatprep.subr.mxu0 0.0
        %1504 = vmatpush1.msra.mxu0 0.0
        %1505 = vmatprep.subr.mxu0 0.0
        %1506 = vmatpush1.msra.mxu0 0.0
        %1507 = vmatprep.subr.mxu0 0.0
        %1508 = vmatpush1.msra.mxu0 0.0
        %1509 = vmatprep.subr.mxu0 0.0
        %1510 = vmatpush1.msra.mxu0 0.0
        %1511 = vmatprep.subr.mxu0 0.0
        %1512 = vmatpush1.msra.mxu0 0.0
        %1513 = vmatprep.subr.mxu0 0.0
        %1514 = vmatpush1.msra.mxu0 0.0
        %1515 = vmatprep.subr.mxu0 0.0
        %1516 = vmatpush1.msra.mxu0 0.0
        %1517 = vmatprep.subr.mxu0 0.0
        %1518 = vmatpush1.msra.mxu0 0.0
        %1519 = vmatprep.subr.mxu0 0.0
        %1520 = vmatpush1.msra.mxu0 0.0
        %1521 = vmatprep.subr.mxu0 0.0
        %1522 = vmatpush1.msra.mxu0 0.0
        %1523 = vmatprep.subr.mxu0 0.0
        %1524 = vmatpush1.msra.mxu0 0.0
        %1525 = vmatprep.subr.mxu0 0.0
        %1526 = vmatpush1.msra.mxu0 0.0
        %1527 = vmatprep.subr.mxu0 0.0
        %1528 = vmatpush1.msra.mxu0 0.0
        %1529 = vmatprep.subr.mxu0 0.0
        %1530 = vmatpush1.msra.mxu0 0.0
        %1531 = vmatprep.subr.mxu0 0.0
        %1532 = vmatpush1.msra.mxu0 0.0
        %1533 = vmatprep.subr.mxu0 0.0
        %1534 = vmatpush1.msra.mxu0 0.0
        %1535 = vmatprep.subr.mxu0 0.0
        %1536 = vmatpush1.msra.mxu0 0.0
        %1537 = vmatprep.mubr.f32.mxu0 0.0
        %1538 = vmatmul.mubr.f32.gmra.mrb[0].mxu0 %v1471
        %v1539 = vpop.f32.mrb[0].mxu0
        %v1540 = vadd.f32 0.0, %v1539
        %v1541 = vpop.f32.mrb[0].mxu0
        %1542 = vdwg.mxu0
        %1543 = vst.msk [vmem:[#allocation2] sm:$0xff] %vm499, %v1467
        %1544 = vst.msk [vmem:[#allocation2 + $0x8] sm:$0xff] %vm499, %v1540
        %1545 = vrot.lane.b32.xlu0 %v414, 96
        %v1546 = vpop.permute.xlu0 %1545
        %1547 = vrot.lane.b32.xlu0 %v416, 96
        %v1548 = vpop.permute.xlu0 %1547
        %v1549 = vsel %vm499, %v1546, 0
        %v1551 = vsel %vm499, %v1548, 0
        %1553 = vmatprep.subr.mxu0 0.0
        %1554 = vmatpush1.xpose.msra.mxu0 %v1551
        %1555 = vmatprep.subr.mxu0 0.0
        %1556 = vmatpush1.xpose.msra.mxu0 0.0
        %1557 = vmatprep.subr.mxu0 0.0
        %1558 = vmatpush1.xpose.msra.mxu0 0.0
        %1559 = vmatprep.subr.mxu0 0.0
        %1560 = vmatpush1.xpose.msra.mxu0 0.0
        %1561 = vmatprep.subr.mxu0 0.0
        %1562 = vmatpush1.xpose.msra.mxu0 0.0
        %1563 = vmatprep.subr.mxu0 0.0
        %1564 = vmatpush1.xpose.msra.mxu0 0.0
        %1565 = vmatprep.subr.mxu0 0.0
        %1566 = vmatpush1.xpose.msra.mxu0 0.0
        %1567 = vmatprep.subr.mxu0 0.0
        %1568 = vmatpush1.xpose.msra.mxu0 0.0
        %1569 = vmatprep.subr.mxu0 0.0
        %1570 = vmatpush1.xpose.msra.mxu0 0.0
        %1571 = vmatprep.subr.mxu0 0.0
        %1572 = vmatpush1.xpose.msra.mxu0 0.0
        %1573 = vmatprep.subr.mxu0 0.0
        %1574 = vmatpush1.xpose.msra.mxu0 0.0
        %1575 = vmatprep.subr.mxu0 0.0
        %1576 = vmatpush1.xpose.msra.mxu0 0.0
        %1577 = vmatprep.subr.mxu0 0.0
        %1578 = vmatpush1.xpose.msra.mxu0 0.0
        %1579 = vmatprep.subr.mxu0 0.0
        %1580 = vmatpush1.xpose.msra.mxu0 0.0
        %1581 = vmatprep.subr.mxu0 0.0
        %1582 = vmatpush1.xpose.msra.mxu0 0.0
        %1583 = vmatprep.subr.mxu0 0.0
        %1584 = vmatpush1.xpose.msra.mxu0 0.0
        %1585 = vmatprep.subr.mxu0 0.0
        %1586 = vmatpush1.xpose.msra.mxu0 0.0
        %1587 = vmatprep.subr.mxu0 0.0
        %1588 = vmatpush1.xpose.msra.mxu0 0.0
        %1589 = vmatprep.subr.mxu0 0.0
        %1590 = vmatpush1.xpose.msra.mxu0 0.0
        %1591 = vmatprep.subr.mxu0 0.0
        %1592 = vmatpush1.xpose.msra.mxu0 0.0
        %1593 = vmatprep.subr.mxu0 0.0
        %1594 = vmatpush1.xpose.msra.mxu0 0.0
        %1595 = vmatprep.subr.mxu0 0.0
        %1596 = vmatpush1.xpose.msra.mxu0 0.0
        %1597 = vmatprep.subr.mxu0 0.0
        %1598 = vmatpush1.xpose.msra.mxu0 0.0
        %1599 = vmatprep.subr.mxu0 0.0
        %1600 = vmatpush1.xpose.msra.mxu0 0.0
        %1601 = vmatprep.subr.mxu0 0.0
        %1602 = vmatpush1.xpose.msra.mxu0 0.0
        %1603 = vmatprep.subr.mxu0 0.0
        %1604 = vmatpush1.xpose.msra.mxu0 0.0
        %1605 = vmatprep.subr.mxu0 0.0
        %1606 = vmatpush1.xpose.msra.mxu0 0.0
        %1607 = vmatprep.subr.mxu0 0.0
        %1608 = vmatpush1.xpose.msra.mxu0 0.0
        %1609 = vmatprep.subr.mxu0 0.0
        %1610 = vmatpush1.xpose.msra.mxu0 0.0
        %1611 = vmatprep.subr.mxu0 0.0
        %1612 = vmatpush1.xpose.msra.mxu0 0.0
        %1613 = vmatprep.subr.mxu0 0.0
        %1614 = vmatpush1.xpose.msra.mxu0 0.0
        %1615 = vmatprep.subr.mxu0 0.0
        %1616 = vmatpush1.xpose.msra.mxu0 0.0
        %1617 = vmatprep.mubr.f32.mxu0 0.0
        %1618 = vmatmul.mubr.f32.gmra.mrb[0].mxu0 %v1549
        %v1619 = vpop.f32.mrb[0].mxu0
        %v1620 = vadd.f32 0.0, %v1619
        %v1621 = vpop.f32.mrb[0].mxu0
        %1622 = vdwg.mxu0
        %1623 = vrot.lane.b32.xlu0 %v420, 96
        %v1624 = vpop.permute.xlu0 %1623
        %1625 = vrot.lane.b32.xlu0 %v422, 96
        %v1626 = vpop.permute.xlu0 %1625
        %v1627 = vsel %vm499, %v1624, 0
        %v1629 = vsel %vm499, %v1626, 0
        %1631 = vmatprep.subr.mxu0 0.0
        %1632 = vmatpush1.xpose.msra.mxu0 %v1629
        %1633 = vmatprep.subr.mxu0 0.0
        %1634 = vmatpush1.xpose.msra.mxu0 0.0
        %1635 = vmatprep.subr.mxu0 0.0
        %1636 = vmatpush1.xpose.msra.mxu0 0.0
        %1637 = vmatprep.subr.mxu0 0.0
        %1638 = vmatpush1.xpose.msra.mxu0 0.0
        %1639 = vmatprep.subr.mxu0 0.0
        %1640 = vmatpush1.xpose.msra.mxu0 0.0
        %1641 = vmatprep.subr.mxu0 0.0
        %1642 = vmatpush1.xpose.msra.mxu0 0.0
        %1643 = vmatprep.subr.mxu0 0.0
        %1644 = vmatpush1.xpose.msra.mxu0 0.0
        %1645 = vmatprep.subr.mxu0 0.0
        %1646 = vmatpush1.xpose.msra.mxu0 0.0
        %1647 = vmatprep.subr.mxu0 0.0
        %1648 = vmatpush1.xpose.msra.mxu0 0.0
        %1649 = vmatprep.subr.mxu0 0.0
        %1650 = vmatpush1.xpose.msra.mxu0 0.0
        %1651 = vmatprep.subr.mxu0 0.0
        %1652 = vmatpush1.xpose.msra.mxu0 0.0
        %1653 = vmatprep.subr.mxu0 0.0
        %1654 = vmatpush1.xpose.msra.mxu0 0.0
        %1655 = vmatprep.subr.mxu0 0.0
        %1656 = vmatpush1.xpose.msra.mxu0 0.0
        %1657 = vmatprep.subr.mxu0 0.0
        %1658 = vmatpush1.xpose.msra.mxu0 0.0
        %1659 = vmatprep.subr.mxu0 0.0
        %1660 = vmatpush1.xpose.msra.mxu0 0.0
        %1661 = vmatprep.subr.mxu0 0.0
        %1662 = vmatpush1.xpose.msra.mxu0 0.0
        %1663 = vmatprep.subr.mxu0 0.0
        %1664 = vmatpush1.xpose.msra.mxu0 0.0
        %1665 = vmatprep.subr.mxu0 0.0
        %1666 = vmatpush1.xpose.msra.mxu0 0.0
        %1667 = vmatprep.subr.mxu0 0.0
        %1668 = vmatpush1.xpose.msra.mxu0 0.0
        %1669 = vmatprep.subr.mxu0 0.0
        %1670 = vmatpush1.xpose.msra.mxu0 0.0
        %1671 = vmatprep.subr.mxu0 0.0
        %1672 = vmatpush1.xpose.msra.mxu0 0.0
        %1673 = vmatprep.subr.mxu0 0.0
        %1674 = vmatpush1.xpose.msra.mxu0 0.0
        %1675 = vmatprep.subr.mxu0 0.0
        %1676 = vmatpush1.xpose.msra.mxu0 0.0
        %1677 = vmatprep.subr.mxu0 0.0
        %1678 = vmatpush1.xpose.msra.mxu0 0.0
        %1679 = vmatprep.subr.mxu0 0.0
        %1680 = vmatpush1.xpose.msra.mxu0 0.0
        %1681 = vmatprep.subr.mxu0 0.0
        %1682 = vmatpush1.xpose.msra.mxu0 0.0
        %1683 = vmatprep.subr.mxu0 0.0
        %1684 = vmatpush1.xpose.msra.mxu0 0.0
        %1685 = vmatprep.subr.mxu0 0.0
        %1686 = vmatpush1.xpose.msra.mxu0 0.0
        %1687 = vmatprep.subr.mxu0 0.0
        %1688 = vmatpush1.xpose.msra.mxu0 0.0
        %1689 = vmatprep.subr.mxu0 0.0
        %1690 = vmatpush1.xpose.msra.mxu0 0.0
        %1691 = vmatprep.subr.mxu0 0.0
        %1692 = vmatpush1.xpose.msra.mxu0 0.0
        %1693 = vmatprep.subr.mxu0 0.0
        %1694 = vmatpush1.xpose.msra.mxu0 0.0
        %1695 = vmatprep.mubr.f32.mxu0 0.0
        %1696 = vmatmul.mubr.f32.gmra.mrb[0].mxu0 %v1627
        %v1697 = vpop.f32.mrb[0].mxu0
        %v1698 = vadd.f32 0.0, %v1697
        %v1699 = vpop.f32.mrb[0].mxu0
        %1700 = vdwg.mxu0
        %v1701 = vmul.f32 %v1620, 0.088388346
        %v1702 = vmul.f32 %v1698, 0.088388346
        %v1703 = vsel %vm654, %v1701, -inf
        %1704 = vmax.xlane.f32.xlu0 %v1703
        %v1705 = vpop.xlane.xlu0 %1704
        %v1706 = vsel %vm654, %v1702, -inf
        %1707 = vmax.xlane.f32.xlu0 %v1706
        %v1708 = vpop.xlane.xlu0 %1707
        %v1709 = vsub.f32 %v1705, 1.0
        %v1710 = vsub.f32 %v1708, 1.0
        %v1711 = vsub.f32 %v1705, 0.35355338
        %v1712 = vsub.f32 %v1708, 0.35355338
        %v1713 = vsub.f32 %v1701, %v1709
        %v1714 = vsub.f32 %v1702, %v1710
        %v1715 = vmax.f32 %v1713, 0.0
        %v1716 = vmax.f32 %v1714, 0.0
        %v1717 = vmul.f32 %v1715, %v1715
        %v1718 = vmul.f32 %v1716, %v1716
        %v1719 = vsel %vm654, %v1717, 0.0
        %1720 = vadd.xlane.f32.xlu0 %v1719
        %v1721 = vpop.xlane.xlu0 %1720
        %v1722 = vsel %vm654, %v1718, 0.0
        %1723 = vadd.xlane.f32.xlu0 %v1722
        %v1724 = vpop.xlane.xlu0 %1723
        %v1725 = vsub.f32 %v1721, 1.0
        %v1726 = vsub.f32 %v1724, 1.0
        %v1727 = vsub.f32 %v1711, %v1709
        %v1728 = vsub.f32 %v1712, %v1710
        %v1729 = vmul.f32 %v1727, 0.5
        %v1730 = vmul.f32 %v1728, 0.5
        %v1731 = vadd.f32 %v1709, %v1729
        %v1732 = vadd.f32 %v1710, %v1730
        %v1733 = vsub.f32 %v1701, %v1731
        %v1734 = vsub.f32 %v1702, %v1732
        %v1735 = vmax.f32 %v1733, 0.0
        %v1736 = vmax.f32 %v1734, 0.0
        %v1737 = vmul.f32 %v1735, %v1735
        %v1738 = vmul.f32 %v1736, %v1736
        %v1739 = vsel %vm654, %v1737, 0.0
        %1740 = vadd.xlane.f32.xlu0 %v1739
        %v1741 = vpop.xlane.xlu0 %1740
        %v1742 = vsel %vm654, %v1738, 0.0
        %1743 = vadd.xlane.f32.xlu0 %v1742
        %v1744 = vpop.xlane.xlu0 %1743
        %v1745 = vsub.f32 %v1741, 1.0
        %v1746 = vsub.f32 %v1744, 1.0
        %v1747 = vmul.f32 %v1745, %v1725
        %v1748 = vmul.f32 %v1746, %v1726
        %vm1749 = vcmp.ge.f32.partialorder %v1747, 0.0
        %vm1750 = vcmp.ge.f32.partialorder %v1748, 0.0
        %v1751 = vsel %vm1749, %v1731, %v1709
        %v1752 = vsel %vm1750, %v1732, %v1710
        %v1753 = vmul.f32 %v1729, 0.5
        %v1754 = vmul.f32 %v1730, 0.5
        %v1755 = vadd.f32 %v1751, %v1753
        %v1756 = vadd.f32 %v1752, %v1754
        %v1757 = vsub.f32 %v1701, %v1755
        %v1758 = vsub.f32 %v1702, %v1756
        %v1759 = vmax.f32 %v1757, 0.0
        %v1760 = vmax.f32 %v1758, 0.0
        %v1761 = vmul.f32 %v1759, %v1759
        %v1762 = vmul.f32 %v1760, %v1760
        %v1763 = vsel %vm654, %v1761, 0.0
        %1764 = vadd.xlane.f32.xlu0 %v1763
        %v1765 = vpop.xlane.xlu0 %1764
        %v1766 = vsel %vm654, %v1762, 0.0
        %1767 = vadd.xlane.f32.xlu0 %v1766
        %v1768 = vpop.xlane.xlu0 %1767
        %v1769 = vsub.f32 %v1765, 1.0
        %v1770 = vsub.f32 %v1768, 1.0
        %v1771 = vmul.f32 %v1769, %v1725
        %v1772 = vmul.f32 %v1770, %v1726
        %vm1773 = vcmp.ge.f32.partialorder %v1771, 0.0
        %vm1774 = vcmp.ge.f32.partialorder %v1772, 0.0
        %v1775 = vsel %vm1773, %v1755, %v1751
        %v1776 = vsel %vm1774, %v1756, %v1752
        %v1777 = vmul.f32 %v1753, 0.5
        %v1778 = vmul.f32 %v1754, 0.5
        %v1779 = vadd.f32 %v1775, %v1777
        %v1780 = vadd.f32 %v1776, %v1778
        %v1781 = vsub.f32 %v1701, %v1779
        %v1782 = vsub.f32 %v1702, %v1780
        %v1783 = vmax.f32 %v1781, 0.0
        %v1784 = vmax.f32 %v1782, 0.0
        %v1785 = vmul.f32 %v1783, %v1783
        %v1786 = vmul.f32 %v1784, %v1784
        %v1787 = vsel %vm654, %v1785, 0.0
        %1788 = vadd.xlane.f32.xlu0 %v1787
        %v1789 = vpop.xlane.xlu0 %1788
        %v1790 = vsel %vm654, %v1786, 0.0
        %1791 = vadd.xlane.f32.xlu0 %v1790
        %v1792 = vpop.xlane.xlu0 %1791
        %v1793 = vsub.f32 %v1789, 1.0
        %v1794 = vsub.f32 %v1792, 1.0
        %v1795 = vmul.f32 %v1793, %v1725
        %v1796 = vmul.f32 %v1794, %v1726
        %vm1797 = vcmp.ge.f32.partialorder %v1795, 0.0
        %vm1798 = vcmp.ge.f32.partialorder %v1796, 0.0
        %v1799 = vsel %vm1797, %v1779, %v1775
        %v1800 = vsel %vm1798, %v1780, %v1776
        %v1801 = vmul.f32 %v1777, 0.5
        %v1802 = vmul.f32 %v1778, 0.5
        %v1803 = vadd.f32 %v1799, %v1801
        %v1804 = vadd.f32 %v1800, %v1802
        %v1805 = vsub.f32 %v1701, %v1803
        %v1806 = vsub.f32 %v1702, %v1804
        %v1807 = vmax.f32 %v1805, 0.0
        %v1808 = vmax.f32 %v1806, 0.0
        %v1809 = vmul.f32 %v1807, %v1807
        %v1810 = vmul.f32 %v1808, %v1808
        %v1811 = vsel %vm654, %v1809, 0.0
        %1812 = vadd.xlane.f32.xlu0 %v1811
        %v1813 = vpop.xlane.xlu0 %1812
        %v1814 = vsel %vm654, %v1810, 0.0
        %1815 = vadd.xlane.f32.xlu0 %v1814
        %v1816 = vpop.xlane.xlu0 %1815
        %v1817 = vsub.f32 %v1813, 1.0
        %v1818 = vsub.f32 %v1816, 1.0
        %v1819 = vmul.f32 %v1817, %v1725
        %v1820 = vmul.f32 %v1818, %v1726
        %vm1821 = vcmp.ge.f32.partialorder %v1819, 0.0
        %vm1822 = vcmp.ge.f32.partialorder %v1820, 0.0
        %v1823 = vsel %vm1821, %v1803, %v1799
        %v1824 = vsel %vm1822, %v1804, %v1800
        %v1825 = vmul.f32 %v1801, 0.5
        %v1826 = vmul.f32 %v1802, 0.5
        %v1827 = vadd.f32 %v1823, %v1825
        %v1828 = vadd.f32 %v1824, %v1826
        %v1829 = vsub.f32 %v1701, %v1827
        %v1830 = vsub.f32 %v1702, %v1828
        %v1831 = vmax.f32 %v1829, 0.0
        %v1832 = vmax.f32 %v1830, 0.0
        %v1833 = vmul.f32 %v1831, %v1831
        %v1834 = vmul.f32 %v1832, %v1832
        %v1835 = vsel %vm654, %v1833, 0.0
        %1836 = vadd.xlane.f32.xlu0 %v1835
        %v1837 = vpop.xlane.xlu0 %1836
        %v1838 = vsel %vm654, %v1834, 0.0
        %1839 = vadd.xlane.f32.xlu0 %v1838
        %v1840 = vpop.xlane.xlu0 %1839
        %v1841 = vsub.f32 %v1837, 1.0
        %v1842 = vsub.f32 %v1840, 1.0
        %v1843 = vmul.f32 %v1841, %v1725
        %v1844 = vmul.f32 %v1842, %v1726
        %vm1845 = vcmp.ge.f32.partialorder %v1843, 0.0
        %vm1846 = vcmp.ge.f32.partialorder %v1844, 0.0
        %v1847 = vsel %vm1845, %v1827, %v1823
        %v1848 = vsel %vm1846, %v1828, %v1824
        %v1849 = vmul.f32 %v1825, 0.5
        %v1850 = vmul.f32 %v1826, 0.5
        %v1851 = vadd.f32 %v1847, %v1849
        %v1852 = vadd.f32 %v1848, %v1850
        %v1853 = vsub.f32 %v1701, %v1851
        %v1854 = vsub.f32 %v1702, %v1852
        %v1855 = vmax.f32 %v1853, 0.0
        %v1856 = vmax.f32 %v1854, 0.0
        %v1857 = vmul.f32 %v1855, %v1855
        %v1858 = vmul.f32 %v1856, %v1856
        %v1859 = vsel %vm654, %v1857, 0.0
        %1860 = vadd.xlane.f32.xlu0 %v1859
        %v1861 = vpop.xlane.xlu0 %1860
        %v1862 = vsel %vm654, %v1858, 0.0
        %1863 = vadd.xlane.f32.xlu0 %v1862
        %v1864 = vpop.xlane.xlu0 %1863
        %v1865 = vsub.f32 %v1861, 1.0
        %v1866 = vsub.f32 %v1864, 1.0
        %v1867 = vmul.f32 %v1865, %v1725
        %v1868 = vmul.f32 %v1866, %v1726
        %vm1869 = vcmp.ge.f32.partialorder %v1867, 0.0
        %vm1870 = vcmp.ge.f32.partialorder %v1868, 0.0
        %v1871 = vsel %vm1869, %v1851, %v1847
        %v1872 = vsel %vm1870, %v1852, %v1848
        %v1873 = vmul.f32 %v1849, 0.5
        %v1874 = vmul.f32 %v1850, 0.5
        %v1875 = vadd.f32 %v1871, %v1873
        %v1876 = vadd.f32 %v1872, %v1874
        %v1877 = vsub.f32 %v1701, %v1875
        %v1878 = vsub.f32 %v1702, %v1876
        %v1879 = vmax.f32 %v1877, 0.0
        %v1880 = vmax.f32 %v1878, 0.0
        %v1881 = vmul.f32 %v1879, %v1879
        %v1882 = vmul.f32 %v1880, %v1880
        %v1883 = vsel %vm654, %v1881, 0.0
        %1884 = vadd.xlane.f32.xlu0 %v1883
        %v1885 = vpop.xlane.xlu0 %1884
        %v1886 = vsel %vm654, %v1882, 0.0
        %1887 = vadd.xlane.f32.xlu0 %v1886
        %v1888 = vpop.xlane.xlu0 %1887
        %v1889 = vsub.f32 %v1885, 1.0
        %v1890 = vsub.f32 %v1888, 1.0
        %v1891 = vmul.f32 %v1889, %v1725
        %v1892 = vmul.f32 %v1890, %v1726
        %vm1893 = vcmp.ge.f32.partialorder %v1891, 0.0
        %vm1894 = vcmp.ge.f32.partialorder %v1892, 0.0
        %v1895 = vsel %vm1893, %v1875, %v1871
        %v1896 = vsel %vm1894, %v1876, %v1872
        %v1897 = vmul.f32 %v1873, 0.5
        %v1898 = vmul.f32 %v1874, 0.5
        %v1899 = vadd.f32 %v1895, %v1897
        %v1900 = vadd.f32 %v1896, %v1898
        %v1901 = vsub.f32 %v1701, %v1899
        %v1902 = vsub.f32 %v1702, %v1900
        %v1903 = vmax.f32 %v1901, 0.0
        %v1904 = vmax.f32 %v1902, 0.0
        %v1905 = vmul.f32 %v1903, %v1903
        %v1906 = vmul.f32 %v1904, %v1904
        %v1907 = vsel %vm654, %v1905, 0.0
        %1908 = vadd.xlane.f32.xlu0 %v1907
        %v1909 = vpop.xlane.xlu0 %1908
        %v1910 = vsel %vm654, %v1906, 0.0
        %1911 = vadd.xlane.f32.xlu0 %v1910
        %v1912 = vpop.xlane.xlu0 %1911
        %v1913 = vsub.f32 %v1909, 1.0
        %v1914 = vsub.f32 %v1912, 1.0
        %v1915 = vmul.f32 %v1913, %v1725
        %v1916 = vmul.f32 %v1914, %v1726
        %vm1917 = vcmp.ge.f32.partialorder %v1915, 0.0
        %vm1918 = vcmp.ge.f32.partialorder %v1916, 0.0
        %v1919 = vsel %vm1917, %v1899, %v1895
        %v1920 = vsel %vm1918, %v1900, %v1896
        %v1921 = vmul.f32 %v1897, 0.5
        %v1922 = vmul.f32 %v1898, 0.5
        %v1923 = vadd.f32 %v1919, %v1921
        %v1924 = vadd.f32 %v1920, %v1922
        %v1925 = vsub.f32 %v1701, %v1923
        %v1926 = vsub.f32 %v1702, %v1924
        %v1927 = vmax.f32 %v1925, 0.0
        %v1928 = vmax.f32 %v1926, 0.0
        %v1929 = vmul.f32 %v1927, %v1927
        %v1930 = vmul.f32 %v1928, %v1928
        %v1931 = vsel %vm654, %v1929, 0.0
        %1932 = vadd.xlane.f32.xlu0 %v1931
        %v1933 = vpop.xlane.xlu0 %1932
        %v1934 = vsel %vm654, %v1930, 0.0
        %1935 = vadd.xlane.f32.xlu0 %v1934
        %v1936 = vpop.xlane.xlu0 %1935
        %v1937 = vsub.f32 %v1933, 1.0
        %v1938 = vsub.f32 %v1936, 1.0
        %v1939 = vmul.f32 %v1937, %v1725
        %v1940 = vmul.f32 %v1938, %v1726
        %vm1941 = vcmp.ge.f32.partialorder %v1939, 0.0
        %vm1942 = vcmp.ge.f32.partialorder %v1940, 0.0
        %v1943 = vsel %vm1941, %v1923, %v1919
        %v1944 = vsel %vm1942, %v1924, %v1920
        %v1945 = vmul.f32 %v1921, 0.5
        %v1946 = vmul.f32 %v1922, 0.5
        %v1947 = vadd.f32 %v1943, %v1945
        %v1948 = vadd.f32 %v1944, %v1946
        %v1949 = vsub.f32 %v1701, %v1947
        %v1950 = vsub.f32 %v1702, %v1948
        %v1951 = vmax.f32 %v1949, 0.0
        %v1952 = vmax.f32 %v1950, 0.0
        %v1953 = vmul.f32 %v1951, %v1951
        %v1954 = vmul.f32 %v1952, %v1952
        %v1955 = vsel %vm654, %v1953, 0.0
        %1956 = vadd.xlane.f32.xlu0 %v1955
        %v1957 = vpop.xlane.xlu0 %1956
        %v1958 = vsel %vm654, %v1954, 0.0
        %1959 = vadd.xlane.f32.xlu0 %v1958
        %v1960 = vpop.xlane.xlu0 %1959
        %v1961 = vsub.f32 %v1957, 1.0
        %v1962 = vsub.f32 %v1960, 1.0
        %v1963 = vmul.f32 %v1961, %v1725
        %v1964 = vmul.f32 %v1962, %v1726
        %vm1965 = vcmp.ge.f32.partialorder %v1963, 0.0
        %vm1966 = vcmp.ge.f32.partialorder %v1964, 0.0
        %v1967 = vsel %vm1965, %v1947, %v1943
        %v1968 = vsel %vm1966, %v1948, %v1944
        %v1969 = vmul.f32 %v1945, 0.5
        %v1970 = vmul.f32 %v1946, 0.5
        %v1971 = vadd.f32 %v1967, %v1969
        %v1972 = vadd.f32 %v1968, %v1970
        %v1973 = vsub.f32 %v1701, %v1971
        %v1974 = vsub.f32 %v1702, %v1972
        %v1975 = vmax.f32 %v1973, 0.0
        %v1976 = vmax.f32 %v1974, 0.0
        %v1977 = vmul.f32 %v1975, %v1975
        %v1978 = vmul.f32 %v1976, %v1976
        %v1979 = vsel %vm654, %v1977, 0.0
        %1980 = vadd.xlane.f32.xlu0 %v1979
        %v1981 = vpop.xlane.xlu0 %1980
        %v1982 = vsel %vm654, %v1978, 0.0
        %1983 = vadd.xlane.f32.xlu0 %v1982
        %v1984 = vpop.xlane.xlu0 %1983
        %v1985 = vsub.f32 %v1981, 1.0
        %v1986 = vsub.f32 %v1984, 1.0
        %v1987 = vmul.f32 %v1985, %v1725
        %v1988 = vmul.f32 %v1986, %v1726
        %vm1989 = vcmp.ge.f32.partialorder %v1987, 0.0
        %vm1990 = vcmp.ge.f32.partialorder %v1988, 0.0
        %v1991 = vsel %vm1989, %v1971, %v1967
        %v1992 = vsel %vm1990, %v1972, %v1968
        %v1993 = vmul.f32 %v1969, 0.5
        %v1994 = vmul.f32 %v1970, 0.5
        %v1995 = vadd.f32 %v1991, %v1993
        %v1996 = vadd.f32 %v1992, %v1994
        %v1997 = vsub.f32 %v1701, %v1995
        %v1998 = vsub.f32 %v1702, %v1996
        %v1999 = vmax.f32 %v1997, 0.0
        %v2000 = vmax.f32 %v1998, 0.0
        %v2001 = vmul.f32 %v1999, %v1999
        %v2002 = vmul.f32 %v2000, %v2000
        %v2003 = vsel %vm654, %v2001, 0.0
        %2004 = vadd.xlane.f32.xlu0 %v2003
        %v2005 = vpop.xlane.xlu0 %2004
        %v2006 = vsel %vm654, %v2002, 0.0
        %2007 = vadd.xlane.f32.xlu0 %v2006
        %v2008 = vpop.xlane.xlu0 %2007
        %v2009 = vsub.f32 %v2005, 1.0
        %v2010 = vsub.f32 %v2008, 1.0
        %v2011 = vmul.f32 %v2009, %v1725
        %v2012 = vmul.f32 %v2010, %v1726
        %vm2013 = vcmp.ge.f32.partialorder %v2011, 0.0
        %vm2014 = vcmp.ge.f32.partialorder %v2012, 0.0
        %v2015 = vsel %vm2013, %v1995, %v1991
        %v2016 = vsel %vm2014, %v1996, %v1992
        %v2017 = vmul.f32 %v1993, 0.5
        %v2018 = vmul.f32 %v1994, 0.5
        %v2019 = vadd.f32 %v2015, %v2017
        %v2020 = vadd.f32 %v2016, %v2018
        %v2021 = vsub.f32 %v1701, %v2019
        %v2022 = vsub.f32 %v1702, %v2020
        %v2023 = vmax.f32 %v2021, 0.0
        %v2024 = vmax.f32 %v2022, 0.0
        %v2025 = vmul.f32 %v2023, %v2023
        %v2026 = vmul.f32 %v2024, %v2024
        %v2027 = vsel %vm654, %v2025, 0.0
        %2028 = vadd.xlane.f32.xlu0 %v2027
        %v2029 = vpop.xlane.xlu0 %2028
        %v2030 = vsel %vm654, %v2026, 0.0
        %2031 = vadd.xlane.f32.xlu0 %v2030
        %v2032 = vpop.xlane.xlu0 %2031
        %v2033 = vsub.f32 %v2029, 1.0
        %v2034 = vsub.f32 %v2032, 1.0
        %v2035 = vmul.f32 %v2033, %v1725
        %v2036 = vmul.f32 %v2034, %v1726
        %vm2037 = vcmp.ge.f32.partialorder %v2035, 0.0
        %vm2038 = vcmp.ge.f32.partialorder %v2036, 0.0
        %v2039 = vsel %vm2037, %v2019, %v2015
        %v2040 = vsel %vm2038, %v2020, %v2016
        %v2041 = vmul.f32 %v2017, 0.5
        %v2042 = vmul.f32 %v2018, 0.5
        %v2043 = vadd.f32 %v2039, %v2041
        %v2044 = vadd.f32 %v2040, %v2042
        %v2045 = vsub.f32 %v1701, %v2043
        %v2046 = vsub.f32 %v1702, %v2044
        %v2047 = vmax.f32 %v2045, 0.0
        %v2048 = vmax.f32 %v2046, 0.0
        %v2049 = vmul.f32 %v2047, %v2047
        %v2050 = vmul.f32 %v2048, %v2048
        %v2051 = vsel %vm654, %v2049, 0.0
        %2052 = vadd.xlane.f32.xlu0 %v2051
        %v2053 = vpop.xlane.xlu0 %2052
        %v2054 = vsel %vm654, %v2050, 0.0
        %2055 = vadd.xlane.f32.xlu0 %v2054
        %v2056 = vpop.xlane.xlu0 %2055
        %v2057 = vsub.f32 %v2053, 1.0
        %v2058 = vsub.f32 %v2056, 1.0
        %v2059 = vmul.f32 %v2057, %v1725
        %v2060 = vmul.f32 %v2058, %v1726
        %vm2061 = vcmp.ge.f32.partialorder %v2059, 0.0
        %vm2062 = vcmp.ge.f32.partialorder %v2060, 0.0
        %v2063 = vsel %vm2061, %v2043, %v2039
        %v2064 = vsel %vm2062, %v2044, %v2040
        %v2065 = vmul.f32 %v2041, 0.5
        %v2066 = vmul.f32 %v2042, 0.5
        %v2067 = vadd.f32 %v2063, %v2065
        %v2068 = vadd.f32 %v2064, %v2066
        %v2069 = vsub.f32 %v1701, %v2067
        %v2070 = vsub.f32 %v1702, %v2068
        %v2071 = vmax.f32 %v2069, 0.0
        %v2072 = vmax.f32 %v2070, 0.0
        %v2073 = vmul.f32 %v2071, %v2071
        %v2074 = vmul.f32 %v2072, %v2072
        %v2075 = vsel %vm654, %v2073, 0.0
        %2076 = vadd.xlane.f32.xlu0 %v2075
        %v2077 = vpop.xlane.xlu0 %2076
        %v2078 = vsel %vm654, %v2074, 0.0
        %2079 = vadd.xlane.f32.xlu0 %v2078
        %v2080 = vpop.xlane.xlu0 %2079
        %v2081 = vsub.f32 %v2077, 1.0
        %v2082 = vsub.f32 %v2080, 1.0
        %v2083 = vmul.f32 %v2081, %v1725
        %v2084 = vmul.f32 %v2082, %v1726
        %vm2085 = vcmp.ge.f32.partialorder %v2083, 0.0
        %vm2086 = vcmp.ge.f32.partialorder %v2084, 0.0
        %v2087 = vsel %vm2085, %v2067, %v2063
        %v2088 = vsel %vm2086, %v2068, %v2064
        %v2089 = vmul.f32 %v2065, 0.5
        %v2090 = vmul.f32 %v2066, 0.5
        %v2091 = vadd.f32 %v2087, %v2089
        %v2092 = vadd.f32 %v2088, %v2090
        %v2093 = vsub.f32 %v1701, %v2091
        %v2094 = vsub.f32 %v1702, %v2092
        %v2095 = vmax.f32 %v2093, 0.0
        %v2096 = vmax.f32 %v2094, 0.0
        %v2097 = vmul.f32 %v2095, %v2095
        %v2098 = vmul.f32 %v2096, %v2096
        %v2099 = vsel %vm654, %v2097, 0.0
        %2100 = vadd.xlane.f32.xlu0 %v2099
        %v2101 = vpop.xlane.xlu0 %2100
        %v2102 = vsel %vm654, %v2098, 0.0
        %2103 = vadd.xlane.f32.xlu0 %v2102
        %v2104 = vpop.xlane.xlu0 %2103
        %v2105 = vsub.f32 %v2101, 1.0
        %v2106 = vsub.f32 %v2104, 1.0
        %v2107 = vmul.f32 %v2105, %v1725
        %v2108 = vmul.f32 %v2106, %v1726
        %vm2109 = vcmp.ge.f32.partialorder %v2107, 0.0
        %vm2110 = vcmp.ge.f32.partialorder %v2108, 0.0
        %v2111 = vsel %vm2109, %v2091, %v2087
        %v2112 = vsel %vm2110, %v2092, %v2088
        %v2113 = vmul.f32 %v2089, 0.5
        %v2114 = vmul.f32 %v2090, 0.5
        %v2115 = vadd.f32 %v2111, %v2113
        %v2116 = vadd.f32 %v2112, %v2114
        %v2117 = vsub.f32 %v1701, %v2115
        %v2118 = vsub.f32 %v1702, %v2116
        %v2119 = vmax.f32 %v2117, 0.0
        %v2120 = vmax.f32 %v2118, 0.0
        %v2121 = vmul.f32 %v2119, %v2119
        %v2122 = vmul.f32 %v2120, %v2120
        %v2123 = vsel %vm654, %v2121, 0.0
        %2124 = vadd.xlane.f32.xlu0 %v2123
        %v2125 = vpop.xlane.xlu0 %2124
        %v2126 = vsel %vm654, %v2122, 0.0
        %2127 = vadd.xlane.f32.xlu0 %v2126
        %v2128 = vpop.xlane.xlu0 %2127
        %v2129 = vsub.f32 %v2125, 1.0
        %v2130 = vsub.f32 %v2128, 1.0
        %v2131 = vmul.f32 %v2129, %v1725
        %v2132 = vmul.f32 %v2130, %v1726
        %vm2133 = vcmp.ge.f32.partialorder %v2131, 0.0
        %vm2134 = vcmp.ge.f32.partialorder %v2132, 0.0
        %v2135 = vsel %vm2133, %v2115, %v2111
        %v2136 = vsel %vm2134, %v2116, %v2112
        %v2137 = vmul.f32 %v2113, 0.5
        %v2138 = vmul.f32 %v2114, 0.5
        %v2139 = vadd.f32 %v2135, %v2137
        %v2140 = vadd.f32 %v2136, %v2138
        %v2141 = vsub.f32 %v1701, %v2139
        %v2142 = vsub.f32 %v1702, %v2140
        %v2143 = vmax.f32 %v2141, 0.0
        %v2144 = vmax.f32 %v2142, 0.0
        %v2145 = vmul.f32 %v2143, %v2143
        %v2146 = vmul.f32 %v2144, %v2144
        %v2147 = vsel %vm654, %v2145, 0.0
        %2148 = vadd.xlane.f32.xlu0 %v2147
        %v2149 = vpop.xlane.xlu0 %2148
        %v2150 = vsel %vm654, %v2146, 0.0
        %2151 = vadd.xlane.f32.xlu0 %v2150
        %v2152 = vpop.xlane.xlu0 %2151
        %v2153 = vsub.f32 %v2149, 1.0
        %v2154 = vsub.f32 %v2152, 1.0
        %v2155 = vmul.f32 %v2153, %v1725
        %v2156 = vmul.f32 %v2154, %v1726
        %vm2157 = vcmp.ge.f32.partialorder %v2155, 0.0
        %vm2158 = vcmp.ge.f32.partialorder %v2156, 0.0
        %v2159 = vsel %vm2157, %v2139, %v2135
        %v2160 = vsel %vm2158, %v2140, %v2136
        %v2161 = vmul.f32 %v2137, 0.5
        %v2162 = vmul.f32 %v2138, 0.5
        %v2163 = vadd.f32 %v2159, %v2161
        %v2164 = vadd.f32 %v2160, %v2162
        %v2165 = vsub.f32 %v1701, %v2163
        %v2166 = vsub.f32 %v1702, %v2164
        %v2167 = vmax.f32 %v2165, 0.0
        %v2168 = vmax.f32 %v2166, 0.0
        %v2169 = vmul.f32 %v2167, %v2167
        %v2170 = vmul.f32 %v2168, %v2168
        %v2171 = vsel %vm654, %v2169, 0.0
        %2172 = vadd.xlane.f32.xlu0 %v2171
        %v2173 = vpop.xlane.xlu0 %2172
        %v2174 = vsel %vm654, %v2170, 0.0
        %2175 = vadd.xlane.f32.xlu0 %v2174
        %v2176 = vpop.xlane.xlu0 %2175
        %v2177 = vsub.f32 %v2173, 1.0
        %v2178 = vsub.f32 %v2176, 1.0
        %v2179 = vmul.f32 %v2177, %v1725
        %v2180 = vmul.f32 %v2178, %v1726
        %vm2181 = vcmp.ge.f32.partialorder %v2179, 0.0
        %vm2182 = vcmp.ge.f32.partialorder %v2180, 0.0
        %v2183 = vsel %vm2181, %v2163, %v2159
        %v2184 = vsel %vm2182, %v2164, %v2160
        %v2185 = vmul.f32 %v2161, 0.5
        %v2186 = vmul.f32 %v2162, 0.5
        %v2187 = vadd.f32 %v2183, %v2185
        %v2188 = vadd.f32 %v2184, %v2186
        %v2189 = vsub.f32 %v1701, %v2187
        %v2190 = vsub.f32 %v1702, %v2188
        %v2191 = vmax.f32 %v2189, 0.0
        %v2192 = vmax.f32 %v2190, 0.0
        %v2193 = vmul.f32 %v2191, %v2191
        %v2194 = vmul.f32 %v2192, %v2192
        %v2195 = vsel %vm654, %v2193, 0.0
        %2196 = vadd.xlane.f32.xlu0 %v2195
        %v2197 = vpop.xlane.xlu0 %2196
        %v2198 = vsel %vm654, %v2194, 0.0
        %2199 = vadd.xlane.f32.xlu0 %v2198
        %v2200 = vpop.xlane.xlu0 %2199
        %v2201 = vsub.f32 %v2197, 1.0
        %v2202 = vsub.f32 %v2200, 1.0
        %v2203 = vmul.f32 %v2201, %v1725
        %v2204 = vmul.f32 %v2202, %v1726
        %vm2205 = vcmp.ge.f32.partialorder %v2203, 0.0
        %vm2206 = vcmp.ge.f32.partialorder %v2204, 0.0
        %v2207 = vsel %vm2205, %v2187, %v2183
        %v2208 = vsel %vm2206, %v2188, %v2184
        %v2209 = vmul.f32 %v2185, 0.5
        %v2210 = vmul.f32 %v2186, 0.5
        %v2211 = vadd.f32 %v2207, %v2209
        %v2212 = vadd.f32 %v2208, %v2210
        %v2213 = vsub.f32 %v1701, %v2211
        %v2214 = vsub.f32 %v1702, %v2212
        %v2215 = vmax.f32 %v2213, 0.0
        %v2216 = vmax.f32 %v2214, 0.0
        %v2217 = vmul.f32 %v2215, %v2215
        %v2218 = vmul.f32 %v2216, %v2216
        %v2219 = vsel %vm654, %v2217, 0.0
        %2220 = vadd.xlane.f32.xlu0 %v2219
        %v2221 = vpop.xlane.xlu0 %2220
        %v2222 = vsel %vm654, %v2218, 0.0
        %2223 = vadd.xlane.f32.xlu0 %v2222
        %v2224 = vpop.xlane.xlu0 %2223
        %v2225 = vsub.f32 %v2221, 1.0
        %v2226 = vsub.f32 %v2224, 1.0
        %v2227 = vmul.f32 %v2225, %v1725
        %v2228 = vmul.f32 %v2226, %v1726
        %vm2229 = vcmp.ge.f32.partialorder %v2227, 0.0
        %vm2230 = vcmp.ge.f32.partialorder %v2228, 0.0
        %v2231 = vsel %vm2229, %v2211, %v2207
        %v2232 = vsel %vm2230, %v2212, %v2208
        %v2233 = vmul.f32 %v2209, 0.5
        %v2234 = vmul.f32 %v2210, 0.5
        %v2235 = vadd.f32 %v2231, %v2233
        %v2236 = vadd.f32 %v2232, %v2234
        %v2237 = vsub.f32 %v1701, %v2235
        %v2238 = vsub.f32 %v1702, %v2236
        %v2239 = vmax.f32 %v2237, 0.0
        %v2240 = vmax.f32 %v2238, 0.0
        %v2241 = vmul.f32 %v2239, %v2239
        %v2242 = vmul.f32 %v2240, %v2240
        %v2243 = vsel %vm654, %v2241, 0.0
        %2244 = vadd.xlane.f32.xlu0 %v2243
        %v2245 = vpop.xlane.xlu0 %2244
        %v2246 = vsel %vm654, %v2242, 0.0
        %2247 = vadd.xlane.f32.xlu0 %v2246
        %v2248 = vpop.xlane.xlu0 %2247
        %v2249 = vsub.f32 %v2245, 1.0
        %v2250 = vsub.f32 %v2248, 1.0
        %v2251 = vmul.f32 %v2249, %v1725
        %v2252 = vmul.f32 %v2250, %v1726
        %vm2253 = vcmp.ge.f32.partialorder %v2251, 0.0
        %vm2254 = vcmp.ge.f32.partialorder %v2252, 0.0
        %v2255 = vsel %vm2253, %v2235, %v2231
        %v2256 = vsel %vm2254, %v2236, %v2232
        %v2257 = vmul.f32 %v2233, 0.5
        %v2258 = vmul.f32 %v2234, 0.5
        %v2259 = vadd.f32 %v2255, %v2257
        %v2260 = vadd.f32 %v2256, %v2258
        %v2261 = vsub.f32 %v1701, %v2259
        %v2262 = vsub.f32 %v1702, %v2260
        %v2263 = vmax.f32 %v2261, 0.0
        %v2264 = vmax.f32 %v2262, 0.0
        %v2265 = vmul.f32 %v2263, %v2263
        %v2266 = vmul.f32 %v2264, %v2264
        %v2267 = vsel %vm654, %v2265, 0.0
        %2268 = vadd.xlane.f32.xlu0 %v2267
        %v2269 = vpop.xlane.xlu0 %2268
        %v2270 = vsel %vm654, %v2266, 0.0
        %2271 = vadd.xlane.f32.xlu0 %v2270
        %v2272 = vpop.xlane.xlu0 %2271
        %v2273 = vsub.f32 %v2269, 1.0
        %v2274 = vsub.f32 %v2272, 1.0
        %v2275 = vmul.f32 %v2273, %v1725
        %v2276 = vmul.f32 %v2274, %v1726
        %vm2277 = vcmp.ge.f32.partialorder %v2275, 0.0
        %vm2278 = vcmp.ge.f32.partialorder %v2276, 0.0
        %v2279 = vsel %vm2277, %v2259, %v2255
        %v2280 = vsel %vm2278, %v2260, %v2256
        %v2281 = vmul.f32 %v2257, 0.5
        %v2282 = vmul.f32 %v2258, 0.5
        %v2283 = vadd.f32 %v2279, %v2281
        %v2284 = vadd.f32 %v2280, %v2282
        %v2285 = vsub.f32 %v1701, %v2283
        %v2286 = vsub.f32 %v1702, %v2284
        %v2287 = vmax.f32 %v2285, 0.0
        %v2288 = vmax.f32 %v2286, 0.0
        %v2289 = vmul.f32 %v2287, %v2287
        %v2290 = vmul.f32 %v2288, %v2288
        %v2291 = vsel %vm654, %v2289, 0.0
        %2292 = vadd.xlane.f32.xlu0 %v2291
        %v2293 = vpop.xlane.xlu0 %2292
        %v2294 = vsel %vm654, %v2290, 0.0
        %2295 = vadd.xlane.f32.xlu0 %v2294
        %v2296 = vpop.xlane.xlu0 %2295
        %v2297 = vsub.f32 %v2293, 1.0
        %v2298 = vsub.f32 %v2296, 1.0
        %v2299 = vmul.f32 %v2297, %v1725
        %v2300 = vmul.f32 %v2298, %v1726
        %vm2301 = vcmp.ge.f32.partialorder %v2299, 0.0
        %vm2302 = vcmp.ge.f32.partialorder %v2300, 0.0
        %v2303 = vsel %vm2301, %v2283, %v2279
        %v2304 = vsel %vm2302, %v2284, %v2280
        %v2305 = vmul.f32 %v2281, 0.5
        %v2306 = vmul.f32 %v2282, 0.5
        %v2307 = vadd.f32 %v2303, %v2305
        %v2308 = vadd.f32 %v2304, %v2306
        %v2309 = vsub.f32 %v1701, %v2307
        %v2310 = vsub.f32 %v1702, %v2308
        %v2311 = vmax.f32 %v2309, 0.0
        %v2312 = vmax.f32 %v2310, 0.0
        %v2313 = vmul.f32 %v2311, %v2311
        %v2314 = vmul.f32 %v2312, %v2312
        %v2315 = vsel %vm654, %v2313, 0.0
        %2316 = vadd.xlane.f32.xlu0 %v2315
        %v2317 = vpop.xlane.xlu0 %2316
        %v2318 = vsel %vm654, %v2314, 0.0
        %2319 = vadd.xlane.f32.xlu0 %v2318
        %v2320 = vpop.xlane.xlu0 %2319
        %v2321 = vsub.f32 %v2317, 1.0
        %v2322 = vsub.f32 %v2320, 1.0
        %v2323 = vmul.f32 %v2321, %v1725
        %v2324 = vmul.f32 %v2322, %v1726
        %vm2325 = vcmp.ge.f32.partialorder %v2323, 0.0
        %vm2326 = vcmp.ge.f32.partialorder %v2324, 0.0
        %v2327 = vsel %vm2325, %v2307, %v2303
        %v2328 = vsel %vm2326, %v2308, %v2304
        %v2329 = vmul.f32 %v2305, 0.5
        %v2330 = vmul.f32 %v2306, 0.5
        %v2331 = vadd.f32 %v2327, %v2329
        %v2332 = vadd.f32 %v2328, %v2330
        %v2333 = vsub.f32 %v1701, %v2331
        %v2334 = vsub.f32 %v1702, %v2332
        %v2335 = vmax.f32 %v2333, 0.0
        %v2336 = vmax.f32 %v2334, 0.0
        %v2337 = vmul.f32 %v2335, %v2335
        %v2338 = vmul.f32 %v2336, %v2336
        %v2339 = vsel %vm654, %v2337, 0.0
        %2340 = vadd.xlane.f32.xlu0 %v2339
        %v2341 = vpop.xlane.xlu0 %2340
        %v2342 = vsel %vm654, %v2338, 0.0
        %2343 = vadd.xlane.f32.xlu0 %v2342
        %v2344 = vpop.xlane.xlu0 %2343
        %v2345 = vsub.f32 %v2341, 1.0
        %v2346 = vsub.f32 %v2344, 1.0
        %v2347 = vmul.f32 %v2345, %v1725
        %v2348 = vmul.f32 %v2346, %v1726
        %vm2349 = vcmp.ge.f32.partialorder %v2347, 0.0
        %vm2350 = vcmp.ge.f32.partialorder %v2348, 0.0
        %v2351 = vsel %vm2349, %v2331, %v2327
        %v2352 = vsel %vm2350, %v2332, %v2328
        %v2353 = vmul.f32 %v2329, 0.5
        %v2354 = vmul.f32 %v2330, 0.5
        %v2355 = vadd.f32 %v2351, %v2353
        %v2356 = vadd.f32 %v2352, %v2354
        %v2357 = vsub.f32 %v1701, %v2355
        %v2358 = vsub.f32 %v1702, %v2356
        %v2359 = vmax.f32 %v2357, 0.0
        %v2360 = vmax.f32 %v2358, 0.0
        %v2361 = vmul.f32 %v2359, %v2359
        %v2362 = vmul.f32 %v2360, %v2360
        %v2363 = vsel %vm654, %v2361, 0.0
        %2364 = vadd.xlane.f32.xlu0 %v2363
        %v2365 = vpop.xlane.xlu0 %2364
        %v2366 = vsel %vm654, %v2362, 0.0
        %2367 = vadd.xlane.f32.xlu0 %v2366
        %v2368 = vpop.xlane.xlu0 %2367
        %v2369 = vsub.f32 %v2365, 1.0
        %v2370 = vsub.f32 %v2368, 1.0
        %v2371 = vmul.f32 %v2369, %v1725
        %v2372 = vmul.f32 %v2370, %v1726
        %vm2373 = vcmp.ge.f32.partialorder %v2371, 0.0
        %vm2374 = vcmp.ge.f32.partialorder %v2372, 0.0
        %v2375 = vsel %vm2373, %v2355, %v2351
        %v2376 = vsel %vm2374, %v2356, %v2352
        %v2377 = vmul.f32 %v2353, 0.5
        %v2378 = vmul.f32 %v2354, 0.5
        %v2379 = vadd.f32 %v2375, %v2377
        %v2380 = vadd.f32 %v2376, %v2378
        %v2381 = vsub.f32 %v1701, %v2379
        %v2382 = vsub.f32 %v1702, %v2380
        %v2383 = vmax.f32 %v2381, 0.0
        %v2384 = vmax.f32 %v2382, 0.0
        %v2385 = vmul.f32 %v2383, %v2383
        %v2386 = vmul.f32 %v2384, %v2384
        %v2387 = vsel %vm654, %v2385, 0.0
        %2388 = vadd.xlane.f32.xlu0 %v2387
        %v2389 = vpop.xlane.xlu0 %2388
        %v2390 = vsel %vm654, %v2386, 0.0
        %2391 = vadd.xlane.f32.xlu0 %v2390
        %v2392 = vpop.xlane.xlu0 %2391
        %v2393 = vsub.f32 %v2389, 1.0
        %v2394 = vsub.f32 %v2392, 1.0
        %v2395 = vmul.f32 %v2393, %v1725
        %v2396 = vmul.f32 %v2394, %v1726
        %vm2397 = vcmp.ge.f32.partialorder %v2395, 0.0
        %vm2398 = vcmp.ge.f32.partialorder %v2396, 0.0
        %v2399 = vsel %vm2397, %v2379, %v2375
        %v2400 = vsel %vm2398, %v2380, %v2376
        %v2401 = vmul.f32 %v2377, 0.5
        %v2402 = vmul.f32 %v2378, 0.5
        %v2403 = vadd.f32 %v2399, %v2401
        %v2404 = vadd.f32 %v2400, %v2402
        %v2405 = vsub.f32 %v1701, %v2403
        %v2406 = vsub.f32 %v1702, %v2404
        %v2407 = vmax.f32 %v2405, 0.0
        %v2408 = vmax.f32 %v2406, 0.0
        %v2409 = vmul.f32 %v2407, %v2407
        %v2410 = vmul.f32 %v2408, %v2408
        %v2411 = vsel %vm654, %v2409, 0.0
        %2412 = vadd.xlane.f32.xlu0 %v2411
        %v2413 = vpop.xlane.xlu0 %2412
        %v2414 = vsel %vm654, %v2410, 0.0
        %2415 = vadd.xlane.f32.xlu0 %v2414
        %v2416 = vpop.xlane.xlu0 %2415
        %v2417 = vsub.f32 %v2413, 1.0
        %v2418 = vsub.f32 %v2416, 1.0
        %v2419 = vmul.f32 %v2417, %v1725
        %v2420 = vmul.f32 %v2418, %v1726
        %vm2421 = vcmp.ge.f32.partialorder %v2419, 0.0
        %vm2422 = vcmp.ge.f32.partialorder %v2420, 0.0
        %v2423 = vsel %vm2421, %v2403, %v2399
        %v2424 = vsel %vm2422, %v2404, %v2400
        %v2425 = vmul.f32 %v2401, 0.5
        %v2426 = vmul.f32 %v2402, 0.5
        %v2427 = vadd.f32 %v2423, %v2425
        %v2428 = vadd.f32 %v2424, %v2426
        %v2429 = vsub.f32 %v1701, %v2427
        %v2430 = vsub.f32 %v1702, %v2428
        %v2431 = vmax.f32 %v2429, 0.0
        %v2432 = vmax.f32 %v2430, 0.0
        %v2433 = vmul.f32 %v2431, %v2431
        %v2434 = vmul.f32 %v2432, %v2432
        %v2435 = vsel %vm654, %v2433, 0.0
        %2436 = vadd.xlane.f32.xlu0 %v2435
        %v2437 = vpop.xlane.xlu0 %2436
        %v2438 = vsel %vm654, %v2434, 0.0
        %2439 = vadd.xlane.f32.xlu0 %v2438
        %v2440 = vpop.xlane.xlu0 %2439
        %v2441 = vrcp.pop %v2437
        %v2442 = vrcp.pop %v2440
        %v2443 = vmul.f32 %v2433, %v2441
        %v2444 = vmul.f32 %v2434, %v2442
        %2446 = vrot.lane.b32.xlu0 %v491, 96
        %v2447 = vpop.permute.xlu0 %2446
        %v2450 = vsel %vm654, %v2443, 0
        %2452 = vmatprep.subr.mxu0 0.0
        %2453 = vmatpush1.msra.mxu0 %v2447
        %2454 = vmatprep.subr.mxu0 0.0
        %2455 = vmatpush1.msra.mxu0 0.0
        %2456 = vmatprep.subr.mxu0 0.0
        %2457 = vmatpush1.msra.mxu0 0.0
        %2458 = vmatprep.subr.mxu0 0.0
        %2459 = vmatpush1.msra.mxu0 0.0
        %2460 = vmatprep.subr.mxu0 0.0
        %2461 = vmatpush1.msra.mxu0 0.0
        %2462 = vmatprep.subr.mxu0 0.0
        %2463 = vmatpush1.msra.mxu0 0.0
        %2464 = vmatprep.subr.mxu0 0.0
        %2465 = vmatpush1.msra.mxu0 0.0
        %2466 = vmatprep.subr.mxu0 0.0
        %2467 = vmatpush1.msra.mxu0 0.0
        %2468 = vmatprep.subr.mxu0 0.0
        %2469 = vmatpush1.msra.mxu0 0.0
        %2470 = vmatprep.subr.mxu0 0.0
        %2471 = vmatpush1.msra.mxu0 0.0
        %2472 = vmatprep.subr.mxu0 0.0
        %2473 = vmatpush1.msra.mxu0 0.0
        %2474 = vmatprep.subr.mxu0 0.0
        %2475 = vmatpush1.msra.mxu0 0.0
        %2476 = vmatprep.subr.mxu0 0.0
        %2477 = vmatpush1.msra.mxu0 0.0
        %2478 = vmatprep.subr.mxu0 0.0
        %2479 = vmatpush1.msra.mxu0 0.0
        %2480 = vmatprep.subr.mxu0 0.0
        %2481 = vmatpush1.msra.mxu0 0.0
        %2482 = vmatprep.subr.mxu0 0.0
        %2483 = vmatpush1.msra.mxu0 0.0
        %2484 = vmatprep.subr.mxu0 0.0
        %2485 = vmatpush1.msra.mxu0 0.0
        %2486 = vmatprep.subr.mxu0 0.0
        %2487 = vmatpush1.msra.mxu0 0.0
        %2488 = vmatprep.subr.mxu0 0.0
        %2489 = vmatpush1.msra.mxu0 0.0
        %2490 = vmatprep.subr.mxu0 0.0
        %2491 = vmatpush1.msra.mxu0 0.0
        %2492 = vmatprep.subr.mxu0 0.0
        %2493 = vmatpush1.msra.mxu0 0.0
        %2494 = vmatprep.subr.mxu0 0.0
        %2495 = vmatpush1.msra.mxu0 0.0
        %2496 = vmatprep.subr.mxu0 0.0
        %2497 = vmatpush1.msra.mxu0 0.0
        %2498 = vmatprep.subr.mxu0 0.0
        %2499 = vmatpush1.msra.mxu0 0.0
        %2500 = vmatprep.subr.mxu0 0.0
        %2501 = vmatpush1.msra.mxu0 0.0
        %2502 = vmatprep.subr.mxu0 0.0
        %2503 = vmatpush1.msra.mxu0 0.0
        %2504 = vmatprep.subr.mxu0 0.0
        %2505 = vmatpush1.msra.mxu0 0.0
        %2506 = vmatprep.subr.mxu0 0.0
        %2507 = vmatpush1.msra.mxu0 0.0
        %2508 = vmatprep.subr.mxu0 0.0
        %2509 = vmatpush1.msra.mxu0 0.0
        %2510 = vmatprep.subr.mxu0 0.0
        %2511 = vmatpush1.msra.mxu0 0.0
        %2512 = vmatprep.subr.mxu0 0.0
        %2513 = vmatpush1.msra.mxu0 0.0
        %2514 = vmatprep.subr.mxu0 0.0
        %2515 = vmatpush1.msra.mxu0 0.0
        %2516 = vmatprep.mubr.f32.mxu0 0.0
        %2517 = vmatmul.mubr.f32.gmra.mrb[0].mxu0 %v2450
        %v2518 = vpop.f32.mrb[0].mxu0
        %v2519 = vadd.f32 0.0, %v2518
        %v2520 = vpop.f32.mrb[0].mxu0
        %2521 = vdwg.mxu0
        %2523 = vrot.lane.b32.xlu0 %v496, 96
        %v2524 = vpop.permute.xlu0 %2523
        %v2527 = vsel %vm654, %v2444, 0
        %2529 = vmatprep.subr.mxu0 0.0
        %2530 = vmatpush1.msra.mxu0 %v2524
        %2531 = vmatprep.subr.mxu0 0.0
        %2532 = vmatpush1.msra.mxu0 0.0
        %2533 = vmatprep.subr.mxu0 0.0
        %2534 = vmatpush1.msra.mxu0 0.0
        %2535 = vmatprep.subr.mxu0 0.0
        %2536 = vmatpush1.msra.mxu0 0.0
        %2537 = vmatprep.subr.mxu0 0.0
        %2538 = vmatpush1.msra.mxu0 0.0
        %2539 = vmatprep.subr.mxu0 0.0
        %2540 = vmatpush1.msra.mxu0 0.0
        %2541 = vmatprep.subr.mxu0 0.0
        %2542 = vmatpush1.msra.mxu0 0.0
        %2543 = vmatprep.subr.mxu0 0.0
        %2544 = vmatpush1.msra.mxu0 0.0
        %2545 = vmatprep.subr.mxu0 0.0
        %2546 = vmatpush1.msra.mxu0 0.0
        %2547 = vmatprep.subr.mxu0 0.0
        %2548 = vmatpush1.msra.mxu0 0.0
        %2549 = vmatprep.subr.mxu0 0.0
        %2550 = vmatpush1.msra.mxu0 0.0
        %2551 = vmatprep.subr.mxu0 0.0
        %2552 = vmatpush1.msra.mxu0 0.0
        %2553 = vmatprep.subr.mxu0 0.0
        %2554 = vmatpush1.msra.mxu0 0.0
        %2555 = vmatprep.subr.mxu0 0.0
        %2556 = vmatpush1.msra.mxu0 0.0
        %2557 = vmatprep.subr.mxu0 0.0
        %2558 = vmatpush1.msra.mxu0 0.0
        %2559 = vmatprep.subr.mxu0 0.0
        %2560 = vmatpush1.msra.mxu0 0.0
        %2561 = vmatprep.subr.mxu0 0.0
        %2562 = vmatpush1.msra.mxu0 0.0
        %2563 = vmatprep.subr.mxu0 0.0
        %2564 = vmatpush1.msra.mxu0 0.0
        %2565 = vmatprep.subr.mxu0 0.0
        %2566 = vmatpush1.msra.mxu0 0.0
        %2567 = vmatprep.subr.mxu0 0.0
        %2568 = vmatpush1.msra.mxu0 0.0
        %2569 = vmatprep.subr.mxu0 0.0
        %2570 = vmatpush1.msra.mxu0 0.0
        %2571 = vmatprep.subr.mxu0 0.0
        %2572 = vmatpush1.msra.mxu0 0.0
        %2573 = vmatprep.subr.mxu0 0.0
        %2574 = vmatpush1.msra.mxu0 0.0
        %2575 = vmatprep.subr.mxu0 0.0
        %2576 = vmatpush1.msra.mxu0 0.0
        %2577 = vmatprep.subr.mxu0 0.0
        %2578 = vmatpush1.msra.mxu0 0.0
        %2579 = vmatprep.subr.mxu0 0.0
        %2580 = vmatpush1.msra.mxu0 0.0
        %2581 = vmatprep.subr.mxu0 0.0
        %2582 = vmatpush1.msra.mxu0 0.0
        %2583 = vmatprep.subr.mxu0 0.0
        %2584 = vmatpush1.msra.mxu0 0.0
        %2585 = vmatprep.subr.mxu0 0.0
        %2586 = vmatpush1.msra.mxu0 0.0
        %2587 = vmatprep.subr.mxu0 0.0
        %2588 = vmatpush1.msra.mxu0 0.0
        %2589 = vmatprep.subr.mxu0 0.0
        %2590 = vmatpush1.msra.mxu0 0.0
        %2591 = vmatprep.subr.mxu0 0.0
        %2592 = vmatpush1.msra.mxu0 0.0
        %2593 = vmatprep.mubr.f32.mxu0 0.0
        %2594 = vmatmul.mubr.f32.gmra.mrb[0].mxu0 %v2527
        %v2595 = vpop.f32.mrb[0].mxu0
        %v2596 = vadd.f32 0.0, %v2595
        %v2597 = vpop.f32.mrb[0].mxu0
        %2598 = vdwg.mxu0
        %2601 = vrot.lane.b32.xlu0 %v2519, 32
        %v2602 = vpop.permute.xlu0 %2601
        %2603 = vrot.lane.b32.xlu0 %v2596, 32
        %v2604 = vpop.permute.xlu0 %2603
        %vm2607 = vcmask 523520
        %2608 = vst.msk [vmem:[#allocation2] sm:$0xff] %vm2607, %v2602
        %2609 = vst.msk [vmem:[#allocation2 + $0x8] sm:$0xff] %vm2607, %v2604
        %2610 = vrot.lane.b32.xlu0 %v414, 64
        %v2611 = vpop.permute.xlu0 %2610
        %2612 = vrot.lane.b32.xlu0 %v416, 64
        %v2613 = vpop.permute.xlu0 %2612
        %v2614 = vsel %vm499, %v2611, 0
        %v2616 = vsel %vm499, %v2613, 0
        %2618 = vmatprep.subr.mxu0 0.0
        %2619 = vmatpush1.xpose.msra.mxu0 %v2616
        %2620 = vmatprep.subr.mxu0 0.0
        %2621 = vmatpush1.xpose.msra.mxu0 0.0
        %2622 = vmatprep.subr.mxu0 0.0
        %2623 = vmatpush1.xpose.msra.mxu0 0.0
        %2624 = vmatprep.subr.mxu0 0.0
        %2625 = vmatpush1.xpose.msra.mxu0 0.0
        %2626 = vmatprep.subr.mxu0 0.0
        %2627 = vmatpush1.xpose.msra.mxu0 0.0
        %2628 = vmatprep.subr.mxu0 0.0
        %2629 = vmatpush1.xpose.msra.mxu0 0.0
        %2630 = vmatprep.subr.mxu0 0.0
        %2631 = vmatpush1.xpose.msra.mxu0 0.0
        %2632 = vmatprep.subr.mxu0 0.0
        %2633 = vmatpush1.xpose.msra.mxu0 0.0
        %2634 = vmatprep.subr.mxu0 0.0
        %2635 = vmatpush1.xpose.msra.mxu0 0.0
        %2636 = vmatprep.subr.mxu0 0.0
        %2637 = vmatpush1.xpose.msra.mxu0 0.0
        %2638 = vmatprep.subr.mxu0 0.0
        %2639 = vmatpush1.xpose.msra.mxu0 0.0
        %2640 = vmatprep.subr.mxu0 0.0
        %2641 = vmatpush1.xpose.msra.mxu0 0.0
        %2642 = vmatprep.subr.mxu0 0.0
        %2643 = vmatpush1.xpose.msra.mxu0 0.0
        %2644 = vmatprep.subr.mxu0 0.0
        %2645 = vmatpush1.xpose.msra.mxu0 0.0
        %2646 = vmatprep.subr.mxu0 0.0
        %2647 = vmatpush1.xpose.msra.mxu0 0.0
        %2648 = vmatprep.subr.mxu0 0.0
        %2649 = vmatpush1.xpose.msra.mxu0 0.0
        %2650 = vmatprep.subr.mxu0 0.0
        %2651 = vmatpush1.xpose.msra.mxu0 0.0
        %2652 = vmatprep.subr.mxu0 0.0
        %2653 = vmatpush1.xpose.msra.mxu0 0.0
        %2654 = vmatprep.subr.mxu0 0.0
        %2655 = vmatpush1.xpose.msra.mxu0 0.0
        %2656 = vmatprep.subr.mxu0 0.0
        %2657 = vmatpush1.xpose.msra.mxu0 0.0
        %2658 = vmatprep.subr.mxu0 0.0
        %2659 = vmatpush1.xpose.msra.mxu0 0.0
        %2660 = vmatprep.subr.mxu0 0.0
        %2661 = vmatpush1.xpose.msra.mxu0 0.0
        %2662 = vmatprep.subr.mxu0 0.0
        %2663 = vmatpush1.xpose.msra.mxu0 0.0
        %2664 = vmatprep.subr.mxu0 0.0
        %2665 = vmatpush1.xpose.msra.mxu0 0.0
        %2666 = vmatprep.subr.mxu0 0.0
        %2667 = vmatpush1.xpose.msra.mxu0 0.0
        %2668 = vmatprep.subr.mxu0 0.0
        %2669 = vmatpush1.xpose.msra.mxu0 0.0
        %2670 = vmatprep.subr.mxu0 0.0
        %2671 = vmatpush1.xpose.msra.mxu0 0.0
        %2672 = vmatprep.subr.mxu0 0.0
        %2673 = vmatpush1.xpose.msra.mxu0 0.0
        %2674 = vmatprep.subr.mxu0 0.0
        %2675 = vmatpush1.xpose.msra.mxu0 0.0
        %2676 = vmatprep.subr.mxu0 0.0
        %2677 = vmatpush1.xpose.msra.mxu0 0.0
        %2678 = vmatprep.subr.mxu0 0.0
        %2679 = vmatpush1.xpose.msra.mxu0 0.0
        %2680 = vmatprep.subr.mxu0 0.0
        %2681 = vmatpush1.xpose.msra.mxu0 0.0
        %2682 = vmatprep.mubr.f32.mxu0 0.0
        %2683 = vmatmul.mubr.f32.gmra.mrb[0].mxu0 %v2614
        %v2684 = vpop.f32.mrb[0].mxu0
        %v2685 = vadd.f32 0.0, %v2684
        %v2686 = vpop.f32.mrb[0].mxu0
        %2687 = vdwg.mxu0
        %2688 = vrot.lane.b32.xlu0 %v420, 64
        %v2689 = vpop.permute.xlu0 %2688
        %2690 = vrot.lane.b32.xlu0 %v422, 64
        %v2691 = vpop.permute.xlu0 %2690
        %v2692 = vsel %vm499, %v2689, 0
        %v2694 = vsel %vm499, %v2691, 0
        %2696 = vmatprep.subr.mxu0 0.0
        %2697 = vmatpush1.xpose.msra.mxu0 %v2694
        %2698 = vmatprep.subr.mxu0 0.0
        %2699 = vmatpush1.xpose.msra.mxu0 0.0
        %2700 = vmatprep.subr.mxu0 0.0
        %2701 = vmatpush1.xpose.msra.mxu0 0.0
        %2702 = vmatprep.subr.mxu0 0.0
        %2703 = vmatpush1.xpose.msra.mxu0 0.0
        %2704 = vmatprep.subr.mxu0 0.0
        %2705 = vmatpush1.xpose.msra.mxu0 0.0
        %2706 = vmatprep.subr.mxu0 0.0
        %2707 = vmatpush1.xpose.msra.mxu0 0.0
        %2708 = vmatprep.subr.mxu0 0.0
        %2709 = vmatpush1.xpose.msra.mxu0 0.0
        %2710 = vmatprep.subr.mxu0 0.0
        %2711 = vmatpush1.xpose.msra.mxu0 0.0
        %2712 = vmatprep.subr.mxu0 0.0
        %2713 = vmatpush1.xpose.msra.mxu0 0.0
        %2714 = vmatprep.subr.mxu0 0.0
        %2715 = vmatpush1.xpose.msra.mxu0 0.0
        %2716 = vmatprep.subr.mxu0 0.0
        %2717 = vmatpush1.xpose.msra.mxu0 0.0
        %2718 = vmatprep.subr.mxu0 0.0
        %2719 = vmatpush1.xpose.msra.mxu0 0.0
        %2720 = vmatprep.subr.mxu0 0.0
        %2721 = vmatpush1.xpose.msra.mxu0 0.0
        %2722 = vmatprep.subr.mxu0 0.0
        %2723 = vmatpush1.xpose.msra.mxu0 0.0
        %2724 = vmatprep.subr.mxu0 0.0
        %2725 = vmatpush1.xpose.msra.mxu0 0.0
        %2726 = vmatprep.subr.mxu0 0.0
        %2727 = vmatpush1.xpose.msra.mxu0 0.0
        %2728 = vmatprep.subr.mxu0 0.0
        %2729 = vmatpush1.xpose.msra.mxu0 0.0
        %2730 = vmatprep.subr.mxu0 0.0
        %2731 = vmatpush1.xpose.msra.mxu0 0.0
        %2732 = vmatprep.subr.mxu0 0.0
        %2733 = vmatpush1.xpose.msra.mxu0 0.0
        %2734 = vmatprep.subr.mxu0 0.0
        %2735 = vmatpush1.xpose.msra.mxu0 0.0
        %2736 = vmatprep.subr.mxu0 0.0
        %2737 = vmatpush1.xpose.msra.mxu0 0.0
        %2738 = vmatprep.subr.mxu0 0.0
        %2739 = vmatpush1.xpose.msra.mxu0 0.0
        %2740 = vmatprep.subr.mxu0 0.0
        %2741 = vmatpush1.xpose.msra.mxu0 0.0
        %2742 = vmatprep.subr.mxu0 0.0
        %2743 = vmatpush1.xpose.msra.mxu0 0.0
        %2744 = vmatprep.subr.mxu0 0.0
        %2745 = vmatpush1.xpose.msra.mxu0 0.0
        %2746 = vmatprep.subr.mxu0 0.0
        %2747 = vmatpush1.xpose.msra.mxu0 0.0
        %2748 = vmatprep.subr.mxu0 0.0
        %2749 = vmatpush1.xpose.msra.mxu0 0.0
        %2750 = vmatprep.subr.mxu0 0.0
        %2751 = vmatpush1.xpose.msra.mxu0 0.0
        %2752 = vmatprep.subr.mxu0 0.0
        %2753 = vmatpush1.xpose.msra.mxu0 0.0
        %2754 = vmatprep.subr.mxu0 0.0
        %2755 = vmatpush1.xpose.msra.mxu0 0.0
        %2756 = vmatprep.subr.mxu0 0.0
        %2757 = vmatpush1.xpose.msra.mxu0 0.0
        %2758 = vmatprep.subr.mxu0 0.0
        %2759 = vmatpush1.xpose.msra.mxu0 0.0
        %2760 = vmatprep.mubr.f32.mxu0 0.0
        %2761 = vmatmul.mubr.f32.gmra.mrb[0].mxu0 %v2692
        %v2762 = vpop.f32.mrb[0].mxu0
        %v2763 = vadd.f32 0.0, %v2762
        %v2764 = vpop.f32.mrb[0].mxu0
        %2765 = vdwg.mxu0
        %v2766 = vmul.f32 %v2685, 0.088388346
        %v2767 = vmul.f32 %v2763, 0.088388346
        %v2768 = vsel %vm654, %v2766, -inf
        %2769 = vmax.xlane.f32.xlu0 %v2768
        %v2770 = vpop.xlane.xlu0 %2769
        %v2771 = vsel %vm654, %v2767, -inf
        %2772 = vmax.xlane.f32.xlu0 %v2771
        %v2773 = vpop.xlane.xlu0 %2772
        %v2774 = vsub.f32 %v2770, 1.0
        %v2775 = vsub.f32 %v2773, 1.0
        %v2776 = vsub.f32 %v2770, 0.35355338
        %v2777 = vsub.f32 %v2773, 0.35355338
        %v2778 = vsub.f32 %v2766, %v2774
        %v2779 = vsub.f32 %v2767, %v2775
        %v2780 = vmax.f32 %v2778, 0.0
        %v2781 = vmax.f32 %v2779, 0.0
        %v2782 = vmul.f32 %v2780, %v2780
        %v2783 = vmul.f32 %v2781, %v2781
        %v2784 = vsel %vm654, %v2782, 0.0
        %2785 = vadd.xlane.f32.xlu0 %v2784
        %v2786 = vpop.xlane.xlu0 %2785
        %v2787 = vsel %vm654, %v2783, 0.0
        %2788 = vadd.xlane.f32.xlu0 %v2787
        %v2789 = vpop.xlane.xlu0 %2788
        %v2790 = vsub.f32 %v2786, 1.0
        %v2791 = vsub.f32 %v2789, 1.0
        %v2792 = vsub.f32 %v2776, %v2774
        %v2793 = vsub.f32 %v2777, %v2775
        %v2794 = vmul.f32 %v2792, 0.5
        %v2795 = vmul.f32 %v2793, 0.5
        %v2796 = vadd.f32 %v2774, %v2794
        %v2797 = vadd.f32 %v2775, %v2795
        %v2798 = vsub.f32 %v2766, %v2796
        %v2799 = vsub.f32 %v2767, %v2797
        %v2800 = vmax.f32 %v2798, 0.0
        %v2801 = vmax.f32 %v2799, 0.0
        %v2802 = vmul.f32 %v2800, %v2800
        %v2803 = vmul.f32 %v2801, %v2801
        %v2804 = vsel %vm654, %v2802, 0.0
        %2805 = vadd.xlane.f32.xlu0 %v2804
        %v2806 = vpop.xlane.xlu0 %2805
        %v2807 = vsel %vm654, %v2803, 0.0
        %2808 = vadd.xlane.f32.xlu0 %v2807
        %v2809 = vpop.xlane.xlu0 %2808
        %v2810 = vsub.f32 %v2806, 1.0
        %v2811 = vsub.f32 %v2809, 1.0
        %v2812 = vmul.f32 %v2810, %v2790
        %v2813 = vmul.f32 %v2811, %v2791
        %vm2814 = vcmp.ge.f32.partialorder %v2812, 0.0
        %vm2815 = vcmp.ge.f32.partialorder %v2813, 0.0
        %v2816 = vsel %vm2814, %v2796, %v2774
        %v2817 = vsel %vm2815, %v2797, %v2775
        %v2818 = vmul.f32 %v2794, 0.5
        %v2819 = vmul.f32 %v2795, 0.5
        %v2820 = vadd.f32 %v2816, %v2818
        %v2821 = vadd.f32 %v2817, %v2819
        %v2822 = vsub.f32 %v2766, %v2820
        %v2823 = vsub.f32 %v2767, %v2821
        %v2824 = vmax.f32 %v2822, 0.0
        %v2825 = vmax.f32 %v2823, 0.0
        %v2826 = vmul.f32 %v2824, %v2824
        %v2827 = vmul.f32 %v2825, %v2825
        %v2828 = vsel %vm654, %v2826, 0.0
        %2829 = vadd.xlane.f32.xlu0 %v2828
        %v2830 = vpop.xlane.xlu0 %2829
        %v2831 = vsel %vm654, %v2827, 0.0
        %2832 = vadd.xlane.f32.xlu0 %v2831
        %v2833 = vpop.xlane.xlu0 %2832
        %v2834 = vsub.f32 %v2830, 1.0
        %v2835 = vsub.f32 %v2833, 1.0
        %v2836 = vmul.f32 %v2834, %v2790
        %v2837 = vmul.f32 %v2835, %v2791
        %vm2838 = vcmp.ge.f32.partialorder %v2836, 0.0
        %vm2839 = vcmp.ge.f32.partialorder %v2837, 0.0
        %v2840 = vsel %vm2838, %v2820, %v2816
        %v2841 = vsel %vm2839, %v2821, %v2817
        %v2842 = vmul.f32 %v2818, 0.5
        %v2843 = vmul.f32 %v2819, 0.5
        %v2844 = vadd.f32 %v2840, %v2842
        %v2845 = vadd.f32 %v2841, %v2843
        %v2846 = vsub.f32 %v2766, %v2844
        %v2847 = vsub.f32 %v2767, %v2845
        %v2848 = vmax.f32 %v2846, 0.0
        %v2849 = vmax.f32 %v2847, 0.0
        %v2850 = vmul.f32 %v2848, %v2848
        %v2851 = vmul.f32 %v2849, %v2849
        %v2852 = vsel %vm654, %v2850, 0.0
        %2853 = vadd.xlane.f32.xlu0 %v2852
        %v2854 = vpop.xlane.xlu0 %2853
        %v2855 = vsel %vm654, %v2851, 0.0
        %2856 = vadd.xlane.f32.xlu0 %v2855
        %v2857 = vpop.xlane.xlu0 %2856
        %v2858 = vsub.f32 %v2854, 1.0
        %v2859 = vsub.f32 %v2857, 1.0
        %v2860 = vmul.f32 %v2858, %v2790
        %v2861 = vmul.f32 %v2859, %v2791
        %vm2862 = vcmp.ge.f32.partialorder %v2860, 0.0
        %vm2863 = vcmp.ge.f32.partialorder %v2861, 0.0
        %v2864 = vsel %vm2862, %v2844, %v2840
        %v2865 = vsel %vm2863, %v2845, %v2841
        %v2866 = vmul.f32 %v2842, 0.5
        %v2867 = vmul.f32 %v2843, 0.5
        %v2868 = vadd.f32 %v2864, %v2866
        %v2869 = vadd.f32 %v2865, %v2867
        %v2870 = vsub.f32 %v2766, %v2868
        %v2871 = vsub.f32 %v2767, %v2869
        %v2872 = vmax.f32 %v2870, 0.0
        %v2873 = vmax.f32 %v2871, 0.0
        %v2874 = vmul.f32 %v2872, %v2872
        %v2875 = vmul.f32 %v2873, %v2873
        %v2876 = vsel %vm654, %v2874, 0.0
        %2877 = vadd.xlane.f32.xlu0 %v2876
        %v2878 = vpop.xlane.xlu0 %2877
        %v2879 = vsel %vm654, %v2875, 0.0
        %2880 = vadd.xlane.f32.xlu0 %v2879
        %v2881 = vpop.xlane.xlu0 %2880
        %v2882 = vsub.f32 %v2878, 1.0
        %v2883 = vsub.f32 %v2881, 1.0
        %v2884 = vmul.f32 %v2882, %v2790
        %v2885 = vmul.f32 %v2883, %v2791
        %vm2886 = vcmp.ge.f32.partialorder %v2884, 0.0
        %vm2887 = vcmp.ge.f32.partialorder %v2885, 0.0
        %v2888 = vsel %vm2886, %v2868, %v2864
        %v2889 = vsel %vm2887, %v2869, %v2865
        %v2890 = vmul.f32 %v2866, 0.5
        %v2891 = vmul.f32 %v2867, 0.5
        %v2892 = vadd.f32 %v2888, %v2890
        %v2893 = vadd.f32 %v2889, %v2891
        %v2894 = vsub.f32 %v2766, %v2892
        %v2895 = vsub.f32 %v2767, %v2893
        %v2896 = vmax.f32 %v2894, 0.0
        %v2897 = vmax.f32 %v2895, 0.0
        %v2898 = vmul.f32 %v2896, %v2896
        %v2899 = vmul.f32 %v2897, %v2897
        %v2900 = vsel %vm654, %v2898, 0.0
        %2901 = vadd.xlane.f32.xlu0 %v2900
        %v2902 = vpop.xlane.xlu0 %2901
        %v2903 = vsel %vm654, %v2899, 0.0
        %2904 = vadd.xlane.f32.xlu0 %v2903
        %v2905 = vpop.xlane.xlu0 %2904
        %v2906 = vsub.f32 %v2902, 1.0
        %v2907 = vsub.f32 %v2905, 1.0
        %v2908 = vmul.f32 %v2906, %v2790
        %v2909 = vmul.f32 %v2907, %v2791
        %vm2910 = vcmp.ge.f32.partialorder %v2908, 0.0
        %vm2911 = vcmp.ge.f32.partialorder %v2909, 0.0
        %v2912 = vsel %vm2910, %v2892, %v2888
        %v2913 = vsel %vm2911, %v2893, %v2889
        %v2914 = vmul.f32 %v2890, 0.5
        %v2915 = vmul.f32 %v2891, 0.5
        %v2916 = vadd.f32 %v2912, %v2914
        %v2917 = vadd.f32 %v2913, %v2915
        %v2918 = vsub.f32 %v2766, %v2916
        %v2919 = vsub.f32 %v2767, %v2917
        %v2920 = vmax.f32 %v2918, 0.0
        %v2921 = vmax.f32 %v2919, 0.0
        %v2922 = vmul.f32 %v2920, %v2920
        %v2923 = vmul.f32 %v2921, %v2921
        %v2924 = vsel %vm654, %v2922, 0.0
        %2925 = vadd.xlane.f32.xlu0 %v2924
        %v2926 = vpop.xlane.xlu0 %2925
        %v2927 = vsel %vm654, %v2923, 0.0
        %2928 = vadd.xlane.f32.xlu0 %v2927
        %v2929 = vpop.xlane.xlu0 %2928
        %v2930 = vsub.f32 %v2926, 1.0
        %v2931 = vsub.f32 %v2929, 1.0
        %v2932 = vmul.f32 %v2930, %v2790
        %v2933 = vmul.f32 %v2931, %v2791
        %vm2934 = vcmp.ge.f32.partialorder %v2932, 0.0
        %vm2935 = vcmp.ge.f32.partialorder %v2933, 0.0
        %v2936 = vsel %vm2934, %v2916, %v2912
        %v2937 = vsel %vm2935, %v2917, %v2913
        %v2938 = vmul.f32 %v2914, 0.5
        %v2939 = vmul.f32 %v2915, 0.5
        %v2940 = vadd.f32 %v2936, %v2938
        %v2941 = vadd.f32 %v2937, %v2939
        %v2942 = vsub.f32 %v2766, %v2940
        %v2943 = vsub.f32 %v2767, %v2941
        %v2944 = vmax.f32 %v2942, 0.0
        %v2945 = vmax.f32 %v2943, 0.0
        %v2946 = vmul.f32 %v2944, %v2944
        %v2947 = vmul.f32 %v2945, %v2945
        %v2948 = vsel %vm654, %v2946, 0.0
        %2949 = vadd.xlane.f32.xlu0 %v2948
        %v2950 = vpop.xlane.xlu0 %2949
        %v2951 = vsel %vm654, %v2947, 0.0
        %2952 = vadd.xlane.f32.xlu0 %v2951
        %v2953 = vpop.xlane.xlu0 %2952
        %v2954 = vsub.f32 %v2950, 1.0
        %v2955 = vsub.f32 %v2953, 1.0
        %v2956 = vmul.f32 %v2954, %v2790
        %v2957 = vmul.f32 %v2955, %v2791
        %vm2958 = vcmp.ge.f32.partialorder %v2956, 0.0
        %vm2959 = vcmp.ge.f32.partialorder %v2957, 0.0
        %v2960 = vsel %vm2958, %v2940, %v2936
        %v2961 = vsel %vm2959, %v2941, %v2937
        %v2962 = vmul.f32 %v2938, 0.5
        %v2963 = vmul.f32 %v2939, 0.5
        %v2964 = vadd.f32 %v2960, %v2962
        %v2965 = vadd.f32 %v2961, %v2963
        %v2966 = vsub.f32 %v2766, %v2964
        %v2967 = vsub.f32 %v2767, %v2965
        %v2968 = vmax.f32 %v2966, 0.0
        %v2969 = vmax.f32 %v2967, 0.0
        %v2970 = vmul.f32 %v2968, %v2968
        %v2971 = vmul.f32 %v2969, %v2969
        %v2972 = vsel %vm654, %v2970, 0.0
        %2973 = vadd.xlane.f32.xlu0 %v2972
        %v2974 = vpop.xlane.xlu0 %2973
        %v2975 = vsel %vm654, %v2971, 0.0
        %2976 = vadd.xlane.f32.xlu0 %v2975
        %v2977 = vpop.xlane.xlu0 %2976
        %v2978 = vsub.f32 %v2974, 1.0
        %v2979 = vsub.f32 %v2977, 1.0
        %v2980 = vmul.f32 %v2978, %v2790
        %v2981 = vmul.f32 %v2979, %v2791
        %vm2982 = vcmp.ge.f32.partialorder %v2980, 0.0
        %vm2983 = vcmp.ge.f32.partialorder %v2981, 0.0
        %v2984 = vsel %vm2982, %v2964, %v2960
        %v2985 = vsel %vm2983, %v2965, %v2961
        %v2986 = vmul.f32 %v2962, 0.5
        %v2987 = vmul.f32 %v2963, 0.5
        %v2988 = vadd.f32 %v2984, %v2986
        %v2989 = vadd.f32 %v2985, %v2987
        %v2990 = vsub.f32 %v2766, %v2988
        %v2991 = vsub.f32 %v2767, %v2989
        %v2992 = vmax.f32 %v2990, 0.0
        %v2993 = vmax.f32 %v2991, 0.0
        %v2994 = vmul.f32 %v2992, %v2992
        %v2995 = vmul.f32 %v2993, %v2993
        %v2996 = vsel %vm654, %v2994, 0.0
        %2997 = vadd.xlane.f32.xlu0 %v2996
        %v2998 = vpop.xlane.xlu0 %2997
        %v2999 = vsel %vm654, %v2995, 0.0
        %3000 = vadd.xlane.f32.xlu0 %v2999
        %v3001 = vpop.xlane.xlu0 %3000
        %v3002 = vsub.f32 %v2998, 1.0
        %v3003 = vsub.f32 %v3001, 1.0
        %v3004 = vmul.f32 %v3002, %v2790
        %v3005 = vmul.f32 %v3003, %v2791
        %vm3006 = vcmp.ge.f32.partialorder %v3004, 0.0
        %vm3007 = vcmp.ge.f32.partialorder %v3005, 0.0
        %v3008 = vsel %vm3006, %v2988, %v2984
        %v3009 = vsel %vm3007, %v2989, %v2985
        %v3010 = vmul.f32 %v2986, 0.5
        %v3011 = vmul.f32 %v2987, 0.5
        %v3012 = vadd.f32 %v3008, %v3010
        %v3013 = vadd.f32 %v3009, %v3011
        %v3014 = vsub.f32 %v2766, %v3012
        %v3015 = vsub.f32 %v2767, %v3013
        %v3016 = vmax.f32 %v3014, 0.0
        %v3017 = vmax.f32 %v3015, 0.0
        %v3018 = vmul.f32 %v3016, %v3016
        %v3019 = vmul.f32 %v3017, %v3017
        %v3020 = vsel %vm654, %v3018, 0.0
        %3021 = vadd.xlane.f32.xlu0 %v3020
        %v3022 = vpop.xlane.xlu0 %3021
        %v3023 = vsel %vm654, %v3019, 0.0
        %3024 = vadd.xlane.f32.xlu0 %v3023
        %v3025 = vpop.xlane.xlu0 %3024
        %v3026 = vsub.f32 %v3022, 1.0
        %v3027 = vsub.f32 %v3025, 1.0
        %v3028 = vmul.f32 %v3026, %v2790
        %v3029 = vmul.f32 %v3027, %v2791
        %vm3030 = vcmp.ge.f32.partialorder %v3028, 0.0
        %vm3031 = vcmp.ge.f32.partialorder %v3029, 0.0
        %v3032 = vsel %vm3030, %v3012, %v3008
        %v3033 = vsel %vm3031, %v3013, %v3009
        %v3034 = vmul.f32 %v3010, 0.5
        %v3035 = vmul.f32 %v3011, 0.5
        %v3036 = vadd.f32 %v3032, %v3034
        %v3037 = vadd.f32 %v3033, %v3035
        %v3038 = vsub.f32 %v2766, %v3036
        %v3039 = vsub.f32 %v2767, %v3037
        %v3040 = vmax.f32 %v3038, 0.0
        %v3041 = vmax.f32 %v3039, 0.0
        %v3042 = vmul.f32 %v3040, %v3040
        %v3043 = vmul.f32 %v3041, %v3041
        %v3044 = vsel %vm654, %v3042, 0.0
        %3045 = vadd.xlane.f32.xlu0 %v3044
        %v3046 = vpop.xlane.xlu0 %3045
        %v3047 = vsel %vm654, %v3043, 0.0
        %3048 = vadd.xlane.f32.xlu0 %v3047
        %v3049 = vpop.xlane.xlu0 %3048
        %v3050 = vsub.f32 %v3046, 1.0
        %v3051 = vsub.f32 %v3049, 1.0
        %v3052 = vmul.f32 %v3050, %v2790
        %v3053 = vmul.f32 %v3051, %v2791
        %vm3054 = vcmp.ge.f32.partialorder %v3052, 0.0
        %vm3055 = vcmp.ge.f32.partialorder %v3053, 0.0
        %v3056 = vsel %vm3054, %v3036, %v3032
        %v3057 = vsel %vm3055, %v3037, %v3033
        %v3058 = vmul.f32 %v3034, 0.5
        %v3059 = vmul.f32 %v3035, 0.5
        %v3060 = vadd.f32 %v3056, %v3058
        %v3061 = vadd.f32 %v3057, %v3059
        %v3062 = vsub.f32 %v2766, %v3060
        %v3063 = vsub.f32 %v2767, %v3061
        %v3064 = vmax.f32 %v3062, 0.0
        %v3065 = vmax.f32 %v3063, 0.0
        %v3066 = vmul.f32 %v3064, %v3064
        %v3067 = vmul.f32 %v3065, %v3065
        %v3068 = vsel %vm654, %v3066, 0.0
        %3069 = vadd.xlane.f32.xlu0 %v3068
        %v3070 = vpop.xlane.xlu0 %3069
        %v3071 = vsel %vm654, %v3067, 0.0
        %3072 = vadd.xlane.f32.xlu0 %v3071
        %v3073 = vpop.xlane.xlu0 %3072
        %v3074 = vsub.f32 %v3070, 1.0
        %v3075 = vsub.f32 %v3073, 1.0
        %v3076 = vmul.f32 %v3074, %v2790
        %v3077 = vmul.f32 %v3075, %v2791
        %vm3078 = vcmp.ge.f32.partialorder %v3076, 0.0
        %vm3079 = vcmp.ge.f32.partialorder %v3077, 0.0
        %v3080 = vsel %vm3078, %v3060, %v3056
        %v3081 = vsel %vm3079, %v3061, %v3057
        %v3082 = vmul.f32 %v3058, 0.5
        %v3083 = vmul.f32 %v3059, 0.5
        %v3084 = vadd.f32 %v3080, %v3082
        %v3085 = vadd.f32 %v3081, %v3083
        %v3086 = vsub.f32 %v2766, %v3084
        %v3087 = vsub.f32 %v2767, %v3085
        %v3088 = vmax.f32 %v3086, 0.0
        %v3089 = vmax.f32 %v3087, 0.0
        %v3090 = vmul.f32 %v3088, %v3088
        %v3091 = vmul.f32 %v3089, %v3089
        %v3092 = vsel %vm654, %v3090, 0.0
        %3093 = vadd.xlane.f32.xlu0 %v3092
        %v3094 = vpop.xlane.xlu0 %3093
        %v3095 = vsel %vm654, %v3091, 0.0
        %3096 = vadd.xlane.f32.xlu0 %v3095
        %v3097 = vpop.xlane.xlu0 %3096
        %v3098 = vsub.f32 %v3094, 1.0
        %v3099 = vsub.f32 %v3097, 1.0
        %v3100 = vmul.f32 %v3098, %v2790
        %v3101 = vmul.f32 %v3099, %v2791
        %vm3102 = vcmp.ge.f32.partialorder %v3100, 0.0
        %vm3103 = vcmp.ge.f32.partialorder %v3101, 0.0
        %v3104 = vsel %vm3102, %v3084, %v3080
        %v3105 = vsel %vm3103, %v3085, %v3081
        %v3106 = vmul.f32 %v3082, 0.5
        %v3107 = vmul.f32 %v3083, 0.5
        %v3108 = vadd.f32 %v3104, %v3106
        %v3109 = vadd.f32 %v3105, %v3107
        %v3110 = vsub.f32 %v2766, %v3108
        %v3111 = vsub.f32 %v2767, %v3109
        %v3112 = vmax.f32 %v3110, 0.0
        %v3113 = vmax.f32 %v3111, 0.0
        %v3114 = vmul.f32 %v3112, %v3112
        %v3115 = vmul.f32 %v3113, %v3113
        %v3116 = vsel %vm654, %v3114, 0.0
        %3117 = vadd.xlane.f32.xlu0 %v3116
        %v3118 = vpop.xlane.xlu0 %3117
        %v3119 = vsel %vm654, %v3115, 0.0
        %3120 = vadd.xlane.f32.xlu0 %v3119
        %v3121 = vpop.xlane.xlu0 %3120
        %v3122 = vsub.f32 %v3118, 1.0
        %v3123 = vsub.f32 %v3121, 1.0
        %v3124 = vmul.f32 %v3122, %v2790
        %v3125 = vmul.f32 %v3123, %v2791
        %vm3126 = vcmp.ge.f32.partialorder %v3124, 0.0
        %vm3127 = vcmp.ge.f32.partialorder %v3125, 0.0
        %v3128 = vsel %vm3126, %v3108, %v3104
        %v3129 = vsel %vm3127, %v3109, %v3105
        %v3130 = vmul.f32 %v3106, 0.5
        %v3131 = vmul.f32 %v3107, 0.5
        %v3132 = vadd.f32 %v3128, %v3130
        %v3133 = vadd.f32 %v3129, %v3131
        %v3134 = vsub.f32 %v2766, %v3132
        %v3135 = vsub.f32 %v2767, %v3133
        %v3136 = vmax.f32 %v3134, 0.0
        %v3137 = vmax.f32 %v3135, 0.0
        %v3138 = vmul.f32 %v3136, %v3136
        %v3139 = vmul.f32 %v3137, %v3137
        %v3140 = vsel %vm654, %v3138, 0.0
        %3141 = vadd.xlane.f32.xlu0 %v3140
        %v3142 = vpop.xlane.xlu0 %3141
        %v3143 = vsel %vm654, %v3139, 0.0
        %3144 = vadd.xlane.f32.xlu0 %v3143
        %v3145 = vpop.xlane.xlu0 %3144
        %v3146 = vsub.f32 %v3142, 1.0
        %v3147 = vsub.f32 %v3145, 1.0
        %v3148 = vmul.f32 %v3146, %v2790
        %v3149 = vmul.f32 %v3147, %v2791
        %vm3150 = vcmp.ge.f32.partialorder %v3148, 0.0
        %vm3151 = vcmp.ge.f32.partialorder %v3149, 0.0
        %v3152 = vsel %vm3150, %v3132, %v3128
        %v3153 = vsel %vm3151, %v3133, %v3129
        %v3154 = vmul.f32 %v3130, 0.5
        %v3155 = vmul.f32 %v3131, 0.5
        %v3156 = vadd.f32 %v3152, %v3154
        %v3157 = vadd.f32 %v3153, %v3155
        %v3158 = vsub.f32 %v2766, %v3156
        %v3159 = vsub.f32 %v2767, %v3157
        %v3160 = vmax.f32 %v3158, 0.0
        %v3161 = vmax.f32 %v3159, 0.0
        %v3162 = vmul.f32 %v3160, %v3160
        %v3163 = vmul.f32 %v3161, %v3161
        %v3164 = vsel %vm654, %v3162, 0.0
        %3165 = vadd.xlane.f32.xlu0 %v3164
        %v3166 = vpop.xlane.xlu0 %3165
        %v3167 = vsel %vm654, %v3163, 0.0
        %3168 = vadd.xlane.f32.xlu0 %v3167
        %v3169 = vpop.xlane.xlu0 %3168
        %v3170 = vsub.f32 %v3166, 1.0
        %v3171 = vsub.f32 %v3169, 1.0
        %v3172 = vmul.f32 %v3170, %v2790
        %v3173 = vmul.f32 %v3171, %v2791
        %vm3174 = vcmp.ge.f32.partialorder %v3172, 0.0
        %vm3175 = vcmp.ge.f32.partialorder %v3173, 0.0
        %v3176 = vsel %vm3174, %v3156, %v3152
        %v3177 = vsel %vm3175, %v3157, %v3153
        %v3178 = vmul.f32 %v3154, 0.5
        %v3179 = vmul.f32 %v3155, 0.5
        %v3180 = vadd.f32 %v3176, %v3178
        %v3181 = vadd.f32 %v3177, %v3179
        %v3182 = vsub.f32 %v2766, %v3180
        %v3183 = vsub.f32 %v2767, %v3181
        %v3184 = vmax.f32 %v3182, 0.0
        %v3185 = vmax.f32 %v3183, 0.0
        %v3186 = vmul.f32 %v3184, %v3184
        %v3187 = vmul.f32 %v3185, %v3185
        %v3188 = vsel %vm654, %v3186, 0.0
        %3189 = vadd.xlane.f32.xlu0 %v3188
        %v3190 = vpop.xlane.xlu0 %3189
        %v3191 = vsel %vm654, %v3187, 0.0
        %3192 = vadd.xlane.f32.xlu0 %v3191
        %v3193 = vpop.xlane.xlu0 %3192
        %v3194 = vsub.f32 %v3190, 1.0
        %v3195 = vsub.f32 %v3193, 1.0
        %v3196 = vmul.f32 %v3194, %v2790
        %v3197 = vmul.f32 %v3195, %v2791
        %vm3198 = vcmp.ge.f32.partialorder %v3196, 0.0
        %vm3199 = vcmp.ge.f32.partialorder %v3197, 0.0
        %v3200 = vsel %vm3198, %v3180, %v3176
        %v3201 = vsel %vm3199, %v3181, %v3177
        %v3202 = vmul.f32 %v3178, 0.5
        %v3203 = vmul.f32 %v3179, 0.5
        %v3204 = vadd.f32 %v3200, %v3202
        %v3205 = vadd.f32 %v3201, %v3203
        %v3206 = vsub.f32 %v2766, %v3204
        %v3207 = vsub.f32 %v2767, %v3205
        %v3208 = vmax.f32 %v3206, 0.0
        %v3209 = vmax.f32 %v3207, 0.0
        %v3210 = vmul.f32 %v3208, %v3208
        %v3211 = vmul.f32 %v3209, %v3209
        %v3212 = vsel %vm654, %v3210, 0.0
        %3213 = vadd.xlane.f32.xlu0 %v3212
        %v3214 = vpop.xlane.xlu0 %3213
        %v3215 = vsel %vm654, %v3211, 0.0
        %3216 = vadd.xlane.f32.xlu0 %v3215
        %v3217 = vpop.xlane.xlu0 %3216
        %v3218 = vsub.f32 %v3214, 1.0
        %v3219 = vsub.f32 %v3217, 1.0
        %v3220 = vmul.f32 %v3218, %v2790
        %v3221 = vmul.f32 %v3219, %v2791
        %vm3222 = vcmp.ge.f32.partialorder %v3220, 0.0
        %vm3223 = vcmp.ge.f32.partialorder %v3221, 0.0
        %v3224 = vsel %vm3222, %v3204, %v3200
        %v3225 = vsel %vm3223, %v3205, %v3201
        %v3226 = vmul.f32 %v3202, 0.5
        %v3227 = vmul.f32 %v3203, 0.5
        %v3228 = vadd.f32 %v3224, %v3226
        %v3229 = vadd.f32 %v3225, %v3227
        %v3230 = vsub.f32 %v2766, %v3228
        %v3231 = vsub.f32 %v2767, %v3229
        %v3232 = vmax.f32 %v3230, 0.0
        %v3233 = vmax.f32 %v3231, 0.0
        %v3234 = vmul.f32 %v3232, %v3232
        %v3235 = vmul.f32 %v3233, %v3233
        %v3236 = vsel %vm654, %v3234, 0.0
        %3237 = vadd.xlane.f32.xlu0 %v3236
        %v3238 = vpop.xlane.xlu0 %3237
        %v3239 = vsel %vm654, %v3235, 0.0
        %3240 = vadd.xlane.f32.xlu0 %v3239
        %v3241 = vpop.xlane.xlu0 %3240
        %v3242 = vsub.f32 %v3238, 1.0
        %v3243 = vsub.f32 %v3241, 1.0
        %v3244 = vmul.f32 %v3242, %v2790
        %v3245 = vmul.f32 %v3243, %v2791
        %vm3246 = vcmp.ge.f32.partialorder %v3244, 0.0
        %vm3247 = vcmp.ge.f32.partialorder %v3245, 0.0
        %v3248 = vsel %vm3246, %v3228, %v3224
        %v3249 = vsel %vm3247, %v3229, %v3225
        %v3250 = vmul.f32 %v3226, 0.5
        %v3251 = vmul.f32 %v3227, 0.5
        %v3252 = vadd.f32 %v3248, %v3250
        %v3253 = vadd.f32 %v3249, %v3251
        %v3254 = vsub.f32 %v2766, %v3252
        %v3255 = vsub.f32 %v2767, %v3253
        %v3256 = vmax.f32 %v3254, 0.0
        %v3257 = vmax.f32 %v3255, 0.0
        %v3258 = vmul.f32 %v3256, %v3256
        %v3259 = vmul.f32 %v3257, %v3257
        %v3260 = vsel %vm654, %v3258, 0.0
        %3261 = vadd.xlane.f32.xlu0 %v3260
        %v3262 = vpop.xlane.xlu0 %3261
        %v3263 = vsel %vm654, %v3259, 0.0
        %3264 = vadd.xlane.f32.xlu0 %v3263
        %v3265 = vpop.xlane.xlu0 %3264
        %v3266 = vsub.f32 %v3262, 1.0
        %v3267 = vsub.f32 %v3265, 1.0
        %v3268 = vmul.f32 %v3266, %v2790
        %v3269 = vmul.f32 %v3267, %v2791
        %vm3270 = vcmp.ge.f32.partialorder %v3268, 0.0
        %vm3271 = vcmp.ge.f32.partialorder %v3269, 0.0
        %v3272 = vsel %vm3270, %v3252, %v3248
        %v3273 = vsel %vm3271, %v3253, %v3249
        %v3274 = vmul.f32 %v3250, 0.5
        %v3275 = vmul.f32 %v3251, 0.5
        %v3276 = vadd.f32 %v3272, %v3274
        %v3277 = vadd.f32 %v3273, %v3275
        %v3278 = vsub.f32 %v2766, %v3276
        %v3279 = vsub.f32 %v2767, %v3277
        %v3280 = vmax.f32 %v3278, 0.0
        %v3281 = vmax.f32 %v3279, 0.0
        %v3282 = vmul.f32 %v3280, %v3280
        %v3283 = vmul.f32 %v3281, %v3281
        %v3284 = vsel %vm654, %v3282, 0.0
        %3285 = vadd.xlane.f32.xlu0 %v3284
        %v3286 = vpop.xlane.xlu0 %3285
        %v3287 = vsel %vm654, %v3283, 0.0
        %3288 = vadd.xlane.f32.xlu0 %v3287
        %v3289 = vpop.xlane.xlu0 %3288
        %v3290 = vsub.f32 %v3286, 1.0
        %v3291 = vsub.f32 %v3289, 1.0
        %v3292 = vmul.f32 %v3290, %v2790
        %v3293 = vmul.f32 %v3291, %v2791
        %vm3294 = vcmp.ge.f32.partialorder %v3292, 0.0
        %vm3295 = vcmp.ge.f32.partialorder %v3293, 0.0
        %v3296 = vsel %vm3294, %v3276, %v3272
        %v3297 = vsel %vm3295, %v3277, %v3273
        %v3298 = vmul.f32 %v3274, 0.5
        %v3299 = vmul.f32 %v3275, 0.5
        %v3300 = vadd.f32 %v3296, %v3298
        %v3301 = vadd.f32 %v3297, %v3299
        %v3302 = vsub.f32 %v2766, %v3300
        %v3303 = vsub.f32 %v2767, %v3301
        %v3304 = vmax.f32 %v3302, 0.0
        %v3305 = vmax.f32 %v3303, 0.0
        %v3306 = vmul.f32 %v3304, %v3304
        %v3307 = vmul.f32 %v3305, %v3305
        %v3308 = vsel %vm654, %v3306, 0.0
        %3309 = vadd.xlane.f32.xlu0 %v3308
        %v3310 = vpop.xlane.xlu0 %3309
        %v3311 = vsel %vm654, %v3307, 0.0
        %3312 = vadd.xlane.f32.xlu0 %v3311
        %v3313 = vpop.xlane.xlu0 %3312
        %v3314 = vsub.f32 %v3310, 1.0
        %v3315 = vsub.f32 %v3313, 1.0
        %v3316 = vmul.f32 %v3314, %v2790
        %v3317 = vmul.f32 %v3315, %v2791
        %vm3318 = vcmp.ge.f32.partialorder %v3316, 0.0
        %vm3319 = vcmp.ge.f32.partialorder %v3317, 0.0
        %v3320 = vsel %vm3318, %v3300, %v3296
        %v3321 = vsel %vm3319, %v3301, %v3297
        %v3322 = vmul.f32 %v3298, 0.5
        %v3323 = vmul.f32 %v3299, 0.5
        %v3324 = vadd.f32 %v3320, %v3322
        %v3325 = vadd.f32 %v3321, %v3323
        %v3326 = vsub.f32 %v2766, %v3324
        %v3327 = vsub.f32 %v2767, %v3325
        %v3328 = vmax.f32 %v3326, 0.0
        %v3329 = vmax.f32 %v3327, 0.0
        %v3330 = vmul.f32 %v3328, %v3328
        %v3331 = vmul.f32 %v3329, %v3329
        %v3332 = vsel %vm654, %v3330, 0.0
        %3333 = vadd.xlane.f32.xlu0 %v3332
        %v3334 = vpop.xlane.xlu0 %3333
        %v3335 = vsel %vm654, %v3331, 0.0
        %3336 = vadd.xlane.f32.xlu0 %v3335
        %v3337 = vpop.xlane.xlu0 %3336
        %v3338 = vsub.f32 %v3334, 1.0
        %v3339 = vsub.f32 %v3337, 1.0
        %v3340 = vmul.f32 %v3338, %v2790
        %v3341 = vmul.f32 %v3339, %v2791
        %vm3342 = vcmp.ge.f32.partialorder %v3340, 0.0
        %vm3343 = vcmp.ge.f32.partialorder %v3341, 0.0
        %v3344 = vsel %vm3342, %v3324, %v3320
        %v3345 = vsel %vm3343, %v3325, %v3321
        %v3346 = vmul.f32 %v3322, 0.5
        %v3347 = vmul.f32 %v3323, 0.5
        %v3348 = vadd.f32 %v3344, %v3346
        %v3349 = vadd.f32 %v3345, %v3347
        %v3350 = vsub.f32 %v2766, %v3348
        %v3351 = vsub.f32 %v2767, %v3349
        %v3352 = vmax.f32 %v3350, 0.0
        %v3353 = vmax.f32 %v3351, 0.0
        %v3354 = vmul.f32 %v3352, %v3352
        %v3355 = vmul.f32 %v3353, %v3353
        %v3356 = vsel %vm654, %v3354, 0.0
        %3357 = vadd.xlane.f32.xlu0 %v3356
        %v3358 = vpop.xlane.xlu0 %3357
        %v3359 = vsel %vm654, %v3355, 0.0
        %3360 = vadd.xlane.f32.xlu0 %v3359
        %v3361 = vpop.xlane.xlu0 %3360
        %v3362 = vsub.f32 %v3358, 1.0
        %v3363 = vsub.f32 %v3361, 1.0
        %v3364 = vmul.f32 %v3362, %v2790
        %v3365 = vmul.f32 %v3363, %v2791
        %vm3366 = vcmp.ge.f32.partialorder %v3364, 0.0
        %vm3367 = vcmp.ge.f32.partialorder %v3365, 0.0
        %v3368 = vsel %vm3366, %v3348, %v3344
        %v3369 = vsel %vm3367, %v3349, %v3345
        %v3370 = vmul.f32 %v3346, 0.5
        %v3371 = vmul.f32 %v3347, 0.5
        %v3372 = vadd.f32 %v3368, %v3370
        %v3373 = vadd.f32 %v3369, %v3371
        %v3374 = vsub.f32 %v2766, %v3372
        %v3375 = vsub.f32 %v2767, %v3373
        %v3376 = vmax.f32 %v3374, 0.0
        %v3377 = vmax.f32 %v3375, 0.0
        %v3378 = vmul.f32 %v3376, %v3376
        %v3379 = vmul.f32 %v3377, %v3377
        %v3380 = vsel %vm654, %v3378, 0.0
        %3381 = vadd.xlane.f32.xlu0 %v3380
        %v3382 = vpop.xlane.xlu0 %3381
        %v3383 = vsel %vm654, %v3379, 0.0
        %3384 = vadd.xlane.f32.xlu0 %v3383
        %v3385 = vpop.xlane.xlu0 %3384
        %v3386 = vsub.f32 %v3382, 1.0
        %v3387 = vsub.f32 %v3385, 1.0
        %v3388 = vmul.f32 %v3386, %v2790
        %v3389 = vmul.f32 %v3387, %v2791
        %vm3390 = vcmp.ge.f32.partialorder %v3388, 0.0
        %vm3391 = vcmp.ge.f32.partialorder %v3389, 0.0
        %v3392 = vsel %vm3390, %v3372, %v3368
        %v3393 = vsel %vm3391, %v3373, %v3369
        %v3394 = vmul.f32 %v3370, 0.5
        %v3395 = vmul.f32 %v3371, 0.5
        %v3396 = vadd.f32 %v3392, %v3394
        %v3397 = vadd.f32 %v3393, %v3395
        %v3398 = vsub.f32 %v2766, %v3396
        %v3399 = vsub.f32 %v2767, %v3397
        %v3400 = vmax.f32 %v3398, 0.0
        %v3401 = vmax.f32 %v3399, 0.0
        %v3402 = vmul.f32 %v3400, %v3400
        %v3403 = vmul.f32 %v3401, %v3401
        %v3404 = vsel %vm654, %v3402, 0.0
        %3405 = vadd.xlane.f32.xlu0 %v3404
        %v3406 = vpop.xlane.xlu0 %3405
        %v3407 = vsel %vm654, %v3403, 0.0
        %3408 = vadd.xlane.f32.xlu0 %v3407
        %v3409 = vpop.xlane.xlu0 %3408
        %v3410 = vsub.f32 %v3406, 1.0
        %v3411 = vsub.f32 %v3409, 1.0
        %v3412 = vmul.f32 %v3410, %v2790
        %v3413 = vmul.f32 %v3411, %v2791
        %vm3414 = vcmp.ge.f32.partialorder %v3412, 0.0
        %vm3415 = vcmp.ge.f32.partialorder %v3413, 0.0
        %v3416 = vsel %vm3414, %v3396, %v3392
        %v3417 = vsel %vm3415, %v3397, %v3393
        %v3418 = vmul.f32 %v3394, 0.5
        %v3419 = vmul.f32 %v3395, 0.5
        %v3420 = vadd.f32 %v3416, %v3418
        %v3421 = vadd.f32 %v3417, %v3419
        %v3422 = vsub.f32 %v2766, %v3420
        %v3423 = vsub.f32 %v2767, %v3421
        %v3424 = vmax.f32 %v3422, 0.0
        %v3425 = vmax.f32 %v3423, 0.0
        %v3426 = vmul.f32 %v3424, %v3424
        %v3427 = vmul.f32 %v3425, %v3425
        %v3428 = vsel %vm654, %v3426, 0.0
        %3429 = vadd.xlane.f32.xlu0 %v3428
        %v3430 = vpop.xlane.xlu0 %3429
        %v3431 = vsel %vm654, %v3427, 0.0
        %3432 = vadd.xlane.f32.xlu0 %v3431
        %v3433 = vpop.xlane.xlu0 %3432
        %v3434 = vsub.f32 %v3430, 1.0
        %v3435 = vsub.f32 %v3433, 1.0
        %v3436 = vmul.f32 %v3434, %v2790
        %v3437 = vmul.f32 %v3435, %v2791
        %vm3438 = vcmp.ge.f32.partialorder %v3436, 0.0
        %vm3439 = vcmp.ge.f32.partialorder %v3437, 0.0
        %v3440 = vsel %vm3438, %v3420, %v3416
        %v3441 = vsel %vm3439, %v3421, %v3417
        %v3442 = vmul.f32 %v3418, 0.5
        %v3443 = vmul.f32 %v3419, 0.5
        %v3444 = vadd.f32 %v3440, %v3442
        %v3445 = vadd.f32 %v3441, %v3443
        %v3446 = vsub.f32 %v2766, %v3444
        %v3447 = vsub.f32 %v2767, %v3445
        %v3448 = vmax.f32 %v3446, 0.0
        %v3449 = vmax.f32 %v3447, 0.0
        %v3450 = vmul.f32 %v3448, %v3448
        %v3451 = vmul.f32 %v3449, %v3449
        %v3452 = vsel %vm654, %v3450, 0.0
        %3453 = vadd.xlane.f32.xlu0 %v3452
        %v3454 = vpop.xlane.xlu0 %3453
        %v3455 = vsel %vm654, %v3451, 0.0
        %3456 = vadd.xlane.f32.xlu0 %v3455
        %v3457 = vpop.xlane.xlu0 %3456
        %v3458 = vsub.f32 %v3454, 1.0
        %v3459 = vsub.f32 %v3457, 1.0
        %v3460 = vmul.f32 %v3458, %v2790
        %v3461 = vmul.f32 %v3459, %v2791
        %vm3462 = vcmp.ge.f32.partialorder %v3460, 0.0
        %vm3463 = vcmp.ge.f32.partialorder %v3461, 0.0
        %v3464 = vsel %vm3462, %v3444, %v3440
        %v3465 = vsel %vm3463, %v3445, %v3441
        %v3466 = vmul.f32 %v3442, 0.5
        %v3467 = vmul.f32 %v3443, 0.5
        %v3468 = vadd.f32 %v3464, %v3466
        %v3469 = vadd.f32 %v3465, %v3467
        %v3470 = vsub.f32 %v2766, %v3468
        %v3471 = vsub.f32 %v2767, %v3469
        %v3472 = vmax.f32 %v3470, 0.0
        %v3473 = vmax.f32 %v3471, 0.0
        %v3474 = vmul.f32 %v3472, %v3472
        %v3475 = vmul.f32 %v3473, %v3473
        %v3476 = vsel %vm654, %v3474, 0.0
        %3477 = vadd.xlane.f32.xlu0 %v3476
        %v3478 = vpop.xlane.xlu0 %3477
        %v3479 = vsel %vm654, %v3475, 0.0
        %3480 = vadd.xlane.f32.xlu0 %v3479
        %v3481 = vpop.xlane.xlu0 %3480
        %v3482 = vsub.f32 %v3478, 1.0
        %v3483 = vsub.f32 %v3481, 1.0
        %v3484 = vmul.f32 %v3482, %v2790
        %v3485 = vmul.f32 %v3483, %v2791
        %vm3486 = vcmp.ge.f32.partialorder %v3484, 0.0
        %vm3487 = vcmp.ge.f32.partialorder %v3485, 0.0
        %v3488 = vsel %vm3486, %v3468, %v3464
        %v3489 = vsel %vm3487, %v3469, %v3465
        %v3490 = vmul.f32 %v3466, 0.5
        %v3491 = vmul.f32 %v3467, 0.5
        %v3492 = vadd.f32 %v3488, %v3490
        %v3493 = vadd.f32 %v3489, %v3491
        %v3494 = vsub.f32 %v2766, %v3492
        %v3495 = vsub.f32 %v2767, %v3493
        %v3496 = vmax.f32 %v3494, 0.0
        %v3497 = vmax.f32 %v3495, 0.0
        %v3498 = vmul.f32 %v3496, %v3496
        %v3499 = vmul.f32 %v3497, %v3497
        %v3500 = vsel %vm654, %v3498, 0.0
        %3501 = vadd.xlane.f32.xlu0 %v3500
        %v3502 = vpop.xlane.xlu0 %3501
        %v3503 = vsel %vm654, %v3499, 0.0
        %3504 = vadd.xlane.f32.xlu0 %v3503
        %v3505 = vpop.xlane.xlu0 %3504
        %v3506 = vrcp.pop %v3502
        %v3507 = vrcp.pop %v3505
        %v3508 = vmul.f32 %v3498, %v3506
        %v3509 = vmul.f32 %v3499, %v3507
        %3510 = vrot.lane.b32.xlu0 %v491, 64
        %v3511 = vpop.permute.xlu0 %3510
        %v3514 = vsel %vm654, %v3508, 0
        %3516 = vmatprep.subr.mxu0 0.0
        %3517 = vmatpush1.msra.mxu0 %v3511
        %3518 = vmatprep.subr.mxu0 0.0
        %3519 = vmatpush1.msra.mxu0 0.0
        %3520 = vmatprep.subr.mxu0 0.0
        %3521 = vmatpush1.msra.mxu0 0.0
        %3522 = vmatprep.subr.mxu0 0.0
        %3523 = vmatpush1.msra.mxu0 0.0
        %3524 = vmatprep.subr.mxu0 0.0
        %3525 = vmatpush1.msra.mxu0 0.0
        %3526 = vmatprep.subr.mxu0 0.0
        %3527 = vmatpush1.msra.mxu0 0.0
        %3528 = vmatprep.subr.mxu0 0.0
        %3529 = vmatpush1.msra.mxu0 0.0
        %3530 = vmatprep.subr.mxu0 0.0
        %3531 = vmatpush1.msra.mxu0 0.0
        %3532 = vmatprep.subr.mxu0 0.0
        %3533 = vmatpush1.msra.mxu0 0.0
        %3534 = vmatprep.subr.mxu0 0.0
        %3535 = vmatpush1.msra.mxu0 0.0
        %3536 = vmatprep.subr.mxu0 0.0
        %3537 = vmatpush1.msra.mxu0 0.0
        %3538 = vmatprep.subr.mxu0 0.0
        %3539 = vmatpush1.msra.mxu0 0.0
        %3540 = vmatprep.subr.mxu0 0.0
        %3541 = vmatpush1.msra.mxu0 0.0
        %3542 = vmatprep.subr.mxu0 0.0
        %3543 = vmatpush1.msra.mxu0 0.0
        %3544 = vmatprep.subr.mxu0 0.0
        %3545 = vmatpush1.msra.mxu0 0.0
        %3546 = vmatprep.subr.mxu0 0.0
        %3547 = vmatpush1.msra.mxu0 0.0
        %3548 = vmatprep.subr.mxu0 0.0
        %3549 = vmatpush1.msra.mxu0 0.0
        %3550 = vmatprep.subr.mxu0 0.0
        %3551 = vmatpush1.msra.mxu0 0.0
        %3552 = vmatprep.subr.mxu0 0.0
        %3553 = vmatpush1.msra.mxu0 0.0
        %3554 = vmatprep.subr.mxu0 0.0
        %3555 = vmatpush1.msra.mxu0 0.0
        %3556 = vmatprep.subr.mxu0 0.0
        %3557 = vmatpush1.msra.mxu0 0.0
        %3558 = vmatprep.subr.mxu0 0.0
        %3559 = vmatpush1.msra.mxu0 0.0
        %3560 = vmatprep.subr.mxu0 0.0
        %3561 = vmatpush1.msra.mxu0 0.0
        %3562 = vmatprep.subr.mxu0 0.0
        %3563 = vmatpush1.msra.mxu0 0.0
        %3564 = vmatprep.subr.mxu0 0.0
        %3565 = vmatpush1.msra.mxu0 0.0
        %3566 = vmatprep.subr.mxu0 0.0
        %3567 = vmatpush1.msra.mxu0 0.0
        %3568 = vmatprep.subr.mxu0 0.0
        %3569 = vmatpush1.msra.mxu0 0.0
        %3570 = vmatprep.subr.mxu0 0.0
        %3571 = vmatpush1.msra.mxu0 0.0
        %3572 = vmatprep.subr.mxu0 0.0
        %3573 = vmatpush1.msra.mxu0 0.0
        %3574 = vmatprep.subr.mxu0 0.0
        %3575 = vmatpush1.msra.mxu0 0.0
        %3576 = vmatprep.subr.mxu0 0.0
        %3577 = vmatpush1.msra.mxu0 0.0
        %3578 = vmatprep.subr.mxu0 0.0
        %3579 = vmatpush1.msra.mxu0 0.0
        %3580 = vmatprep.mubr.f32.mxu0 0.0
        %3581 = vmatmul.mubr.f32.gmra.mrb[0].mxu0 %v3514
        %v3582 = vpop.f32.mrb[0].mxu0
        %v3583 = vadd.f32 0.0, %v3582
        %v3584 = vpop.f32.mrb[0].mxu0
        %3585 = vdwg.mxu0
        %3586 = vrot.lane.b32.xlu0 %v496, 64
        %v3587 = vpop.permute.xlu0 %3586
        %v3590 = vsel %vm654, %v3509, 0
        %3592 = vmatprep.subr.mxu0 0.0
        %3593 = vmatpush1.msra.mxu0 %v3587
        %3594 = vmatprep.subr.mxu0 0.0
        %3595 = vmatpush1.msra.mxu0 0.0
        %3596 = vmatprep.subr.mxu0 0.0
        %3597 = vmatpush1.msra.mxu0 0.0
        %3598 = vmatprep.subr.mxu0 0.0
        %3599 = vmatpush1.msra.mxu0 0.0
        %3600 = vmatprep.subr.mxu0 0.0
        %3601 = vmatpush1.msra.mxu0 0.0
        %3602 = vmatprep.subr.mxu0 0.0
        %3603 = vmatpush1.msra.mxu0 0.0
        %3604 = vmatprep.subr.mxu0 0.0
        %3605 = vmatpush1.msra.mxu0 0.0
        %3606 = vmatprep.subr.mxu0 0.0
        %3607 = vmatpush1.msra.mxu0 0.0
        %3608 = vmatprep.subr.mxu0 0.0
        %3609 = vmatpush1.msra.mxu0 0.0
        %3610 = vmatprep.subr.mxu0 0.0
        %3611 = vmatpush1.msra.mxu0 0.0
        %3612 = vmatprep.subr.mxu0 0.0
        %3613 = vmatpush1.msra.mxu0 0.0
        %3614 = vmatprep.subr.mxu0 0.0
        %3615 = vmatpush1.msra.mxu0 0.0
        %3616 = vmatprep.subr.mxu0 0.0
        %3617 = vmatpush1.msra.mxu0 0.0
        %3618 = vmatprep.subr.mxu0 0.0
        %3619 = vmatpush1.msra.mxu0 0.0
        %3620 = vmatprep.subr.mxu0 0.0
        %3621 = vmatpush1.msra.mxu0 0.0
        %3622 = vmatprep.subr.mxu0 0.0
        %3623 = vmatpush1.msra.mxu0 0.0
        %3624 = vmatprep.subr.mxu0 0.0
        %3625 = vmatpush1.msra.mxu0 0.0
        %3626 = vmatprep.subr.mxu0 0.0
        %3627 = vmatpush1.msra.mxu0 0.0
        %3628 = vmatprep.subr.mxu0 0.0
        %3629 = vmatpush1.msra.mxu0 0.0
        %3630 = vmatprep.subr.mxu0 0.0
        %3631 = vmatpush1.msra.mxu0 0.0
        %3632 = vmatprep.subr.mxu0 0.0
        %3633 = vmatpush1.msra.mxu0 0.0
        %3634 = vmatprep.subr.mxu0 0.0
        %3635 = vmatpush1.msra.mxu0 0.0
        %3636 = vmatprep.subr.mxu0 0.0
        %3637 = vmatpush1.msra.mxu0 0.0
        %3638 = vmatprep.subr.mxu0 0.0
        %3639 = vmatpush1.msra.mxu0 0.0
        %3640 = vmatprep.subr.mxu0 0.0
        %3641 = vmatpush1.msra.mxu0 0.0
        %3642 = vmatprep.subr.mxu0 0.0
        %3643 = vmatpush1.msra.mxu0 0.0
        %3644 = vmatprep.subr.mxu0 0.0
        %3645 = vmatpush1.msra.mxu0 0.0
        %3646 = vmatprep.subr.mxu0 0.0
        %3647 = vmatpush1.msra.mxu0 0.0
        %3648 = vmatprep.subr.mxu0 0.0
        %3649 = vmatpush1.msra.mxu0 0.0
        %3650 = vmatprep.subr.mxu0 0.0
        %3651 = vmatpush1.msra.mxu0 0.0
        %3652 = vmatprep.subr.mxu0 0.0
        %3653 = vmatpush1.msra.mxu0 0.0
        %3654 = vmatprep.subr.mxu0 0.0
        %3655 = vmatpush1.msra.mxu0 0.0
        %3656 = vmatprep.mubr.f32.mxu0 0.0
        %3657 = vmatmul.mubr.f32.gmra.mrb[0].mxu0 %v3590
        %v3658 = vpop.f32.mrb[0].mxu0
        %v3659 = vadd.f32 0.0, %v3658
        %v3660 = vpop.f32.mrb[0].mxu0
        %3661 = vdwg.mxu0
        %3664 = vrot.lane.b32.xlu0 %v3583, 64
        %v3665 = vpop.permute.xlu0 %3664
        %3666 = vrot.lane.b32.xlu0 %v3659, 64
        %v3667 = vpop.permute.xlu0 %3666
        %vm3670 = vcmask 785920
        %3671 = vst.msk [vmem:[#allocation2] sm:$0xff] %vm3670, %v3665
        %3672 = vst.msk [vmem:[#allocation2 + $0x8] sm:$0xff] %vm3670, %v3667
        %3673 = vrot.lane.b32.xlu0 %v414, 32
        %v3674 = vpop.permute.xlu0 %3673
        %3675 = vrot.lane.b32.xlu0 %v416, 32
        %v3676 = vpop.permute.xlu0 %3675
        %v3677 = vsel %vm499, %v3674, 0
        %v3679 = vsel %vm499, %v3676, 0
        %3681 = vmatprep.subr.mxu0 0.0
        %3682 = vmatpush1.xpose.msra.mxu0 %v3679
        %3683 = vmatprep.subr.mxu0 0.0
        %3684 = vmatpush1.xpose.msra.mxu0 0.0
        %3685 = vmatprep.subr.mxu0 0.0
        %3686 = vmatpush1.xpose.msra.mxu0 0.0
        %3687 = vmatprep.subr.mxu0 0.0
        %3688 = vmatpush1.xpose.msra.mxu0 0.0
        %3689 = vmatprep.subr.mxu0 0.0
        %3690 = vmatpush1.xpose.msra.mxu0 0.0
        %3691 = vmatprep.subr.mxu0 0.0
        %3692 = vmatpush1.xpose.msra.mxu0 0.0
        %3693 = vmatprep.subr.mxu0 0.0
        %3694 = vmatpush1.xpose.msra.mxu0 0.0
        %3695 = vmatprep.subr.mxu0 0.0
        %3696 = vmatpush1.xpose.msra.mxu0 0.0
        %3697 = vmatprep.subr.mxu0 0.0
        %3698 = vmatpush1.xpose.msra.mxu0 0.0
        %3699 = vmatprep.subr.mxu0 0.0
        %3700 = vmatpush1.xpose.msra.mxu0 0.0
        %3701 = vmatprep.subr.mxu0 0.0
        %3702 = vmatpush1.xpose.msra.mxu0 0.0
        %3703 = vmatprep.subr.mxu0 0.0
        %3704 = vmatpush1.xpose.msra.mxu0 0.0
        %3705 = vmatprep.subr.mxu0 0.0
        %3706 = vmatpush1.xpose.msra.mxu0 0.0
        %3707 = vmatprep.subr.mxu0 0.0
        %3708 = vmatpush1.xpose.msra.mxu0 0.0
        %3709 = vmatprep.subr.mxu0 0.0
        %3710 = vmatpush1.xpose.msra.mxu0 0.0
        %3711 = vmatprep.subr.mxu0 0.0
        %3712 = vmatpush1.xpose.msra.mxu0 0.0
        %3713 = vmatprep.subr.mxu0 0.0
        %3714 = vmatpush1.xpose.msra.mxu0 0.0
        %3715 = vmatprep.subr.mxu0 0.0
        %3716 = vmatpush1.xpose.msra.mxu0 0.0
        %3717 = vmatprep.subr.mxu0 0.0
        %3718 = vmatpush1.xpose.msra.mxu0 0.0
        %3719 = vmatprep.subr.mxu0 0.0
        %3720 = vmatpush1.xpose.msra.mxu0 0.0
        %3721 = vmatprep.subr.mxu0 0.0
        %3722 = vmatpush1.xpose.msra.mxu0 0.0
        %3723 = vmatprep.subr.mxu0 0.0
        %3724 = vmatpush1.xpose.msra.mxu0 0.0
        %3725 = vmatprep.subr.mxu0 0.0
        %3726 = vmatpush1.xpose.msra.mxu0 0.0
        %3727 = vmatprep.subr.mxu0 0.0
        %3728 = vmatpush1.xpose.msra.mxu0 0.0
        %3729 = vmatprep.subr.mxu0 0.0
        %3730 = vmatpush1.xpose.msra.mxu0 0.0
        %3731 = vmatprep.subr.mxu0 0.0
        %3732 = vmatpush1.xpose.msra.mxu0 0.0
        %3733 = vmatprep.subr.mxu0 0.0
        %3734 = vmatpush1.xpose.msra.mxu0 0.0
        %3735 = vmatprep.subr.mxu0 0.0
        %3736 = vmatpush1.xpose.msra.mxu0 0.0
        %3737 = vmatprep.subr.mxu0 0.0
        %3738 = vmatpush1.xpose.msra.mxu0 0.0
        %3739 = vmatprep.subr.mxu0 0.0
        %3740 = vmatpush1.xpose.msra.mxu0 0.0
        %3741 = vmatprep.subr.mxu0 0.0
        %3742 = vmatpush1.xpose.msra.mxu0 0.0
        %3743 = vmatprep.subr.mxu0 0.0
        %3744 = vmatpush1.xpose.msra.mxu0 0.0
        %3745 = vmatprep.mubr.f32.mxu0 0.0
        %3746 = vmatmul.mubr.f32.gmra.mrb[0].mxu0 %v3677
        %v3747 = vpop.f32.mrb[0].mxu0
        %v3748 = vadd.f32 0.0, %v3747
        %v3749 = vpop.f32.mrb[0].mxu0
        %3750 = vdwg.mxu0
        %3751 = vrot.lane.b32.xlu0 %v420, 32
        %v3752 = vpop.permute.xlu0 %3751
        %3753 = vrot.lane.b32.xlu0 %v422, 32
        %v3754 = vpop.permute.xlu0 %3753
        %v3755 = vsel %vm499, %v3752, 0
        %v3757 = vsel %vm499, %v3754, 0
        %3759 = vmatprep.subr.mxu0 0.0
        %3760 = vmatpush1.xpose.msra.mxu0 %v3757
        %3761 = vmatprep.subr.mxu0 0.0
        %3762 = vmatpush1.xpose.msra.mxu0 0.0
        %3763 = vmatprep.subr.mxu0 0.0
        %3764 = vmatpush1.xpose.msra.mxu0 0.0
        %3765 = vmatprep.subr.mxu0 0.0
        %3766 = vmatpush1.xpose.msra.mxu0 0.0
        %3767 = vmatprep.subr.mxu0 0.0
        %3768 = vmatpush1.xpose.msra.mxu0 0.0
        %3769 = vmatprep.subr.mxu0 0.0
        %3770 = vmatpush1.xpose.msra.mxu0 0.0
        %3771 = vmatprep.subr.mxu0 0.0
        %3772 = vmatpush1.xpose.msra.mxu0 0.0
        %3773 = vmatprep.subr.mxu0 0.0
        %3774 = vmatpush1.xpose.msra.mxu0 0.0
        %3775 = vmatprep.subr.mxu0 0.0
        %3776 = vmatpush1.xpose.msra.mxu0 0.0
        %3777 = vmatprep.subr.mxu0 0.0
        %3778 = vmatpush1.xpose.msra.mxu0 0.0
        %3779 = vmatprep.subr.mxu0 0.0
        %3780 = vmatpush1.xpose.msra.mxu0 0.0
        %3781 = vmatprep.subr.mxu0 0.0
        %3782 = vmatpush1.xpose.msra.mxu0 0.0
        %3783 = vmatprep.subr.mxu0 0.0
        %3784 = vmatpush1.xpose.msra.mxu0 0.0
        %3785 = vmatprep.subr.mxu0 0.0
        %3786 = vmatpush1.xpose.msra.mxu0 0.0
        %3787 = vmatprep.subr.mxu0 0.0
        %3788 = vmatpush1.xpose.msra.mxu0 0.0
        %3789 = vmatprep.subr.mxu0 0.0
        %3790 = vmatpush1.xpose.msra.mxu0 0.0
        %3791 = vmatprep.subr.mxu0 0.0
        %3792 = vmatpush1.xpose.msra.mxu0 0.0
        %3793 = vmatprep.subr.mxu0 0.0
        %3794 = vmatpush1.xpose.msra.mxu0 0.0
        %3795 = vmatprep.subr.mxu0 0.0
        %3796 = vmatpush1.xpose.msra.mxu0 0.0
        %3797 = vmatprep.subr.mxu0 0.0
        %3798 = vmatpush1.xpose.msra.mxu0 0.0
        %3799 = vmatprep.subr.mxu0 0.0
        %3800 = vmatpush1.xpose.msra.mxu0 0.0
        %3801 = vmatprep.subr.mxu0 0.0
        %3802 = vmatpush1.xpose.msra.mxu0 0.0
        %3803 = vmatprep.subr.mxu0 0.0
        %3804 = vmatpush1.xpose.msra.mxu0 0.0
        %3805 = vmatprep.subr.mxu0 0.0
        %3806 = vmatpush1.xpose.msra.mxu0 0.0
        %3807 = vmatprep.subr.mxu0 0.0
        %3808 = vmatpush1.xpose.msra.mxu0 0.0
        %3809 = vmatprep.subr.mxu0 0.0
        %3810 = vmatpush1.xpose.msra.mxu0 0.0
        %3811 = vmatprep.subr.mxu0 0.0
        %3812 = vmatpush1.xpose.msra.mxu0 0.0
        %3813 = vmatprep.subr.mxu0 0.0
        %3814 = vmatpush1.xpose.msra.mxu0 0.0
        %3815 = vmatprep.subr.mxu0 0.0
        %3816 = vmatpush1.xpose.msra.mxu0 0.0
        %3817 = vmatprep.subr.mxu0 0.0
        %3818 = vmatpush1.xpose.msra.mxu0 0.0
        %3819 = vmatprep.subr.mxu0 0.0
        %3820 = vmatpush1.xpose.msra.mxu0 0.0
        %3821 = vmatprep.subr.mxu0 0.0
        %3822 = vmatpush1.xpose.msra.mxu0 0.0
        %3823 = vmatprep.mubr.f32.mxu0 0.0
        %3824 = vmatmul.mubr.f32.gmra.mrb[0].mxu0 %v3755
        %v3825 = vpop.f32.mrb[0].mxu0
        %v3826 = vadd.f32 0.0, %v3825
        %v3827 = vpop.f32.mrb[0].mxu0
        %3828 = vdwg.mxu0
        %v3829 = vmul.f32 %v3748, 0.088388346
        %v3830 = vmul.f32 %v3826, 0.088388346
        %v3831 = vsel %vm654, %v3829, -inf
        %3832 = vmax.xlane.f32.xlu0 %v3831
        %v3833 = vpop.xlane.xlu0 %3832
        %v3834 = vsel %vm654, %v3830, -inf
        %3835 = vmax.xlane.f32.xlu0 %v3834
        %v3836 = vpop.xlane.xlu0 %3835
        %v3837 = vsub.f32 %v3833, 1.0
        %v3838 = vsub.f32 %v3836, 1.0
        %v3839 = vsub.f32 %v3833, 0.35355338
        %v3840 = vsub.f32 %v3836, 0.35355338
        %v3841 = vsub.f32 %v3829, %v3837
        %v3842 = vsub.f32 %v3830, %v3838
        %v3843 = vmax.f32 %v3841, 0.0
        %v3844 = vmax.f32 %v3842, 0.0
        %v3845 = vmul.f32 %v3843, %v3843
        %v3846 = vmul.f32 %v3844, %v3844
        %v3847 = vsel %vm654, %v3845, 0.0
        %3848 = vadd.xlane.f32.xlu0 %v3847
        %v3849 = vpop.xlane.xlu0 %3848
        %v3850 = vsel %vm654, %v3846, 0.0
        %3851 = vadd.xlane.f32.xlu0 %v3850
        %v3852 = vpop.xlane.xlu0 %3851
        %v3853 = vsub.f32 %v3849, 1.0
        %v3854 = vsub.f32 %v3852, 1.0
        %v3855 = vsub.f32 %v3839, %v3837
        %v3856 = vsub.f32 %v3840, %v3838
        %v3857 = vmul.f32 %v3855, 0.5
        %v3858 = vmul.f32 %v3856, 0.5
        %v3859 = vadd.f32 %v3837, %v3857
        %v3860 = vadd.f32 %v3838, %v3858
        %v3861 = vsub.f32 %v3829, %v3859
        %v3862 = vsub.f32 %v3830, %v3860
        %v3863 = vmax.f32 %v3861, 0.0
        %v3864 = vmax.f32 %v3862, 0.0
        %v3865 = vmul.f32 %v3863, %v3863
        %v3866 = vmul.f32 %v3864, %v3864
        %v3867 = vsel %vm654, %v3865, 0.0
        %3868 = vadd.xlane.f32.xlu0 %v3867
        %v3869 = vpop.xlane.xlu0 %3868
        %v3870 = vsel %vm654, %v3866, 0.0
        %3871 = vadd.xlane.f32.xlu0 %v3870
        %v3872 = vpop.xlane.xlu0 %3871
        %v3873 = vsub.f32 %v3869, 1.0
        %v3874 = vsub.f32 %v3872, 1.0
        %v3875 = vmul.f32 %v3873, %v3853
        %v3876 = vmul.f32 %v3874, %v3854
        %vm3877 = vcmp.ge.f32.partialorder %v3875, 0.0
        %vm3878 = vcmp.ge.f32.partialorder %v3876, 0.0
        %v3879 = vsel %vm3877, %v3859, %v3837
        %v3880 = vsel %vm3878, %v3860, %v3838
        %v3881 = vmul.f32 %v3857, 0.5
        %v3882 = vmul.f32 %v3858, 0.5
        %v3883 = vadd.f32 %v3879, %v3881
        %v3884 = vadd.f32 %v3880, %v3882
        %v3885 = vsub.f32 %v3829, %v3883
        %v3886 = vsub.f32 %v3830, %v3884
        %v3887 = vmax.f32 %v3885, 0.0
        %v3888 = vmax.f32 %v3886, 0.0
        %v3889 = vmul.f32 %v3887, %v3887
        %v3890 = vmul.f32 %v3888, %v3888
        %v3891 = vsel %vm654, %v3889, 0.0
        %3892 = vadd.xlane.f32.xlu0 %v3891
        %v3893 = vpop.xlane.xlu0 %3892
        %v3894 = vsel %vm654, %v3890, 0.0
        %3895 = vadd.xlane.f32.xlu0 %v3894
        %v3896 = vpop.xlane.xlu0 %3895
        %v3897 = vsub.f32 %v3893, 1.0
        %v3898 = vsub.f32 %v3896, 1.0
        %v3899 = vmul.f32 %v3897, %v3853
        %v3900 = vmul.f32 %v3898, %v3854
        %vm3901 = vcmp.ge.f32.partialorder %v3899, 0.0
        %vm3902 = vcmp.ge.f32.partialorder %v3900, 0.0
        %v3903 = vsel %vm3901, %v3883, %v3879
        %v3904 = vsel %vm3902, %v3884, %v3880
        %v3905 = vmul.f32 %v3881, 0.5
        %v3906 = vmul.f32 %v3882, 0.5
        %v3907 = vadd.f32 %v3903, %v3905
        %v3908 = vadd.f32 %v3904, %v3906
        %v3909 = vsub.f32 %v3829, %v3907
        %v3910 = vsub.f32 %v3830, %v3908
        %v3911 = vmax.f32 %v3909, 0.0
        %v3912 = vmax.f32 %v3910, 0.0
        %v3913 = vmul.f32 %v3911, %v3911
        %v3914 = vmul.f32 %v3912, %v3912
        %v3915 = vsel %vm654, %v3913, 0.0
        %3916 = vadd.xlane.f32.xlu0 %v3915
        %v3917 = vpop.xlane.xlu0 %3916
        %v3918 = vsel %vm654, %v3914, 0.0
        %3919 = vadd.xlane.f32.xlu0 %v3918
        %v3920 = vpop.xlane.xlu0 %3919
        %v3921 = vsub.f32 %v3917, 1.0
        %v3922 = vsub.f32 %v3920, 1.0
        %v3923 = vmul.f32 %v3921, %v3853
        %v3924 = vmul.f32 %v3922, %v3854
        %vm3925 = vcmp.ge.f32.partialorder %v3923, 0.0
        %vm3926 = vcmp.ge.f32.partialorder %v3924, 0.0
        %v3927 = vsel %vm3925, %v3907, %v3903
        %v3928 = vsel %vm3926, %v3908, %v3904
        %v3929 = vmul.f32 %v3905, 0.5
        %v3930 = vmul.f32 %v3906, 0.5
        %v3931 = vadd.f32 %v3927, %v3929
        %v3932 = vadd.f32 %v3928, %v3930
        %v3933 = vsub.f32 %v3829, %v3931
        %v3934 = vsub.f32 %v3830, %v3932
        %v3935 = vmax.f32 %v3933, 0.0
        %v3936 = vmax.f32 %v3934, 0.0
        %v3937 = vmul.f32 %v3935, %v3935
        %v3938 = vmul.f32 %v3936, %v3936
        %v3939 = vsel %vm654, %v3937, 0.0
        %3940 = vadd.xlane.f32.xlu0 %v3939
        %v3941 = vpop.xlane.xlu0 %3940
        %v3942 = vsel %vm654, %v3938, 0.0
        %3943 = vadd.xlane.f32.xlu0 %v3942
        %v3944 = vpop.xlane.xlu0 %3943
        %v3945 = vsub.f32 %v3941, 1.0
        %v3946 = vsub.f32 %v3944, 1.0
        %v3947 = vmul.f32 %v3945, %v3853
        %v3948 = vmul.f32 %v3946, %v3854
        %vm3949 = vcmp.ge.f32.partialorder %v3947, 0.0
        %vm3950 = vcmp.ge.f32.partialorder %v3948, 0.0
        %v3951 = vsel %vm3949, %v3931, %v3927
        %v3952 = vsel %vm3950, %v3932, %v3928
        %v3953 = vmul.f32 %v3929, 0.5
        %v3954 = vmul.f32 %v3930, 0.5
        %v3955 = vadd.f32 %v3951, %v3953
        %v3956 = vadd.f32 %v3952, %v3954
        %v3957 = vsub.f32 %v3829, %v3955
        %v3958 = vsub.f32 %v3830, %v3956
        %v3959 = vmax.f32 %v3957, 0.0
        %v3960 = vmax.f32 %v3958, 0.0
        %v3961 = vmul.f32 %v3959, %v3959
        %v3962 = vmul.f32 %v3960, %v3960
        %v3963 = vsel %vm654, %v3961, 0.0
        %3964 = vadd.xlane.f32.xlu0 %v3963
        %v3965 = vpop.xlane.xlu0 %3964
        %v3966 = vsel %vm654, %v3962, 0.0
        %3967 = vadd.xlane.f32.xlu0 %v3966
        %v3968 = vpop.xlane.xlu0 %3967
        %v3969 = vsub.f32 %v3965, 1.0
        %v3970 = vsub.f32 %v3968, 1.0
        %v3971 = vmul.f32 %v3969, %v3853
        %v3972 = vmul.f32 %v3970, %v3854
        %vm3973 = vcmp.ge.f32.partialorder %v3971, 0.0
        %vm3974 = vcmp.ge.f32.partialorder %v3972, 0.0
        %v3975 = vsel %vm3973, %v3955, %v3951
        %v3976 = vsel %vm3974, %v3956, %v3952
        %v3977 = vmul.f32 %v3953, 0.5
        %v3978 = vmul.f32 %v3954, 0.5
        %v3979 = vadd.f32 %v3975, %v3977
        %v3980 = vadd.f32 %v3976, %v3978
        %v3981 = vsub.f32 %v3829, %v3979
        %v3982 = vsub.f32 %v3830, %v3980
        %v3983 = vmax.f32 %v3981, 0.0
        %v3984 = vmax.f32 %v3982, 0.0
        %v3985 = vmul.f32 %v3983, %v3983
        %v3986 = vmul.f32 %v3984, %v3984
        %v3987 = vsel %vm654, %v3985, 0.0
        %3988 = vadd.xlane.f32.xlu0 %v3987
        %v3989 = vpop.xlane.xlu0 %3988
        %v3990 = vsel %vm654, %v3986, 0.0
        %3991 = vadd.xlane.f32.xlu0 %v3990
        %v3992 = vpop.xlane.xlu0 %3991
        %v3993 = vsub.f32 %v3989, 1.0
        %v3994 = vsub.f32 %v3992, 1.0
        %v3995 = vmul.f32 %v3993, %v3853
        %v3996 = vmul.f32 %v3994, %v3854
        %vm3997 = vcmp.ge.f32.partialorder %v3995, 0.0
        %vm3998 = vcmp.ge.f32.partialorder %v3996, 0.0
        %v3999 = vsel %vm3997, %v3979, %v3975
        %v4000 = vsel %vm3998, %v3980, %v3976
        %v4001 = vmul.f32 %v3977, 0.5
        %v4002 = vmul.f32 %v3978, 0.5
        %v4003 = vadd.f32 %v3999, %v4001
        %v4004 = vadd.f32 %v4000, %v4002
        %v4005 = vsub.f32 %v3829, %v4003
        %v4006 = vsub.f32 %v3830, %v4004
        %v4007 = vmax.f32 %v4005, 0.0
        %v4008 = vmax.f32 %v4006, 0.0
        %v4009 = vmul.f32 %v4007, %v4007
        %v4010 = vmul.f32 %v4008, %v4008
        %v4011 = vsel %vm654, %v4009, 0.0
        %4012 = vadd.xlane.f32.xlu0 %v4011
        %v4013 = vpop.xlane.xlu0 %4012
        %v4014 = vsel %vm654, %v4010, 0.0
        %4015 = vadd.xlane.f32.xlu0 %v4014
        %v4016 = vpop.xlane.xlu0 %4015
        %v4017 = vsub.f32 %v4013, 1.0
        %v4018 = vsub.f32 %v4016, 1.0
        %v4019 = vmul.f32 %v4017, %v3853
        %v4020 = vmul.f32 %v4018, %v3854
        %vm4021 = vcmp.ge.f32.partialorder %v4019, 0.0
        %vm4022 = vcmp.ge.f32.partialorder %v4020, 0.0
        %v4023 = vsel %vm4021, %v4003, %v3999
        %v4024 = vsel %vm4022, %v4004, %v4000
        %v4025 = vmul.f32 %v4001, 0.5
        %v4026 = vmul.f32 %v4002, 0.5
        %v4027 = vadd.f32 %v4023, %v4025
        %v4028 = vadd.f32 %v4024, %v4026
        %v4029 = vsub.f32 %v3829, %v4027
        %v4030 = vsub.f32 %v3830, %v4028
        %v4031 = vmax.f32 %v4029, 0.0
        %v4032 = vmax.f32 %v4030, 0.0
        %v4033 = vmul.f32 %v4031, %v4031
        %v4034 = vmul.f32 %v4032, %v4032
        %v4035 = vsel %vm654, %v4033, 0.0
        %4036 = vadd.xlane.f32.xlu0 %v4035
        %v4037 = vpop.xlane.xlu0 %4036
        %v4038 = vsel %vm654, %v4034, 0.0
        %4039 = vadd.xlane.f32.xlu0 %v4038
        %v4040 = vpop.xlane.xlu0 %4039
        %v4041 = vsub.f32 %v4037, 1.0
        %v4042 = vsub.f32 %v4040, 1.0
        %v4043 = vmul.f32 %v4041, %v3853
        %v4044 = vmul.f32 %v4042, %v3854
        %vm4045 = vcmp.ge.f32.partialorder %v4043, 0.0
        %vm4046 = vcmp.ge.f32.partialorder %v4044, 0.0
        %v4047 = vsel %vm4045, %v4027, %v4023
        %v4048 = vsel %vm4046, %v4028, %v4024
        %v4049 = vmul.f32 %v4025, 0.5
        %v4050 = vmul.f32 %v4026, 0.5
        %v4051 = vadd.f32 %v4047, %v4049
        %v4052 = vadd.f32 %v4048, %v4050
        %v4053 = vsub.f32 %v3829, %v4051
        %v4054 = vsub.f32 %v3830, %v4052
        %v4055 = vmax.f32 %v4053, 0.0
        %v4056 = vmax.f32 %v4054, 0.0
        %v4057 = vmul.f32 %v4055, %v4055
        %v4058 = vmul.f32 %v4056, %v4056
        %v4059 = vsel %vm654, %v4057, 0.0
        %4060 = vadd.xlane.f32.xlu0 %v4059
        %v4061 = vpop.xlane.xlu0 %4060
        %v4062 = vsel %vm654, %v4058, 0.0
        %4063 = vadd.xlane.f32.xlu0 %v4062
        %v4064 = vpop.xlane.xlu0 %4063
        %v4065 = vsub.f32 %v4061, 1.0
        %v4066 = vsub.f32 %v4064, 1.0
        %v4067 = vmul.f32 %v4065, %v3853
        %v4068 = vmul.f32 %v4066, %v3854
        %vm4069 = vcmp.ge.f32.partialorder %v4067, 0.0
        %vm4070 = vcmp.ge.f32.partialorder %v4068, 0.0
        %v4071 = vsel %vm4069, %v4051, %v4047
        %v4072 = vsel %vm4070, %v4052, %v4048
        %v4073 = vmul.f32 %v4049, 0.5
        %v4074 = vmul.f32 %v4050, 0.5
        %v4075 = vadd.f32 %v4071, %v4073
        %v4076 = vadd.f32 %v4072, %v4074
        %v4077 = vsub.f32 %v3829, %v4075
        %v4078 = vsub.f32 %v3830, %v4076
        %v4079 = vmax.f32 %v4077, 0.0
        %v4080 = vmax.f32 %v4078, 0.0
        %v4081 = vmul.f32 %v4079, %v4079
        %v4082 = vmul.f32 %v4080, %v4080
        %v4083 = vsel %vm654, %v4081, 0.0
        %4084 = vadd.xlane.f32.xlu0 %v4083
        %v4085 = vpop.xlane.xlu0 %4084
        %v4086 = vsel %vm654, %v4082, 0.0
        %4087 = vadd.xlane.f32.xlu0 %v4086
        %v4088 = vpop.xlane.xlu0 %4087
        %v4089 = vsub.f32 %v4085, 1.0
        %v4090 = vsub.f32 %v4088, 1.0
        %v4091 = vmul.f32 %v4089, %v3853
        %v4092 = vmul.f32 %v4090, %v3854
        %vm4093 = vcmp.ge.f32.partialorder %v4091, 0.0
        %vm4094 = vcmp.ge.f32.partialorder %v4092, 0.0
        %v4095 = vsel %vm4093, %v4075, %v4071
        %v4096 = vsel %vm4094, %v4076, %v4072
        %v4097 = vmul.f32 %v4073, 0.5
        %v4098 = vmul.f32 %v4074, 0.5
        %v4099 = vadd.f32 %v4095, %v4097
        %v4100 = vadd.f32 %v4096, %v4098
        %v4101 = vsub.f32 %v3829, %v4099
        %v4102 = vsub.f32 %v3830, %v4100
        %v4103 = vmax.f32 %v4101, 0.0
        %v4104 = vmax.f32 %v4102, 0.0
        %v4105 = vmul.f32 %v4103, %v4103
        %v4106 = vmul.f32 %v4104, %v4104
        %v4107 = vsel %vm654, %v4105, 0.0
        %4108 = vadd.xlane.f32.xlu0 %v4107
        %v4109 = vpop.xlane.xlu0 %4108
        %v4110 = vsel %vm654, %v4106, 0.0
        %4111 = vadd.xlane.f32.xlu0 %v4110
        %v4112 = vpop.xlane.xlu0 %4111
        %v4113 = vsub.f32 %v4109, 1.0
        %v4114 = vsub.f32 %v4112, 1.0
        %v4115 = vmul.f32 %v4113, %v3853
        %v4116 = vmul.f32 %v4114, %v3854
        %vm4117 = vcmp.ge.f32.partialorder %v4115, 0.0
        %vm4118 = vcmp.ge.f32.partialorder %v4116, 0.0
        %v4119 = vsel %vm4117, %v4099, %v4095
        %v4120 = vsel %vm4118, %v4100, %v4096
        %v4121 = vmul.f32 %v4097, 0.5
        %v4122 = vmul.f32 %v4098, 0.5
        %v4123 = vadd.f32 %v4119, %v4121
        %v4124 = vadd.f32 %v4120, %v4122
        %v4125 = vsub.f32 %v3829, %v4123
        %v4126 = vsub.f32 %v3830, %v4124
        %v4127 = vmax.f32 %v4125, 0.0
        %v4128 = vmax.f32 %v4126, 0.0
        %v4129 = vmul.f32 %v4127, %v4127
        %v4130 = vmul.f32 %v4128, %v4128
        %v4131 = vsel %vm654, %v4129, 0.0
        %4132 = vadd.xlane.f32.xlu0 %v4131
        %v4133 = vpop.xlane.xlu0 %4132
        %v4134 = vsel %vm654, %v4130, 0.0
        %4135 = vadd.xlane.f32.xlu0 %v4134
        %v4136 = vpop.xlane.xlu0 %4135
        %v4137 = vsub.f32 %v4133, 1.0
        %v4138 = vsub.f32 %v4136, 1.0
        %v4139 = vmul.f32 %v4137, %v3853
        %v4140 = vmul.f32 %v4138, %v3854
        %vm4141 = vcmp.ge.f32.partialorder %v4139, 0.0
        %vm4142 = vcmp.ge.f32.partialorder %v4140, 0.0
        %v4143 = vsel %vm4141, %v4123, %v4119
        %v4144 = vsel %vm4142, %v4124, %v4120
        %v4145 = vmul.f32 %v4121, 0.5
        %v4146 = vmul.f32 %v4122, 0.5
        %v4147 = vadd.f32 %v4143, %v4145
        %v4148 = vadd.f32 %v4144, %v4146
        %v4149 = vsub.f32 %v3829, %v4147
        %v4150 = vsub.f32 %v3830, %v4148
        %v4151 = vmax.f32 %v4149, 0.0
        %v4152 = vmax.f32 %v4150, 0.0
        %v4153 = vmul.f32 %v4151, %v4151
        %v4154 = vmul.f32 %v4152, %v4152
        %v4155 = vsel %vm654, %v4153, 0.0
        %4156 = vadd.xlane.f32.xlu0 %v4155
        %v4157 = vpop.xlane.xlu0 %4156
        %v4158 = vsel %vm654, %v4154, 0.0
        %4159 = vadd.xlane.f32.xlu0 %v4158
        %v4160 = vpop.xlane.xlu0 %4159
        %v4161 = vsub.f32 %v4157, 1.0
        %v4162 = vsub.f32 %v4160, 1.0
        %v4163 = vmul.f32 %v4161, %v3853
        %v4164 = vmul.f32 %v4162, %v3854
        %vm4165 = vcmp.ge.f32.partialorder %v4163, 0.0
        %vm4166 = vcmp.ge.f32.partialorder %v4164, 0.0
        %v4167 = vsel %vm4165, %v4147, %v4143
        %v4168 = vsel %vm4166, %v4148, %v4144
        %v4169 = vmul.f32 %v4145, 0.5
        %v4170 = vmul.f32 %v4146, 0.5
        %v4171 = vadd.f32 %v4167, %v4169
        %v4172 = vadd.f32 %v4168, %v4170
        %v4173 = vsub.f32 %v3829, %v4171
        %v4174 = vsub.f32 %v3830, %v4172
        %v4175 = vmax.f32 %v4173, 0.0
        %v4176 = vmax.f32 %v4174, 0.0
        %v4177 = vmul.f32 %v4175, %v4175
        %v4178 = vmul.f32 %v4176, %v4176
        %v4179 = vsel %vm654, %v4177, 0.0
        %4180 = vadd.xlane.f32.xlu0 %v4179
        %v4181 = vpop.xlane.xlu0 %4180
        %v4182 = vsel %vm654, %v4178, 0.0
        %4183 = vadd.xlane.f32.xlu0 %v4182
        %v4184 = vpop.xlane.xlu0 %4183
        %v4185 = vsub.f32 %v4181, 1.0
        %v4186 = vsub.f32 %v4184, 1.0
        %v4187 = vmul.f32 %v4185, %v3853
        %v4188 = vmul.f32 %v4186, %v3854
        %vm4189 = vcmp.ge.f32.partialorder %v4187, 0.0
        %vm4190 = vcmp.ge.f32.partialorder %v4188, 0.0
        %v4191 = vsel %vm4189, %v4171, %v4167
        %v4192 = vsel %vm4190, %v4172, %v4168
        %v4193 = vmul.f32 %v4169, 0.5
        %v4194 = vmul.f32 %v4170, 0.5
        %v4195 = vadd.f32 %v4191, %v4193
        %v4196 = vadd.f32 %v4192, %v4194
        %v4197 = vsub.f32 %v3829, %v4195
        %v4198 = vsub.f32 %v3830, %v4196
        %v4199 = vmax.f32 %v4197, 0.0
        %v4200 = vmax.f32 %v4198, 0.0
        %v4201 = vmul.f32 %v4199, %v4199
        %v4202 = vmul.f32 %v4200, %v4200
        %v4203 = vsel %vm654, %v4201, 0.0
        %4204 = vadd.xlane.f32.xlu0 %v4203
        %v4205 = vpop.xlane.xlu0 %4204
        %v4206 = vsel %vm654, %v4202, 0.0
        %4207 = vadd.xlane.f32.xlu0 %v4206
        %v4208 = vpop.xlane.xlu0 %4207
        %v4209 = vsub.f32 %v4205, 1.0
        %v4210 = vsub.f32 %v4208, 1.0
        %v4211 = vmul.f32 %v4209, %v3853
        %v4212 = vmul.f32 %v4210, %v3854
        %vm4213 = vcmp.ge.f32.partialorder %v4211, 0.0
        %vm4214 = vcmp.ge.f32.partialorder %v4212, 0.0
        %v4215 = vsel %vm4213, %v4195, %v4191
        %v4216 = vsel %vm4214, %v4196, %v4192
        %v4217 = vmul.f32 %v4193, 0.5
        %v4218 = vmul.f32 %v4194, 0.5
        %v4219 = vadd.f32 %v4215, %v4217
        %v4220 = vadd.f32 %v4216, %v4218
        %v4221 = vsub.f32 %v3829, %v4219
        %v4222 = vsub.f32 %v3830, %v4220
        %v4223 = vmax.f32 %v4221, 0.0
        %v4224 = vmax.f32 %v4222, 0.0
        %v4225 = vmul.f32 %v4223, %v4223
        %v4226 = vmul.f32 %v4224, %v4224
        %v4227 = vsel %vm654, %v4225, 0.0
        %4228 = vadd.xlane.f32.xlu0 %v4227
        %v4229 = vpop.xlane.xlu0 %4228
        %v4230 = vsel %vm654, %v4226, 0.0
        %4231 = vadd.xlane.f32.xlu0 %v4230
        %v4232 = vpop.xlane.xlu0 %4231
        %v4233 = vsub.f32 %v4229, 1.0
        %v4234 = vsub.f32 %v4232, 1.0
        %v4235 = vmul.f32 %v4233, %v3853
        %v4236 = vmul.f32 %v4234, %v3854
        %vm4237 = vcmp.ge.f32.partialorder %v4235, 0.0
        %vm4238 = vcmp.ge.f32.partialorder %v4236, 0.0
        %v4239 = vsel %vm4237, %v4219, %v4215
        %v4240 = vsel %vm4238, %v4220, %v4216
        %v4241 = vmul.f32 %v4217, 0.5
        %v4242 = vmul.f32 %v4218, 0.5
        %v4243 = vadd.f32 %v4239, %v4241
        %v4244 = vadd.f32 %v4240, %v4242
        %v4245 = vsub.f32 %v3829, %v4243
        %v4246 = vsub.f32 %v3830, %v4244
        %v4247 = vmax.f32 %v4245, 0.0
        %v4248 = vmax.f32 %v4246, 0.0
        %v4249 = vmul.f32 %v4247, %v4247
        %v4250 = vmul.f32 %v4248, %v4248
        %v4251 = vsel %vm654, %v4249, 0.0
        %4252 = vadd.xlane.f32.xlu0 %v4251
        %v4253 = vpop.xlane.xlu0 %4252
        %v4254 = vsel %vm654, %v4250, 0.0
        %4255 = vadd.xlane.f32.xlu0 %v4254
        %v4256 = vpop.xlane.xlu0 %4255
        %v4257 = vsub.f32 %v4253, 1.0
        %v4258 = vsub.f32 %v4256, 1.0
        %v4259 = vmul.f32 %v4257, %v3853
        %v4260 = vmul.f32 %v4258, %v3854
        %vm4261 = vcmp.ge.f32.partialorder %v4259, 0.0
        %vm4262 = vcmp.ge.f32.partialorder %v4260, 0.0
        %v4263 = vsel %vm4261, %v4243, %v4239
        %v4264 = vsel %vm4262, %v4244, %v4240
        %v4265 = vmul.f32 %v4241, 0.5
        %v4266 = vmul.f32 %v4242, 0.5
        %v4267 = vadd.f32 %v4263, %v4265
        %v4268 = vadd.f32 %v4264, %v4266
        %v4269 = vsub.f32 %v3829, %v4267
        %v4270 = vsub.f32 %v3830, %v4268
        %v4271 = vmax.f32 %v4269, 0.0
        %v4272 = vmax.f32 %v4270, 0.0
        %v4273 = vmul.f32 %v4271, %v4271
        %v4274 = vmul.f32 %v4272, %v4272
        %v4275 = vsel %vm654, %v4273, 0.0
        %4276 = vadd.xlane.f32.xlu0 %v4275
        %v4277 = vpop.xlane.xlu0 %4276
        %v4278 = vsel %vm654, %v4274, 0.0
        %4279 = vadd.xlane.f32.xlu0 %v4278
        %v4280 = vpop.xlane.xlu0 %4279
        %v4281 = vsub.f32 %v4277, 1.0
        %v4282 = vsub.f32 %v4280, 1.0
        %v4283 = vmul.f32 %v4281, %v3853
        %v4284 = vmul.f32 %v4282, %v3854
        %vm4285 = vcmp.ge.f32.partialorder %v4283, 0.0
        %vm4286 = vcmp.ge.f32.partialorder %v4284, 0.0
        %v4287 = vsel %vm4285, %v4267, %v4263
        %v4288 = vsel %vm4286, %v4268, %v4264
        %v4289 = vmul.f32 %v4265, 0.5
        %v4290 = vmul.f32 %v4266, 0.5
        %v4291 = vadd.f32 %v4287, %v4289
        %v4292 = vadd.f32 %v4288, %v4290
        %v4293 = vsub.f32 %v3829, %v4291
        %v4294 = vsub.f32 %v3830, %v4292
        %v4295 = vmax.f32 %v4293, 0.0
        %v4296 = vmax.f32 %v4294, 0.0
        %v4297 = vmul.f32 %v4295, %v4295
        %v4298 = vmul.f32 %v4296, %v4296
        %v4299 = vsel %vm654, %v4297, 0.0
        %4300 = vadd.xlane.f32.xlu0 %v4299
        %v4301 = vpop.xlane.xlu0 %4300
        %v4302 = vsel %vm654, %v4298, 0.0
        %4303 = vadd.xlane.f32.xlu0 %v4302
        %v4304 = vpop.xlane.xlu0 %4303
        %v4305 = vsub.f32 %v4301, 1.0
        %v4306 = vsub.f32 %v4304, 1.0
        %v4307 = vmul.f32 %v4305, %v3853
        %v4308 = vmul.f32 %v4306, %v3854
        %vm4309 = vcmp.ge.f32.partialorder %v4307, 0.0
        %vm4310 = vcmp.ge.f32.partialorder %v4308, 0.0
        %v4311 = vsel %vm4309, %v4291, %v4287
        %v4312 = vsel %vm4310, %v4292, %v4288
        %v4313 = vmul.f32 %v4289, 0.5
        %v4314 = vmul.f32 %v4290, 0.5
        %v4315 = vadd.f32 %v4311, %v4313
        %v4316 = vadd.f32 %v4312, %v4314
        %v4317 = vsub.f32 %v3829, %v4315
        %v4318 = vsub.f32 %v3830, %v4316
        %v4319 = vmax.f32 %v4317, 0.0
        %v4320 = vmax.f32 %v4318, 0.0
        %v4321 = vmul.f32 %v4319, %v4319
        %v4322 = vmul.f32 %v4320, %v4320
        %v4323 = vsel %vm654, %v4321, 0.0
        %4324 = vadd.xlane.f32.xlu0 %v4323
        %v4325 = vpop.xlane.xlu0 %4324
        %v4326 = vsel %vm654, %v4322, 0.0
        %4327 = vadd.xlane.f32.xlu0 %v4326
        %v4328 = vpop.xlane.xlu0 %4327
        %v4329 = vsub.f32 %v4325, 1.0
        %v4330 = vsub.f32 %v4328, 1.0
        %v4331 = vmul.f32 %v4329, %v3853
        %v4332 = vmul.f32 %v4330, %v3854
        %vm4333 = vcmp.ge.f32.partialorder %v4331, 0.0
        %vm4334 = vcmp.ge.f32.partialorder %v4332, 0.0
        %v4335 = vsel %vm4333, %v4315, %v4311
        %v4336 = vsel %vm4334, %v4316, %v4312
        %v4337 = vmul.f32 %v4313, 0.5
        %v4338 = vmul.f32 %v4314, 0.5
        %v4339 = vadd.f32 %v4335, %v4337
        %v4340 = vadd.f32 %v4336, %v4338
        %v4341 = vsub.f32 %v3829, %v4339
        %v4342 = vsub.f32 %v3830, %v4340
        %v4343 = vmax.f32 %v4341, 0.0
        %v4344 = vmax.f32 %v4342, 0.0
        %v4345 = vmul.f32 %v4343, %v4343
        %v4346 = vmul.f32 %v4344, %v4344
        %v4347 = vsel %vm654, %v4345, 0.0
        %4348 = vadd.xlane.f32.xlu0 %v4347
        %v4349 = vpop.xlane.xlu0 %4348
        %v4350 = vsel %vm654, %v4346, 0.0
        %4351 = vadd.xlane.f32.xlu0 %v4350
        %v4352 = vpop.xlane.xlu0 %4351
        %v4353 = vsub.f32 %v4349, 1.0
        %v4354 = vsub.f32 %v4352, 1.0
        %v4355 = vmul.f32 %v4353, %v3853
        %v4356 = vmul.f32 %v4354, %v3854
        %vm4357 = vcmp.ge.f32.partialorder %v4355, 0.0
        %vm4358 = vcmp.ge.f32.partialorder %v4356, 0.0
        %v4359 = vsel %vm4357, %v4339, %v4335
        %v4360 = vsel %vm4358, %v4340, %v4336
        %v4361 = vmul.f32 %v4337, 0.5
        %v4362 = vmul.f32 %v4338, 0.5
        %v4363 = vadd.f32 %v4359, %v4361
        %v4364 = vadd.f32 %v4360, %v4362
        %v4365 = vsub.f32 %v3829, %v4363
        %v4366 = vsub.f32 %v3830, %v4364
        %v4367 = vmax.f32 %v4365, 0.0
        %v4368 = vmax.f32 %v4366, 0.0
        %v4369 = vmul.f32 %v4367, %v4367
        %v4370 = vmul.f32 %v4368, %v4368
        %v4371 = vsel %vm654, %v4369, 0.0
        %4372 = vadd.xlane.f32.xlu0 %v4371
        %v4373 = vpop.xlane.xlu0 %4372
        %v4374 = vsel %vm654, %v4370, 0.0
        %4375 = vadd.xlane.f32.xlu0 %v4374
        %v4376 = vpop.xlane.xlu0 %4375
        %v4377 = vsub.f32 %v4373, 1.0
        %v4378 = vsub.f32 %v4376, 1.0
        %v4379 = vmul.f32 %v4377, %v3853
        %v4380 = vmul.f32 %v4378, %v3854
        %vm4381 = vcmp.ge.f32.partialorder %v4379, 0.0
        %vm4382 = vcmp.ge.f32.partialorder %v4380, 0.0
        %v4383 = vsel %vm4381, %v4363, %v4359
        %v4384 = vsel %vm4382, %v4364, %v4360
        %v4385 = vmul.f32 %v4361, 0.5
        %v4386 = vmul.f32 %v4362, 0.5
        %v4387 = vadd.f32 %v4383, %v4385
        %v4388 = vadd.f32 %v4384, %v4386
        %v4389 = vsub.f32 %v3829, %v4387
        %v4390 = vsub.f32 %v3830, %v4388
        %v4391 = vmax.f32 %v4389, 0.0
        %v4392 = vmax.f32 %v4390, 0.0
        %v4393 = vmul.f32 %v4391, %v4391
        %v4394 = vmul.f32 %v4392, %v4392
        %v4395 = vsel %vm654, %v4393, 0.0
        %4396 = vadd.xlane.f32.xlu0 %v4395
        %v4397 = vpop.xlane.xlu0 %4396
        %v4398 = vsel %vm654, %v4394, 0.0
        %4399 = vadd.xlane.f32.xlu0 %v4398
        %v4400 = vpop.xlane.xlu0 %4399
        %v4401 = vsub.f32 %v4397, 1.0
        %v4402 = vsub.f32 %v4400, 1.0
        %v4403 = vmul.f32 %v4401, %v3853
        %v4404 = vmul.f32 %v4402, %v3854
        %vm4405 = vcmp.ge.f32.partialorder %v4403, 0.0
        %vm4406 = vcmp.ge.f32.partialorder %v4404, 0.0
        %v4407 = vsel %vm4405, %v4387, %v4383
        %v4408 = vsel %vm4406, %v4388, %v4384
        %v4409 = vmul.f32 %v4385, 0.5
        %v4410 = vmul.f32 %v4386, 0.5
        %v4411 = vadd.f32 %v4407, %v4409
        %v4412 = vadd.f32 %v4408, %v4410
        %v4413 = vsub.f32 %v3829, %v4411
        %v4414 = vsub.f32 %v3830, %v4412
        %v4415 = vmax.f32 %v4413, 0.0
        %v4416 = vmax.f32 %v4414, 0.0
        %v4417 = vmul.f32 %v4415, %v4415
        %v4418 = vmul.f32 %v4416, %v4416
        %v4419 = vsel %vm654, %v4417, 0.0
        %4420 = vadd.xlane.f32.xlu0 %v4419
        %v4421 = vpop.xlane.xlu0 %4420
        %v4422 = vsel %vm654, %v4418, 0.0
        %4423 = vadd.xlane.f32.xlu0 %v4422
        %v4424 = vpop.xlane.xlu0 %4423
        %v4425 = vsub.f32 %v4421, 1.0
        %v4426 = vsub.f32 %v4424, 1.0
        %v4427 = vmul.f32 %v4425, %v3853
        %v4428 = vmul.f32 %v4426, %v3854
        %vm4429 = vcmp.ge.f32.partialorder %v4427, 0.0
        %vm4430 = vcmp.ge.f32.partialorder %v4428, 0.0
        %v4431 = vsel %vm4429, %v4411, %v4407
        %v4432 = vsel %vm4430, %v4412, %v4408
        %v4433 = vmul.f32 %v4409, 0.5
        %v4434 = vmul.f32 %v4410, 0.5
        %v4435 = vadd.f32 %v4431, %v4433
        %v4436 = vadd.f32 %v4432, %v4434
        %v4437 = vsub.f32 %v3829, %v4435
        %v4438 = vsub.f32 %v3830, %v4436
        %v4439 = vmax.f32 %v4437, 0.0
        %v4440 = vmax.f32 %v4438, 0.0
        %v4441 = vmul.f32 %v4439, %v4439
        %v4442 = vmul.f32 %v4440, %v4440
        %v4443 = vsel %vm654, %v4441, 0.0
        %4444 = vadd.xlane.f32.xlu0 %v4443
        %v4445 = vpop.xlane.xlu0 %4444
        %v4446 = vsel %vm654, %v4442, 0.0
        %4447 = vadd.xlane.f32.xlu0 %v4446
        %v4448 = vpop.xlane.xlu0 %4447
        %v4449 = vsub.f32 %v4445, 1.0
        %v4450 = vsub.f32 %v4448, 1.0
        %v4451 = vmul.f32 %v4449, %v3853
        %v4452 = vmul.f32 %v4450, %v3854
        %vm4453 = vcmp.ge.f32.partialorder %v4451, 0.0
        %vm4454 = vcmp.ge.f32.partialorder %v4452, 0.0
        %v4455 = vsel %vm4453, %v4435, %v4431
        %v4456 = vsel %vm4454, %v4436, %v4432
        %v4457 = vmul.f32 %v4433, 0.5
        %v4458 = vmul.f32 %v4434, 0.5
        %v4459 = vadd.f32 %v4455, %v4457
        %v4460 = vadd.f32 %v4456, %v4458
        %v4461 = vsub.f32 %v3829, %v4459
        %v4462 = vsub.f32 %v3830, %v4460
        %v4463 = vmax.f32 %v4461, 0.0
        %v4464 = vmax.f32 %v4462, 0.0
        %v4465 = vmul.f32 %v4463, %v4463
        %v4466 = vmul.f32 %v4464, %v4464
        %v4467 = vsel %vm654, %v4465, 0.0
        %4468 = vadd.xlane.f32.xlu0 %v4467
        %v4469 = vpop.xlane.xlu0 %4468
        %v4470 = vsel %vm654, %v4466, 0.0
        %4471 = vadd.xlane.f32.xlu0 %v4470
        %v4472 = vpop.xlane.xlu0 %4471
        %v4473 = vsub.f32 %v4469, 1.0
        %v4474 = vsub.f32 %v4472, 1.0
        %v4475 = vmul.f32 %v4473, %v3853
        %v4476 = vmul.f32 %v4474, %v3854
        %vm4477 = vcmp.ge.f32.partialorder %v4475, 0.0
        %vm4478 = vcmp.ge.f32.partialorder %v4476, 0.0
        %v4479 = vsel %vm4477, %v4459, %v4455
        %v4480 = vsel %vm4478, %v4460, %v4456
        %v4481 = vmul.f32 %v4457, 0.5
        %v4482 = vmul.f32 %v4458, 0.5
        %v4483 = vadd.f32 %v4479, %v4481
        %v4484 = vadd.f32 %v4480, %v4482
        %v4485 = vsub.f32 %v3829, %v4483
        %v4486 = vsub.f32 %v3830, %v4484
        %v4487 = vmax.f32 %v4485, 0.0
        %v4488 = vmax.f32 %v4486, 0.0
        %v4489 = vmul.f32 %v4487, %v4487
        %v4490 = vmul.f32 %v4488, %v4488
        %v4491 = vsel %vm654, %v4489, 0.0
        %4492 = vadd.xlane.f32.xlu0 %v4491
        %v4493 = vpop.xlane.xlu0 %4492
        %v4494 = vsel %vm654, %v4490, 0.0
        %4495 = vadd.xlane.f32.xlu0 %v4494
        %v4496 = vpop.xlane.xlu0 %4495
        %v4497 = vsub.f32 %v4493, 1.0
        %v4498 = vsub.f32 %v4496, 1.0
        %v4499 = vmul.f32 %v4497, %v3853
        %v4500 = vmul.f32 %v4498, %v3854
        %vm4501 = vcmp.ge.f32.partialorder %v4499, 0.0
        %vm4502 = vcmp.ge.f32.partialorder %v4500, 0.0
        %v4503 = vsel %vm4501, %v4483, %v4479
        %v4504 = vsel %vm4502, %v4484, %v4480
        %v4505 = vmul.f32 %v4481, 0.5
        %v4506 = vmul.f32 %v4482, 0.5
        %v4507 = vadd.f32 %v4503, %v4505
        %v4508 = vadd.f32 %v4504, %v4506
        %v4509 = vsub.f32 %v3829, %v4507
        %v4510 = vsub.f32 %v3830, %v4508
        %v4511 = vmax.f32 %v4509, 0.0
        %v4512 = vmax.f32 %v4510, 0.0
        %v4513 = vmul.f32 %v4511, %v4511
        %v4514 = vmul.f32 %v4512, %v4512
        %v4515 = vsel %vm654, %v4513, 0.0
        %4516 = vadd.xlane.f32.xlu0 %v4515
        %v4517 = vpop.xlane.xlu0 %4516
        %v4518 = vsel %vm654, %v4514, 0.0
        %4519 = vadd.xlane.f32.xlu0 %v4518
        %v4520 = vpop.xlane.xlu0 %4519
        %v4521 = vsub.f32 %v4517, 1.0
        %v4522 = vsub.f32 %v4520, 1.0
        %v4523 = vmul.f32 %v4521, %v3853
        %v4524 = vmul.f32 %v4522, %v3854
        %vm4525 = vcmp.ge.f32.partialorder %v4523, 0.0
        %vm4526 = vcmp.ge.f32.partialorder %v4524, 0.0
        %v4527 = vsel %vm4525, %v4507, %v4503
        %v4528 = vsel %vm4526, %v4508, %v4504
        %v4529 = vmul.f32 %v4505, 0.5
        %v4530 = vmul.f32 %v4506, 0.5
        %v4531 = vadd.f32 %v4527, %v4529
        %v4532 = vadd.f32 %v4528, %v4530
        %v4533 = vsub.f32 %v3829, %v4531
        %v4534 = vsub.f32 %v3830, %v4532
        %v4535 = vmax.f32 %v4533, 0.0
        %v4536 = vmax.f32 %v4534, 0.0
        %v4537 = vmul.f32 %v4535, %v4535
        %v4538 = vmul.f32 %v4536, %v4536
        %v4539 = vsel %vm654, %v4537, 0.0
        %4540 = vadd.xlane.f32.xlu0 %v4539
        %v4541 = vpop.xlane.xlu0 %4540
        %v4542 = vsel %vm654, %v4538, 0.0
        %4543 = vadd.xlane.f32.xlu0 %v4542
        %v4544 = vpop.xlane.xlu0 %4543
        %v4545 = vsub.f32 %v4541, 1.0
        %v4546 = vsub.f32 %v4544, 1.0
        %v4547 = vmul.f32 %v4545, %v3853
        %v4548 = vmul.f32 %v4546, %v3854
        %vm4549 = vcmp.ge.f32.partialorder %v4547, 0.0
        %vm4550 = vcmp.ge.f32.partialorder %v4548, 0.0
        %v4551 = vsel %vm4549, %v4531, %v4527
        %v4552 = vsel %vm4550, %v4532, %v4528
        %v4553 = vmul.f32 %v4529, 0.5
        %v4554 = vmul.f32 %v4530, 0.5
        %v4555 = vadd.f32 %v4551, %v4553
        %v4556 = vadd.f32 %v4552, %v4554
        %v4557 = vsub.f32 %v3829, %v4555
        %v4558 = vsub.f32 %v3830, %v4556
        %v4559 = vmax.f32 %v4557, 0.0
        %v4560 = vmax.f32 %v4558, 0.0
        %v4561 = vmul.f32 %v4559, %v4559
        %v4562 = vmul.f32 %v4560, %v4560
        %v4563 = vsel %vm654, %v4561, 0.0
        %4564 = vadd.xlane.f32.xlu0 %v4563
        %v4565 = vpop.xlane.xlu0 %4564
        %v4566 = vsel %vm654, %v4562, 0.0
        %4567 = vadd.xlane.f32.xlu0 %v4566
        %v4568 = vpop.xlane.xlu0 %4567
        %v4569 = vrcp.pop %v4565
        %v4570 = vrcp.pop %v4568
        %v4571 = vmul.f32 %v4561, %v4569
        %v4572 = vmul.f32 %v4562, %v4570
        %4573 = vrot.lane.b32.xlu0 %v491, 32
        %v4574 = vpop.permute.xlu0 %4573
        %v4577 = vsel %vm654, %v4571, 0
        %4579 = vmatprep.subr.mxu0 0.0
        %4580 = vmatpush1.msra.mxu0 %v4574
        %4581 = vmatprep.subr.mxu0 0.0
        %4582 = vmatpush1.msra.mxu0 0.0
        %4583 = vmatprep.subr.mxu0 0.0
        %4584 = vmatpush1.msra.mxu0 0.0
        %4585 = vmatprep.subr.mxu0 0.0
        %4586 = vmatpush1.msra.mxu0 0.0
        %4587 = vmatprep.subr.mxu0 0.0
        %4588 = vmatpush1.msra.mxu0 0.0
        %4589 = vmatprep.subr.mxu0 0.0
        %4590 = vmatpush1.msra.mxu0 0.0
        %4591 = vmatprep.subr.mxu0 0.0
        %4592 = vmatpush1.msra.mxu0 0.0
        %4593 = vmatprep.subr.mxu0 0.0
        %4594 = vmatpush1.msra.mxu0 0.0
        %4595 = vmatprep.subr.mxu0 0.0
        %4596 = vmatpush1.msra.mxu0 0.0
        %4597 = vmatprep.subr.mxu0 0.0
        %4598 = vmatpush1.msra.mxu0 0.0
        %4599 = vmatprep.subr.mxu0 0.0
        %4600 = vmatpush1.msra.mxu0 0.0
        %4601 = vmatprep.subr.mxu0 0.0
        %4602 = vmatpush1.msra.mxu0 0.0
        %4603 = vmatprep.subr.mxu0 0.0
        %4604 = vmatpush1.msra.mxu0 0.0
        %4605 = vmatprep.subr.mxu0 0.0
        %4606 = vmatpush1.msra.mxu0 0.0
        %4607 = vmatprep.subr.mxu0 0.0
        %4608 = vmatpush1.msra.mxu0 0.0
        %4609 = vmatprep.subr.mxu0 0.0
        %4610 = vmatpush1.msra.mxu0 0.0
        %4611 = vmatprep.subr.mxu0 0.0
        %4612 = vmatpush1.msra.mxu0 0.0
        %4613 = vmatprep.subr.mxu0 0.0
        %4614 = vmatpush1.msra.mxu0 0.0
        %4615 = vmatprep.subr.mxu0 0.0
        %4616 = vmatpush1.msra.mxu0 0.0
        %4617 = vmatprep.subr.mxu0 0.0
        %4618 = vmatpush1.msra.mxu0 0.0
        %4619 = vmatprep.subr.mxu0 0.0
        %4620 = vmatpush1.msra.mxu0 0.0
        %4621 = vmatprep.subr.mxu0 0.0
        %4622 = vmatpush1.msra.mxu0 0.0
        %4623 = vmatprep.subr.mxu0 0.0
        %4624 = vmatpush1.msra.mxu0 0.0
        %4625 = vmatprep.subr.mxu0 0.0
        %4626 = vmatpush1.msra.mxu0 0.0
        %4627 = vmatprep.subr.mxu0 0.0
        %4628 = vmatpush1.msra.mxu0 0.0
        %4629 = vmatprep.subr.mxu0 0.0
        %4630 = vmatpush1.msra.mxu0 0.0
        %4631 = vmatprep.subr.mxu0 0.0
        %4632 = vmatpush1.msra.mxu0 0.0
        %4633 = vmatprep.subr.mxu0 0.0
        %4634 = vmatpush1.msra.mxu0 0.0
        %4635 = vmatprep.subr.mxu0 0.0
        %4636 = vmatpush1.msra.mxu0 0.0
        %4637 = vmatprep.subr.mxu0 0.0
        %4638 = vmatpush1.msra.mxu0 0.0
        %4639 = vmatprep.subr.mxu0 0.0
        %4640 = vmatpush1.msra.mxu0 0.0
        %4641 = vmatprep.subr.mxu0 0.0
        %4642 = vmatpush1.msra.mxu0 0.0
        %4643 = vmatprep.mubr.f32.mxu0 0.0
        %4644 = vmatmul.mubr.f32.gmra.mrb[0].mxu0 %v4577
        %v4645 = vpop.f32.mrb[0].mxu0
        %v4646 = vadd.f32 0.0, %v4645
        %v4647 = vpop.f32.mrb[0].mxu0
        %4648 = vdwg.mxu0
        %4649 = vrot.lane.b32.xlu0 %v496, 32
        %v4650 = vpop.permute.xlu0 %4649
        %v4653 = vsel %vm654, %v4572, 0
        %4655 = vmatprep.subr.mxu0 0.0
        %4656 = vmatpush1.msra.mxu0 %v4650
        %4657 = vmatprep.subr.mxu0 0.0
        %4658 = vmatpush1.msra.mxu0 0.0
        %4659 = vmatprep.subr.mxu0 0.0
        %4660 = vmatpush1.msra.mxu0 0.0
        %4661 = vmatprep.subr.mxu0 0.0
        %4662 = vmatpush1.msra.mxu0 0.0
        %4663 = vmatprep.subr.mxu0 0.0
        %4664 = vmatpush1.msra.mxu0 0.0
        %4665 = vmatprep.subr.mxu0 0.0
        %4666 = vmatpush1.msra.mxu0 0.0
        %4667 = vmatprep.subr.mxu0 0.0
        %4668 = vmatpush1.msra.mxu0 0.0
        %4669 = vmatprep.subr.mxu0 0.0
        %4670 = vmatpush1.msra.mxu0 0.0
        %4671 = vmatprep.subr.mxu0 0.0
        %4672 = vmatpush1.msra.mxu0 0.0
        %4673 = vmatprep.subr.mxu0 0.0
        %4674 = vmatpush1.msra.mxu0 0.0
        %4675 = vmatprep.subr.mxu0 0.0
        %4676 = vmatpush1.msra.mxu0 0.0
        %4677 = vmatprep.subr.mxu0 0.0
        %4678 = vmatpush1.msra.mxu0 0.0
        %4679 = vmatprep.subr.mxu0 0.0
        %4680 = vmatpush1.msra.mxu0 0.0
        %4681 = vmatprep.subr.mxu0 0.0
        %4682 = vmatpush1.msra.mxu0 0.0
        %4683 = vmatprep.subr.mxu0 0.0
        %4684 = vmatpush1.msra.mxu0 0.0
        %4685 = vmatprep.subr.mxu0 0.0
        %4686 = vmatpush1.msra.mxu0 0.0
        %4687 = vmatprep.subr.mxu0 0.0
        %4688 = vmatpush1.msra.mxu0 0.0
        %4689 = vmatprep.subr.mxu0 0.0
        %4690 = vmatpush1.msra.mxu0 0.0
        %4691 = vmatprep.subr.mxu0 0.0
        %4692 = vmatpush1.msra.mxu0 0.0
        %4693 = vmatprep.subr.mxu0 0.0
        %4694 = vmatpush1.msra.mxu0 0.0
        %4695 = vmatprep.subr.mxu0 0.0
        %4696 = vmatpush1.msra.mxu0 0.0
        %4697 = vmatprep.subr.mxu0 0.0
        %4698 = vmatpush1.msra.mxu0 0.0
        %4699 = vmatprep.subr.mxu0 0.0
        %4700 = vmatpush1.msra.mxu0 0.0
        %4701 = vmatprep.subr.mxu0 0.0
        %4702 = vmatpush1.msra.mxu0 0.0
        %4703 = vmatprep.subr.mxu0 0.0
        %4704 = vmatpush1.msra.mxu0 0.0
        %4705 = vmatprep.subr.mxu0 0.0
        %4706 = vmatpush1.msra.mxu0 0.0
        %4707 = vmatprep.subr.mxu0 0.0
        %4708 = vmatpush1.msra.mxu0 0.0
        %4709 = vmatprep.subr.mxu0 0.0
        %4710 = vmatpush1.msra.mxu0 0.0
        %4711 = vmatprep.subr.mxu0 0.0
        %4712 = vmatpush1.msra.mxu0 0.0
        %4713 = vmatprep.subr.mxu0 0.0
        %4714 = vmatpush1.msra.mxu0 0.0
        %4715 = vmatprep.subr.mxu0 0.0
        %4716 = vmatpush1.msra.mxu0 0.0
        %4717 = vmatprep.subr.mxu0 0.0
        %4718 = vmatpush1.msra.mxu0 0.0
        %4719 = vmatprep.mubr.f32.mxu0 0.0
        %4720 = vmatmul.mubr.f32.gmra.mrb[0].mxu0 %v4653
        %v4721 = vpop.f32.mrb[0].mxu0
        %v4722 = vadd.f32 0.0, %v4721
        %v4723 = vpop.f32.mrb[0].mxu0
        %4724 = vdwg.mxu0
        %4727 = vrot.lane.b32.xlu0 %v4646, 96
        %v4728 = vpop.permute.xlu0 %4727
        %4729 = vrot.lane.b32.xlu0 %v4722, 96
        %v4730 = vpop.permute.xlu0 %4729
        %vm4733 = vcmask 1048320
        %4734 = vst.msk [vmem:[#allocation2] sm:$0xff] %vm4733, %v4728
        %4735 = vst.msk [vmem:[#allocation2 + $0x8] sm:$0xff] %vm4733, %v4730
        %v4736 = vld [vmem:[#allocation2] sm:$0xff]
        %v4737 = vld [vmem:[#allocation2 + $0x8] sm:$0xff]
        %4738 = vadd.xlane.f32.xlu0 %v4736
        %v4739 = vpop.xlane.xlu0 %4738
        %4740 = vadd.xlane.f32.xlu0 %v4737
        %v4741 = vpop.xlane.xlu0 %4740
        %v4742 = vrcp.pop 128.0
        %v4743 = vmul.f32 %v4739, %v4742
        %v4744 = vmul.f32 %v4741, %v4742
        %v4745 = vsub.f32 %v4736, %v4743
        %v4746 = vsub.f32 %v4737, %v4744
        %v4747 = vmul.f32 %v4745, %v4745
        %v4748 = vmul.f32 %v4746, %v4746
        %4749 = vadd.xlane.f32.xlu0 %v4747
        %v4750 = vpop.xlane.xlu0 %4749
        %4751 = vadd.xlane.f32.xlu0 %v4748
        %v4752 = vpop.xlane.xlu0 %4751
        %v4753 = vmul.f32 %v4750, %v4742
        %v4754 = vmul.f32 %v4752, %v4742
        %v4755 = vadd.f32 %v4753, 1e-05
        %v4756 = vadd.f32 %v4754, 1e-05
        %v4757 = vrsqrt.pop %v4755
        %v4758 = vrsqrt.pop %v4756
        %v4759 = vmul.f32 %v4745, %v4757
        %v4760 = vmul.f32 %v4746, %v4758
        %v4761 = vld [vmem:[%s3] sm:$0x1]
        %v4763 = vlaneseq
        %v4764 = vshrl.u32 %v4763, 7
        %v4765 = vsub.s32 0, %v4764
        %v4766 = vrot.slane %v4761, %v4765
        %v4768 = vmul.f32 %v4759, %v4766
        %v4769 = vmul.f32 %v4760, %v4766
        %v4770 = vld [vmem:[%s4] sm:$0x1]
        %v4772 = vlaneseq
        %v4773 = vshrl.u32 %v4772, 7
        %v4774 = vsub.s32 0, %v4773
        %v4775 = vrot.slane %v4770, %v4774
        %v4777 = vadd.f32 %v4768, %v4775
        %v4778 = vadd.f32 %v4769, %v4775
        %v4779 = vld [vmem:[%s5] sm:$0xff]
        %v4780 = vld [vmem:[%s5 + $0x8] sm:$0xff]
        %v4781 = vld [vmem:[%s5 + $0x10] sm:$0xff]
        %v4782 = vld [vmem:[%s5 + $0x18] sm:$0xff]
        %v4783 = vld [vmem:[%s5 + $0x20] sm:$0xff]
        %v4784 = vld [vmem:[%s5 + $0x28] sm:$0xff]
        %v4785 = vld [vmem:[%s5 + $0x30] sm:$0xff]
        %v4786 = vld [vmem:[%s5 + $0x38] sm:$0xff]
        %v4787 = vld [vmem:[%s5 + $0x40] sm:$0xff]
        %v4788 = vld [vmem:[%s5 + $0x48] sm:$0xff]
        %v4789 = vld [vmem:[%s5 + $0x50] sm:$0xff]
        %v4790 = vld [vmem:[%s5 + $0x58] sm:$0xff]
        %v4791 = vld [vmem:[%s5 + $0x60] sm:$0xff]
        %v4792 = vld [vmem:[%s5 + $0x68] sm:$0xff]
        %v4793 = vld [vmem:[%s5 + $0x70] sm:$0xff]
        %v4794 = vld [vmem:[%s5 + $0x78] sm:$0xff]
        %v4795 = vld [vmem:[%s6] sm:$0x1]
        %v4797 = vlaneseq
        %v4798 = vshrl.u32 %v4797, 7
        %v4799 = vsub.s32 0, %v4798
        %v4800 = vrot.slane %v4795, %v4799
        %4802 = vmatprep.subr.mxu0 0.0
        %4803 = vmatpush1.msra.mxu0 %v4779
        %4804 = vmatprep.subr.mxu0 0.0
        %4805 = vmatpush1.msra.mxu0 %v4780
        %4806 = vmatprep.subr.mxu0 0.0
        %4807 = vmatpush1.msra.mxu0 %v4781
        %4808 = vmatprep.subr.mxu0 0.0
        %4809 = vmatpush1.msra.mxu0 %v4782
        %4810 = vmatprep.subr.mxu0 0.0
        %4811 = vmatpush1.msra.mxu0 %v4783
        %4812 = vmatprep.subr.mxu0 0.0
        %4813 = vmatpush1.msra.mxu0 %v4784
        %4814 = vmatprep.subr.mxu0 0.0
        %4815 = vmatpush1.msra.mxu0 %v4785
        %4816 = vmatprep.subr.mxu0 0.0
        %4817 = vmatpush1.msra.mxu0 %v4786
        %4818 = vmatprep.subr.mxu0 0.0
        %4819 = vmatpush1.msra.mxu0 %v4787
        %4820 = vmatprep.subr.mxu0 0.0
        %4821 = vmatpush1.msra.mxu0 %v4788
        %4822 = vmatprep.subr.mxu0 0.0
        %4823 = vmatpush1.msra.mxu0 %v4789
        %4824 = vmatprep.subr.mxu0 0.0
        %4825 = vmatpush1.msra.mxu0 %v4790
        %4826 = vmatprep.subr.mxu0 0.0
        %4827 = vmatpush1.msra.mxu0 %v4791
        %4828 = vmatprep.subr.mxu0 0.0
        %4829 = vmatpush1.msra.mxu0 %v4792
        %4830 = vmatprep.subr.mxu0 0.0
        %4831 = vmatpush1.msra.mxu0 %v4793
        %4832 = vmatprep.subr.mxu0 0.0
        %4833 = vmatpush1.msra.mxu0 %v4794
        %4834 = vmatprep.subr.mxu0 0.0
        %4835 = vmatpush1.msra.mxu0 0.0
        %4836 = vmatprep.subr.mxu0 0.0
        %4837 = vmatpush1.msra.mxu0 0.0
        %4838 = vmatprep.subr.mxu0 0.0
        %4839 = vmatpush1.msra.mxu0 0.0
        %4840 = vmatprep.subr.mxu0 0.0
        %4841 = vmatpush1.msra.mxu0 0.0
        %4842 = vmatprep.subr.mxu0 0.0
        %4843 = vmatpush1.msra.mxu0 0.0
        %4844 = vmatprep.subr.mxu0 0.0
        %4845 = vmatpush1.msra.mxu0 0.0
        %4846 = vmatprep.subr.mxu0 0.0
        %4847 = vmatpush1.msra.mxu0 0.0
        %4848 = vmatprep.subr.mxu0 0.0
        %4849 = vmatpush1.msra.mxu0 0.0
        %4850 = vmatprep.subr.mxu0 0.0
        %4851 = vmatpush1.msra.mxu0 0.0
        %4852 = vmatprep.subr.mxu0 0.0
        %4853 = vmatpush1.msra.mxu0 0.0
        %4854 = vmatprep.subr.mxu0 0.0
        %4855 = vmatpush1.msra.mxu0 0.0
        %4856 = vmatprep.subr.mxu0 0.0
        %4857 = vmatpush1.msra.mxu0 0.0
        %4858 = vmatprep.subr.mxu0 0.0
        %4859 = vmatpush1.msra.mxu0 0.0
        %4860 = vmatprep.subr.mxu0 0.0
        %4861 = vmatpush1.msra.mxu0 0.0
        %4862 = vmatprep.subr.mxu0 0.0
        %4863 = vmatpush1.msra.mxu0 0.0
        %4864 = vmatprep.subr.mxu0 0.0
        %4865 = vmatpush1.msra.mxu0 0.0
        %4866 = vmatprep.mubr.f32.mxu0 0.0
        %4867 = vmatmul.mubr.f32.gmra.mrb[0].mxu0 %v4777
        %v4868 = vpop.f32.mrb[0].mxu0
        %v4869 = vadd.f32 %v4800, %v4868
        %v4870 = vpop.f32.mrb[0].mxu0
        %4871 = vmatprep.mubr.f32.mxu0 0.0
        %4872 = vmatmul.mubr.f32.gmra.mrb[0].mxu0 %v4778
        %v4873 = vpop.f32.mrb[0].mxu0
        %v4874 = vadd.f32 %v4800, %v4873
        %v4875 = vpop.f32.mrb[0].mxu0
        %4876 = vdwg.mxu0
        %4877 = vst [vmem:[%s272] sm:$0xff] %v4869
        %4878 = vst [vmem:[%s272 + $0x8] sm:$0xff] %v4874
        %s4879 = sand.u32 %s181, 1
        %s4880 = scalar_lea.sflag [#allocation4], %s4879
        %s4881 = sand.u32 %s181, 1
        %s4882 = smul.addr %s4881, 16
        %s4883 = scalar_lea.vmem [#allocation3], %s4882
        // Predicated region
        $region49: #{flash_attention_forward.1} parent=47 // pred_check
          %p4884 = pneg %p191
        $region50: #{flash_attention_forward.1} parent=47 // pred_check_branch
          %4886 = sbr.rel (%p4884) target = $region52
        $region51: #{flash_attention_forward.1} parent=47 // pred_region
          %s4887 = smul.u32 2, %s21
          %s4889 = ssub.s32 256, 256
          %4890 = vsyncadd %s4880, %s4889
          %s4891 = smul.addr %s4887, 128
          %s4892 = scalar_lea.hbm %s7, %s4891
          %s4893 = sshll.u32 %s4883, 4
          %s4894 = int_to_ptr.vmem [resolvable:$true] %s4893
          %4899 = dma.vmem_to_hbm [thread:$0]  %s4894, 256, %s4892, %s4880, 128, 128, 8
        $region52: #{flash_attention_forward.1} parent=47 // pred_fallthru
          _
      $region48: #{flash_attention_forward.1} parent=5 // pred_fallthru
        _
      %p4900 = scmp.le.s32.totalorder 2, %s16
      // Predicated region
      $region53: #{flash_attention_forward.1} parent=5 // pred_check
        %p4901 = pneg %p4900
      $region54: #{flash_attention_forward.1} parent=5 // pred_check_branch
        %4903 = sbr.rel (%p4901) target = $region56
      $region55: #{flash_attention_forward.1} parent=5 // pred_region
        %s4904 = ssub.s32 %s16, 2
        // Predicated region
        $region57: #{flash_attention_forward.1} parent=55 // pred_check
          %p4905 = pneg %p197
        $region58: #{flash_attention_forward.1} parent=55 // pred_check_branch
          %4907 = sbr.rel (%p4905) target = $region60
        $region59: #{flash_attention_forward.1} parent=55 // pred_region
          %s4908 = sand.u32 %s182, 1
          %s4909 = scalar_lea.sflag [#allocation4], %s4908
          %s4910 = sand.u32 %s182, 1
          %s4911 = smul.addr %s4910, 16
          %s4912 = scalar_lea.vmem [#allocation3], %s4911
          %4913 = dma.done %s4909, 256
        $region60: #{flash_attention_forward.1} parent=55 // pred_fallthru
          _
      $region56: #{flash_attention_forward.1} parent=5 // pred_fallthru
        _
    $region6: #{flash_attention_forward.1} parent=1 // loop_footer
      %s20 = sadd.s32 1, %s16
    $region7: #{flash_attention_forward.1} parent=1 // loop_footer_branch
      %15 = sbr.rel target = $region3
    $region8: #{flash_attention_forward.1} parent=1 // loop_exit
      _
    %4914 = vsyncpa [#allocation4], 1
    %s4915 = scalar_lea.sflag [#allocation4], 1
    %4916 = vsyncpa %s4915, 1

</llo_original>
